<compile_context>
chip_gen: v7x
topology: tpu7x:2x2x1
jax: 0.10.0
libtpu: 0.0.40
codegen_flags: <defaults>
</compile_context>

<pallas_src>
import jax
import jax.numpy as jnp
from jax.experimental import pallas as pl
from jax.experimental.pallas import tpu as pltpu


# fc3/fc4 fused-kernel tiling (N=512 output features of fc3, K=26880 inputs).
FC_TN = 256          # 2 N-tiles -> "parallel" axis (sharded across v7x's 2 TCs)
FC_TK = 8960         # 3 K-steps; bf16 block 4.6 MB, ~9.2 MB double-buffered


# ----------------------------------------------------------------------------
# Pallas kernel 1: single-shot  O = relu(W @ P + b)      (both conv layers)
#   W: (Co, K) bf16   P: (K, M) bf16   b: (Co, 1) f32  ->  O: (Co, M) bf16
#   M = N*Ho*Wo sits on the lane axis (lane-dense stores), f32 MXU accumulate.
# ----------------------------------------------------------------------------
def _mm_bias_relu_kernel(w_ref, p_ref, b_ref, o_ref):
    out = jnp.dot(w_ref[...], p_ref[...], preferred_element_type=jnp.float32)
    o_ref[...] = jnp.maximum(out + b_ref[...], 0.0).astype(o_ref.dtype)


def mm_bias_relu(w, p, b, out_dtype=jnp.bfloat16):
    Co, K = w.shape
    K2, M = p.shape
    assert K == K2, (K, K2)
    return pl.pallas_call(
        _mm_bias_relu_kernel,
        out_shape=jax.ShapeDtypeStruct((Co, M), out_dtype),
        grid_spec=pltpu.PrefetchScalarGridSpec(
            num_scalar_prefetch=0,
            grid=(1,),
            in_specs=[
                pl.BlockSpec((Co, K), lambda i: (0, 0)),
                pl.BlockSpec((K, M), lambda i: (0, 0)),
                pl.BlockSpec((Co, 1), lambda i: (0, 0)),
            ],
            out_specs=pl.BlockSpec((Co, M), lambda i: (0, 0)),
        ),
        compiler_params=pltpu.CompilerParams(dimension_semantics=("arbitrary",)),
    )(w.astype(jnp.bfloat16), p.astype(jnp.bfloat16), b.astype(jnp.float32))


# ----------------------------------------------------------------------------
# Pallas kernel 2: fused fc3 (relu) + fc4, tiled over (N_out, K):
#   x:  (M, K)  bf16    w3: (K, 512) bf16    b3: (1, 512) f32
#   w4: (512,5) f32     b4/nt: (1, 5) f32
#   out: per-N-tile fc4 partials (nt, M, 5) f32  (fc4 bias already folded in)
# ----------------------------------------------------------------------------
def _fc_fused_kernel(x_ref, w3_ref, b3_ref, w4_ref, b4_ref, o_ref, acc_ref):
    k = pl.program_id(1)

    @pl.when(k == 0)
    def _():
        acc_ref[...] = jnp.zeros_like(acc_ref)

    # bf16 x bf16 on the MXU, f32 accumulation.  No per-step cast needed.
    acc_ref[...] += jnp.dot(
        x_ref[...], w3_ref[...], preferred_element_type=jnp.float32
    )

    @pl.when(k == pl.num_programs(1) - 1)
    def _():
        h = jnp.maximum(acc_ref[...] + b3_ref[...], 0.0)            # (M, tn) f32
        part = jnp.dot(h, w4_ref[...], preferred_element_type=jnp.float32)
        part = part + b4_ref[...]                                   # b4 / nt
        o_ref[...] = part.reshape(o_ref.shape).astype(o_ref.dtype)


def fc3_fc4_fused(x, w3_kn, b3_row, w4_nq, b4_frac, *, tn=FC_TN, tk=FC_TK):
    M, K = x.shape
    K2, N = w3_kn.shape
    N2, Q = w4_nq.shape
    assert K == K2 and N == N2, (K, K2, N, N2)
    assert N % tn == 0, (N, tn)
    assert K % tk == 0, (K, tk)          # no silent tk=K fallback (VMEM safety)
    nt, kt = N // tn, K // tk
    partials = pl.pallas_call(
        _fc_fused_kernel,
        out_shape=jax.ShapeDtypeStruct((nt, M, Q), jnp.float32),
        grid_spec=pltpu.PrefetchScalarGridSpec(
            num_scalar_prefetch=0,
            grid=(nt, kt),
            in_specs=[
                pl.BlockSpec((M, tk), lambda n, k: (0, k)),
                pl.BlockSpec((tk, tn), lambda n, k: (k, n)),
                pl.BlockSpec((1, tn), lambda n, k: (0, n)),
                pl.BlockSpec((tn, Q), lambda n, k: (n, 0)),
                pl.BlockSpec((1, Q), lambda n, k: (0, 0)),
            ],
            out_specs=pl.BlockSpec((1, M, Q), lambda n, k: (n, 0, 0)),
            scratch_shapes=[pltpu.VMEM((M, tn), jnp.float32)],
        ),
        compiler_params=pltpu.CompilerParams(
            dimension_semantics=("parallel", "arbitrary"),
            vmem_limit_bytes=24 * 1024 * 1024,
        ),
    )(x.astype(jnp.bfloat16), w3_kn, b3_row, w4_nq, b4_frac)
    # Tiny (nt, M, 5) reduce; kept in XLA so the nt axis stays "parallel"
    # (sharded across v7x's two TensorCores) with no cross-tile write race.
    return jnp.sum(partials, axis=0)     # (M, Q) — fc4 bias already included


# ----------------------------------------------------------------------------
# Transposed im2col glue (bf16):  CNHW tensor -> (9*Cin, N*Ho*Wo) patch matrix.
# Row order (kh, kw, cin) matches the prepared (Co, 9*Cin) weight matrix.
# ----------------------------------------------------------------------------
def _im2col_T(x_cnhw, ho, wo):
    C, Nb = x_cnhw.shape[0], x_cnhw.shape[1]
    cols = []
    for dy in range(3):
        for dx in range(3):
            cols.append(x_cnhw[:, :, dy:dy + ho, dx:dx + wo])
    p = jnp.stack(cols, axis=0)                      # (9, C, N, ho, wo)
    return p.reshape(9 * C, Nb * ho * wo)


# ----------------------------------------------------------------------------
# One-time parameter preparation (eager, OUTSIDE the jitted forward):
# all weight transposes / reshapes / casts happen exactly once.
# ----------------------------------------------------------------------------
def prepare_params(params):
    c1, c2 = params["conv1_w"], params["conv2_w"]
    co1, ci1 = c1.shape[0], c1.shape[1]
    co2, ci2 = c2.shape[0], c2.shape[1]
    nt = params["fc3_w"].shape[0] // FC_TN           # number of fc N-tiles
    return dict(
        # (Co, Cin, 3, 3) -> (Co, 3, 3, Cin) -> (Co, 9*Cin), bf16 for the MXU.
        conv1_wm=jnp.transpose(c1, (0, 2, 3, 1)).reshape(co1, 9 * ci1)
        .astype(jnp.bfloat16),
        conv1_b=params["conv1_b"].reshape(co1, 1).astype(jnp.float32),
        conv2_wm=jnp.transpose(c2, (0, 2, 3, 1)).reshape(co2, 9 * ci2)
        .astype(jnp.bfloat16),
        conv2_b=params["conv2_b"].reshape(co2, 1).astype(jnp.float32),
        # fc3: (512, K) -> (K, 512) bf16, prepared once (no in-jit transpose).
        fc3_wm=jnp.transpose(params["fc3_w"], (1, 0)).astype(jnp.bfloat16),
        fc3_b=params["fc3_b"].reshape(1, -1).astype(jnp.float32),
        # fc4: (5, 512) -> (512, 5) f32; bias pre-divided by nt so each N-tile
        # partial carries an equal share (exact: nt is a power of two).
        fc4_wm=jnp.transpose(params["fc4_w"], (1, 0)).astype(jnp.float32),
        fc4_b_frac=(params["fc4_b"] / nt).reshape(1, -1).astype(jnp.float32),
    )


# ----------------------------------------------------------------------------
# Full DQN forward (jitted).  Input is PyTorch-style NCHW.
# ----------------------------------------------------------------------------
def dqn_forward(x_nchw, prep):
    N, C, H, W = x_nchw.shape
    x_cnhw = jnp.transpose(x_nchw, (1, 0, 2, 3)).astype(jnp.bfloat16)

    h1, w1 = H - 2, W - 2
    p1 = _im2col_T(x_cnhw, h1, w1)                             # (9C, N*h1*w1)
    y1 = mm_bias_relu(prep["conv1_wm"], p1, prep["conv1_b"])   # (32, M1) bf16
    y1 = y1.reshape(32, N, h1, w1)

    h2, w2 = h1 - 2, w1 - 2
    p2 = _im2col_T(y1, h2, w2)                                 # (288, N*h2*w2)
    y2 = mm_bias_relu(prep["conv2_wm"], p2, prep["conv2_b"])   # (64, M2) bf16
    y2 = y2.reshape(64, N, h2, w2)

    # PyTorch flattens NCHW -> (N, C*H*W); reproduce that exact order (bf16).
    flat = jnp.transpose(y2, (1, 0, 2, 3)).reshape(N, -1)      # (N, 26880)

    # Fused fc3(+relu)+fc4 with fc4 bias folded in-kernel.
    return fc3_fc4_fused(flat, prep["fc3_wm"], prep["fc3_b"],
                         prep["fc4_wm"], prep["fc4_b_frac"],
                         tn=FC_TN, tk=FC_TK)                   # (N, 5) f32


# ----------------------------------------------------------------------------
# Pure-JAX reference (numerical sanity check).
# ----------------------------------------------------------------------------
def dqn_reference(x_nchw, params):
    def conv(x, w, b):
        dn = jax.lax.conv_dimension_numbers(
            x.shape, w.shape, ("NCHW", "OIHW", "NCHW")
        )
        y = jax.lax.conv_general_dilated(
            x, w, (1, 1), "VALID", dimension_numbers=dn,
            precision=jax.lax.Precision.HIGHEST,
        )
        return jax.nn.relu(y + b[None, :, None, None])

    x = conv(x_nchw, params["conv1_w"], params["conv1_b"])
    x = conv(x, params["conv2_w"], params["conv2_b"])
    x = x.reshape(x.shape[0], -1)
    x = jax.nn.relu(
        jnp.dot(x, params["fc3_w"].T, precision=jax.lax.Precision.HIGHEST)
        + params["fc3_b"]
    )
    x = (
        jnp.dot(x, params["fc4_w"].T, precision=jax.lax.Precision.HIGHEST)
        + params["fc4_b"]
    )
    return x


# ----------------------------------------------------------------------------
# Deterministic synthetic parameters (PyTorch-style shapes & fan-in init).
# ----------------------------------------------------------------------------
def init_params(key):
    ks = jax.random.split(key, 8)

    def u(k, shape, fan_in):
        bound = 1.0 / jnp.sqrt(jnp.float32(fan_in))
        return jax.random.uniform(k, shape, jnp.float32, -bound, bound)

    return dict(
        conv1_w=u(ks[0], (32, 7, 3, 3), 7 * 9),
        conv1_b=u(ks[1], (32,), 7 * 9),
        conv2_w=u(ks[2], (64, 32, 3, 3), 32 * 9),
        conv2_b=u(ks[3], (64,), 32 * 9),
        fc3_w=u(ks[4], (512, 30 * 14 * 64), 30 * 14 * 64),
        fc3_b=u(ks[5], (512,), 30 * 14 * 64),
        fc4_w=u(ks[6], (5, 512), 512),
        fc4_b=u(ks[7], (5,), 512),
    )


if __name__ == "__main__":
    key = jax.random.PRNGKey(0)
    k_param, k_x = jax.random.split(key)
    params = init_params(k_param)
    prep = prepare_params(params)          # one-time weight prep, outside jit

    # Input implied by the module: fc3 expects 30*14*64 features, i.e. the
    # input to conv1 must be (N, 7, 34, 18) in NCHW.  batch = 2.
    x = jax.random.normal(k_x, (2, 7, 34, 18), jnp.float32)

    out = jax.block_until_ready(jax.jit(dqn_forward)(x, prep))
    assert out.shape == (2, 5), out.shape

    ref = jax.block_until_ready(jax.jit(dqn_reference)(x, params))
    max_err = float(jnp.max(jnp.abs(out - ref)))
    assert max_err < 1e-2, f"mismatch vs reference: {max_err}"

    print("KERNEL_OK")
</pallas_src>

<mosaic_0001>
module attributes {stable_mosaic.version = 11 : i64} {
  func.func @_mm_bias_relu_kernel(%arg0: i32, %arg1: memref<32x63xbf16, #tpu.memory_space<vmem>>, %arg2: memref<63x1024xbf16, #tpu.memory_space<vmem>>, %arg3: memref<32x1xf32, #tpu.memory_space<vmem>>, %arg4: memref<32x1024xbf16, #tpu.memory_space<vmem>>) attributes {dimension_semantics = [#tpu.dimension_semantics<arbitrary>], iteration_bounds = array<i64: 1>, scalar_prefetch = 0 : i64, scratch_operands = 0 : i64, tpu.core_type = #tpu.core_type<tc>, window_params = [{pipeline_mode = #tpu.pipeline_mode<synchronous>, transform_indices = @transform_0, window_bounds = array<i64: 32, 63>}, {pipeline_mode = #tpu.pipeline_mode<synchronous>, transform_indices = @transform_1, window_bounds = array<i64: 63, 1024>}, {pipeline_mode = #tpu.pipeline_mode<synchronous>, transform_indices = @transform_2, window_bounds = array<i64: 32, 1>}, {pipeline_mode = #tpu.pipeline_mode<synchronous>, transform_indices = @transform_3, window_bounds = array<i64: 32, 1024>}]} {
    %c0 = arith.constant 0 : index
    %c0_0 = arith.constant 0 : index
    %0 = vector.load %arg1[%c0, %c0_0] : memref<32x63xbf16, #tpu.memory_space<vmem>>, vector<32x63xbf16>
    %c0_1 = arith.constant 0 : index
    %c0_2 = arith.constant 0 : index
    %1 = vector.load %arg2[%c0_1, %c0_2] : memref<63x1024xbf16, #tpu.memory_space<vmem>>, vector<63x1024xbf16>
    %cst = arith.constant dense<0.000000e+00> : vector<32x1024xf32>
    %2 = tpu.matmul %0, %1, %cst {dimension_numbers = #tpu.dot_dimension_numbers<[1], [0], [0], [1], [0, 0, 1, 1], [], []>} : vector<32x63xbf16>, vector<63x1024xbf16>, vector<32x1024xf32> -> vector<32x1024xf32>
    %c0_3 = arith.constant 0 : index
    %c0_4 = arith.constant 0 : index
    %3 = vector.load %arg3[%c0_3, %c0_4] : memref<32x1xf32, #tpu.memory_space<vmem>>, vector<32x1xf32>
    %4 = vector.broadcast %3 : vector<32x1xf32> to vector<32x1024xf32>
    %5 = arith.addf %2, %4 : vector<32x1024xf32>
    %cst_5 = arith.constant 0.000000e+00 : f32
    %6 = vector.broadcast %cst_5 : f32 to vector<32x1024xf32>
    %7 = arith.maximumf %5, %6 : vector<32x1024xf32>
    %8 = arith.truncf %7 : vector<32x1024xf32> to vector<32x1024xbf16>
    %c0_6 = arith.constant 0 : index
    %c0_7 = arith.constant 0 : index
    %9 = vector.load %arg4[%c0_6, %c0_7] : memref<32x1024xbf16, #tpu.memory_space<vmem>>, vector<32x1024xbf16>
    tpu.vector_store %arg4[%c0_6, %c0_7], %8 {strides = array<i32>} : memref<32x1024xbf16, #tpu.memory_space<vmem>>, vector<32x1024xbf16>,
    return
  }
  func.func @transform_0(%arg0: i32) -> (i32, i32) {
    %c0_i32 = arith.constant 0 : i32
    %c0_i32_0 = arith.constant 0 : i32
    %c0_i32_1 = arith.constant 0 : i32
    return %c0_i32, %c0_i32_0 : i32, i32
  }
  func.func @transform_1(%arg0: i32) -> (i32, i32) {
    %c0_i32 = arith.constant 0 : i32
    %c0_i32_0 = arith.constant 0 : i32
    %c0_i32_1 = arith.constant 0 : i32
    return %c0_i32, %c0_i32_0 : i32, i32
  }
  func.func @transform_2(%arg0: i32) -> (i32, i32) {
    %c0_i32 = arith.constant 0 : i32
    %c0_i32_0 = arith.constant 0 : i32
    %c0_i32_1 = arith.constant 0 : i32
    return %c0_i32, %c0_i32_0 : i32, i32
  }
  func.func @transform_3(%arg0: i32) -> (i32, i32) {
    %c0_i32 = arith.constant 0 : i32
    %c0_i32_0 = arith.constant 0 : i32
    %c0_i32_1 = arith.constant 0 : i32
    return %c0_i32, %c0_i32_0 : i32, i32
  }
}

module attributes {stable_mosaic.version = 11 : i64} {
  func.func @_mm_bias_relu_kernel(%arg0: i32, %arg1: memref<64x288xbf16, #tpu.memory_space<vmem>>, %arg2: memref<288x840xbf16, #tpu.memory_space<vmem>>, %arg3: memref<64x1xf32, #tpu.memory_space<vmem>>, %arg4: memref<64x840xbf16, #tpu.memory_space<vmem>>) attributes {dimension_semantics = [#tpu.dimension_semantics<arbitrary>], iteration_bounds = array<i64: 1>, scalar_prefetch = 0 : i64, scratch_operands = 0 : i64, tpu.core_type = #tpu.core_type<tc>, window_params = [{pipeline_mode = #tpu.pipeline_mode<synchronous>, transform_indices = @transform_0, window_bounds = array<i64: 64, 288>}, {pipeline_mode = #tpu.pipeline_mode<synchronous>, transform_indices = @transform_1, window_bounds = array<i64: 288, 840>}, {pipeline_mode = #tpu.pipeline_mode<synchronous>, transform_indices = @transform_2, window_bounds = array<i64: 64, 1>}, {pipeline_mode = #tpu.pipeline_mode<synchronous>, transform_indices = @transform_3, window_bounds = array<i64: 64, 840>}]} {
    %c0 = arith.constant 0 : index
    %c0_0 = arith.constant 0 : index
    %0 = vector.load %arg1[%c0, %c0_0] : memref<64x288xbf16, #tpu.memory_space<vmem>>, vector<64x288xbf16>
    %c0_1 = arith.constant 0 : index
    %c0_2 = arith.constant 0 : index
    %1 = vector.load %arg2[%c0_1, %c0_2] : memref<288x840xbf16, #tpu.memory_space<vmem>>, vector<288x840xbf16>
    %cst = arith.constant dense<0.000000e+00> : vector<64x840xf32>
    %2 = tpu.matmul %0, %1, %cst {dimension_numbers = #tpu.dot_dimension_numbers<[1], [0], [0], [1], [0, 0, 1, 1], [], []>} : vector<64x288xbf16>, vector<288x840xbf16>, vector<64x840xf32> -> vector<64x840xf32>
    %c0_3 = arith.constant 0 : index
    %c0_4 = arith.constant 0 : index
    %3 = vector.load %arg3[%c0_3, %c0_4] : memref<64x1xf32, #tpu.memory_space<vmem>>, vector<64x1xf32>
    %4 = vector.broadcast %3 : vector<64x1xf32> to vector<64x840xf32>
    %5 = arith.addf %2, %4 : vector<64x840xf32>
    %cst_5 = arith.constant 0.000000e+00 : f32
    %6 = vector.broadcast %cst_5 : f32 to vector<64x840xf32>
    %7 = arith.maximumf %5, %6 : vector<64x840xf32>
    %8 = arith.truncf %7 : vector<64x840xf32> to vector<64x840xbf16>
    %c0_6 = arith.constant 0 : index
    %c0_7 = arith.constant 0 : index
    %9 = vector.load %arg4[%c0_6, %c0_7] : memref<64x840xbf16, #tpu.memory_space<vmem>>, vector<64x840xbf16>
    tpu.vector_store %arg4[%c0_6, %c0_7], %8 {strides = array<i32>} : memref<64x840xbf16, #tpu.memory_space<vmem>>, vector<64x840xbf16>,
    return
  }
  func.func @transform_0(%arg0: i32) -> (i32, i32) {
    %c0_i32 = arith.constant 0 : i32
    %c0_i32_0 = arith.constant 0 : i32
    %c0_i32_1 = arith.constant 0 : i32
    return %c0_i32, %c0_i32_0 : i32, i32
  }
  func.func @transform_1(%arg0: i32) -> (i32, i32) {
    %c0_i32 = arith.constant 0 : i32
    %c0_i32_0 = arith.constant 0 : i32
    %c0_i32_1 = arith.constant 0 : i32
    return %c0_i32, %c0_i32_0 : i32, i32
  }
  func.func @transform_2(%arg0: i32) -> (i32, i32) {
    %c0_i32 = arith.constant 0 : i32
    %c0_i32_0 = arith.constant 0 : i32
    %c0_i32_1 = arith.constant 0 : i32
    return %c0_i32, %c0_i32_0 : i32, i32
  }
  func.func @transform_3(%arg0: i32) -> (i32, i32) {
    %c0_i32 = arith.constant 0 : i32
    %c0_i32_0 = arith.constant 0 : i32
    %c0_i32_1 = arith.constant 0 : i32
    return %c0_i32, %c0_i32_0 : i32, i32
  }
}

module attributes {stable_mosaic.version = 11 : i64} {
  func.func @_fc_fused_kernel(%arg0: i32, %arg1: i32, %arg2: memref<2x8960xbf16, #tpu.memory_space<vmem>>, %arg3: memref<8960x256xbf16, #tpu.memory_space<vmem>>, %arg4: memref<1x256xf32, #tpu.memory_space<vmem>>, %arg5: memref<256x5xf32, #tpu.memory_space<vmem>>, %arg6: memref<1x5xf32, #tpu.memory_space<vmem>>, %arg7: memref<1x2x5xf32, #tpu.memory_space<vmem>>, %arg8: memref<2x256xf32, #tpu.memory_space<vmem>>) attributes {dimension_semantics = [#tpu.dimension_semantics<parallel>, #tpu.dimension_semantics<arbitrary>], iteration_bounds = array<i64: 2, 3>, scalar_prefetch = 0 : i64, scratch_operands = 1 : i64, tpu.core_type = #tpu.core_type<tc>, window_params = [{transform_indices = @transform_0, window_bounds = array<i64: 2, 8960>}, {transform_indices = @transform_1, window_bounds = array<i64: 8960, 256>}, {transform_indices = @transform_2, window_bounds = array<i64: 1, 256>}, {transform_indices = @transform_3, window_bounds = array<i64: 256, 5>}, {pipeline_mode = #tpu.pipeline_mode<synchronous>, transform_indices = @transform_4, window_bounds = array<i64: 1, 5>}, {transform_indices = @transform_5, window_bounds = array<i64: 1, 2, 5>}]} {
    %c0_i32 = arith.constant 0 : i32
    %0 = arith.cmpi eq, %arg1, %c0_i32 : i32
    %1 = arith.extui %0 : i1 to i32
    %c0_i32_0 = arith.constant 0 : i32
    %2 = arith.cmpi ne, %1, %c0_i32_0 : i32
    scf.if %2 {
      %cst_9 = arith.constant 0.000000e+00 : f32
      %12 = vector.broadcast %cst_9 : f32 to vector<2x256xf32>
      %c0_10 = arith.constant 0 : index
      %c0_11 = arith.constant 0 : index
      %13 = vector.load %arg8[%c0_10, %c0_11] : memref<2x256xf32, #tpu.memory_space<vmem>>, vector<2x256xf32>
      tpu.vector_store %arg8[%c0_10, %c0_11], %12 {strides = array<i32>} : memref<2x256xf32, #tpu.memory_space<vmem>>, vector<2x256xf32>,
    } else {
    }
    %c0 = arith.constant 0 : index
    %c0_1 = arith.constant 0 : index
    %3 = vector.load %arg8[%c0, %c0_1] : memref<2x256xf32, #tpu.memory_space<vmem>>, vector<2x256xf32>
    %c0_2 = arith.constant 0 : index
    %c0_3 = arith.constant 0 : index
    %4 = vector.load %arg2[%c0_2, %c0_3] : memref<2x8960xbf16, #tpu.memory_space<vmem>>, vector<2x8960xbf16>
    %c0_4 = arith.constant 0 : index
    %c0_5 = arith.constant 0 : index
    %5 = vector.load %arg3[%c0_4, %c0_5] : memref<8960x256xbf16, #tpu.memory_space<vmem>>, vector<8960x256xbf16>
    %cst = arith.constant dense<0.000000e+00> : vector<2x256xf32>
    %6 = tpu.matmul %4, %5, %cst {dimension_numbers = #tpu.dot_dimension_numbers<[1], [0], [0], [1], [0, 0, 1, 1], [], []>} : vector<2x8960xbf16>, vector<8960x256xbf16>, vector<2x256xf32> -> vector<2x256xf32>
    %7 = arith.addf %3, %6 : vector<2x256xf32>
    %c0_6 = arith.constant 0 : index
    %c0_7 = arith.constant 0 : index
    %8 = vector.load %arg8[%c0_6, %c0_7] : memref<2x256xf32, #tpu.memory_space<vmem>>, vector<2x256xf32>
    tpu.vector_store %arg8[%c0_6, %c0_7], %7 {strides = array<i32>} : memref<2x256xf32, #tpu.memory_space<vmem>>, vector<2x256xf32>,
    %c2_i32 = arith.constant 2 : i32
    %9 = arith.cmpi eq, %arg1, %c2_i32 : i32
    %10 = arith.extui %9 : i1 to i32
    %c0_i32_8 = arith.constant 0 : i32
    %11 = arith.cmpi ne, %10, %c0_i32_8 : i32
    scf.if %11 {
      %c0_9 = arith.constant 0 : index
      %c0_10 = arith.constant 0 : index
      %12 = vector.load %arg8[%c0_9, %c0_10] : memref<2x256xf32, #tpu.memory_space<vmem>>, vector<2x256xf32>
      %c0_11 = arith.constant 0 : index
      %c0_12 = arith.constant 0 : index
      %13 = vector.load %arg4[%c0_11, %c0_12] : memref<1x256xf32, #tpu.memory_space<vmem>>, vector<1x256xf32>
      %14 = vector.broadcast %13 : vector<1x256xf32> to vector<2x256xf32>
      %15 = arith.addf %12, %14 : vector<2x256xf32>
      %cst_13 = arith.constant 0.000000e+00 : f32
      %16 = vector.broadcast %cst_13 : f32 to vector<2x256xf32>
      %17 = arith.maximumf %15, %16 : vector<2x256xf32>
      %c0_14 = arith.constant 0 : index
      %c0_15 = arith.constant 0 : index
      %18 = vector.load %arg5[%c0_14, %c0_15] : memref<256x5xf32, #tpu.memory_space<vmem>>, vector<256x5xf32>
      %cst_16 = arith.constant dense<0.000000e+00> : vector<2x5xf32>
      %19 = tpu.matmul %17, %18, %cst_16 {dimension_numbers = #tpu.dot_dimension_numbers<[1], [0], [0], [1], [0, 0, 1, 1], [], []>} : vector<2x256xf32>, vector<256x5xf32>, vector<2x5xf32> -> vector<2x5xf32>
      %c0_17 = arith.constant 0 : index
      %c0_18 = arith.constant 0 : index
      %20 = vector.load %arg6[%c0_17, %c0_18] : memref<1x5xf32, #tpu.memory_space<vmem>>, vector<1x5xf32>
      %21 = vector.broadcast %20 : vector<1x5xf32> to vector<2x5xf32>
      %22 = arith.addf %19, %21 : vector<2x5xf32>
      %23 = vector.shape_cast %22 : vector<2x5xf32> to vector<1x2x5xf32>
      %c0_19 = arith.constant 0 : index
      %c0_20 = arith.constant 0 : index
      %c0_21 = arith.constant 0 : index
      %24 = vector.load %arg7[%c0_19, %c0_20, %c0_21] : memref<1x2x5xf32, #tpu.memory_space<vmem>>, vector<1x2x5xf32>
      tpu.vector_store %arg7[%c0_19, %c0_20, %c0_21], %23 {strides = array<i32>} : memref<1x2x5xf32, #tpu.memory_space<vmem>>, vector<1x2x5xf32>,
    } else {
    }
    return
  }
  func.func @transform_0(%arg0: i32, %arg1: i32) -> (i32, i32) {
    %c0_i32 = arith.constant 0 : i32
    %c0_i32_0 = arith.constant 0 : i32
    return %c0_i32, %arg1 : i32, i32
  }
  func.func @transform_1(%arg0: i32, %arg1: i32) -> (i32, i32) {
    %c0_i32 = arith.constant 0 : i32
    return %arg1, %arg0 : i32, i32
  }
  func.func @transform_2(%arg0: i32, %arg1: i32) -> (i32, i32) {
    %c0_i32 = arith.constant 0 : i32
    %c0_i32_0 = arith.constant 0 : i32
    return %c0_i32, %arg0 : i32, i32
  }
  func.func @transform_3(%arg0: i32, %arg1: i32) -> (i32, i32) {
    %c0_i32 = arith.constant 0 : i32
    %c0_i32_0 = arith.constant 0 : i32
    return %arg0, %c0_i32 : i32, i32
  }
  func.func @transform_4(%arg0: i32, %arg1: i32) -> (i32, i32) {
    %c0_i32 = arith.constant 0 : i32
    %c0_i32_0 = arith.constant 0 : i32
    %c0_i32_1 = arith.constant 0 : i32
    return %c0_i32, %c0_i32_0 : i32, i32
  }
  func.func @transform_5(%arg0: i32, %arg1: i32) -> (i32, i32, i32) {
    %c0_i32 = arith.constant 0 : i32
    %c0_i32_0 = arith.constant 0 : i32
    %c0_i32_1 = arith.constant 0 : i32
    return %arg0, %c0_i32, %c0_i32_0 : i32, i32, i32
  }
}

</mosaic_0001>

<llo_original>
// kernel: dqn_forward.3
$region0: #{dqn_forward.3}
  #allocation0 [shape = 'u32[]', space=smem, size = 0x4, offset = 0x4, fixed_abs, tag = 'smem constant byte address 0x4 - core index']
  #allocation1 [shape = 'u32[144,128]{1,0:T(1,128)}', space=vmem, size = 0x12000, scoped, tag = 'internal scratch']
  %s0 = inlined_call_operand.vmem [shape: bf16[32,63], index: 0, kind: input, shape index: {}]
  %s1 = inlined_call_operand.vmem [shape: bf16[63,1024], index: 1, kind: input, shape index: {}]
  %s2 = inlined_call_operand.vmem [shape: f32[32,1], index: 2, kind: input, shape index: {}]
  %s3 = inlined_call_operand.vmem [shape: bf16[32,1024], index: 3, kind: output, shape index: {}]
  %s4 = sld [smem:[#allocation0]]
  $region22: #{dqn_forward.3} parent=0
    _
  %s6 = ssub.s32 1, %s4
  %s7 = scalar_select 0, %s6, %s4
  // Predicated region
  $region2: #{dqn_forward.3} parent=0 // pred_check
    _
  $region3: #{dqn_forward.3} parent=0 // pred_check_branch
    %9 = sbr.rel (0) target = $region5
  $region4: #{dqn_forward.3} parent=0 // pred_region
    _
  $region5: #{dqn_forward.3} parent=0 // pred_fallthru
    _
  // Predicated region
  $region6: #{dqn_forward.3} parent=0 // pred_check
    _
  $region7: #{dqn_forward.3} parent=0 // pred_check_branch
    %11 = sbr.rel (0) target = $region9
  $region8: #{dqn_forward.3} parent=0 // pred_region
    _
  $region9: #{dqn_forward.3} parent=0 // pred_fallthru
    _
  // Predicated region
  $region10: #{dqn_forward.3} parent=0 // pred_check
    _
  $region11: #{dqn_forward.3} parent=0 // pred_check_branch
    %13 = sbr.rel (0) target = $region13
  $region12: #{dqn_forward.3} parent=0 // pred_region
    _
  $region13: #{dqn_forward.3} parent=0 // pred_fallthru
    _
  %v15 = vld [vmem:[%s0] sm:$0xf]
  %v16 = vld [vmem:[%s0 + $0x4] sm:$0xf]
  %v17 = vld [vmem:[%s0 + $0x8] sm:$0xf]
  %v18 = vld [vmem:[%s0 + $0xc] sm:$0xf]
  %v19 = vld [vmem:[%s1] sm:$0xff]
  %v20 = vld [vmem:[%s1 + $0x8] sm:$0xff]
  %v21 = vld [vmem:[%s1 + $0x10] sm:$0xff]
  %v22 = vld [vmem:[%s1 + $0x18] sm:$0xff]
  %v23 = vld [vmem:[%s1 + $0x20] sm:$0xff]
  %v24 = vld [vmem:[%s1 + $0x28] sm:$0xff]
  %v25 = vld [vmem:[%s1 + $0x30] sm:$0xff]
  %v26 = vld [vmem:[%s1 + $0x38] sm:$0xff]
  %v27 = vld [vmem:[%s1 + $0x40] sm:$0xff]
  %v28 = vld [vmem:[%s1 + $0x48] sm:$0xff]
  %v29 = vld [vmem:[%s1 + $0x50] sm:$0xff]
  %v30 = vld [vmem:[%s1 + $0x58] sm:$0xff]
  %v31 = vld [vmem:[%s1 + $0x60] sm:$0xff]
  %v32 = vld [vmem:[%s1 + $0x68] sm:$0xff]
  %v33 = vld [vmem:[%s1 + $0x70] sm:$0xff]
  %v34 = vld [vmem:[%s1 + $0x78] sm:$0xff]
  %v35 = vld [vmem:[%s1 + $0x80] sm:$0xff]
  %v36 = vld [vmem:[%s1 + $0x88] sm:$0xff]
  %v37 = vld [vmem:[%s1 + $0x90] sm:$0xff]
  %v38 = vld [vmem:[%s1 + $0x98] sm:$0xff]
  %v39 = vld [vmem:[%s1 + $0xa0] sm:$0xff]
  %v40 = vld [vmem:[%s1 + $0xa8] sm:$0xff]
  %v41 = vld [vmem:[%s1 + $0xb0] sm:$0xff]
  %v42 = vld [vmem:[%s1 + $0xb8] sm:$0xff]
  %v43 = vld [vmem:[%s1 + $0xc0] sm:$0xff]
  %v44 = vld [vmem:[%s1 + $0xc8] sm:$0xff]
  %v45 = vld [vmem:[%s1 + $0xd0] sm:$0xff]
  %v46 = vld [vmem:[%s1 + $0xd8] sm:$0xff]
  %v47 = vld [vmem:[%s1 + $0xe0] sm:$0xff]
  %v48 = vld [vmem:[%s1 + $0xe8] sm:$0xff]
  %v49 = vld [vmem:[%s1 + $0xf0] sm:$0xff]
  %v50 = vld [vmem:[%s1 + $0xf8] sm:$0xff]
  %v51 = vld [vmem:[%s2] sm:$0xff]
  %v52 = vld [vmem:[%s2 + $0x8] sm:$0xff]
  %v53 = vld [vmem:[%s2 + $0x10] sm:$0xff]
  %v54 = vld [vmem:[%s2 + $0x18] sm:$0xff]
  %56 = vset.pattern.permute.xlu0 0
  %57 = vperm.xlu0 %56, %v51
  %v58 = vpop.permute.xlu0 %57
  %61 = vset.pattern.permute.xlu0 0
  %62 = vperm.xlu0 %61, %v52
  %v63 = vpop.permute.xlu0 %62
  %66 = vset.pattern.permute.xlu0 0
  %67 = vperm.xlu0 %66, %v53
  %v68 = vpop.permute.xlu0 %67
  %71 = vset.pattern.permute.xlu0 0
  %72 = vperm.xlu0 %71, %v54
  %v73 = vpop.permute.xlu0 %72
  %v79 = vunpack.c.l.b16 %v15
  %v80 = vunpack.c.l.b16 %v16
  %v81 = vunpack.c.l.b16 %v17
  %v82 = vunpack.c.l.b16 %v18
  %v83 = vpack.c.b16 %v80, %v79
  %v84 = vpack.c.b16 %v82, %v81
  %v117 = vunpack.c.l.b16 %v19
  %v118 = vunpack.c.h.b16 %v19
  %v119 = vunpack.c.l.b16 %v20
  %v120 = vunpack.c.h.b16 %v20
  %v121 = vunpack.c.l.b16 %v21
  %v122 = vunpack.c.h.b16 %v21
  %v123 = vunpack.c.l.b16 %v22
  %v124 = vunpack.c.h.b16 %v22
  %v125 = vunpack.c.l.b16 %v23
  %v126 = vunpack.c.h.b16 %v23
  %v127 = vunpack.c.l.b16 %v24
  %v128 = vunpack.c.h.b16 %v24
  %v129 = vunpack.c.l.b16 %v25
  %v130 = vunpack.c.h.b16 %v25
  %v131 = vunpack.c.l.b16 %v26
  %v132 = vunpack.c.h.b16 %v26
  %v133 = vunpack.c.l.b16 %v27
  %v134 = vunpack.c.h.b16 %v27
  %v135 = vunpack.c.l.b16 %v28
  %v136 = vunpack.c.h.b16 %v28
  %v137 = vunpack.c.l.b16 %v29
  %v138 = vunpack.c.h.b16 %v29
  %v139 = vunpack.c.l.b16 %v30
  %v140 = vunpack.c.h.b16 %v30
  %v141 = vunpack.c.l.b16 %v31
  %v142 = vunpack.c.h.b16 %v31
  %v143 = vunpack.c.l.b16 %v32
  %v144 = vunpack.c.h.b16 %v32
  %v145 = vunpack.c.l.b16 %v33
  %v146 = vunpack.c.h.b16 %v33
  %v147 = vunpack.c.l.b16 %v34
  %v148 = vunpack.c.h.b16 %v34
  %v149 = vunpack.c.l.b16 %v35
  %v150 = vunpack.c.h.b16 %v35
  %v151 = vunpack.c.l.b16 %v36
  %v152 = vunpack.c.h.b16 %v36
  %v153 = vunpack.c.l.b16 %v37
  %v154 = vunpack.c.h.b16 %v37
  %v155 = vunpack.c.l.b16 %v38
  %v156 = vunpack.c.h.b16 %v38
  %v157 = vunpack.c.l.b16 %v39
  %v158 = vunpack.c.h.b16 %v39
  %v159 = vunpack.c.l.b16 %v40
  %v160 = vunpack.c.h.b16 %v40
  %v161 = vunpack.c.l.b16 %v41
  %v162 = vunpack.c.h.b16 %v41
  %v163 = vunpack.c.l.b16 %v42
  %v164 = vunpack.c.h.b16 %v42
  %v165 = vunpack.c.l.b16 %v43
  %v166 = vunpack.c.h.b16 %v43
  %v167 = vunpack.c.l.b16 %v44
  %v168 = vunpack.c.h.b16 %v44
  %v169 = vunpack.c.l.b16 %v45
  %v170 = vunpack.c.h.b16 %v45
  %v171 = vunpack.c.l.b16 %v46
  %v172 = vunpack.c.h.b16 %v46
  %v173 = vunpack.c.l.b16 %v47
  %v174 = vunpack.c.h.b16 %v47
  %v175 = vunpack.c.l.b16 %v48
  %v176 = vunpack.c.h.b16 %v48
  %v177 = vunpack.c.l.b16 %v49
  %v178 = vunpack.c.h.b16 %v49
  %v179 = vunpack.c.l.b16 %v50
  %v180 = vunpack.c.h.b16 %v50
  %v181 = vpack.c.b16 %v125, %v117
  %v182 = vpack.c.b16 %v126, %v118
  %v183 = vpack.c.b16 %v127, %v119
  %v184 = vpack.c.b16 %v128, %v120
  %v185 = vpack.c.b16 %v129, %v121
  %v186 = vpack.c.b16 %v130, %v122
  %v187 = vpack.c.b16 %v131, %v123
  %v188 = vpack.c.b16 %v132, %v124
  %v189 = vpack.c.b16 %v141, %v133
  %v190 = vpack.c.b16 %v142, %v134
  %v191 = vpack.c.b16 %v143, %v135
  %v192 = vpack.c.b16 %v144, %v136
  %v193 = vpack.c.b16 %v145, %v137
  %v194 = vpack.c.b16 %v146, %v138
  %v195 = vpack.c.b16 %v147, %v139
  %v196 = vpack.c.b16 %v148, %v140
  %v197 = vpack.c.b16 %v157, %v149
  %v198 = vpack.c.b16 %v158, %v150
  %v199 = vpack.c.b16 %v159, %v151
  %v200 = vpack.c.b16 %v160, %v152
  %v201 = vpack.c.b16 %v161, %v153
  %v202 = vpack.c.b16 %v162, %v154
  %v203 = vpack.c.b16 %v163, %v155
  %v204 = vpack.c.b16 %v164, %v156
  %v205 = vpack.c.b16 %v173, %v165
  %v206 = vpack.c.b16 %v174, %v166
  %v207 = vpack.c.b16 %v175, %v167
  %v208 = vpack.c.b16 %v176, %v168
  %v209 = vpack.c.b16 %v177, %v169
  %v210 = vpack.c.b16 %v178, %v170
  %v211 = vpack.c.b16 %v179, %v171
  %v212 = vpack.c.b16 %v180, %v172
  %vm237 = vcmask 515072
  %v239 = vsel %vm237, %v83, 0
  %v242 = vsel %vm237, %v84, 0
  %vm244 = vcmask 1046528
  %vm245 = vcmask 1047552
  %v246 = vsel %vm244, 4294967295, 65535
  %v247 = vsel %vm245, %v246, 0
  %v249 = vand.u32 %v205, %v247
  %v252 = vand.u32 %v206, %v247
  %v255 = vand.u32 %v207, %v247
  %v258 = vand.u32 %v208, %v247
  %v261 = vand.u32 %v209, %v247
  %v264 = vand.u32 %v210, %v247
  %v267 = vand.u32 %v211, %v247
  %v270 = vand.u32 %v212, %v247
  %272 = vmatprep.subr.bf16.mxu0 %v182
  %273 = vmatpush1.bf16.msra.mxu0 %v181
  %274 = vmatprep.subr.bf16.mxu0 %v190
  %275 = vmatpush1.bf16.msra.mxu0 %v189
  %276 = vmatprep.subr.bf16.mxu0 %v198
  %277 = vmatpush1.bf16.msra.mxu0 %v197
  %278 = vmatprep.subr.bf16.mxu0 %v252
  %279 = vmatpush1.bf16.msra.mxu0 %v249
  %280 = vmatprep.subr.bf16.mxu0 0
  %281 = vmatpush1.bf16.msra.mxu0 0
  %282 = vmatprep.subr.bf16.mxu0 0
  %283 = vmatpush1.bf16.msra.mxu0 0
  %284 = vmatprep.subr.bf16.mxu0 0
  %285 = vmatpush1.bf16.msra.mxu0 0
  %286 = vmatprep.subr.bf16.mxu0 0
  %287 = vmatpush1.bf16.msra.mxu0 0
  %288 = vmatprep.subr.bf16.mxu0 0
  %289 = vmatpush1.bf16.msra.mxu0 0
  %290 = vmatprep.subr.bf16.mxu0 0
  %291 = vmatpush1.bf16.msra.mxu0 0
  %292 = vmatprep.subr.bf16.mxu0 0
  %293 = vmatpush1.bf16.msra.mxu0 0
  %294 = vmatprep.subr.bf16.mxu0 0
  %295 = vmatpush1.bf16.msra.mxu0 0
  %296 = vmatprep.subr.bf16.mxu0 0
  %297 = vmatpush1.bf16.msra.mxu0 0
  %298 = vmatprep.subr.bf16.mxu0 0
  %299 = vmatpush1.bf16.msra.mxu0 0
  %300 = vmatprep.subr.bf16.mxu0 0
  %301 = vmatpush1.bf16.msra.mxu0 0
  %302 = vmatprep.subr.bf16.mxu0 0
  %303 = vmatpush1.bf16.msra.mxu0 0
  %304 = vmatprep.mubr.bf16.mxu0 0
  %305 = vmatmul.mubr.bf16.gmra.mrb[0].mxu0 %v239
  %v306 = vpop.f32.mrb[0].mxu0
  %v307 = vadd.f32 %v58, %v306
  %v308 = vpop.f32.mrb[0].mxu0
  %v309 = vadd.f32 %v58, %v308
  %v310 = vpop.f32.mrb[0].mxu0
  %v311 = vadd.f32 %v63, %v310
  %v312 = vpop.f32.mrb[0].mxu0
  %v313 = vadd.f32 %v63, %v312
  %314 = vmatprep.mubr.bf16.mxu0 0
  %315 = vmatmul.mubr.bf16.gmra.mrb[0].mxu0 %v242
  %v316 = vpop.f32.mrb[0].mxu0
  %v317 = vadd.f32 %v68, %v316
  %v318 = vpop.f32.mrb[0].mxu0
  %v319 = vadd.f32 %v68, %v318
  %v320 = vpop.f32.mrb[0].mxu0
  %v321 = vadd.f32 %v73, %v320
  %v322 = vpop.f32.mrb[0].mxu0
  %v323 = vadd.f32 %v73, %v322
  %324 = vdwg.mxu0
  %325 = vmatprep.subr.bf16.mxu0 %v184
  %326 = vmatpush1.bf16.msra.mxu0 %v183
  %327 = vmatprep.subr.bf16.mxu0 %v192
  %328 = vmatpush1.bf16.msra.mxu0 %v191
  %329 = vmatprep.subr.bf16.mxu0 %v200
  %330 = vmatpush1.bf16.msra.mxu0 %v199
  %331 = vmatprep.subr.bf16.mxu0 %v258
  %332 = vmatpush1.bf16.msra.mxu0 %v255
  %333 = vmatprep.subr.bf16.mxu0 0
  %334 = vmatpush1.bf16.msra.mxu0 0
  %335 = vmatprep.subr.bf16.mxu0 0
  %336 = vmatpush1.bf16.msra.mxu0 0
  %337 = vmatprep.subr.bf16.mxu0 0
  %338 = vmatpush1.bf16.msra.mxu0 0
  %339 = vmatprep.subr.bf16.mxu0 0
  %340 = vmatpush1.bf16.msra.mxu0 0
  %341 = vmatprep.subr.bf16.mxu0 0
  %342 = vmatpush1.bf16.msra.mxu0 0
  %343 = vmatprep.subr.bf16.mxu0 0
  %344 = vmatpush1.bf16.msra.mxu0 0
  %345 = vmatprep.subr.bf16.mxu0 0
  %346 = vmatpush1.bf16.msra.mxu0 0
  %347 = vmatprep.subr.bf16.mxu0 0
  %348 = vmatpush1.bf16.msra.mxu0 0
  %349 = vmatprep.subr.bf16.mxu0 0
  %350 = vmatpush1.bf16.msra.mxu0 0
  %351 = vmatprep.subr.bf16.mxu0 0
  %352 = vmatpush1.bf16.msra.mxu0 0
  %353 = vmatprep.subr.bf16.mxu0 0
  %354 = vmatpush1.bf16.msra.mxu0 0
  %355 = vmatprep.subr.bf16.mxu0 0
  %356 = vmatpush1.bf16.msra.mxu0 0
  %357 = vmatprep.mubr.bf16.mxu0 0
  %358 = vmatmul.mubr.bf16.gmra.mrb[0].mxu0 %v239
  %v359 = vpop.f32.mrb[0].mxu0
  %v360 = vadd.f32 %v58, %v359
  %v361 = vpop.f32.mrb[0].mxu0
  %v362 = vadd.f32 %v58, %v361
  %v363 = vpop.f32.mrb[0].mxu0
  %v364 = vadd.f32 %v63, %v363
  %v365 = vpop.f32.mrb[0].mxu0
  %v366 = vadd.f32 %v63, %v365
  %367 = vmatprep.mubr.bf16.mxu0 0
  %368 = vmatmul.mubr.bf16.gmra.mrb[0].mxu0 %v242
  %v369 = vpop.f32.mrb[0].mxu0
  %v370 = vadd.f32 %v68, %v369
  %v371 = vpop.f32.mrb[0].mxu0
  %v372 = vadd.f32 %v68, %v371
  %v373 = vpop.f32.mrb[0].mxu0
  %v374 = vadd.f32 %v73, %v373
  %v375 = vpop.f32.mrb[0].mxu0
  %v376 = vadd.f32 %v73, %v375
  %377 = vdwg.mxu0
  %378 = vmatprep.subr.bf16.mxu0 %v186
  %379 = vmatpush1.bf16.msra.mxu0 %v185
  %380 = vmatprep.subr.bf16.mxu0 %v194
  %381 = vmatpush1.bf16.msra.mxu0 %v193
  %382 = vmatprep.subr.bf16.mxu0 %v202
  %383 = vmatpush1.bf16.msra.mxu0 %v201
  %384 = vmatprep.subr.bf16.mxu0 %v264
  %385 = vmatpush1.bf16.msra.mxu0 %v261
  %386 = vmatprep.subr.bf16.mxu0 0
  %387 = vmatpush1.bf16.msra.mxu0 0
  %388 = vmatprep.subr.bf16.mxu0 0
  %389 = vmatpush1.bf16.msra.mxu0 0
  %390 = vmatprep.subr.bf16.mxu0 0
  %391 = vmatpush1.bf16.msra.mxu0 0
  %392 = vmatprep.subr.bf16.mxu0 0
  %393 = vmatpush1.bf16.msra.mxu0 0
  %394 = vmatprep.subr.bf16.mxu0 0
  %395 = vmatpush1.bf16.msra.mxu0 0
  %396 = vmatprep.subr.bf16.mxu0 0
  %397 = vmatpush1.bf16.msra.mxu0 0
  %398 = vmatprep.subr.bf16.mxu0 0
  %399 = vmatpush1.bf16.msra.mxu0 0
  %400 = vmatprep.subr.bf16.mxu0 0
  %401 = vmatpush1.bf16.msra.mxu0 0
  %402 = vmatprep.subr.bf16.mxu0 0
  %403 = vmatpush1.bf16.msra.mxu0 0
  %404 = vmatprep.subr.bf16.mxu0 0
  %405 = vmatpush1.bf16.msra.mxu0 0
  %406 = vmatprep.subr.bf16.mxu0 0
  %407 = vmatpush1.bf16.msra.mxu0 0
  %408 = vmatprep.subr.bf16.mxu0 0
  %409 = vmatpush1.bf16.msra.mxu0 0
  %410 = vmatprep.mubr.bf16.mxu0 0
  %411 = vmatmul.mubr.bf16.gmra.mrb[0].mxu0 %v239
  %v412 = vpop.f32.mrb[0].mxu0
  %v413 = vadd.f32 %v58, %v412
  %v414 = vpop.f32.mrb[0].mxu0
  %v415 = vadd.f32 %v58, %v414
  %v416 = vpop.f32.mrb[0].mxu0
  %v417 = vadd.f32 %v63, %v416
  %v418 = vpop.f32.mrb[0].mxu0
  %v419 = vadd.f32 %v63, %v418
  %420 = vmatprep.mubr.bf16.mxu0 0
  %421 = vmatmul.mubr.bf16.gmra.mrb[0].mxu0 %v242
  %v422 = vpop.f32.mrb[0].mxu0
  %v423 = vadd.f32 %v68, %v422
  %v424 = vpop.f32.mrb[0].mxu0
  %v425 = vadd.f32 %v68, %v424
  %v426 = vpop.f32.mrb[0].mxu0
  %v427 = vadd.f32 %v73, %v426
  %v428 = vpop.f32.mrb[0].mxu0
  %v429 = vadd.f32 %v73, %v428
  %430 = vdwg.mxu0
  %431 = vmatprep.subr.bf16.mxu0 %v188
  %432 = vmatpush1.bf16.msra.mxu0 %v187
  %433 = vmatprep.subr.bf16.mxu0 %v196
  %434 = vmatpush1.bf16.msra.mxu0 %v195
  %435 = vmatprep.subr.bf16.mxu0 %v204
  %436 = vmatpush1.bf16.msra.mxu0 %v203
  %437 = vmatprep.subr.bf16.mxu0 %v270
  %438 = vmatpush1.bf16.msra.mxu0 %v267
  %439 = vmatprep.subr.bf16.mxu0 0
  %440 = vmatpush1.bf16.msra.mxu0 0
  %441 = vmatprep.subr.bf16.mxu0 0
  %442 = vmatpush1.bf16.msra.mxu0 0
  %443 = vmatprep.subr.bf16.mxu0 0
  %444 = vmatpush1.bf16.msra.mxu0 0
  %445 = vmatprep.subr.bf16.mxu0 0
  %446 = vmatpush1.bf16.msra.mxu0 0
  %447 = vmatprep.subr.bf16.mxu0 0
  %448 = vmatpush1.bf16.msra.mxu0 0
  %449 = vmatprep.subr.bf16.mxu0 0
  %450 = vmatpush1.bf16.msra.mxu0 0
  %451 = vmatprep.subr.bf16.mxu0 0
  %452 = vmatpush1.bf16.msra.mxu0 0
  %453 = vmatprep.subr.bf16.mxu0 0
  %454 = vmatpush1.bf16.msra.mxu0 0
  %455 = vmatprep.subr.bf16.mxu0 0
  %456 = vmatpush1.bf16.msra.mxu0 0
  %457 = vmatprep.subr.bf16.mxu0 0
  %458 = vmatpush1.bf16.msra.mxu0 0
  %459 = vmatprep.subr.bf16.mxu0 0
  %460 = vmatpush1.bf16.msra.mxu0 0
  %461 = vmatprep.subr.bf16.mxu0 0
  %462 = vmatpush1.bf16.msra.mxu0 0
  %463 = vmatprep.mubr.bf16.mxu0 0
  %464 = vmatmul.mubr.bf16.gmra.mrb[0].mxu0 %v239
  %v465 = vpop.f32.mrb[0].mxu0
  %v466 = vadd.f32 %v58, %v465
  %v467 = vpop.f32.mrb[0].mxu0
  %v468 = vadd.f32 %v58, %v467
  %v469 = vpop.f32.mrb[0].mxu0
  %v470 = vadd.f32 %v63, %v469
  %v471 = vpop.f32.mrb[0].mxu0
  %v472 = vadd.f32 %v63, %v471
  %473 = vmatprep.mubr.bf16.mxu0 0
  %474 = vmatmul.mubr.bf16.gmra.mrb[0].mxu0 %v242
  %v475 = vpop.f32.mrb[0].mxu0
  %v476 = vadd.f32 %v68, %v475
  %v477 = vpop.f32.mrb[0].mxu0
  %v478 = vadd.f32 %v68, %v477
  %v479 = vpop.f32.mrb[0].mxu0
  %v480 = vadd.f32 %v73, %v479
  %v481 = vpop.f32.mrb[0].mxu0
  %v482 = vadd.f32 %v73, %v481
  %483 = vdwg.mxu0
  %v484 = vmax.f32 %v307, 0.0
  %v485 = vmax.f32 %v309, 0.0
  %v486 = vmax.f32 %v360, 0.0
  %v487 = vmax.f32 %v362, 0.0
  %v488 = vmax.f32 %v413, 0.0
  %v489 = vmax.f32 %v415, 0.0
  %v490 = vmax.f32 %v466, 0.0
  %v491 = vmax.f32 %v468, 0.0
  %v492 = vmax.f32 %v311, 0.0
  %v493 = vmax.f32 %v313, 0.0
  %v494 = vmax.f32 %v364, 0.0
  %v495 = vmax.f32 %v366, 0.0
  %v496 = vmax.f32 %v417, 0.0
  %v497 = vmax.f32 %v419, 0.0
  %v498 = vmax.f32 %v470, 0.0
  %v499 = vmax.f32 %v472, 0.0
  %v500 = vmax.f32 %v317, 0.0
  %v501 = vmax.f32 %v319, 0.0
  %v502 = vmax.f32 %v370, 0.0
  %v503 = vmax.f32 %v372, 0.0
  %v504 = vmax.f32 %v423, 0.0
  %v505 = vmax.f32 %v425, 0.0
  %v506 = vmax.f32 %v476, 0.0
  %v507 = vmax.f32 %v478, 0.0
  %v508 = vmax.f32 %v321, 0.0
  %v509 = vmax.f32 %v323, 0.0
  %v510 = vmax.f32 %v374, 0.0
  %v511 = vmax.f32 %v376, 0.0
  %v512 = vmax.f32 %v427, 0.0
  %v513 = vmax.f32 %v429, 0.0
  %v514 = vmax.f32 %v480, 0.0
  %v515 = vmax.f32 %v482, 0.0
  %v516 = vpack.c.bf16 %v492, %v484
  %v517 = vpack.c.bf16 %v493, %v485
  %v518 = vpack.c.bf16 %v494, %v486
  %v519 = vpack.c.bf16 %v495, %v487
  %v520 = vpack.c.bf16 %v496, %v488
  %v521 = vpack.c.bf16 %v497, %v489
  %v522 = vpack.c.bf16 %v498, %v490
  %v523 = vpack.c.bf16 %v499, %v491
  %v524 = vpack.c.bf16 %v508, %v500
  %v525 = vpack.c.bf16 %v509, %v501
  %v526 = vpack.c.bf16 %v510, %v502
  %v527 = vpack.c.bf16 %v511, %v503
  %v528 = vpack.c.bf16 %v512, %v504
  %v529 = vpack.c.bf16 %v513, %v505
  %v530 = vpack.c.bf16 %v514, %v506
  %v531 = vpack.c.bf16 %v515, %v507
  %v548 = vunpack.c.l.b16 %v516
  %v549 = vunpack.c.l.b16 %v517
  %v550 = vunpack.c.l.b16 %v518
  %v551 = vunpack.c.l.b16 %v519
  %v552 = vunpack.c.l.b16 %v520
  %v553 = vunpack.c.l.b16 %v521
  %v554 = vunpack.c.l.b16 %v522
  %v555 = vunpack.c.l.b16 %v523
  %v556 = vunpack.c.h.b16 %v516
  %v557 = vunpack.c.h.b16 %v517
  %v558 = vunpack.c.h.b16 %v518
  %v559 = vunpack.c.h.b16 %v519
  %v560 = vunpack.c.h.b16 %v520
  %v561 = vunpack.c.h.b16 %v521
  %v562 = vunpack.c.h.b16 %v522
  %v563 = vunpack.c.h.b16 %v523
  %v564 = vunpack.c.l.b16 %v524
  %v565 = vunpack.c.l.b16 %v525
  %v566 = vunpack.c.l.b16 %v526
  %v567 = vunpack.c.l.b16 %v527
  %v568 = vunpack.c.l.b16 %v528
  %v569 = vunpack.c.l.b16 %v529
  %v570 = vunpack.c.l.b16 %v530
  %v571 = vunpack.c.l.b16 %v531
  %v572 = vunpack.c.h.b16 %v524
  %v573 = vunpack.c.h.b16 %v525
  %v574 = vunpack.c.h.b16 %v526
  %v575 = vunpack.c.h.b16 %v527
  %v576 = vunpack.c.h.b16 %v528
  %v577 = vunpack.c.h.b16 %v529
  %v578 = vunpack.c.h.b16 %v530
  %v579 = vunpack.c.h.b16 %v531
  %v580 = vpack.c.b16 %v549, %v548
  %v581 = vpack.c.b16 %v551, %v550
  %v582 = vpack.c.b16 %v553, %v552
  %v583 = vpack.c.b16 %v555, %v554
  %v584 = vpack.c.b16 %v557, %v556
  %v585 = vpack.c.b16 %v559, %v558
  %v586 = vpack.c.b16 %v561, %v560
  %v587 = vpack.c.b16 %v563, %v562
  %v588 = vpack.c.b16 %v565, %v564
  %v589 = vpack.c.b16 %v567, %v566
  %v590 = vpack.c.b16 %v569, %v568
  %v591 = vpack.c.b16 %v571, %v570
  %v592 = vpack.c.b16 %v573, %v572
  %v593 = vpack.c.b16 %v575, %v574
  %v594 = vpack.c.b16 %v577, %v576
  %v595 = vpack.c.b16 %v579, %v578
  %612 = vst [vmem:[%s3] sm:$0xff] %v580
  %613 = vst [vmem:[%s3 + $0x8] sm:$0xff] %v581
  %614 = vst [vmem:[%s3 + $0x10] sm:$0xff] %v582
  %615 = vst [vmem:[%s3 + $0x18] sm:$0xff] %v583
  %616 = vst [vmem:[%s3 + $0x20] sm:$0xff] %v584
  %617 = vst [vmem:[%s3 + $0x28] sm:$0xff] %v585
  %618 = vst [vmem:[%s3 + $0x30] sm:$0xff] %v586
  %619 = vst [vmem:[%s3 + $0x38] sm:$0xff] %v587
  %620 = vst [vmem:[%s3 + $0x40] sm:$0xff] %v588
  %621 = vst [vmem:[%s3 + $0x48] sm:$0xff] %v589
  %622 = vst [vmem:[%s3 + $0x50] sm:$0xff] %v590
  %623 = vst [vmem:[%s3 + $0x58] sm:$0xff] %v591
  %624 = vst [vmem:[%s3 + $0x60] sm:$0xff] %v592
  %625 = vst [vmem:[%s3 + $0x68] sm:$0xff] %v593
  %626 = vst [vmem:[%s3 + $0x70] sm:$0xff] %v594
  %627 = vst [vmem:[%s3 + $0x78] sm:$0xff] %v595
  // Predicated region
  $region14: #{dqn_forward.3} parent=0 // pred_check
    _
  $region15: #{dqn_forward.3} parent=0 // pred_check_branch
    %629 = sbr.rel (0) target = $region17
  $region16: #{dqn_forward.3} parent=0 // pred_region
    _
  $region17: #{dqn_forward.3} parent=0 // pred_fallthru
    _
  // Predicated region
  $region18: #{dqn_forward.3} parent=0 // pred_check
    _
  $region19: #{dqn_forward.3} parent=0 // pred_check_branch
    %631 = sbr.rel (0) target = $region21
  $region20: #{dqn_forward.3} parent=0 // pred_region
    _
  $region21: #{dqn_forward.3} parent=0 // pred_fallthru
    _

// kernel: dqn_forward.4
$region0: #{dqn_forward.4}
  #allocation0 [shape = 'u32[]', space=smem, size = 0x4, offset = 0x4, fixed_abs, tag = 'smem constant byte address 0x4 - core index']
  #allocation1 [shape = 'u32[144,128]{1,0:T(1,128)}', space=vmem, size = 0x12000, scoped, tag = 'internal scratch']
  %s0 = inlined_call_operand.vmem [shape: bf16[64,288], index: 0, kind: input, shape index: {}]
  %s1 = inlined_call_operand.vmem [shape: bf16[288,840], index: 1, kind: input, shape index: {}]
  %s2 = inlined_call_operand.vmem [shape: f32[64,1], index: 2, kind: input, shape index: {}]
  %s3 = inlined_call_operand.vmem [shape: bf16[64,840], index: 3, kind: output, shape index: {}]
  %s4 = sld [smem:[#allocation0]]
  $region22: #{dqn_forward.4} parent=0
    _
  %s6 = ssub.s32 1, %s4
  %s7 = scalar_select 0, %s6, %s4
  // Predicated region
  $region2: #{dqn_forward.4} parent=0 // pred_check
    _
  $region3: #{dqn_forward.4} parent=0 // pred_check_branch
    %9 = sbr.rel (0) target = $region5
  $region4: #{dqn_forward.4} parent=0 // pred_region
    _
  $region5: #{dqn_forward.4} parent=0 // pred_fallthru
    _
  // Predicated region
  $region6: #{dqn_forward.4} parent=0 // pred_check
    _
  $region7: #{dqn_forward.4} parent=0 // pred_check_branch
    %11 = sbr.rel (0) target = $region9
  $region8: #{dqn_forward.4} parent=0 // pred_region
    _
  $region9: #{dqn_forward.4} parent=0 // pred_fallthru
    _
  // Predicated region
  $region10: #{dqn_forward.4} parent=0 // pred_check
    _
  $region11: #{dqn_forward.4} parent=0 // pred_check_branch
    %13 = sbr.rel (0) target = $region13
  $region12: #{dqn_forward.4} parent=0 // pred_region
    _
  $region13: #{dqn_forward.4} parent=0 // pred_fallthru
    _
  %v15 = vld [vmem:[%s0] sm:$0xff]
  %v16 = vld [vmem:[%s0 + $0x8] sm:$0xf]
  %v17 = vld [vmem:[%s0 + $0xc] sm:$0xff]
  %v18 = vld [vmem:[%s0 + $0x14] sm:$0xf]
  %v19 = vld [vmem:[%s0 + $0x18] sm:$0xff]
  %v20 = vld [vmem:[%s0 + $0x20] sm:$0xf]
  %v21 = vld [vmem:[%s0 + $0x24] sm:$0xff]
  %v22 = vld [vmem:[%s0 + $0x2c] sm:$0xf]
  %v23 = vld [vmem:[%s0 + $0x30] sm:$0xff]
  %v24 = vld [vmem:[%s0 + $0x38] sm:$0xf]
  %v25 = vld [vmem:[%s0 + $0x3c] sm:$0xff]
  %v26 = vld [vmem:[%s0 + $0x44] sm:$0xf]
  %v27 = vld [vmem:[%s0 + $0x48] sm:$0xff]
  %v28 = vld [vmem:[%s0 + $0x50] sm:$0xf]
  %v29 = vld [vmem:[%s0 + $0x54] sm:$0xff]
  %v30 = vld [vmem:[%s0 + $0x5c] sm:$0xf]
  %v31 = vld [vmem:[%s1] sm:$0xff]
  %v32 = vld [vmem:[%s1 + $0x8] sm:$0xff]
  %v33 = vld [vmem:[%s1 + $0x10] sm:$0xff]
  %v34 = vld [vmem:[%s1 + $0x18] sm:$0xf]
  %v35 = vld [vmem:[%s1 + $0x1c] sm:$0xff]
  %v36 = vld [vmem:[%s1 + $0x24] sm:$0xff]
  %v37 = vld [vmem:[%s1 + $0x2c] sm:$0xff]
  %v38 = vld [vmem:[%s1 + $0x34] sm:$0xf]
  %v39 = vld [vmem:[%s1 + $0x38] sm:$0xff]
  %v40 = vld [vmem:[%s1 + $0x40] sm:$0xff]
  %v41 = vld [vmem:[%s1 + $0x48] sm:$0xff]
  %v42 = vld [vmem:[%s1 + $0x50] sm:$0xf]
  %v43 = vld [vmem:[%s1 + $0x54] sm:$0xff]
  %v44 = vld [vmem:[%s1 + $0x5c] sm:$0xff]
  %v45 = vld [vmem:[%s1 + $0x64] sm:$0xff]
  %v46 = vld [vmem:[%s1 + $0x6c] sm:$0xf]
  %v47 = vld [vmem:[%s1 + $0x70] sm:$0xff]
  %v48 = vld [vmem:[%s1 + $0x78] sm:$0xff]
  %v49 = vld [vmem:[%s1 + $0x80] sm:$0xff]
  %v50 = vld [vmem:[%s1 + $0x88] sm:$0xf]
  %v51 = vld [vmem:[%s1 + $0x8c] sm:$0xff]
  %v52 = vld [vmem:[%s1 + $0x94] sm:$0xff]
  %v53 = vld [vmem:[%s1 + $0x9c] sm:$0xff]
  %v54 = vld [vmem:[%s1 + $0xa4] sm:$0xf]
  %v55 = vld [vmem:[%s1 + $0xa8] sm:$0xff]
  %v56 = vld [vmem:[%s1 + $0xb0] sm:$0xff]
  %v57 = vld [vmem:[%s1 + $0xb8] sm:$0xff]
  %v58 = vld [vmem:[%s1 + $0xc0] sm:$0xf]
  %v59 = vld [vmem:[%s1 + $0xc4] sm:$0xff]
  %v60 = vld [vmem:[%s1 + $0xcc] sm:$0xff]
  %v61 = vld [vmem:[%s1 + $0xd4] sm:$0xff]
  %v62 = vld [vmem:[%s1 + $0xdc] sm:$0xf]
  %v63 = vld [vmem:[%s1 + $0xe0] sm:$0xff]
  %v64 = vld [vmem:[%s1 + $0xe8] sm:$0xff]
  %v65 = vld [vmem:[%s1 + $0xf0] sm:$0xff]
  %v66 = vld [vmem:[%s1 + $0xf8] sm:$0xf]
  %v67 = vld [vmem:[%s1 + $0xfc] sm:$0xff]
  %v68 = vld [vmem:[%s1 + $0x104] sm:$0xff]
  %v69 = vld [vmem:[%s1 + $0x10c] sm:$0xff]
  %v70 = vld [vmem:[%s1 + $0x114] sm:$0xf]
  %v71 = vld [vmem:[%s1 + $0x118] sm:$0xff]
  %v72 = vld [vmem:[%s1 + $0x120] sm:$0xff]
  %v73 = vld [vmem:[%s1 + $0x128] sm:$0xff]
  %v74 = vld [vmem:[%s1 + $0x130] sm:$0xf]
  %v75 = vld [vmem:[%s1 + $0x134] sm:$0xff]
  %v76 = vld [vmem:[%s1 + $0x13c] sm:$0xff]
  %v77 = vld [vmem:[%s1 + $0x144] sm:$0xff]
  %v78 = vld [vmem:[%s1 + $0x14c] sm:$0xf]
  %v79 = vld [vmem:[%s1 + $0x150] sm:$0xff]
  %v80 = vld [vmem:[%s1 + $0x158] sm:$0xff]
  %v81 = vld [vmem:[%s1 + $0x160] sm:$0xff]
  %v82 = vld [vmem:[%s1 + $0x168] sm:$0xf]
  %v83 = vld [vmem:[%s1 + $0x16c] sm:$0xff]
  %v84 = vld [vmem:[%s1 + $0x174] sm:$0xff]
  %v85 = vld [vmem:[%s1 + $0x17c] sm:$0xff]
  %v86 = vld [vmem:[%s1 + $0x184] sm:$0xf]
  %v87 = vld [vmem:[%s1 + $0x188] sm:$0xff]
  %v88 = vld [vmem:[%s1 + $0x190] sm:$0xff]
  %v89 = vld [vmem:[%s1 + $0x198] sm:$0xff]
  %v90 = vld [vmem:[%s1 + $0x1a0] sm:$0xf]
  %v91 = vld [vmem:[%s1 + $0x1a4] sm:$0xff]
  %v92 = vld [vmem:[%s1 + $0x1ac] sm:$0xff]
  %v93 = vld [vmem:[%s1 + $0x1b4] sm:$0xff]
  %v94 = vld [vmem:[%s1 + $0x1bc] sm:$0xf]
  %v95 = vld [vmem:[%s1 + $0x1c0] sm:$0xff]
  %v96 = vld [vmem:[%s1 + $0x1c8] sm:$0xff]
  %v97 = vld [vmem:[%s1 + $0x1d0] sm:$0xff]
  %v98 = vld [vmem:[%s1 + $0x1d8] sm:$0xf]
  %v99 = vld [vmem:[%s1 + $0x1dc] sm:$0xff]
  %v100 = vld [vmem:[%s1 + $0x1e4] sm:$0xff]
  %v101 = vld [vmem:[%s1 + $0x1ec] sm:$0xff]
  %v102 = vld [vmem:[%s1 + $0x1f4] sm:$0xf]
  %v103 = vld [vmem:[%s1 + $0x1f8] sm:$0xff]
  %v104 = vld [vmem:[%s1 + $0x200] sm:$0xff]
  %v105 = vld [vmem:[%s1 + $0x208] sm:$0xff]
  %v106 = vld [vmem:[%s1 + $0x210] sm:$0xf]
  %v107 = vld [vmem:[%s1 + $0x214] sm:$0xff]
  %v108 = vld [vmem:[%s1 + $0x21c] sm:$0xff]
  %v109 = vld [vmem:[%s1 + $0x224] sm:$0xff]
  %v110 = vld [vmem:[%s1 + $0x22c] sm:$0xf]
  %v111 = vld [vmem:[%s1 + $0x230] sm:$0xff]
  %v112 = vld [vmem:[%s1 + $0x238] sm:$0xff]
  %v113 = vld [vmem:[%s1 + $0x240] sm:$0xff]
  %v114 = vld [vmem:[%s1 + $0x248] sm:$0xf]
  %v115 = vld [vmem:[%s1 + $0x24c] sm:$0xff]
  %v116 = vld [vmem:[%s1 + $0x254] sm:$0xff]
  %v117 = vld [vmem:[%s1 + $0x25c] sm:$0xff]
  %v118 = vld [vmem:[%s1 + $0x264] sm:$0xf]
  %v119 = vld [vmem:[%s1 + $0x268] sm:$0xff]
  %v120 = vld [vmem:[%s1 + $0x270] sm:$0xff]
  %v121 = vld [vmem:[%s1 + $0x278] sm:$0xff]
  %v122 = vld [vmem:[%s1 + $0x280] sm:$0xf]
  %v123 = vld [vmem:[%s1 + $0x284] sm:$0xff]
  %v124 = vld [vmem:[%s1 + $0x28c] sm:$0xff]
  %v125 = vld [vmem:[%s1 + $0x294] sm:$0xff]
  %v126 = vld [vmem:[%s1 + $0x29c] sm:$0xf]
  %v127 = vld [vmem:[%s1 + $0x2a0] sm:$0xff]
  %v128 = vld [vmem:[%s1 + $0x2a8] sm:$0xff]
  %v129 = vld [vmem:[%s1 + $0x2b0] sm:$0xff]
  %v130 = vld [vmem:[%s1 + $0x2b8] sm:$0xf]
  %v131 = vld [vmem:[%s1 + $0x2bc] sm:$0xff]
  %v132 = vld [vmem:[%s1 + $0x2c4] sm:$0xff]
  %v133 = vld [vmem:[%s1 + $0x2cc] sm:$0xff]
  %v134 = vld [vmem:[%s1 + $0x2d4] sm:$0xf]
  %v135 = vld [vmem:[%s1 + $0x2d8] sm:$0xff]
  %v136 = vld [vmem:[%s1 + $0x2e0] sm:$0xff]
  %v137 = vld [vmem:[%s1 + $0x2e8] sm:$0xff]
  %v138 = vld [vmem:[%s1 + $0x2f0] sm:$0xf]
  %v139 = vld [vmem:[%s1 + $0x2f4] sm:$0xff]
  %v140 = vld [vmem:[%s1 + $0x2fc] sm:$0xff]
  %v141 = vld [vmem:[%s1 + $0x304] sm:$0xff]
  %v142 = vld [vmem:[%s1 + $0x30c] sm:$0xf]
  %v143 = vld [vmem:[%s1 + $0x310] sm:$0xff]
  %v144 = vld [vmem:[%s1 + $0x318] sm:$0xff]
  %v145 = vld [vmem:[%s1 + $0x320] sm:$0xff]
  %v146 = vld [vmem:[%s1 + $0x328] sm:$0xf]
  %v147 = vld [vmem:[%s1 + $0x32c] sm:$0xff]
  %v148 = vld [vmem:[%s1 + $0x334] sm:$0xff]
  %v149 = vld [vmem:[%s1 + $0x33c] sm:$0xff]
  %v150 = vld [vmem:[%s1 + $0x344] sm:$0xf]
  %v151 = vld [vmem:[%s1 + $0x348] sm:$0xff]
  %v152 = vld [vmem:[%s1 + $0x350] sm:$0xff]
  %v153 = vld [vmem:[%s1 + $0x358] sm:$0xff]
  %v154 = vld [vmem:[%s1 + $0x360] sm:$0xf]
  %v155 = vld [vmem:[%s1 + $0x364] sm:$0xff]
  %v156 = vld [vmem:[%s1 + $0x36c] sm:$0xff]
  %v157 = vld [vmem:[%s1 + $0x374] sm:$0xff]
  %v158 = vld [vmem:[%s1 + $0x37c] sm:$0xf]
  %v159 = vld [vmem:[%s1 + $0x380] sm:$0xff]
  %v160 = vld [vmem:[%s1 + $0x388] sm:$0xff]
  %v161 = vld [vmem:[%s1 + $0x390] sm:$0xff]
  %v162 = vld [vmem:[%s1 + $0x398] sm:$0xf]
  %v163 = vld [vmem:[%s1 + $0x39c] sm:$0xff]
  %v164 = vld [vmem:[%s1 + $0x3a4] sm:$0xff]
  %v165 = vld [vmem:[%s1 + $0x3ac] sm:$0xff]
  %v166 = vld [vmem:[%s1 + $0x3b4] sm:$0xf]
  %v167 = vld [vmem:[%s1 + $0x3b8] sm:$0xff]
  %v168 = vld [vmem:[%s1 + $0x3c0] sm:$0xff]
  %v169 = vld [vmem:[%s1 + $0x3c8] sm:$0xff]
  %v170 = vld [vmem:[%s1 + $0x3d0] sm:$0xf]
  %v171 = vld [vmem:[%s1 + $0x3d4] sm:$0xff]
  %v172 = vld [vmem:[%s1 + $0x3dc] sm:$0xff]
  %v173 = vld [vmem:[%s1 + $0x3e4] sm:$0xff]
  %v174 = vld [vmem:[%s1 + $0x3ec] sm:$0xf]
  %v175 = vld [vmem:[%s2] sm:$0xff]
  %v176 = vld [vmem:[%s2 + $0x8] sm:$0xff]
  %v177 = vld [vmem:[%s2 + $0x10] sm:$0xff]
  %v178 = vld [vmem:[%s2 + $0x18] sm:$0xff]
  %v179 = vld [vmem:[%s2 + $0x20] sm:$0xff]
  %v180 = vld [vmem:[%s2 + $0x28] sm:$0xff]
  %v181 = vld [vmem:[%s2 + $0x30] sm:$0xff]
  %v182 = vld [vmem:[%s2 + $0x38] sm:$0xff]
  %184 = vset.pattern.permute.xlu0 0
  %185 = vperm.xlu0 %184, %v175
  %v186 = vpop.permute.xlu0 %185
  %189 = vset.pattern.permute.xlu0 0
  %190 = vperm.xlu0 %189, %v176
  %v191 = vpop.permute.xlu0 %190
  %194 = vset.pattern.permute.xlu0 0
  %195 = vperm.xlu0 %194, %v177
  %v196 = vpop.permute.xlu0 %195
  %199 = vset.pattern.permute.xlu0 0
  %200 = vperm.xlu0 %199, %v178
  %v201 = vpop.permute.xlu0 %200
  %204 = vset.pattern.permute.xlu0 0
  %205 = vperm.xlu0 %204, %v179
  %v206 = vpop.permute.xlu0 %205
  %209 = vset.pattern.permute.xlu0 0
  %210 = vperm.xlu0 %209, %v180
  %v211 = vpop.permute.xlu0 %210
  %214 = vset.pattern.permute.xlu0 0
  %215 = vperm.xlu0 %214, %v181
  %v216 = vpop.permute.xlu0 %215
  %219 = vset.pattern.permute.xlu0 0
  %220 = vperm.xlu0 %219, %v182
  %v221 = vpop.permute.xlu0 %220
  %v239 = vunpack.c.l.b16 %v15
  %v240 = vunpack.c.h.b16 %v15
  %v241 = vunpack.c.l.b16 %v16
  %v242 = vunpack.c.l.b16 %v17
  %v243 = vunpack.c.h.b16 %v17
  %v244 = vunpack.c.l.b16 %v18
  %v245 = vunpack.c.l.b16 %v19
  %v246 = vunpack.c.h.b16 %v19
  %v247 = vunpack.c.l.b16 %v20
  %v248 = vunpack.c.l.b16 %v21
  %v249 = vunpack.c.h.b16 %v21
  %v250 = vunpack.c.l.b16 %v22
  %v251 = vunpack.c.l.b16 %v23
  %v252 = vunpack.c.h.b16 %v23
  %v253 = vunpack.c.l.b16 %v24
  %v254 = vunpack.c.l.b16 %v25
  %v255 = vunpack.c.h.b16 %v25
  %v256 = vunpack.c.l.b16 %v26
  %v257 = vunpack.c.l.b16 %v27
  %v258 = vunpack.c.h.b16 %v27
  %v259 = vunpack.c.l.b16 %v28
  %v260 = vunpack.c.l.b16 %v29
  %v261 = vunpack.c.h.b16 %v29
  %v262 = vunpack.c.l.b16 %v30
  %v263 = vpack.c.b16 %v242, %v239
  %v264 = vpack.c.b16 %v243, %v240
  %v265 = vpack.c.b16 %v244, %v241
  %v266 = vpack.c.b16 %v248, %v245
  %v267 = vpack.c.b16 %v249, %v246
  %v268 = vpack.c.b16 %v250, %v247
  %v269 = vpack.c.b16 %v254, %v251
  %v270 = vpack.c.b16 %v255, %v252
  %v271 = vpack.c.b16 %v256, %v253
  %v272 = vpack.c.b16 %v260, %v257
  %v273 = vpack.c.b16 %v261, %v258
  %v274 = vpack.c.b16 %v262, %v259
  %v427 = vunpack.c.l.b16 %v31
  %v428 = vunpack.c.h.b16 %v31
  %v429 = vunpack.c.l.b16 %v32
  %v430 = vunpack.c.h.b16 %v32
  %v431 = vunpack.c.l.b16 %v33
  %v432 = vunpack.c.h.b16 %v33
  %v433 = vunpack.c.l.b16 %v34
  %v434 = vunpack.c.l.b16 %v35
  %v435 = vunpack.c.h.b16 %v35
  %v436 = vunpack.c.l.b16 %v36
  %v437 = vunpack.c.h.b16 %v36
  %v438 = vunpack.c.l.b16 %v37
  %v439 = vunpack.c.h.b16 %v37
  %v440 = vunpack.c.l.b16 %v38
  %v441 = vunpack.c.l.b16 %v39
  %v442 = vunpack.c.h.b16 %v39
  %v443 = vunpack.c.l.b16 %v40
  %v444 = vunpack.c.h.b16 %v40
  %v445 = vunpack.c.l.b16 %v41
  %v446 = vunpack.c.h.b16 %v41
  %v447 = vunpack.c.l.b16 %v42
  %v448 = vunpack.c.l.b16 %v43
  %v449 = vunpack.c.h.b16 %v43
  %v450 = vunpack.c.l.b16 %v44
  %v451 = vunpack.c.h.b16 %v44
  %v452 = vunpack.c.l.b16 %v45
  %v453 = vunpack.c.h.b16 %v45
  %v454 = vunpack.c.l.b16 %v46
  %v455 = vunpack.c.l.b16 %v47
  %v456 = vunpack.c.h.b16 %v47
  %v457 = vunpack.c.l.b16 %v48
  %v458 = vunpack.c.h.b16 %v48
  %v459 = vunpack.c.l.b16 %v49
  %v460 = vunpack.c.h.b16 %v49
  %v461 = vunpack.c.l.b16 %v50
  %v462 = vunpack.c.l.b16 %v51
  %v463 = vunpack.c.h.b16 %v51
  %v464 = vunpack.c.l.b16 %v52
  %v465 = vunpack.c.h.b16 %v52
  %v466 = vunpack.c.l.b16 %v53
  %v467 = vunpack.c.h.b16 %v53
  %v468 = vunpack.c.l.b16 %v54
  %v469 = vunpack.c.l.b16 %v55
  %v470 = vunpack.c.h.b16 %v55
  %v471 = vunpack.c.l.b16 %v56
  %v472 = vunpack.c.h.b16 %v56
  %v473 = vunpack.c.l.b16 %v57
  %v474 = vunpack.c.h.b16 %v57
  %v475 = vunpack.c.l.b16 %v58
  %v476 = vunpack.c.l.b16 %v59
  %v477 = vunpack.c.h.b16 %v59
  %v478 = vunpack.c.l.b16 %v60
  %v479 = vunpack.c.h.b16 %v60
  %v480 = vunpack.c.l.b16 %v61
  %v481 = vunpack.c.h.b16 %v61
  %v482 = vunpack.c.l.b16 %v62
  %v483 = vunpack.c.l.b16 %v63
  %v484 = vunpack.c.h.b16 %v63
  %v485 = vunpack.c.l.b16 %v64
  %v486 = vunpack.c.h.b16 %v64
  %v487 = vunpack.c.l.b16 %v65
  %v488 = vunpack.c.h.b16 %v65
  %v489 = vunpack.c.l.b16 %v66
  %v490 = vunpack.c.l.b16 %v67
  %v491 = vunpack.c.h.b16 %v67
  %v492 = vunpack.c.l.b16 %v68
  %v493 = vunpack.c.h.b16 %v68
  %v494 = vunpack.c.l.b16 %v69
  %v495 = vunpack.c.h.b16 %v69
  %v496 = vunpack.c.l.b16 %v70
  %v497 = vunpack.c.l.b16 %v71
  %v498 = vunpack.c.h.b16 %v71
  %v499 = vunpack.c.l.b16 %v72
  %v500 = vunpack.c.h.b16 %v72
  %v501 = vunpack.c.l.b16 %v73
  %v502 = vunpack.c.h.b16 %v73
  %v503 = vunpack.c.l.b16 %v74
  %v504 = vunpack.c.l.b16 %v75
  %v505 = vunpack.c.h.b16 %v75
  %v506 = vunpack.c.l.b16 %v76
  %v507 = vunpack.c.h.b16 %v76
  %v508 = vunpack.c.l.b16 %v77
  %v509 = vunpack.c.h.b16 %v77
  %v510 = vunpack.c.l.b16 %v78
  %v511 = vunpack.c.l.b16 %v79
  %v512 = vunpack.c.h.b16 %v79
  %v513 = vunpack.c.l.b16 %v80
  %v514 = vunpack.c.h.b16 %v80
  %v515 = vunpack.c.l.b16 %v81
  %v516 = vunpack.c.h.b16 %v81
  %v517 = vunpack.c.l.b16 %v82
  %v518 = vunpack.c.l.b16 %v83
  %v519 = vunpack.c.h.b16 %v83
  %v520 = vunpack.c.l.b16 %v84
  %v521 = vunpack.c.h.b16 %v84
  %v522 = vunpack.c.l.b16 %v85
  %v523 = vunpack.c.h.b16 %v85
  %v524 = vunpack.c.l.b16 %v86
  %v525 = vunpack.c.l.b16 %v87
  %v526 = vunpack.c.h.b16 %v87
  %v527 = vunpack.c.l.b16 %v88
  %v528 = vunpack.c.h.b16 %v88
  %v529 = vunpack.c.l.b16 %v89
  %v530 = vunpack.c.h.b16 %v89
  %v531 = vunpack.c.l.b16 %v90
  %v532 = vunpack.c.l.b16 %v91
  %v533 = vunpack.c.h.b16 %v91
  %v534 = vunpack.c.l.b16 %v92
  %v535 = vunpack.c.h.b16 %v92
  %v536 = vunpack.c.l.b16 %v93
  %v537 = vunpack.c.h.b16 %v93
  %v538 = vunpack.c.l.b16 %v94
  %v539 = vunpack.c.l.b16 %v95
  %v540 = vunpack.c.h.b16 %v95
  %v541 = vunpack.c.l.b16 %v96
  %v542 = vunpack.c.h.b16 %v96
  %v543 = vunpack.c.l.b16 %v97
  %v544 = vunpack.c.h.b16 %v97
  %v545 = vunpack.c.l.b16 %v98
  %v546 = vunpack.c.l.b16 %v99
  %v547 = vunpack.c.h.b16 %v99
  %v548 = vunpack.c.l.b16 %v100
  %v549 = vunpack.c.h.b16 %v100
  %v550 = vunpack.c.l.b16 %v101
  %v551 = vunpack.c.h.b16 %v101
  %v552 = vunpack.c.l.b16 %v102
  %v553 = vunpack.c.l.b16 %v103
  %v554 = vunpack.c.h.b16 %v103
  %v555 = vunpack.c.l.b16 %v104
  %v556 = vunpack.c.h.b16 %v104
  %v557 = vunpack.c.l.b16 %v105
  %v558 = vunpack.c.h.b16 %v105
  %v559 = vunpack.c.l.b16 %v106
  %v560 = vunpack.c.l.b16 %v107
  %v561 = vunpack.c.h.b16 %v107
  %v562 = vunpack.c.l.b16 %v108
  %v563 = vunpack.c.h.b16 %v108
  %v564 = vunpack.c.l.b16 %v109
  %v565 = vunpack.c.h.b16 %v109
  %v566 = vunpack.c.l.b16 %v110
  %v567 = vunpack.c.l.b16 %v111
  %v568 = vunpack.c.h.b16 %v111
  %v569 = vunpack.c.l.b16 %v112
  %v570 = vunpack.c.h.b16 %v112
  %v571 = vunpack.c.l.b16 %v113
  %v572 = vunpack.c.h.b16 %v113
  %v573 = vunpack.c.l.b16 %v114
  %v574 = vunpack.c.l.b16 %v115
  %v575 = vunpack.c.h.b16 %v115
  %v576 = vunpack.c.l.b16 %v116
  %v577 = vunpack.c.h.b16 %v116
  %v578 = vunpack.c.l.b16 %v117
  %v579 = vunpack.c.h.b16 %v117
  %v580 = vunpack.c.l.b16 %v118
  %v581 = vunpack.c.l.b16 %v119
  %v582 = vunpack.c.h.b16 %v119
  %v583 = vunpack.c.l.b16 %v120
  %v584 = vunpack.c.h.b16 %v120
  %v585 = vunpack.c.l.b16 %v121
  %v586 = vunpack.c.h.b16 %v121
  %v587 = vunpack.c.l.b16 %v122
  %v588 = vunpack.c.l.b16 %v123
  %v589 = vunpack.c.h.b16 %v123
  %v590 = vunpack.c.l.b16 %v124
  %v591 = vunpack.c.h.b16 %v124
  %v592 = vunpack.c.l.b16 %v125
  %v593 = vunpack.c.h.b16 %v125
  %v594 = vunpack.c.l.b16 %v126
  %v595 = vunpack.c.l.b16 %v127
  %v596 = vunpack.c.h.b16 %v127
  %v597 = vunpack.c.l.b16 %v128
  %v598 = vunpack.c.h.b16 %v128
  %v599 = vunpack.c.l.b16 %v129
  %v600 = vunpack.c.h.b16 %v129
  %v601 = vunpack.c.l.b16 %v130
  %v602 = vunpack.c.l.b16 %v131
  %v603 = vunpack.c.h.b16 %v131
  %v604 = vunpack.c.l.b16 %v132
  %v605 = vunpack.c.h.b16 %v132
  %v606 = vunpack.c.l.b16 %v133
  %v607 = vunpack.c.h.b16 %v133
  %v608 = vunpack.c.l.b16 %v134
  %v609 = vunpack.c.l.b16 %v135
  %v610 = vunpack.c.h.b16 %v135
  %v611 = vunpack.c.l.b16 %v136
  %v612 = vunpack.c.h.b16 %v136
  %v613 = vunpack.c.l.b16 %v137
  %v614 = vunpack.c.h.b16 %v137
  %v615 = vunpack.c.l.b16 %v138
  %v616 = vunpack.c.l.b16 %v139
  %v617 = vunpack.c.h.b16 %v139
  %v618 = vunpack.c.l.b16 %v140
  %v619 = vunpack.c.h.b16 %v140
  %v620 = vunpack.c.l.b16 %v141
  %v621 = vunpack.c.h.b16 %v141
  %v622 = vunpack.c.l.b16 %v142
  %v623 = vunpack.c.l.b16 %v143
  %v624 = vunpack.c.h.b16 %v143
  %v625 = vunpack.c.l.b16 %v144
  %v626 = vunpack.c.h.b16 %v144
  %v627 = vunpack.c.l.b16 %v145
  %v628 = vunpack.c.h.b16 %v145
  %v629 = vunpack.c.l.b16 %v146
  %v630 = vunpack.c.l.b16 %v147
  %v631 = vunpack.c.h.b16 %v147
  %v632 = vunpack.c.l.b16 %v148
  %v633 = vunpack.c.h.b16 %v148
  %v634 = vunpack.c.l.b16 %v149
  %v635 = vunpack.c.h.b16 %v149
  %v636 = vunpack.c.l.b16 %v150
  %v637 = vunpack.c.l.b16 %v151
  %v638 = vunpack.c.h.b16 %v151
  %v639 = vunpack.c.l.b16 %v152
  %v640 = vunpack.c.h.b16 %v152
  %v641 = vunpack.c.l.b16 %v153
  %v642 = vunpack.c.h.b16 %v153
  %v643 = vunpack.c.l.b16 %v154
  %v644 = vunpack.c.l.b16 %v155
  %v645 = vunpack.c.h.b16 %v155
  %v646 = vunpack.c.l.b16 %v156
  %v647 = vunpack.c.h.b16 %v156
  %v648 = vunpack.c.l.b16 %v157
  %v649 = vunpack.c.h.b16 %v157
  %v650 = vunpack.c.l.b16 %v158
  %v651 = vunpack.c.l.b16 %v159
  %v652 = vunpack.c.h.b16 %v159
  %v653 = vunpack.c.l.b16 %v160
  %v654 = vunpack.c.h.b16 %v160
  %v655 = vunpack.c.l.b16 %v161
  %v656 = vunpack.c.h.b16 %v161
  %v657 = vunpack.c.l.b16 %v162
  %v658 = vunpack.c.l.b16 %v163
  %v659 = vunpack.c.h.b16 %v163
  %v660 = vunpack.c.l.b16 %v164
  %v661 = vunpack.c.h.b16 %v164
  %v662 = vunpack.c.l.b16 %v165
  %v663 = vunpack.c.h.b16 %v165
  %v664 = vunpack.c.l.b16 %v166
  %v665 = vunpack.c.l.b16 %v167
  %v666 = vunpack.c.h.b16 %v167
  %v667 = vunpack.c.l.b16 %v168
  %v668 = vunpack.c.h.b16 %v168
  %v669 = vunpack.c.l.b16 %v169
  %v670 = vunpack.c.h.b16 %v169
  %v671 = vunpack.c.l.b16 %v170
  %v672 = vunpack.c.l.b16 %v171
  %v673 = vunpack.c.h.b16 %v171
  %v674 = vunpack.c.l.b16 %v172
  %v675 = vunpack.c.h.b16 %v172
  %v676 = vunpack.c.l.b16 %v173
  %v677 = vunpack.c.h.b16 %v173
  %v678 = vunpack.c.l.b16 %v174
  %v679 = vpack.c.b16 %v434, %v427
  %v680 = vpack.c.b16 %v435, %v428
  %v681 = vpack.c.b16 %v436, %v429
  %v682 = vpack.c.b16 %v437, %v430
  %v683 = vpack.c.b16 %v438, %v431
  %v684 = vpack.c.b16 %v439, %v432
  %v685 = vpack.c.b16 %v440, %v433
  %v686 = vpack.c.b16 %v448, %v441
  %v687 = vpack.c.b16 %v449, %v442
  %v688 = vpack.c.b16 %v450, %v443
  %v689 = vpack.c.b16 %v451, %v444
  %v690 = vpack.c.b16 %v452, %v445
  %v691 = vpack.c.b16 %v453, %v446
  %v692 = vpack.c.b16 %v454, %v447
  %v693 = vpack.c.b16 %v462, %v455
  %v694 = vpack.c.b16 %v463, %v456
  %v695 = vpack.c.b16 %v464, %v457
  %v696 = vpack.c.b16 %v465, %v458
  %v697 = vpack.c.b16 %v466, %v459
  %v698 = vpack.c.b16 %v467, %v460
  %v699 = vpack.c.b16 %v468, %v461
  %v700 = vpack.c.b16 %v476, %v469
  %v701 = vpack.c.b16 %v477, %v470
  %v702 = vpack.c.b16 %v478, %v471
  %v703 = vpack.c.b16 %v479, %v472
  %v704 = vpack.c.b16 %v480, %v473
  %v705 = vpack.c.b16 %v481, %v474
  %v706 = vpack.c.b16 %v482, %v475
  %v707 = vpack.c.b16 %v490, %v483
  %v708 = vpack.c.b16 %v491, %v484
  %v709 = vpack.c.b16 %v492, %v485
  %v710 = vpack.c.b16 %v493, %v486
  %v711 = vpack.c.b16 %v494, %v487
  %v712 = vpack.c.b16 %v495, %v488
  %v713 = vpack.c.b16 %v496, %v489
  %v714 = vpack.c.b16 %v504, %v497
  %v715 = vpack.c.b16 %v505, %v498
  %v716 = vpack.c.b16 %v506, %v499
  %v717 = vpack.c.b16 %v507, %v500
  %v718 = vpack.c.b16 %v508, %v501
  %v719 = vpack.c.b16 %v509, %v502
  %v720 = vpack.c.b16 %v510, %v503
  %v721 = vpack.c.b16 %v518, %v511
  %v722 = vpack.c.b16 %v519, %v512
  %v723 = vpack.c.b16 %v520, %v513
  %v724 = vpack.c.b16 %v521, %v514
  %v725 = vpack.c.b16 %v522, %v515
  %v726 = vpack.c.b16 %v523, %v516
  %v727 = vpack.c.b16 %v524, %v517
  %v728 = vpack.c.b16 %v532, %v525
  %v729 = vpack.c.b16 %v533, %v526
  %v730 = vpack.c.b16 %v534, %v527
  %v731 = vpack.c.b16 %v535, %v528
  %v732 = vpack.c.b16 %v536, %v529
  %v733 = vpack.c.b16 %v537, %v530
  %v734 = vpack.c.b16 %v538, %v531
  %v735 = vpack.c.b16 %v546, %v539
  %v736 = vpack.c.b16 %v547, %v540
  %v737 = vpack.c.b16 %v548, %v541
  %v738 = vpack.c.b16 %v549, %v542
  %v739 = vpack.c.b16 %v550, %v543
  %v740 = vpack.c.b16 %v551, %v544
  %v741 = vpack.c.b16 %v552, %v545
  %v742 = vpack.c.b16 %v560, %v553
  %v743 = vpack.c.b16 %v561, %v554
  %v744 = vpack.c.b16 %v562, %v555
  %v745 = vpack.c.b16 %v563, %v556
  %v746 = vpack.c.b16 %v564, %v557
  %v747 = vpack.c.b16 %v565, %v558
  %v748 = vpack.c.b16 %v566, %v559
  %v749 = vpack.c.b16 %v574, %v567
  %v750 = vpack.c.b16 %v575, %v568
  %v751 = vpack.c.b16 %v576, %v569
  %v752 = vpack.c.b16 %v577, %v570
  %v753 = vpack.c.b16 %v578, %v571
  %v754 = vpack.c.b16 %v579, %v572
  %v755 = vpack.c.b16 %v580, %v573
  %v756 = vpack.c.b16 %v588, %v581
  %v757 = vpack.c.b16 %v589, %v582
  %v758 = vpack.c.b16 %v590, %v583
  %v759 = vpack.c.b16 %v591, %v584
  %v760 = vpack.c.b16 %v592, %v585
  %v761 = vpack.c.b16 %v593, %v586
  %v762 = vpack.c.b16 %v594, %v587
  %v763 = vpack.c.b16 %v602, %v595
  %v764 = vpack.c.b16 %v603, %v596
  %v765 = vpack.c.b16 %v604, %v597
  %v766 = vpack.c.b16 %v605, %v598
  %v767 = vpack.c.b16 %v606, %v599
  %v768 = vpack.c.b16 %v607, %v600
  %v769 = vpack.c.b16 %v608, %v601
  %v770 = vpack.c.b16 %v616, %v609
  %v771 = vpack.c.b16 %v617, %v610
  %v772 = vpack.c.b16 %v618, %v611
  %v773 = vpack.c.b16 %v619, %v612
  %v774 = vpack.c.b16 %v620, %v613
  %v775 = vpack.c.b16 %v621, %v614
  %v776 = vpack.c.b16 %v622, %v615
  %v777 = vpack.c.b16 %v630, %v623
  %v778 = vpack.c.b16 %v631, %v624
  %v779 = vpack.c.b16 %v632, %v625
  %v780 = vpack.c.b16 %v633, %v626
  %v781 = vpack.c.b16 %v634, %v627
  %v782 = vpack.c.b16 %v635, %v628
  %v783 = vpack.c.b16 %v636, %v629
  %v784 = vpack.c.b16 %v644, %v637
  %v785 = vpack.c.b16 %v645, %v638
  %v786 = vpack.c.b16 %v646, %v639
  %v787 = vpack.c.b16 %v647, %v640
  %v788 = vpack.c.b16 %v648, %v641
  %v789 = vpack.c.b16 %v649, %v642
  %v790 = vpack.c.b16 %v650, %v643
  %v791 = vpack.c.b16 %v658, %v651
  %v792 = vpack.c.b16 %v659, %v652
  %v793 = vpack.c.b16 %v660, %v653
  %v794 = vpack.c.b16 %v661, %v654
  %v795 = vpack.c.b16 %v662, %v655
  %v796 = vpack.c.b16 %v663, %v656
  %v797 = vpack.c.b16 %v664, %v657
  %v798 = vpack.c.b16 %v672, %v665
  %v799 = vpack.c.b16 %v673, %v666
  %v800 = vpack.c.b16 %v674, %v667
  %v801 = vpack.c.b16 %v675, %v668
  %v802 = vpack.c.b16 %v676, %v669
  %v803 = vpack.c.b16 %v677, %v670
  %v804 = vpack.c.b16 %v678, %v671
  %vm931 = vcmask 261120
  %v933 = vsel %vm931, %v265, 0
  %v936 = vsel %vm931, %v268, 0
  %v939 = vsel %vm931, %v271, 0
  %v942 = vsel %vm931, %v274, 0
  %944 = vmatprep.subr.bf16.mxu0 %v680
  %945 = vmatpush1.bf16.msra.mxu0 %v679
  %946 = vmatprep.subr.bf16.mxu0 %v687
  %947 = vmatpush1.bf16.msra.mxu0 %v686
  %948 = vmatprep.subr.bf16.mxu0 %v694
  %949 = vmatpush1.bf16.msra.mxu0 %v693
  %950 = vmatprep.subr.bf16.mxu0 %v701
  %951 = vmatpush1.bf16.msra.mxu0 %v700
  %952 = vmatprep.subr.bf16.mxu0 %v708
  %953 = vmatpush1.bf16.msra.mxu0 %v707
  %954 = vmatprep.subr.bf16.mxu0 %v715
  %955 = vmatpush1.bf16.msra.mxu0 %v714
  %956 = vmatprep.subr.bf16.mxu0 %v722
  %957 = vmatpush1.bf16.msra.mxu0 %v721
  %958 = vmatprep.subr.bf16.mxu0 %v729
  %959 = vmatpush1.bf16.msra.mxu0 %v728
  %960 = vmatprep.subr.bf16.mxu0 %v736
  %961 = vmatpush1.bf16.msra.mxu0 %v735
  %962 = vmatprep.subr.bf16.mxu0 %v743
  %963 = vmatpush1.bf16.msra.mxu0 %v742
  %964 = vmatprep.subr.bf16.mxu0 %v750
  %965 = vmatpush1.bf16.msra.mxu0 %v749
  %966 = vmatprep.subr.bf16.mxu0 %v757
  %967 = vmatpush1.bf16.msra.mxu0 %v756
  %968 = vmatprep.subr.bf16.mxu0 %v764
  %969 = vmatpush1.bf16.msra.mxu0 %v763
  %970 = vmatprep.subr.bf16.mxu0 %v771
  %971 = vmatpush1.bf16.msra.mxu0 %v770
  %972 = vmatprep.subr.bf16.mxu0 %v778
  %973 = vmatpush1.bf16.msra.mxu0 %v777
  %974 = vmatprep.subr.bf16.mxu0 %v785
  %975 = vmatpush1.bf16.msra.mxu0 %v784
  %976 = vmatprep.mubr.bf16.mxu0 %v264
  %977 = vmatmul.mubr.bf16.gmra.mrb[0].mxu0 %v263
  %v978 = vpop.f32.mrb[0].mxu0
  %v979 = vadd.f32 %v186, %v978
  %v980 = vpop.f32.mrb[0].mxu0
  %v981 = vadd.f32 %v186, %v980
  %v982 = vpop.f32.mrb[0].mxu0
  %v983 = vadd.f32 %v191, %v982
  %v984 = vpop.f32.mrb[0].mxu0
  %v985 = vadd.f32 %v191, %v984
  %986 = vmatprep.mubr.bf16.mxu0 %v267
  %987 = vmatmul.mubr.bf16.gmra.mrb[0].mxu0 %v266
  %v988 = vpop.f32.mrb[0].mxu0
  %v989 = vadd.f32 %v196, %v988
  %v990 = vpop.f32.mrb[0].mxu0
  %v991 = vadd.f32 %v196, %v990
  %v992 = vpop.f32.mrb[0].mxu0
  %v993 = vadd.f32 %v201, %v992
  %v994 = vpop.f32.mrb[0].mxu0
  %v995 = vadd.f32 %v201, %v994
  %996 = vmatprep.mubr.bf16.mxu0 %v270
  %997 = vmatmul.mubr.bf16.gmra.mrb[0].mxu0 %v269
  %v998 = vpop.f32.mrb[0].mxu0
  %v999 = vadd.f32 %v206, %v998
  %v1000 = vpop.f32.mrb[0].mxu0
  %v1001 = vadd.f32 %v206, %v1000
  %v1002 = vpop.f32.mrb[0].mxu0
  %v1003 = vadd.f32 %v211, %v1002
  %v1004 = vpop.f32.mrb[0].mxu0
  %v1005 = vadd.f32 %v211, %v1004
  %1006 = vmatprep.mubr.bf16.mxu0 %v273
  %1007 = vmatmul.mubr.bf16.gmra.mrb[0].mxu0 %v272
  %v1008 = vpop.f32.mrb[0].mxu0
  %v1009 = vadd.f32 %v216, %v1008
  %v1010 = vpop.f32.mrb[0].mxu0
  %v1011 = vadd.f32 %v216, %v1010
  %v1012 = vpop.f32.mrb[0].mxu0
  %v1013 = vadd.f32 %v221, %v1012
  %v1014 = vpop.f32.mrb[0].mxu0
  %v1015 = vadd.f32 %v221, %v1014
  %1016 = vdwg.mxu0
  %1017 = vmatprep.subr.bf16.mxu0 %v792
  %1018 = vmatpush1.bf16.msra.mxu0 %v791
  %1019 = vmatprep.subr.bf16.mxu0 %v799
  %1020 = vmatpush1.bf16.msra.mxu0 %v798
  %1021 = vmatprep.subr.bf16.mxu0 0
  %1022 = vmatpush1.bf16.msra.mxu0 0
  %1023 = vmatprep.subr.bf16.mxu0 0
  %1024 = vmatpush1.bf16.msra.mxu0 0
  %1025 = vmatprep.subr.bf16.mxu0 0
  %1026 = vmatpush1.bf16.msra.mxu0 0
  %1027 = vmatprep.subr.bf16.mxu0 0
  %1028 = vmatpush1.bf16.msra.mxu0 0
  %1029 = vmatprep.subr.bf16.mxu0 0
  %1030 = vmatpush1.bf16.msra.mxu0 0
  %1031 = vmatprep.subr.bf16.mxu0 0
  %1032 = vmatpush1.bf16.msra.mxu0 0
  %1033 = vmatprep.subr.bf16.mxu0 0
  %1034 = vmatpush1.bf16.msra.mxu0 0
  %1035 = vmatprep.subr.bf16.mxu0 0
  %1036 = vmatpush1.bf16.msra.mxu0 0
  %1037 = vmatprep.subr.bf16.mxu0 0
  %1038 = vmatpush1.bf16.msra.mxu0 0
  %1039 = vmatprep.subr.bf16.mxu0 0
  %1040 = vmatpush1.bf16.msra.mxu0 0
  %1041 = vmatprep.subr.bf16.mxu0 0
  %1042 = vmatpush1.bf16.msra.mxu0 0
  %1043 = vmatprep.subr.bf16.mxu0 0
  %1044 = vmatpush1.bf16.msra.mxu0 0
  %1045 = vmatprep.subr.bf16.mxu0 0
  %1046 = vmatpush1.bf16.msra.mxu0 0
  %1047 = vmatprep.subr.bf16.mxu0 0
  %1048 = vmatpush1.bf16.msra.mxu0 0
  %1049 = vmatprep.mubr.bf16.mxu0 0
  %1050 = vmatmul.mubr.bf16.gmra.mrb[0].mxu0 %v933
  %v1051 = vpop.f32.mrb[0].mxu0
  %v1052 = vadd.f32 %v979, %v1051
  %v1053 = vpop.f32.mrb[0].mxu0
  %v1054 = vadd.f32 %v981, %v1053
  %v1055 = vpop.f32.mrb[0].mxu0
  %v1056 = vadd.f32 %v983, %v1055
  %v1057 = vpop.f32.mrb[0].mxu0
  %v1058 = vadd.f32 %v985, %v1057
  %1059 = vmatprep.mubr.bf16.mxu0 0
  %1060 = vmatmul.mubr.bf16.gmra.mrb[0].mxu0 %v936
  %v1061 = vpop.f32.mrb[0].mxu0
  %v1062 = vadd.f32 %v989, %v1061
  %v1063 = vpop.f32.mrb[0].mxu0
  %v1064 = vadd.f32 %v991, %v1063
  %v1065 = vpop.f32.mrb[0].mxu0
  %v1066 = vadd.f32 %v993, %v1065
  %v1067 = vpop.f32.mrb[0].mxu0
  %v1068 = vadd.f32 %v995, %v1067
  %1069 = vmatprep.mubr.bf16.mxu0 0
  %1070 = vmatmul.mubr.bf16.gmra.mrb[0].mxu0 %v939
  %v1071 = vpop.f32.mrb[0].mxu0
  %v1072 = vadd.f32 %v999, %v1071
  %v1073 = vpop.f32.mrb[0].mxu0
  %v1074 = vadd.f32 %v1001, %v1073
  %v1075 = vpop.f32.mrb[0].mxu0
  %v1076 = vadd.f32 %v1003, %v1075
  %v1077 = vpop.f32.mrb[0].mxu0
  %v1078 = vadd.f32 %v1005, %v1077
  %1079 = vmatprep.mubr.bf16.mxu0 0
  %1080 = vmatmul.mubr.bf16.gmra.mrb[0].mxu0 %v942
  %v1081 = vpop.f32.mrb[0].mxu0
  %v1082 = vadd.f32 %v1009, %v1081
  %v1083 = vpop.f32.mrb[0].mxu0
  %v1084 = vadd.f32 %v1011, %v1083
  %v1085 = vpop.f32.mrb[0].mxu0
  %v1086 = vadd.f32 %v1013, %v1085
  %v1087 = vpop.f32.mrb[0].mxu0
  %v1088 = vadd.f32 %v1015, %v1087
  %1089 = vdwg.mxu0
  %1090 = vmatprep.subr.bf16.mxu0 %v682
  %1091 = vmatpush1.bf16.msra.mxu0 %v681
  %1092 = vmatprep.subr.bf16.mxu0 %v689
  %1093 = vmatpush1.bf16.msra.mxu0 %v688
  %1094 = vmatprep.subr.bf16.mxu0 %v696
  %1095 = vmatpush1.bf16.msra.mxu0 %v695
  %1096 = vmatprep.subr.bf16.mxu0 %v703
  %1097 = vmatpush1.bf16.msra.mxu0 %v702
  %1098 = vmatprep.subr.bf16.mxu0 %v710
  %1099 = vmatpush1.bf16.msra.mxu0 %v709
  %1100 = vmatprep.subr.bf16.mxu0 %v717
  %1101 = vmatpush1.bf16.msra.mxu0 %v716
  %1102 = vmatprep.subr.bf16.mxu0 %v724
  %1103 = vmatpush1.bf16.msra.mxu0 %v723
  %1104 = vmatprep.subr.bf16.mxu0 %v731
  %1105 = vmatpush1.bf16.msra.mxu0 %v730
  %1106 = vmatprep.subr.bf16.mxu0 %v738
  %1107 = vmatpush1.bf16.msra.mxu0 %v737
  %1108 = vmatprep.subr.bf16.mxu0 %v745
  %1109 = vmatpush1.bf16.msra.mxu0 %v744
  %1110 = vmatprep.subr.bf16.mxu0 %v752
  %1111 = vmatpush1.bf16.msra.mxu0 %v751
  %1112 = vmatprep.subr.bf16.mxu0 %v759
  %1113 = vmatpush1.bf16.msra.mxu0 %v758
  %1114 = vmatprep.subr.bf16.mxu0 %v766
  %1115 = vmatpush1.bf16.msra.mxu0 %v765
  %1116 = vmatprep.subr.bf16.mxu0 %v773
  %1117 = vmatpush1.bf16.msra.mxu0 %v772
  %1118 = vmatprep.subr.bf16.mxu0 %v780
  %1119 = vmatpush1.bf16.msra.mxu0 %v779
  %1120 = vmatprep.subr.bf16.mxu0 %v787
  %1121 = vmatpush1.bf16.msra.mxu0 %v786
  %1122 = vmatprep.mubr.bf16.mxu0 %v264
  %1123 = vmatmul.mubr.bf16.gmra.mrb[0].mxu0 %v263
  %v1124 = vpop.f32.mrb[0].mxu0
  %v1125 = vadd.f32 %v186, %v1124
  %v1126 = vpop.f32.mrb[0].mxu0
  %v1127 = vadd.f32 %v186, %v1126
  %v1128 = vpop.f32.mrb[0].mxu0
  %v1129 = vadd.f32 %v191, %v1128
  %v1130 = vpop.f32.mrb[0].mxu0
  %v1131 = vadd.f32 %v191, %v1130
  %1132 = vmatprep.mubr.bf16.mxu0 %v267
  %1133 = vmatmul.mubr.bf16.gmra.mrb[0].mxu0 %v266
  %v1134 = vpop.f32.mrb[0].mxu0
  %v1135 = vadd.f32 %v196, %v1134
  %v1136 = vpop.f32.mrb[0].mxu0
  %v1137 = vadd.f32 %v196, %v1136
  %v1138 = vpop.f32.mrb[0].mxu0
  %v1139 = vadd.f32 %v201, %v1138
  %v1140 = vpop.f32.mrb[0].mxu0
  %v1141 = vadd.f32 %v201, %v1140
  %1142 = vmatprep.mubr.bf16.mxu0 %v270
  %1143 = vmatmul.mubr.bf16.gmra.mrb[0].mxu0 %v269
  %v1144 = vpop.f32.mrb[0].mxu0
  %v1145 = vadd.f32 %v206, %v1144
  %v1146 = vpop.f32.mrb[0].mxu0
  %v1147 = vadd.f32 %v206, %v1146
  %v1148 = vpop.f32.mrb[0].mxu0
  %v1149 = vadd.f32 %v211, %v1148
  %v1150 = vpop.f32.mrb[0].mxu0
  %v1151 = vadd.f32 %v211, %v1150
  %1152 = vmatprep.mubr.bf16.mxu0 %v273
  %1153 = vmatmul.mubr.bf16.gmra.mrb[0].mxu0 %v272
  %v1154 = vpop.f32.mrb[0].mxu0
  %v1155 = vadd.f32 %v216, %v1154
  %v1156 = vpop.f32.mrb[0].mxu0
  %v1157 = vadd.f32 %v216, %v1156
  %v1158 = vpop.f32.mrb[0].mxu0
  %v1159 = vadd.f32 %v221, %v1158
  %v1160 = vpop.f32.mrb[0].mxu0
  %v1161 = vadd.f32 %v221, %v1160
  %1162 = vdwg.mxu0
  %1163 = vmatprep.subr.bf16.mxu0 %v794
  %1164 = vmatpush1.bf16.msra.mxu0 %v793
  %1165 = vmatprep.subr.bf16.mxu0 %v801
  %1166 = vmatpush1.bf16.msra.mxu0 %v800
  %1167 = vmatprep.subr.bf16.mxu0 0
  %1168 = vmatpush1.bf16.msra.mxu0 0
  %1169 = vmatprep.subr.bf16.mxu0 0
  %1170 = vmatpush1.bf16.msra.mxu0 0
  %1171 = vmatprep.subr.bf16.mxu0 0
  %1172 = vmatpush1.bf16.msra.mxu0 0
  %1173 = vmatprep.subr.bf16.mxu0 0
  %1174 = vmatpush1.bf16.msra.mxu0 0
  %1175 = vmatprep.subr.bf16.mxu0 0
  %1176 = vmatpush1.bf16.msra.mxu0 0
  %1177 = vmatprep.subr.bf16.mxu0 0
  %1178 = vmatpush1.bf16.msra.mxu0 0
  %1179 = vmatprep.subr.bf16.mxu0 0
  %1180 = vmatpush1.bf16.msra.mxu0 0
  %1181 = vmatprep.subr.bf16.mxu0 0
  %1182 = vmatpush1.bf16.msra.mxu0 0
  %1183 = vmatprep.subr.bf16.mxu0 0
  %1184 = vmatpush1.bf16.msra.mxu0 0
  %1185 = vmatprep.subr.bf16.mxu0 0
  %1186 = vmatpush1.bf16.msra.mxu0 0
  %1187 = vmatprep.subr.bf16.mxu0 0
  %1188 = vmatpush1.bf16.msra.mxu0 0
  %1189 = vmatprep.subr.bf16.mxu0 0
  %1190 = vmatpush1.bf16.msra.mxu0 0
  %1191 = vmatprep.subr.bf16.mxu0 0
  %1192 = vmatpush1.bf16.msra.mxu0 0
  %1193 = vmatprep.subr.bf16.mxu0 0
  %1194 = vmatpush1.bf16.msra.mxu0 0
  %1195 = vmatprep.mubr.bf16.mxu0 0
  %1196 = vmatmul.mubr.bf16.gmra.mrb[0].mxu0 %v933
  %v1197 = vpop.f32.mrb[0].mxu0
  %v1198 = vadd.f32 %v1125, %v1197
  %v1199 = vpop.f32.mrb[0].mxu0
  %v1200 = vadd.f32 %v1127, %v1199
  %v1201 = vpop.f32.mrb[0].mxu0
  %v1202 = vadd.f32 %v1129, %v1201
  %v1203 = vpop.f32.mrb[0].mxu0
  %v1204 = vadd.f32 %v1131, %v1203
  %1205 = vmatprep.mubr.bf16.mxu0 0
  %1206 = vmatmul.mubr.bf16.gmra.mrb[0].mxu0 %v936
  %v1207 = vpop.f32.mrb[0].mxu0
  %v1208 = vadd.f32 %v1135, %v1207
  %v1209 = vpop.f32.mrb[0].mxu0
  %v1210 = vadd.f32 %v1137, %v1209
  %v1211 = vpop.f32.mrb[0].mxu0
  %v1212 = vadd.f32 %v1139, %v1211
  %v1213 = vpop.f32.mrb[0].mxu0
  %v1214 = vadd.f32 %v1141, %v1213
  %1215 = vmatprep.mubr.bf16.mxu0 0
  %1216 = vmatmul.mubr.bf16.gmra.mrb[0].mxu0 %v939
  %v1217 = vpop.f32.mrb[0].mxu0
  %v1218 = vadd.f32 %v1145, %v1217
  %v1219 = vpop.f32.mrb[0].mxu0
  %v1220 = vadd.f32 %v1147, %v1219
  %v1221 = vpop.f32.mrb[0].mxu0
  %v1222 = vadd.f32 %v1149, %v1221
  %v1223 = vpop.f32.mrb[0].mxu0
  %v1224 = vadd.f32 %v1151, %v1223
  %1225 = vmatprep.mubr.bf16.mxu0 0
  %1226 = vmatmul.mubr.bf16.gmra.mrb[0].mxu0 %v942
  %v1227 = vpop.f32.mrb[0].mxu0
  %v1228 = vadd.f32 %v1155, %v1227
  %v1229 = vpop.f32.mrb[0].mxu0
  %v1230 = vadd.f32 %v1157, %v1229
  %v1231 = vpop.f32.mrb[0].mxu0
  %v1232 = vadd.f32 %v1159, %v1231
  %v1233 = vpop.f32.mrb[0].mxu0
  %v1234 = vadd.f32 %v1161, %v1233
  %1235 = vdwg.mxu0
  %1236 = vmatprep.subr.bf16.mxu0 %v684
  %1237 = vmatpush1.bf16.msra.mxu0 %v683
  %1238 = vmatprep.subr.bf16.mxu0 %v691
  %1239 = vmatpush1.bf16.msra.mxu0 %v690
  %1240 = vmatprep.subr.bf16.mxu0 %v698
  %1241 = vmatpush1.bf16.msra.mxu0 %v697
  %1242 = vmatprep.subr.bf16.mxu0 %v705
  %1243 = vmatpush1.bf16.msra.mxu0 %v704
  %1244 = vmatprep.subr.bf16.mxu0 %v712
  %1245 = vmatpush1.bf16.msra.mxu0 %v711
  %1246 = vmatprep.subr.bf16.mxu0 %v719
  %1247 = vmatpush1.bf16.msra.mxu0 %v718
  %1248 = vmatprep.subr.bf16.mxu0 %v726
  %1249 = vmatpush1.bf16.msra.mxu0 %v725
  %1250 = vmatprep.subr.bf16.mxu0 %v733
  %1251 = vmatpush1.bf16.msra.mxu0 %v732
  %1252 = vmatprep.subr.bf16.mxu0 %v740
  %1253 = vmatpush1.bf16.msra.mxu0 %v739
  %1254 = vmatprep.subr.bf16.mxu0 %v747
  %1255 = vmatpush1.bf16.msra.mxu0 %v746
  %1256 = vmatprep.subr.bf16.mxu0 %v754
  %1257 = vmatpush1.bf16.msra.mxu0 %v753
  %1258 = vmatprep.subr.bf16.mxu0 %v761
  %1259 = vmatpush1.bf16.msra.mxu0 %v760
  %1260 = vmatprep.subr.bf16.mxu0 %v768
  %1261 = vmatpush1.bf16.msra.mxu0 %v767
  %1262 = vmatprep.subr.bf16.mxu0 %v775
  %1263 = vmatpush1.bf16.msra.mxu0 %v774
  %1264 = vmatprep.subr.bf16.mxu0 %v782
  %1265 = vmatpush1.bf16.msra.mxu0 %v781
  %1266 = vmatprep.subr.bf16.mxu0 %v789
  %1267 = vmatpush1.bf16.msra.mxu0 %v788
  %1268 = vmatprep.mubr.bf16.mxu0 %v264
  %1269 = vmatmul.mubr.bf16.gmra.mrb[0].mxu0 %v263
  %v1270 = vpop.f32.mrb[0].mxu0
  %v1271 = vadd.f32 %v186, %v1270
  %v1272 = vpop.f32.mrb[0].mxu0
  %v1273 = vadd.f32 %v186, %v1272
  %v1274 = vpop.f32.mrb[0].mxu0
  %v1275 = vadd.f32 %v191, %v1274
  %v1276 = vpop.f32.mrb[0].mxu0
  %v1277 = vadd.f32 %v191, %v1276
  %1278 = vmatprep.mubr.bf16.mxu0 %v267
  %1279 = vmatmul.mubr.bf16.gmra.mrb[0].mxu0 %v266
  %v1280 = vpop.f32.mrb[0].mxu0
  %v1281 = vadd.f32 %v196, %v1280
  %v1282 = vpop.f32.mrb[0].mxu0
  %v1283 = vadd.f32 %v196, %v1282
  %v1284 = vpop.f32.mrb[0].mxu0
  %v1285 = vadd.f32 %v201, %v1284
  %v1286 = vpop.f32.mrb[0].mxu0
  %v1287 = vadd.f32 %v201, %v1286
  %1288 = vmatprep.mubr.bf16.mxu0 %v270
  %1289 = vmatmul.mubr.bf16.gmra.mrb[0].mxu0 %v269
  %v1290 = vpop.f32.mrb[0].mxu0
  %v1291 = vadd.f32 %v206, %v1290
  %v1292 = vpop.f32.mrb[0].mxu0
  %v1293 = vadd.f32 %v206, %v1292
  %v1294 = vpop.f32.mrb[0].mxu0
  %v1295 = vadd.f32 %v211, %v1294
  %v1296 = vpop.f32.mrb[0].mxu0
  %v1297 = vadd.f32 %v211, %v1296
  %1298 = vmatprep.mubr.bf16.mxu0 %v273
  %1299 = vmatmul.mubr.bf16.gmra.mrb[0].mxu0 %v272
  %v1300 = vpop.f32.mrb[0].mxu0
  %v1301 = vadd.f32 %v216, %v1300
  %v1302 = vpop.f32.mrb[0].mxu0
  %v1303 = vadd.f32 %v216, %v1302
  %v1304 = vpop.f32.mrb[0].mxu0
  %v1305 = vadd.f32 %v221, %v1304
  %v1306 = vpop.f32.mrb[0].mxu0
  %v1307 = vadd.f32 %v221, %v1306
  %1308 = vdwg.mxu0
  %1309 = vmatprep.subr.bf16.mxu0 %v796
  %1310 = vmatpush1.bf16.msra.mxu0 %v795
  %1311 = vmatprep.subr.bf16.mxu0 %v803
  %1312 = vmatpush1.bf16.msra.mxu0 %v802
  %1313 = vmatprep.subr.bf16.mxu0 0
  %1314 = vmatpush1.bf16.msra.mxu0 0
  %1315 = vmatprep.subr.bf16.mxu0 0
  %1316 = vmatpush1.bf16.msra.mxu0 0
  %1317 = vmatprep.subr.bf16.mxu0 0
  %1318 = vmatpush1.bf16.msra.mxu0 0
  %1319 = vmatprep.subr.bf16.mxu0 0
  %1320 = vmatpush1.bf16.msra.mxu0 0
  %1321 = vmatprep.subr.bf16.mxu0 0
  %1322 = vmatpush1.bf16.msra.mxu0 0
  %1323 = vmatprep.subr.bf16.mxu0 0
  %1324 = vmatpush1.bf16.msra.mxu0 0
  %1325 = vmatprep.subr.bf16.mxu0 0
  %1326 = vmatpush1.bf16.msra.mxu0 0
  %1327 = vmatprep.subr.bf16.mxu0 0
  %1328 = vmatpush1.bf16.msra.mxu0 0
  %1329 = vmatprep.subr.bf16.mxu0 0
  %1330 = vmatpush1.bf16.msra.mxu0 0
  %1331 = vmatprep.subr.bf16.mxu0 0
  %1332 = vmatpush1.bf16.msra.mxu0 0
  %1333 = vmatprep.subr.bf16.mxu0 0
  %1334 = vmatpush1.bf16.msra.mxu0 0
  %1335 = vmatprep.subr.bf16.mxu0 0
  %1336 = vmatpush1.bf16.msra.mxu0 0
  %1337 = vmatprep.subr.bf16.mxu0 0
  %1338 = vmatpush1.bf16.msra.mxu0 0
  %1339 = vmatprep.subr.bf16.mxu0 0
  %1340 = vmatpush1.bf16.msra.mxu0 0
  %1341 = vmatprep.mubr.bf16.mxu0 0
  %1342 = vmatmul.mubr.bf16.gmra.mrb[0].mxu0 %v933
  %v1343 = vpop.f32.mrb[0].mxu0
  %v1344 = vadd.f32 %v1271, %v1343
  %v1345 = vpop.f32.mrb[0].mxu0
  %v1346 = vadd.f32 %v1273, %v1345
  %v1347 = vpop.f32.mrb[0].mxu0
  %v1348 = vadd.f32 %v1275, %v1347
  %v1349 = vpop.f32.mrb[0].mxu0
  %v1350 = vadd.f32 %v1277, %v1349
  %1351 = vmatprep.mubr.bf16.mxu0 0
  %1352 = vmatmul.mubr.bf16.gmra.mrb[0].mxu0 %v936
  %v1353 = vpop.f32.mrb[0].mxu0
  %v1354 = vadd.f32 %v1281, %v1353
  %v1355 = vpop.f32.mrb[0].mxu0
  %v1356 = vadd.f32 %v1283, %v1355
  %v1357 = vpop.f32.mrb[0].mxu0
  %v1358 = vadd.f32 %v1285, %v1357
  %v1359 = vpop.f32.mrb[0].mxu0
  %v1360 = vadd.f32 %v1287, %v1359
  %1361 = vmatprep.mubr.bf16.mxu0 0
  %1362 = vmatmul.mubr.bf16.gmra.mrb[0].mxu0 %v939
  %v1363 = vpop.f32.mrb[0].mxu0
  %v1364 = vadd.f32 %v1291, %v1363
  %v1365 = vpop.f32.mrb[0].mxu0
  %v1366 = vadd.f32 %v1293, %v1365
  %v1367 = vpop.f32.mrb[0].mxu0
  %v1368 = vadd.f32 %v1295, %v1367
  %v1369 = vpop.f32.mrb[0].mxu0
  %v1370 = vadd.f32 %v1297, %v1369
  %1371 = vmatprep.mubr.bf16.mxu0 0
  %1372 = vmatmul.mubr.bf16.gmra.mrb[0].mxu0 %v942
  %v1373 = vpop.f32.mrb[0].mxu0
  %v1374 = vadd.f32 %v1301, %v1373
  %v1375 = vpop.f32.mrb[0].mxu0
  %v1376 = vadd.f32 %v1303, %v1375
  %v1377 = vpop.f32.mrb[0].mxu0
  %v1378 = vadd.f32 %v1305, %v1377
  %v1379 = vpop.f32.mrb[0].mxu0
  %v1380 = vadd.f32 %v1307, %v1379
  %1381 = vdwg.mxu0
  %1382 = vmatprep.subr.bf16.mxu0 0
  %1383 = vmatpush1.bf16.msra.mxu0 %v685
  %1384 = vmatprep.subr.bf16.mxu0 0
  %1385 = vmatpush1.bf16.msra.mxu0 %v692
  %1386 = vmatprep.subr.bf16.mxu0 0
  %1387 = vmatpush1.bf16.msra.mxu0 %v699
  %1388 = vmatprep.subr.bf16.mxu0 0
  %1389 = vmatpush1.bf16.msra.mxu0 %v706
  %1390 = vmatprep.subr.bf16.mxu0 0
  %1391 = vmatpush1.bf16.msra.mxu0 %v713
  %1392 = vmatprep.subr.bf16.mxu0 0
  %1393 = vmatpush1.bf16.msra.mxu0 %v720
  %1394 = vmatprep.subr.bf16.mxu0 0
  %1395 = vmatpush1.bf16.msra.mxu0 %v727
  %1396 = vmatprep.subr.bf16.mxu0 0
  %1397 = vmatpush1.bf16.msra.mxu0 %v734
  %1398 = vmatprep.subr.bf16.mxu0 0
  %1399 = vmatpush1.bf16.msra.mxu0 %v741
  %1400 = vmatprep.subr.bf16.mxu0 0
  %1401 = vmatpush1.bf16.msra.mxu0 %v748
  %1402 = vmatprep.subr.bf16.mxu0 0
  %1403 = vmatpush1.bf16.msra.mxu0 %v755
  %1404 = vmatprep.subr.bf16.mxu0 0
  %1405 = vmatpush1.bf16.msra.mxu0 %v762
  %1406 = vmatprep.subr.bf16.mxu0 0
  %1407 = vmatpush1.bf16.msra.mxu0 %v769
  %1408 = vmatprep.subr.bf16.mxu0 0
  %1409 = vmatpush1.bf16.msra.mxu0 %v776
  %1410 = vmatprep.subr.bf16.mxu0 0
  %1411 = vmatpush1.bf16.msra.mxu0 %v783
  %1412 = vmatprep.subr.bf16.mxu0 0
  %1413 = vmatpush1.bf16.msra.mxu0 %v790
  %1414 = vmatprep.mubr.bf16.mxu0 %v264
  %1415 = vmatmul.mubr.bf16.gmra.mrb[0].mxu0 %v263
  %v1416 = vpop.f32.mrb[0].mxu0
  %v1417 = vadd.f32 %v186, %v1416
  %v1418 = vpop.f32.mrb[0].mxu0
  %v1419 = vpop.f32.mrb[0].mxu0
  %v1420 = vadd.f32 %v191, %v1419
  %v1421 = vpop.f32.mrb[0].mxu0
  %1422 = vmatprep.mubr.bf16.mxu0 %v267
  %1423 = vmatmul.mubr.bf16.gmra.mrb[0].mxu0 %v266
  %v1424 = vpop.f32.mrb[0].mxu0
  %v1425 = vadd.f32 %v196, %v1424
  %v1426 = vpop.f32.mrb[0].mxu0
  %v1427 = vpop.f32.mrb[0].mxu0
  %v1428 = vadd.f32 %v201, %v1427
  %v1429 = vpop.f32.mrb[0].mxu0
  %1430 = vmatprep.mubr.bf16.mxu0 %v270
  %1431 = vmatmul.mubr.bf16.gmra.mrb[0].mxu0 %v269
  %v1432 = vpop.f32.mrb[0].mxu0
  %v1433 = vadd.f32 %v206, %v1432
  %v1434 = vpop.f32.mrb[0].mxu0
  %v1435 = vpop.f32.mrb[0].mxu0
  %v1436 = vadd.f32 %v211, %v1435
  %v1437 = vpop.f32.mrb[0].mxu0
  %1438 = vmatprep.mubr.bf16.mxu0 %v273
  %1439 = vmatmul.mubr.bf16.gmra.mrb[0].mxu0 %v272
  %v1440 = vpop.f32.mrb[0].mxu0
  %v1441 = vadd.f32 %v216, %v1440
  %v1442 = vpop.f32.mrb[0].mxu0
  %v1443 = vpop.f32.mrb[0].mxu0
  %v1444 = vadd.f32 %v221, %v1443
  %v1445 = vpop.f32.mrb[0].mxu0
  %1446 = vdwg.mxu0
  %1447 = vmatprep.subr.bf16.mxu0 0
  %1448 = vmatpush1.bf16.msra.mxu0 %v797
  %1449 = vmatprep.subr.bf16.mxu0 0
  %1450 = vmatpush1.bf16.msra.mxu0 %v804
  %1451 = vmatprep.subr.bf16.mxu0 0
  %1452 = vmatpush1.bf16.msra.mxu0 0
  %1453 = vmatprep.subr.bf16.mxu0 0
  %1454 = vmatpush1.bf16.msra.mxu0 0
  %1455 = vmatprep.subr.bf16.mxu0 0
  %1456 = vmatpush1.bf16.msra.mxu0 0
  %1457 = vmatprep.subr.bf16.mxu0 0
  %1458 = vmatpush1.bf16.msra.mxu0 0
  %1459 = vmatprep.subr.bf16.mxu0 0
  %1460 = vmatpush1.bf16.msra.mxu0 0
  %1461 = vmatprep.subr.bf16.mxu0 0
  %1462 = vmatpush1.bf16.msra.mxu0 0
  %1463 = vmatprep.subr.bf16.mxu0 0
  %1464 = vmatpush1.bf16.msra.mxu0 0
  %1465 = vmatprep.subr.bf16.mxu0 0
  %1466 = vmatpush1.bf16.msra.mxu0 0
  %1467 = vmatprep.subr.bf16.mxu0 0
  %1468 = vmatpush1.bf16.msra.mxu0 0
  %1469 = vmatprep.subr.bf16.mxu0 0
  %1470 = vmatpush1.bf16.msra.mxu0 0
  %1471 = vmatprep.subr.bf16.mxu0 0
  %1472 = vmatpush1.bf16.msra.mxu0 0
  %1473 = vmatprep.subr.bf16.mxu0 0
  %1474 = vmatpush1.bf16.msra.mxu0 0
  %1475 = vmatprep.subr.bf16.mxu0 0
  %1476 = vmatpush1.bf16.msra.mxu0 0
  %1477 = vmatprep.subr.bf16.mxu0 0
  %1478 = vmatpush1.bf16.msra.mxu0 0
  %1479 = vmatprep.mubr.bf16.mxu0 0
  %1480 = vmatmul.mubr.bf16.gmra.mrb[0].mxu0 %v933
  %v1481 = vpop.f32.mrb[0].mxu0
  %v1482 = vadd.f32 %v1417, %v1481
  %v1483 = vpop.f32.mrb[0].mxu0
  %v1484 = vpop.f32.mrb[0].mxu0
  %v1485 = vadd.f32 %v1420, %v1484
  %v1486 = vpop.f32.mrb[0].mxu0
  %1487 = vmatprep.mubr.bf16.mxu0 0
  %1488 = vmatmul.mubr.bf16.gmra.mrb[0].mxu0 %v936
  %v1489 = vpop.f32.mrb[0].mxu0
  %v1490 = vadd.f32 %v1425, %v1489
  %v1491 = vpop.f32.mrb[0].mxu0
  %v1492 = vpop.f32.mrb[0].mxu0
  %v1493 = vadd.f32 %v1428, %v1492
  %v1494 = vpop.f32.mrb[0].mxu0
  %1495 = vmatprep.mubr.bf16.mxu0 0
  %1496 = vmatmul.mubr.bf16.gmra.mrb[0].mxu0 %v939
  %v1497 = vpop.f32.mrb[0].mxu0
  %v1498 = vadd.f32 %v1433, %v1497
  %v1499 = vpop.f32.mrb[0].mxu0
  %v1500 = vpop.f32.mrb[0].mxu0
  %v1501 = vadd.f32 %v1436, %v1500
  %v1502 = vpop.f32.mrb[0].mxu0
  %1503 = vmatprep.mubr.bf16.mxu0 0
  %1504 = vmatmul.mubr.bf16.gmra.mrb[0].mxu0 %v942
  %v1505 = vpop.f32.mrb[0].mxu0
  %v1506 = vadd.f32 %v1441, %v1505
  %v1507 = vpop.f32.mrb[0].mxu0
  %v1508 = vpop.f32.mrb[0].mxu0
  %v1509 = vadd.f32 %v1444, %v1508
  %v1510 = vpop.f32.mrb[0].mxu0
  %1511 = vdwg.mxu0
  %v1512 = vmax.f32 %v1052, 0.0
  %v1513 = vmax.f32 %v1054, 0.0
  %v1514 = vmax.f32 %v1198, 0.0
  %v1515 = vmax.f32 %v1200, 0.0
  %v1516 = vmax.f32 %v1344, 0.0
  %v1517 = vmax.f32 %v1346, 0.0
  %v1518 = vmax.f32 %v1482, 0.0
  %v1519 = vmax.f32 %v1056, 0.0
  %v1520 = vmax.f32 %v1058, 0.0
  %v1521 = vmax.f32 %v1202, 0.0
  %v1522 = vmax.f32 %v1204, 0.0
  %v1523 = vmax.f32 %v1348, 0.0
  %v1524 = vmax.f32 %v1350, 0.0
  %v1525 = vmax.f32 %v1485, 0.0
  %v1526 = vmax.f32 %v1062, 0.0
  %v1527 = vmax.f32 %v1064, 0.0
  %v1528 = vmax.f32 %v1208, 0.0
  %v1529 = vmax.f32 %v1210, 0.0
  %v1530 = vmax.f32 %v1354, 0.0
  %v1531 = vmax.f32 %v1356, 0.0
  %v1532 = vmax.f32 %v1490, 0.0
  %v1533 = vmax.f32 %v1066, 0.0
  %v1534 = vmax.f32 %v1068, 0.0
  %v1535 = vmax.f32 %v1212, 0.0
  %v1536 = vmax.f32 %v1214, 0.0
  %v1537 = vmax.f32 %v1358, 0.0
  %v1538 = vmax.f32 %v1360, 0.0
  %v1539 = vmax.f32 %v1493, 0.0
  %v1540 = vmax.f32 %v1072, 0.0
  %v1541 = vmax.f32 %v1074, 0.0
  %v1542 = vmax.f32 %v1218, 0.0
  %v1543 = vmax.f32 %v1220, 0.0
  %v1544 = vmax.f32 %v1364, 0.0
  %v1545 = vmax.f32 %v1366, 0.0
  %v1546 = vmax.f32 %v1498, 0.0
  %v1547 = vmax.f32 %v1076, 0.0
  %v1548 = vmax.f32 %v1078, 0.0
  %v1549 = vmax.f32 %v1222, 0.0
  %v1550 = vmax.f32 %v1224, 0.0
  %v1551 = vmax.f32 %v1368, 0.0
  %v1552 = vmax.f32 %v1370, 0.0
  %v1553 = vmax.f32 %v1501, 0.0
  %v1554 = vmax.f32 %v1082, 0.0
  %v1555 = vmax.f32 %v1084, 0.0
  %v1556 = vmax.f32 %v1228, 0.0
  %v1557 = vmax.f32 %v1230, 0.0
  %v1558 = vmax.f32 %v1374, 0.0
  %v1559 = vmax.f32 %v1376, 0.0
  %v1560 = vmax.f32 %v1506, 0.0
  %v1561 = vmax.f32 %v1086, 0.0
  %v1562 = vmax.f32 %v1088, 0.0
  %v1563 = vmax.f32 %v1232, 0.0
  %v1564 = vmax.f32 %v1234, 0.0
  %v1565 = vmax.f32 %v1378, 0.0
  %v1566 = vmax.f32 %v1380, 0.0
  %v1567 = vmax.f32 %v1509, 0.0
  %v1568 = vpack.c.bf16 %v1519, %v1512
  %v1569 = vpack.c.bf16 %v1520, %v1513
  %v1570 = vpack.c.bf16 %v1521, %v1514
  %v1571 = vpack.c.bf16 %v1522, %v1515
  %v1572 = vpack.c.bf16 %v1523, %v1516
  %v1573 = vpack.c.bf16 %v1524, %v1517
  %v1574 = vpack.c.bf16 %v1525, %v1518
  %v1575 = vpack.c.bf16 %v1533, %v1526
  %v1576 = vpack.c.bf16 %v1534, %v1527
  %v1577 = vpack.c.bf16 %v1535, %v1528
  %v1578 = vpack.c.bf16 %v1536, %v1529
  %v1579 = vpack.c.bf16 %v1537, %v1530
  %v1580 = vpack.c.bf16 %v1538, %v1531
  %v1581 = vpack.c.bf16 %v1539, %v1532
  %v1582 = vpack.c.bf16 %v1547, %v1540
  %v1583 = vpack.c.bf16 %v1548, %v1541
  %v1584 = vpack.c.bf16 %v1549, %v1542
  %v1585 = vpack.c.bf16 %v1550, %v1543
  %v1586 = vpack.c.bf16 %v1551, %v1544
  %v1587 = vpack.c.bf16 %v1552, %v1545
  %v1588 = vpack.c.bf16 %v1553, %v1546
  %v1589 = vpack.c.bf16 %v1561, %v1554
  %v1590 = vpack.c.bf16 %v1562, %v1555
  %v1591 = vpack.c.bf16 %v1563, %v1556
  %v1592 = vpack.c.bf16 %v1564, %v1557
  %v1593 = vpack.c.bf16 %v1565, %v1558
  %v1594 = vpack.c.bf16 %v1566, %v1559
  %v1595 = vpack.c.bf16 %v1567, %v1560
  %v1624 = vunpack.c.l.b16 %v1568
  %v1625 = vunpack.c.l.b16 %v1569
  %v1626 = vunpack.c.l.b16 %v1570
  %v1627 = vunpack.c.l.b16 %v1571
  %v1628 = vunpack.c.l.b16 %v1572
  %v1629 = vunpack.c.l.b16 %v1573
  %v1630 = vunpack.c.l.b16 %v1574
  %v1631 = vunpack.c.h.b16 %v1568
  %v1632 = vunpack.c.h.b16 %v1569
  %v1633 = vunpack.c.h.b16 %v1570
  %v1634 = vunpack.c.h.b16 %v1571
  %v1635 = vunpack.c.h.b16 %v1572
  %v1636 = vunpack.c.h.b16 %v1573
  %v1637 = vunpack.c.h.b16 %v1574
  %v1638 = vunpack.c.l.b16 %v1575
  %v1639 = vunpack.c.l.b16 %v1576
  %v1640 = vunpack.c.l.b16 %v1577
  %v1641 = vunpack.c.l.b16 %v1578
  %v1642 = vunpack.c.l.b16 %v1579
  %v1643 = vunpack.c.l.b16 %v1580
  %v1644 = vunpack.c.l.b16 %v1581
  %v1645 = vunpack.c.h.b16 %v1575
  %v1646 = vunpack.c.h.b16 %v1576
  %v1647 = vunpack.c.h.b16 %v1577
  %v1648 = vunpack.c.h.b16 %v1578
  %v1649 = vunpack.c.h.b16 %v1579
  %v1650 = vunpack.c.h.b16 %v1580
  %v1651 = vunpack.c.h.b16 %v1581
  %v1652 = vunpack.c.l.b16 %v1582
  %v1653 = vunpack.c.l.b16 %v1583
  %v1654 = vunpack.c.l.b16 %v1584
  %v1655 = vunpack.c.l.b16 %v1585
  %v1656 = vunpack.c.l.b16 %v1586
  %v1657 = vunpack.c.l.b16 %v1587
  %v1658 = vunpack.c.l.b16 %v1588
  %v1659 = vunpack.c.h.b16 %v1582
  %v1660 = vunpack.c.h.b16 %v1583
  %v1661 = vunpack.c.h.b16 %v1584
  %v1662 = vunpack.c.h.b16 %v1585
  %v1663 = vunpack.c.h.b16 %v1586
  %v1664 = vunpack.c.h.b16 %v1587
  %v1665 = vunpack.c.h.b16 %v1588
  %v1666 = vunpack.c.l.b16 %v1589
  %v1667 = vunpack.c.l.b16 %v1590
  %v1668 = vunpack.c.l.b16 %v1591
  %v1669 = vunpack.c.l.b16 %v1592
  %v1670 = vunpack.c.l.b16 %v1593
  %v1671 = vunpack.c.l.b16 %v1594
  %v1672 = vunpack.c.l.b16 %v1595
  %v1673 = vunpack.c.h.b16 %v1589
  %v1674 = vunpack.c.h.b16 %v1590
  %v1675 = vunpack.c.h.b16 %v1591
  %v1676 = vunpack.c.h.b16 %v1592
  %v1677 = vunpack.c.h.b16 %v1593
  %v1678 = vunpack.c.h.b16 %v1594
  %v1679 = vunpack.c.h.b16 %v1595
  %v1680 = vpack.c.b16 %v1625, %v1624
  %v1681 = vpack.c.b16 %v1627, %v1626
  %v1682 = vpack.c.b16 %v1629, %v1628
  %v1683 = vpack.c.b16 %v1630, %v1630
  %v1684 = vpack.c.b16 %v1632, %v1631
  %v1685 = vpack.c.b16 %v1634, %v1633
  %v1686 = vpack.c.b16 %v1636, %v1635
  %v1687 = vpack.c.b16 %v1637, %v1637
  %v1688 = vpack.c.b16 %v1639, %v1638
  %v1689 = vpack.c.b16 %v1641, %v1640
  %v1690 = vpack.c.b16 %v1643, %v1642
  %v1691 = vpack.c.b16 %v1644, %v1644
  %v1692 = vpack.c.b16 %v1646, %v1645
  %v1693 = vpack.c.b16 %v1648, %v1647
  %v1694 = vpack.c.b16 %v1650, %v1649
  %v1695 = vpack.c.b16 %v1651, %v1651
  %v1696 = vpack.c.b16 %v1653, %v1652
  %v1697 = vpack.c.b16 %v1655, %v1654
  %v1698 = vpack.c.b16 %v1657, %v1656
  %v1699 = vpack.c.b16 %v1658, %v1658
  %v1700 = vpack.c.b16 %v1660, %v1659
  %v1701 = vpack.c.b16 %v1662, %v1661
  %v1702 = vpack.c.b16 %v1664, %v1663
  %v1703 = vpack.c.b16 %v1665, %v1665
  %v1704 = vpack.c.b16 %v1667, %v1666
  %v1705 = vpack.c.b16 %v1669, %v1668
  %v1706 = vpack.c.b16 %v1671, %v1670
  %v1707 = vpack.c.b16 %v1672, %v1672
  %v1708 = vpack.c.b16 %v1674, %v1673
  %v1709 = vpack.c.b16 %v1676, %v1675
  %v1710 = vpack.c.b16 %v1678, %v1677
  %v1711 = vpack.c.b16 %v1679, %v1679
  %1744 = vst [vmem:[%s3] sm:$0xff] %v1680
  %1745 = vst [vmem:[%s3 + $0x8] sm:$0xff] %v1681
  %1746 = vst [vmem:[%s3 + $0x10] sm:$0xff] %v1682
  %vm1747 = vcmask 584704
  %1748 = vst.msk [vmem:[%s3 + $0x18] sm:$0xf] %vm1747, %v1683
  %1749 = vst [vmem:[%s3 + $0x1c] sm:$0xff] %v1684
  %1750 = vst [vmem:[%s3 + $0x24] sm:$0xff] %v1685
  %1751 = vst [vmem:[%s3 + $0x2c] sm:$0xff] %v1686
  %1752 = vst.msk [vmem:[%s3 + $0x34] sm:$0xf] %vm1747, %v1687
  %1753 = vst [vmem:[%s3 + $0x38] sm:$0xff] %v1688
  %1754 = vst [vmem:[%s3 + $0x40] sm:$0xff] %v1689
  %1755 = vst [vmem:[%s3 + $0x48] sm:$0xff] %v1690
  %1756 = vst.msk [vmem:[%s3 + $0x50] sm:$0xf] %vm1747, %v1691
  %1757 = vst [vmem:[%s3 + $0x54] sm:$0xff] %v1692
  %1758 = vst [vmem:[%s3 + $0x5c] sm:$0xff] %v1693
  %1759 = vst [vmem:[%s3 + $0x64] sm:$0xff] %v1694
  %1760 = vst.msk [vmem:[%s3 + $0x6c] sm:$0xf] %vm1747, %v1695
  %1761 = vst [vmem:[%s3 + $0x70] sm:$0xff] %v1696
  %1762 = vst [vmem:[%s3 + $0x78] sm:$0xff] %v1697
  %1763 = vst [vmem:[%s3 + $0x80] sm:$0xff] %v1698
  %1764 = vst.msk [vmem:[%s3 + $0x88] sm:$0xf] %vm1747, %v1699
  %1765 = vst [vmem:[%s3 + $0x8c] sm:$0xff] %v1700
  %1766 = vst [vmem:[%s3 + $0x94] sm:$0xff] %v1701
  %1767 = vst [vmem:[%s3 + $0x9c] sm:$0xff] %v1702
  %1768 = vst.msk [vmem:[%s3 + $0xa4] sm:$0xf] %vm1747, %v1703
  %1769 = vst [vmem:[%s3 + $0xa8] sm:$0xff] %v1704
  %1770 = vst [vmem:[%s3 + $0xb0] sm:$0xff] %v1705
  %1771 = vst [vmem:[%s3 + $0xb8] sm:$0xff] %v1706
  %1772 = vst.msk [vmem:[%s3 + $0xc0] sm:$0xf] %vm1747, %v1707
  %1773 = vst [vmem:[%s3 + $0xc4] sm:$0xff] %v1708
  %1774 = vst [vmem:[%s3 + $0xcc] sm:$0xff] %v1709
  %1775 = vst [vmem:[%s3 + $0xd4] sm:$0xff] %v1710
  %1776 = vst.msk [vmem:[%s3 + $0xdc] sm:$0xf] %vm1747, %v1711
  // Predicated region
  $region14: #{dqn_forward.4} parent=0 // pred_check
    _
  $region15: #{dqn_forward.4} parent=0 // pred_check_branch
    %1778 = sbr.rel (0) target = $region17
  $region16: #{dqn_forward.4} parent=0 // pred_region
    _
  $region17: #{dqn_forward.4} parent=0 // pred_fallthru
    _
  // Predicated region
  $region18: #{dqn_forward.4} parent=0 // pred_check
    _
  $region19: #{dqn_forward.4} parent=0 // pred_check_branch
    %1780 = sbr.rel (0) target = $region21
  $region20: #{dqn_forward.4} parent=0 // pred_region
    _
  $region21: #{dqn_forward.4} parent=0 // pred_fallthru
    _

// kernel: dqn_forward.5
$region0: #{dqn_forward.5}
  #allocation0 [shape = 'u32[]', space=smem, size = 0x4, offset = 0x4, fixed_abs, tag = 'smem constant byte address 0x4 - core index']
  #allocation1 [shape = 'u32[144,128]{1,0:T(1,128)}', space=vmem, size = 0x12000, scoped, tag = 'internal scratch']
  #allocation2 [shape = 'f32[2,256]{1,0:T(2,128)}', space=vmem, size = 0x800, scoped, tag = 'scratch operand']
  %s0 = inlined_call_operand.vmem [shape: bf16[2,26880], index: 0, kind: input, shape index: {}]
  %s1 = inlined_call_operand.hbm [shape: bf16[26880,512], index: 1, kind: input, shape index: {}]
  %s2 = inlined_call_operand.vmem [shape: f32[1,512], index: 2, kind: input, shape index: {}]
  %s3 = inlined_call_operand.vmem [shape: f32[512,5], index: 3, kind: input, shape index: {}]
  %s4 = inlined_call_operand.vmem [shape: f32[1,5], index: 4, kind: input, shape index: {}]
  %s5 = inlined_call_operand.vmem [shape: f32[2,2,5], index: 5, kind: output, shape index: {}]
  %s6 = sld [smem:[#allocation0]]
  $region65: #{dqn_forward.5} parent=0
    _
  %s8 = ssub.s32 1, %s6
  %s9 = scalar_select 0, %s8, %s6
  $region1: #{dqn_forward.5} parent=0
    #allocation3 [shape = 'u8[9175040]{0}', space=vmem, size = 0x8c0000, scoped, tag = 'input window, operand 1']
    #allocation4 [shape = 's32[2]{0}', space=sflag, size = 0x8, scoped, tag = 'scoped memory for dqn_forward.5']
    %10 = vsyncpa [#allocation4], 0
    %s11 = scalar_lea.sflag [#allocation4], 1
    %12 = vsyncpa %s11, 0
    loop: start=0, step=1, limit=8
    $region2: #{dqn_forward.5} parent=1 // loop_pre_header
      _
    $region3: #{dqn_forward.5} parent=1 // loop_header
      %s14 = sphi 0, %s18
      %p15 = scmp.ge.s32.totalorder %s14, 8
      %s21 = sphi 0, %s33
      %s22 = sphi 0, %s29
      %s23 = sphi 0, %s21
      %s24 = sphi 0, %s22
      %s25 = sphi 0, %s23
      %s26 = sphi 0, %s24
      %s36 = sphi 0, %s38
      %s39 = sphi 0, %s36
      %s40 = sphi 0, %s39
      %s56 = sphi 0, %s40
      %s64 = sphi 0, %s66
      %s67 = sphi 0, %s64
      %s68 = sphi 0, %s67
      %s84 = sphi 0, %s68
      %s90 = sphi 0, %s92
      %s93 = sphi 0, %s90
      %s94 = sphi 0, %s93
      %s110 = sphi 0, %s94
      %s116 = sphi 0, %s118
      %s119 = sphi 0, %s116
      %s120 = sphi 0, %s119
      %s136 = sphi 0, %s120
      %s140 = sphi 0, %s140
      %s142 = sphi 0, %s140
      %s143 = sphi 0, %s142
      %s157 = sphi 0, %s143
      %s163 = sphi 0, %s165
      %s166 = sphi 0, %s163
      %s167 = sphi 0, %s166
      %s183 = sphi 0, %s167
    $region4: #{dqn_forward.5} parent=1 // loop_header_branch
      %17 = sbr.rel (%p15) target = $region8
    $region5: #{dqn_forward.5} parent=1 // loop_body
      %s19 = ssub.s32 %s14, 1
      %s20 = ssub.s32 %s14, 2
      %s27 = sadd.s32 1, %s22
      %p28 = scmp.ge.s32.totalorder %s27, 3
      %s29 = scalar_select %p28, 0, %s27
      %s30 = sadd.s32 1, %s21
      %s31 = scalar_select %p28, %s30, %s21
      %p32 = scmp.ge.s32.totalorder %s31, 2
      %s33 = scalar_select %p32, 0, %s31
      %s34 = ssub.s32 %s22, %s29
      %p35 = scmp.eq.s32.totalorder %s34, 0
      %s37 = sadd.s32 %s36, 1
      %s38 = scalar_select %p35, %s36, %s37
      %p41 = pneg %p35
      %p42 = scmp.eq.s32.totalorder %s14, 5
      %p43 = por %p41, %p42
      %p44 = scmp.ne.s32.totalorder %s36, %s39
      %p45 = scmp.eq.s32.totalorder %s14, 0
      %p46 = por %p44, %p45
      %p47 = scmp.ne.s32.totalorder %s36, %s39
      %p48 = scmp.eq.s32.totalorder %s19, 5
      %p49 = por %p47, %p48
      %p50 = scmp.ne.s32.totalorder %s39, %s40
      %p51 = scmp.eq.s32.totalorder %s19, 0
      %p52 = por %p50, %p51
      %p53 = scmp.ne.s32.totalorder %s39, %s40
      %p54 = scmp.eq.s32.totalorder %s20, 5
      %p55 = por %p53, %p54
      %p57 = scmp.ne.s32.totalorder %s40, %s56
      %p58 = scmp.eq.s32.totalorder %s20, 0
      %p59 = por %p57, %p58
      %s60 = ssub.s32 %s22, %s29
      %s61 = ssub.s32 %s21, %s33
      %s62 = sor.u32 %s60, %s61
      %p63 = scmp.eq.s32.totalorder %s62, 0
      %s65 = sadd.s32 %s64, 1
      %s66 = scalar_select %p63, %s64, %s65
      %p69 = pneg %p63
      %p70 = scmp.eq.s32.totalorder %s14, 5
      %p71 = por %p69, %p70
      %p72 = scmp.ne.s32.totalorder %s64, %s67
      %p73 = scmp.eq.s32.totalorder %s14, 0
      %p74 = por %p72, %p73
      %p75 = scmp.ne.s32.totalorder %s64, %s67
      %p76 = scmp.eq.s32.totalorder %s19, 5
      %p77 = por %p75, %p76
      %p78 = scmp.ne.s32.totalorder %s67, %s68
      %p79 = scmp.eq.s32.totalorder %s19, 0
      %p80 = por %p78, %p79
      %p81 = scmp.ne.s32.totalorder %s67, %s68
      %p82 = scmp.eq.s32.totalorder %s20, 5
      %p83 = por %p81, %p82
      %p85 = scmp.ne.s32.totalorder %s68, %s84
      %p86 = scmp.eq.s32.totalorder %s20, 0
      %p87 = por %p85, %p86
      %s88 = ssub.s32 %s21, %s33
      %p89 = scmp.eq.s32.totalorder %s88, 0
      %s91 = sadd.s32 %s90, 1
      %s92 = scalar_select %p89, %s90, %s91
      %p95 = pneg %p89
      %p96 = scmp.eq.s32.totalorder %s14, 5
      %p97 = por %p95, %p96
      %p98 = scmp.ne.s32.totalorder %s90, %s93
      %p99 = scmp.eq.s32.totalorder %s14, 0
      %p100 = por %p98, %p99
      %p101 = scmp.ne.s32.totalorder %s90, %s93
      %p102 = scmp.eq.s32.totalorder %s19, 5
      %p103 = por %p101, %p102
      %p104 = scmp.ne.s32.totalorder %s93, %s94
      %p105 = scmp.eq.s32.totalorder %s19, 0
      %p106 = por %p104, %p105
      %p107 = scmp.ne.s32.totalorder %s93, %s94
      %p108 = scmp.eq.s32.totalorder %s20, 5
      %p109 = por %p107, %p108
      %p111 = scmp.ne.s32.totalorder %s94, %s110
      %p112 = scmp.eq.s32.totalorder %s20, 0
      %p113 = por %p111, %p112
      %s114 = ssub.s32 %s21, %s33
      %p115 = scmp.eq.s32.totalorder %s114, 0
      %s117 = sadd.s32 %s116, 1
      %s118 = scalar_select %p115, %s116, %s117
      %p121 = pneg %p115
      %p122 = scmp.eq.s32.totalorder %s14, 5
      %p123 = por %p121, %p122
      %p124 = scmp.ne.s32.totalorder %s116, %s119
      %p125 = scmp.eq.s32.totalorder %s14, 0
      %p126 = por %p124, %p125
      %p127 = scmp.ne.s32.totalorder %s116, %s119
      %p128 = scmp.eq.s32.totalorder %s19, 5
      %p129 = por %p127, %p128
      %p130 = scmp.ne.s32.totalorder %s119, %s120
      %p131 = scmp.eq.s32.totalorder %s19, 0
      %p132 = por %p130, %p131
      %p133 = scmp.ne.s32.totalorder %s119, %s120
      %p134 = scmp.eq.s32.totalorder %s20, 5
      %p135 = por %p133, %p134
      %p137 = scmp.ne.s32.totalorder %s120, %s136
      %p138 = scmp.eq.s32.totalorder %s20, 0
      %p139 = por %p137, %p138
      %s141 = sadd.s32 %s140, 1
      %p144 = scmp.eq.s32.totalorder %s14, 5
      %p145 = scmp.ne.s32.totalorder %s140, %s142
      %p146 = scmp.eq.s32.totalorder %s14, 0
      %p147 = por %p145, %p146
      %p148 = scmp.ne.s32.totalorder %s140, %s142
      %p149 = scmp.eq.s32.totalorder %s19, 5
      %p150 = por %p148, %p149
      %p151 = scmp.ne.s32.totalorder %s142, %s143
      %p152 = scmp.eq.s32.totalorder %s19, 0
      %p153 = por %p151, %p152
      %p154 = scmp.ne.s32.totalorder %s142, %s143
      %p155 = scmp.eq.s32.totalorder %s20, 5
      %p156 = por %p154, %p155
      %p158 = scmp.ne.s32.totalorder %s143, %s157
      %p159 = scmp.eq.s32.totalorder %s20, 0
      %p160 = por %p158, %p159
      %s161 = ssub.s32 %s21, %s33
      %p162 = scmp.eq.s32.totalorder %s161, 0
      %s164 = sadd.s32 %s163, 1
      %s165 = scalar_select %p162, %s163, %s164
      %p168 = pneg %p162
      %p169 = scmp.eq.s32.totalorder %s14, 5
      %p170 = por %p168, %p169
      %p171 = scmp.ne.s32.totalorder %s163, %s166
      %p172 = scmp.eq.s32.totalorder %s14, 0
      %p173 = por %p171, %p172
      %p174 = scmp.ne.s32.totalorder %s163, %s166
      %p175 = scmp.eq.s32.totalorder %s19, 5
      %p176 = por %p174, %p175
      %p177 = scmp.ne.s32.totalorder %s166, %s167
      %p178 = scmp.eq.s32.totalorder %s19, 0
      %p179 = por %p177, %p178
      %p180 = scmp.ne.s32.totalorder %s166, %s167
      %p181 = scmp.eq.s32.totalorder %s20, 5
      %p182 = por %p180, %p181
      %p184 = scmp.ne.s32.totalorder %s167, %s183
      %p185 = scmp.eq.s32.totalorder %s20, 0
      %p186 = por %p184, %p185
      %p187 = scmp.le.s32.totalorder 1, %s14
      %p188 = scmp.lt.s32.totalorder %s14, 7
      %p189 = pnand %p187, %p188
      %p190 = pneg %p189
      // Predicated region
      $region9: #{dqn_forward.5} parent=5 // pred_check
        _
      $region10: #{dqn_forward.5} parent=5 // pred_check_branch
        %192 = sbr.rel (%p189) target = $region12
      $region11: #{dqn_forward.5} parent=5 // pred_region
        %s193 = ssub.s32 %s14, 1
        // Predicated region
        $region13: #{dqn_forward.5} parent=11 // pred_check
          %p194 = pneg %p153
        $region14: #{dqn_forward.5} parent=11 // pred_check_branch
          %196 = sbr.rel (%p194) target = $region16
        $region15: #{dqn_forward.5} parent=11 // pred_region
          _
        $region16: #{dqn_forward.5} parent=11 // pred_fallthru
          _
      $region12: #{dqn_forward.5} parent=5 // pred_fallthru
        _
      %p197 = scmp.lt.s32.totalorder %s14, 6
      // Predicated region
      $region17: #{dqn_forward.5} parent=5 // pred_check
        %p198 = pneg %p197
      $region18: #{dqn_forward.5} parent=5 // pred_check_branch
        %200 = sbr.rel (%p198) target = $region20
      $region19: #{dqn_forward.5} parent=5 // pred_region
        // Predicated region
        $region21: #{dqn_forward.5} parent=19 // pred_check
          %p201 = pneg %p46
        $region22: #{dqn_forward.5} parent=19 // pred_check_branch
          %203 = sbr.rel (%p201) target = $region24
        $region23: #{dqn_forward.5} parent=19 // pred_region
          %s204 = smul.u32 70, %s22
          %p205 = scmp.lt.s32.totalorder %s204, 209
          %s206 = scalar_select %p205, %s204, 209
          %s207 = scalar_lea.vmem %s0, %s206
          %s208 = smul.u32 70, %s22
        $region24: #{dqn_forward.5} parent=19 // pred_fallthru
          _
        // Predicated region
        $region25: #{dqn_forward.5} parent=19 // pred_check
          %p209 = pneg %p74
        $region26: #{dqn_forward.5} parent=19 // pred_check_branch
          %211 = sbr.rel (%p209) target = $region28
        $region27: #{dqn_forward.5} parent=19 // pred_region
          %s212 = sand.u32 %s64, 1
          %s213 = scalar_lea.sflag [#allocation4], %s212
          %s214 = sand.u32 %s64, 1
          %s215 = smul.addr %s214, 8960
          %s216 = scalar_lea.vmem [#allocation3], %s215
          %s217 = smul.u32 1120, %s22
          %s218 = smul.u32 2, %s21
          %s220 = ssub.s32 143360, 143360
          %221 = vsyncadd %s213, %s220
          %s222 = smul.addr %s217, 4
          %s223 = sadd.s32 %s218, %s222
          %s224 = smul.addr %s223, 64
          %s225 = scalar_lea.hbm %s1, %s224
          %s226 = sshll.u32 %s216, 4
          %s227 = int_to_ptr.vmem [resolvable:$true] %s226
          %232 = dma.hbm_to_vmem [thread:$0]  %s225, 143360, %s227, %s213, 256, 128, 8
        $region28: #{dqn_forward.5} parent=19 // pred_fallthru
          _
        // Predicated region
        $region29: #{dqn_forward.5} parent=19 // pred_check
          %p233 = pneg %p100
        $region30: #{dqn_forward.5} parent=19 // pred_check_branch
          %235 = sbr.rel (%p233) target = $region32
        $region31: #{dqn_forward.5} parent=19 // pred_region
          %s236 = smul.u32 2, %s21
          %p237 = scmp.lt.s32.totalorder %s236, 3
          %s238 = scalar_select %p237, %s236, 3
          %s239 = scalar_lea.vmem %s2, %s238
          %s240 = smul.u32 2, %s21
        $region32: #{dqn_forward.5} parent=19 // pred_fallthru
          _
        // Predicated region
        $region33: #{dqn_forward.5} parent=19 // pred_check
          %p241 = pneg %p126
        $region34: #{dqn_forward.5} parent=19 // pred_check_branch
          %243 = sbr.rel (%p241) target = $region36
        $region35: #{dqn_forward.5} parent=19 // pred_region
          %s244 = smul.u32 32, %s21
          %p245 = scmp.lt.s32.totalorder %s244, 63
          %s246 = scalar_select %p245, %s244, 63
          %s247 = smul.addr %s246, 8
          %s248 = scalar_lea.vmem %s3, %s247
          %s249 = smul.u32 32, %s21
        $region36: #{dqn_forward.5} parent=19 // pred_fallthru
          _
      $region20: #{dqn_forward.5} parent=5 // pred_fallthru
        _
      %p250 = scmp.le.s32.totalorder 1, %s14
      %p251 = scmp.lt.s32.totalorder %s14, 7
      %p252 = pnand %p250, %p251
      %p253 = pneg %p252
      // Predicated region
      $region37: #{dqn_forward.5} parent=5 // pred_check
        _
      $region38: #{dqn_forward.5} parent=5 // pred_check_branch
        %255 = sbr.rel (%p252) target = $region40
      $region39: #{dqn_forward.5} parent=5 // pred_region
        %s256 = ssub.s32 %s14, 1
        %s257 = sand.u32 %s67, 1
        %s258 = scalar_lea.sflag [#allocation4], %s257
        %s259 = sand.u32 %s67, 1
        %s260 = smul.addr %s259, 8960
        %s261 = scalar_lea.vmem [#allocation3], %s260
        // Predicated region
        $region41: #{dqn_forward.5} parent=39 // pred_check
          %p262 = pneg %p80
        $region42: #{dqn_forward.5} parent=39 // pred_check_branch
          %264 = sbr.rel (%p262) target = $region44
        $region43: #{dqn_forward.5} parent=39 // pred_region
          %265 = dma.done %s258, 143360
        $region44: #{dqn_forward.5} parent=39 // pred_fallthru
          _
        %s266 = smul.u32 70, %s24
        %p267 = scmp.lt.s32.totalorder %s266, 209
        %s268 = scalar_select %p267, %s266, 209
        %s269 = scalar_lea.vmem %s0, %s268
        %p270 = pneg %p52
        %p271 = pneg %p49
        %s272 = sand.u32 %s67, 1
        %s273 = scalar_lea.sflag [#allocation4], %s272
        %s274 = sand.u32 %s67, 1
        %s275 = smul.addr %s274, 8960
        %s276 = scalar_lea.vmem [#allocation3], %s275
        %p277 = pneg %p80
        %p278 = pneg %p77
        %s279 = smul.u32 2, %s23
        %p280 = scmp.lt.s32.totalorder %s279, 3
        %s281 = scalar_select %p280, %s279, 3
        %s282 = scalar_lea.vmem %s2, %s281
        %p283 = pneg %p106
        %p284 = pneg %p103
        %s285 = smul.u32 32, %s23
        %p286 = scmp.lt.s32.totalorder %s285, 63
        %s287 = scalar_select %p286, %s285, 63
        %s288 = smul.addr %s287, 8
        %s289 = scalar_lea.vmem %s3, %s288
        %p290 = pneg %p132
        %p291 = pneg %p129
        %p292 = pneg %p153
        %p293 = pneg %p150
        %p294 = pneg %p179
        %p295 = pneg %p176
        %p296 = scmp.lt.s32.totalorder %s23, 1
        %s297 = scalar_select %p296, %s23, 1
        %s298 = smul.addr %s297, 2
        %s299 = scalar_lea.vmem %s5, %s298
        %s300 = smul.u32 70, %s24
        %p301 = scmp.lt.s32.totalorder %s300, 209
        %s302 = scalar_select %p301, %s300, 209
        %s303 = scalar_lea.vmem %s0, %s302
        %s304 = smul.u32 70, %s24
        %s305 = smul.u32 1120, %s24
        %s306 = smul.u32 2, %s23
        %s307 = smul.u32 2, %s23
        %p308 = scmp.lt.s32.totalorder %s307, 3
        %s309 = scalar_select %p308, %s307, 3
        %s310 = scalar_lea.vmem %s2, %s309
        %s311 = smul.u32 2, %s23
        %s312 = smul.u32 32, %s23
        %p313 = scmp.lt.s32.totalorder %s312, 63
        %s314 = scalar_select %p313, %s312, 63
        %s315 = smul.addr %s314, 8
        %s316 = scalar_lea.vmem %s3, %s315
        %s317 = smul.u32 32, %s23
        %p318 = scmp.lt.s32.totalorder %s23, 1
        %s319 = scalar_select %p318, %s23, 1
        %s320 = smul.addr %s319, 2
        %s321 = scalar_lea.vmem %s5, %s320
        %p322 = scmp.eq.s32.totalorder %s24, 0
        // Predicated region
        $region45: #{dqn_forward.5} parent=39 // pred_check
          %p323 = pneg %p322
        $region46: #{dqn_forward.5} parent=39 // pred_check_branch
          %325 = sbr.rel (%p323) target = $region48
        $region47: #{dqn_forward.5} parent=39 // pred_region
          %326 = vst [vmem:[#allocation2] sm:$0xf] 0.0
        $region48: #{dqn_forward.5} parent=39 // pred_fallthru
          _
        %v327 = vld [vmem:[#allocation2] sm:$0xf]
        %v328 = vld [vmem:[%s303] sm:$0xff]
        %v329 = vld [vmem:[%s303 + $0x8] sm:$0xff]
        %v330 = vld [vmem:[%s303 + $0x10] sm:$0xff]
        %v331 = vld [vmem:[%s303 + $0x18] sm:$0xff]
        %v332 = vld [vmem:[%s303 + $0x20] sm:$0xff]
        %v333 = vld [vmem:[%s303 + $0x28] sm:$0xff]
        %v334 = vld [vmem:[%s303 + $0x30] sm:$0xff]
        %v335 = vld [vmem:[%s303 + $0x38] sm:$0xff]
        %v336 = vld [vmem:[%s303 + $0x40] sm:$0x3f]
        %v337 = vld [vmem:[%s261] sm:$0xff]
        %v338 = vld [vmem:[%s261 + $0x8] sm:$0xff]
        %v339 = vld [vmem:[%s261 + $0x10] sm:$0xff]
        %v340 = vld [vmem:[%s261 + $0x18] sm:$0xff]
        %v341 = vld [vmem:[%s261 + $0x20] sm:$0xff]
        %v342 = vld [vmem:[%s261 + $0x28] sm:$0xff]
        %v343 = vld [vmem:[%s261 + $0x30] sm:$0xff]
        %v344 = vld [vmem:[%s261 + $0x38] sm:$0xff]
        %v345 = vld [vmem:[%s261 + $0x40] sm:$0xff]
        %v346 = vld [vmem:[%s261 + $0x48] sm:$0xff]
        %v347 = vld [vmem:[%s261 + $0x50] sm:$0xff]
        %v348 = vld [vmem:[%s261 + $0x58] sm:$0xff]
        %v349 = vld [vmem:[%s261 + $0x60] sm:$0xff]
        %v350 = vld [vmem:[%s261 + $0x68] sm:$0xff]
        %v351 = vld [vmem:[%s261 + $0x70] sm:$0xff]
        %v352 = vld [vmem:[%s261 + $0x78] sm:$0xff]
        %v353 = vld [vmem:[%s261 + $0x80] sm:$0xff]
        %v354 = vld [vmem:[%s261 + $0x88] sm:$0xff]
        %v355 = vld [vmem:[%s261 + $0x90] sm:$0xff]
        %v356 = vld [vmem:[%s261 + $0x98] sm:$0xff]
        %v357 = vld [vmem:[%s261 + $0xa0] sm:$0xff]
        %v358 = vld [vmem:[%s261 + $0xa8] sm:$0xff]
        %v359 = vld [vmem:[%s261 + $0xb0] sm:$0xff]
        %v360 = vld [vmem:[%s261 + $0xb8] sm:$0xff]
        %v361 = vld [vmem:[%s261 + $0xc0] sm:$0xff]
        %v362 = vld [vmem:[%s261 + $0xc8] sm:$0xff]
        %v363 = vld [vmem:[%s261 + $0xd0] sm:$0xff]
        %v364 = vld [vmem:[%s261 + $0xd8] sm:$0xff]
        %v365 = vld [vmem:[%s261 + $0xe0] sm:$0xff]
        %v366 = vld [vmem:[%s261 + $0xe8] sm:$0xff]
        %v367 = vld [vmem:[%s261 + $0xf0] sm:$0xff]
        %v368 = vld [vmem:[%s261 + $0xf8] sm:$0xff]
        %v369 = vld [vmem:[%s261 + $0x100] sm:$0xff]
        %v370 = vld [vmem:[%s261 + $0x108] sm:$0xff]
        %v371 = vld [vmem:[%s261 + $0x110] sm:$0xff]
        %v372 = vld [vmem:[%s261 + $0x118] sm:$0xff]
        %v373 = vld [vmem:[%s261 + $0x120] sm:$0xff]
        %v374 = vld [vmem:[%s261 + $0x128] sm:$0xff]
        %v375 = vld [vmem:[%s261 + $0x130] sm:$0xff]
        %v376 = vld [vmem:[%s261 + $0x138] sm:$0xff]
        %v377 = vld [vmem:[%s261 + $0x140] sm:$0xff]
        %v378 = vld [vmem:[%s261 + $0x148] sm:$0xff]
        %v379 = vld [vmem:[%s261 + $0x150] sm:$0xff]
        %v380 = vld [vmem:[%s261 + $0x158] sm:$0xff]
        %v381 = vld [vmem:[%s261 + $0x160] sm:$0xff]
        %v382 = vld [vmem:[%s261 + $0x168] sm:$0xff]
        %v383 = vld [vmem:[%s261 + $0x170] sm:$0xff]
        %v384 = vld [vmem:[%s261 + $0x178] sm:$0xff]
        %v385 = vld [vmem:[%s261 + $0x180] sm:$0xff]
        %v386 = vld [vmem:[%s261 + $0x188] sm:$0xff]
        %v387 = vld [vmem:[%s261 + $0x190] sm:$0xff]
        %v388 = vld [vmem:[%s261 + $0x198] sm:$0xff]
        %v389 = vld [vmem:[%s261 + $0x1a0] sm:$0xff]
        %v390 = vld [vmem:[%s261 + $0x1a8] sm:$0xff]
        %v391 = vld [vmem:[%s261 + $0x1b0] sm:$0xff]
        %v392 = vld [vmem:[%s261 + $0x1b8] sm:$0xff]
        %v393 = vld [vmem:[%s261 + $0x1c0] sm:$0xff]
        %v394 = vld [vmem:[%s261 + $0x1c8] sm:$0xff]
        %v395 = vld [vmem:[%s261 + $0x1d0] sm:$0xff]
        %v396 = vld [vmem:[%s261 + $0x1d8] sm:$0xff]
        %v397 = vld [vmem:[%s261 + $0x1e0] sm:$0xff]
        %v398 = vld [vmem:[%s261 + $0x1e8] sm:$0xff]
        %v399 = vld [vmem:[%s261 + $0x1f0] sm:$0xff]
        %v400 = vld [vmem:[%s261 + $0x1f8] sm:$0xff]
        %v401 = vld [vmem:[%s261 + $0x200] sm:$0xff]
        %v402 = vld [vmem:[%s261 + $0x208] sm:$0xff]
        %v403 = vld [vmem:[%s261 + $0x210] sm:$0xff]
        %v404 = vld [vmem:[%s261 + $0x218] sm:$0xff]
        %v405 = vld [vmem:[%s261 + $0x220] sm:$0xff]
        %v406 = vld [vmem:[%s261 + $0x228] sm:$0xff]
        %v407 = vld [vmem:[%s261 + $0x230] sm:$0xff]
        %v408 = vld [vmem:[%s261 + $0x238] sm:$0xff]
        %v409 = vld [vmem:[%s261 + $0x240] sm:$0xff]
        %v410 = vld [vmem:[%s261 + $0x248] sm:$0xff]
        %v411 = vld [vmem:[%s261 + $0x250] sm:$0xff]
        %v412 = vld [vmem:[%s261 + $0x258] sm:$0xff]
        %v413 = vld [vmem:[%s261 + $0x260] sm:$0xff]
        %v414 = vld [vmem:[%s261 + $0x268] sm:$0xff]
        %v415 = vld [vmem:[%s261 + $0x270] sm:$0xff]
        %v416 = vld [vmem:[%s261 + $0x278] sm:$0xff]
        %v417 = vld [vmem:[%s261 + $0x280] sm:$0xff]
        %v418 = vld [vmem:[%s261 + $0x288] sm:$0xff]
        %v419 = vld [vmem:[%s261 + $0x290] sm:$0xff]
        %v420 = vld [vmem:[%s261 + $0x298] sm:$0xff]
        %v421 = vld [vmem:[%s261 + $0x2a0] sm:$0xff]
        %v422 = vld [vmem:[%s261 + $0x2a8] sm:$0xff]
        %v423 = vld [vmem:[%s261 + $0x2b0] sm:$0xff]
        %v424 = vld [vmem:[%s261 + $0x2b8] sm:$0xff]
        %v425 = vld [vmem:[%s261 + $0x2c0] sm:$0xff]
        %v426 = vld [vmem:[%s261 + $0x2c8] sm:$0xff]
        %v427 = vld [vmem:[%s261 + $0x2d0] sm:$0xff]
        %v428 = vld [vmem:[%s261 + $0x2d8] sm:$0xff]
        %v429 = vld [vmem:[%s261 + $0x2e0] sm:$0xff]
        %v430 = vld [vmem:[%s261 + $0x2e8] sm:$0xff]
        %v431 = vld [vmem:[%s261 + $0x2f0] sm:$0xff]
        %v432 = vld [vmem:[%s261 + $0x2f8] sm:$0xff]
        %v433 = vld [vmem:[%s261 + $0x300] sm:$0xff]
        %v434 = vld [vmem:[%s261 + $0x308] sm:$0xff]
        %v435 = vld [vmem:[%s261 + $0x310] sm:$0xff]
        %v436 = vld [vmem:[%s261 + $0x318] sm:$0xff]
        %v437 = vld [vmem:[%s261 + $0x320] sm:$0xff]
        %v438 = vld [vmem:[%s261 + $0x328] sm:$0xff]
        %v439 = vld [vmem:[%s261 + $0x330] sm:$0xff]
        %v440 = vld [vmem:[%s261 + $0x338] sm:$0xff]
        %v441 = vld [vmem:[%s261 + $0x340] sm:$0xff]
        %v442 = vld [vmem:[%s261 + $0x348] sm:$0xff]
        %v443 = vld [vmem:[%s261 + $0x350] sm:$0xff]
        %v444 = vld [vmem:[%s261 + $0x358] sm:$0xff]
        %v445 = vld [vmem:[%s261 + $0x360] sm:$0xff]
        %v446 = vld [vmem:[%s261 + $0x368] sm:$0xff]
        %v447 = vld [vmem:[%s261 + $0x370] sm:$0xff]
        %v448 = vld [vmem:[%s261 + $0x378] sm:$0xff]
        %v449 = vld [vmem:[%s261 + $0x380] sm:$0xff]
        %v450 = vld [vmem:[%s261 + $0x388] sm:$0xff]
        %v451 = vld [vmem:[%s261 + $0x390] sm:$0xff]
        %v452 = vld [vmem:[%s261 + $0x398] sm:$0xff]
        %v453 = vld [vmem:[%s261 + $0x3a0] sm:$0xff]
        %v454 = vld [vmem:[%s261 + $0x3a8] sm:$0xff]
        %v455 = vld [vmem:[%s261 + $0x3b0] sm:$0xff]
        %v456 = vld [vmem:[%s261 + $0x3b8] sm:$0xff]
        %v457 = vld [vmem:[%s261 + $0x3c0] sm:$0xff]
        %v458 = vld [vmem:[%s261 + $0x3c8] sm:$0xff]
        %v459 = vld [vmem:[%s261 + $0x3d0] sm:$0xff]
        %v460 = vld [vmem:[%s261 + $0x3d8] sm:$0xff]
        %v461 = vld [vmem:[%s261 + $0x3e0] sm:$0xff]
        %v462 = vld [vmem:[%s261 + $0x3e8] sm:$0xff]
        %v463 = vld [vmem:[%s261 + $0x3f0] sm:$0xff]
        %v464 = vld [vmem:[%s261 + $0x3f8] sm:$0xff]
        %v465 = vld [vmem:[%s261 + $0x400] sm:$0xff]
        %v466 = vld [vmem:[%s261 + $0x408] sm:$0xff]
        %v467 = vld [vmem:[%s261 + $0x410] sm:$0xff]
        %v468 = vld [vmem:[%s261 + $0x418] sm:$0xff]
        %v469 = vld [vmem:[%s261 + $0x420] sm:$0xff]
        %v470 = vld [vmem:[%s261 + $0x428] sm:$0xff]
        %v471 = vld [vmem:[%s261 + $0x430] sm:$0xff]
        %v472 = vld [vmem:[%s261 + $0x438] sm:$0xff]
        %v473 = vld [vmem:[%s261 + $0x440] sm:$0xff]
        %v474 = vld [vmem:[%s261 + $0x448] sm:$0xff]
        %v475 = vld [vmem:[%s261 + $0x450] sm:$0xff]
        %v476 = vld [vmem:[%s261 + $0x458] sm:$0xff]
        %v477 = vld [vmem:[%s261 + $0x460] sm:$0xff]
        %v478 = vld [vmem:[%s261 + $0x468] sm:$0xff]
        %v479 = vld [vmem:[%s261 + $0x470] sm:$0xff]
        %v480 = vld [vmem:[%s261 + $0x478] sm:$0xff]
        %v481 = vld [vmem:[%s261 + $0x480] sm:$0xff]
        %v482 = vld [vmem:[%s261 + $0x488] sm:$0xff]
        %v483 = vld [vmem:[%s261 + $0x490] sm:$0xff]
        %v484 = vld [vmem:[%s261 + $0x498] sm:$0xff]
        %v485 = vld [vmem:[%s261 + $0x4a0] sm:$0xff]
        %v486 = vld [vmem:[%s261 + $0x4a8] sm:$0xff]
        %v487 = vld [vmem:[%s261 + $0x4b0] sm:$0xff]
        %v488 = vld [vmem:[%s261 + $0x4b8] sm:$0xff]
        %v489 = vld [vmem:[%s261 + $0x4c0] sm:$0xff]
        %v490 = vld [vmem:[%s261 + $0x4c8] sm:$0xff]
        %v491 = vld [vmem:[%s261 + $0x4d0] sm:$0xff]
        %v492 = vld [vmem:[%s261 + $0x4d8] sm:$0xff]
        %v493 = vld [vmem:[%s261 + $0x4e0] sm:$0xff]
        %v494 = vld [vmem:[%s261 + $0x4e8] sm:$0xff]
        %v495 = vld [vmem:[%s261 + $0x4f0] sm:$0xff]
        %v496 = vld [vmem:[%s261 + $0x4f8] sm:$0xff]
        %v497 = vld [vmem:[%s261 + $0x500] sm:$0xff]
        %v498 = vld [vmem:[%s261 + $0x508] sm:$0xff]
        %v499 = vld [vmem:[%s261 + $0x510] sm:$0xff]
        %v500 = vld [vmem:[%s261 + $0x518] sm:$0xff]
        %v501 = vld [vmem:[%s261 + $0x520] sm:$0xff]
        %v502 = vld [vmem:[%s261 + $0x528] sm:$0xff]
        %v503 = vld [vmem:[%s261 + $0x530] sm:$0xff]
        %v504 = vld [vmem:[%s261 + $0x538] sm:$0xff]
        %v505 = vld [vmem:[%s261 + $0x540] sm:$0xff]
        %v506 = vld [vmem:[%s261 + $0x548] sm:$0xff]
        %v507 = vld [vmem:[%s261 + $0x550] sm:$0xff]
        %v508 = vld [vmem:[%s261 + $0x558] sm:$0xff]
        %v509 = vld [vmem:[%s261 + $0x560] sm:$0xff]
        %v510 = vld [vmem:[%s261 + $0x568] sm:$0xff]
        %v511 = vld [vmem:[%s261 + $0x570] sm:$0xff]
        %v512 = vld [vmem:[%s261 + $0x578] sm:$0xff]
        %v513 = vld [vmem:[%s261 + $0x580] sm:$0xff]
        %v514 = vld [vmem:[%s261 + $0x588] sm:$0xff]
        %v515 = vld [vmem:[%s261 + $0x590] sm:$0xff]
        %v516 = vld [vmem:[%s261 + $0x598] sm:$0xff]
        %v517 = vld [vmem:[%s261 + $0x5a0] sm:$0xff]
        %v518 = vld [vmem:[%s261 + $0x5a8] sm:$0xff]
        %v519 = vld [vmem:[%s261 + $0x5b0] sm:$0xff]
        %v520 = vld [vmem:[%s261 + $0x5b8] sm:$0xff]
        %v521 = vld [vmem:[%s261 + $0x5c0] sm:$0xff]
        %v522 = vld [vmem:[%s261 + $0x5c8] sm:$0xff]
        %v523 = vld [vmem:[%s261 + $0x5d0] sm:$0xff]
        %v524 = vld [vmem:[%s261 + $0x5d8] sm:$0xff]
        %v525 = vld [vmem:[%s261 + $0x5e0] sm:$0xff]
        %v526 = vld [vmem:[%s261 + $0x5e8] sm:$0xff]
        %v527 = vld [vmem:[%s261 + $0x5f0] sm:$0xff]
        %v528 = vld [vmem:[%s261 + $0x5f8] sm:$0xff]
        %v529 = vld [vmem:[%s261 + $0x600] sm:$0xff]
        %v530 = vld [vmem:[%s261 + $0x608] sm:$0xff]
        %v531 = vld [vmem:[%s261 + $0x610] sm:$0xff]
        %v532 = vld [vmem:[%s261 + $0x618] sm:$0xff]
        %v533 = vld [vmem:[%s261 + $0x620] sm:$0xff]
        %v534 = vld [vmem:[%s261 + $0x628] sm:$0xff]
        %v535 = vld [vmem:[%s261 + $0x630] sm:$0xff]
        %v536 = vld [vmem:[%s261 + $0x638] sm:$0xff]
        %v537 = vld [vmem:[%s261 + $0x640] sm:$0xff]
        %v538 = vld [vmem:[%s261 + $0x648] sm:$0xff]
        %v539 = vld [vmem:[%s261 + $0x650] sm:$0xff]
        %v540 = vld [vmem:[%s261 + $0x658] sm:$0xff]
        %v541 = vld [vmem:[%s261 + $0x660] sm:$0xff]
        %v542 = vld [vmem:[%s261 + $0x668] sm:$0xff]
        %v543 = vld [vmem:[%s261 + $0x670] sm:$0xff]
        %v544 = vld [vmem:[%s261 + $0x678] sm:$0xff]
        %v545 = vld [vmem:[%s261 + $0x680] sm:$0xff]
        %v546 = vld [vmem:[%s261 + $0x688] sm:$0xff]
        %v547 = vld [vmem:[%s261 + $0x690] sm:$0xff]
        %v548 = vld [vmem:[%s261 + $0x698] sm:$0xff]
        %v549 = vld [vmem:[%s261 + $0x6a0] sm:$0xff]
        %v550 = vld [vmem:[%s261 + $0x6a8] sm:$0xff]
        %v551 = vld [vmem:[%s261 + $0x6b0] sm:$0xff]
        %v552 = vld [vmem:[%s261 + $0x6b8] sm:$0xff]
        %v553 = vld [vmem:[%s261 + $0x6c0] sm:$0xff]
        %v554 = vld [vmem:[%s261 + $0x6c8] sm:$0xff]
        %v555 = vld [vmem:[%s261 + $0x6d0] sm:$0xff]
        %v556 = vld [vmem:[%s261 + $0x6d8] sm:$0xff]
        %v557 = vld [vmem:[%s261 + $0x6e0] sm:$0xff]
        %v558 = vld [vmem:[%s261 + $0x6e8] sm:$0xff]
        %v559 = vld [vmem:[%s261 + $0x6f0] sm:$0xff]
        %v560 = vld [vmem:[%s261 + $0x6f8] sm:$0xff]
        %v561 = vld [vmem:[%s261 + $0x700] sm:$0xff]
        %v562 = vld [vmem:[%s261 + $0x708] sm:$0xff]
        %v563 = vld [vmem:[%s261 + $0x710] sm:$0xff]
        %v564 = vld [vmem:[%s261 + $0x718] sm:$0xff]
        %v565 = vld [vmem:[%s261 + $0x720] sm:$0xff]
        %v566 = vld [vmem:[%s261 + $0x728] sm:$0xff]
        %v567 = vld [vmem:[%s261 + $0x730] sm:$0xff]
        %v568 = vld [vmem:[%s261 + $0x738] sm:$0xff]
        %v569 = vld [vmem:[%s261 + $0x740] sm:$0xff]
        %v570 = vld [vmem:[%s261 + $0x748] sm:$0xff]
        %v571 = vld [vmem:[%s261 + $0x750] sm:$0xff]
        %v572 = vld [vmem:[%s261 + $0x758] sm:$0xff]
        %v573 = vld [vmem:[%s261 + $0x760] sm:$0xff]
        %v574 = vld [vmem:[%s261 + $0x768] sm:$0xff]
        %v575 = vld [vmem:[%s261 + $0x770] sm:$0xff]
        %v576 = vld [vmem:[%s261 + $0x778] sm:$0xff]
        %v577 = vld [vmem:[%s261 + $0x780] sm:$0xff]
        %v578 = vld [vmem:[%s261 + $0x788] sm:$0xff]
        %v579 = vld [vmem:[%s261 + $0x790] sm:$0xff]
        %v580 = vld [vmem:[%s261 + $0x798] sm:$0xff]
        %v581 = vld [vmem:[%s261 + $0x7a0] sm:$0xff]
        %v582 = vld [vmem:[%s261 + $0x7a8] sm:$0xff]
        %v583 = vld [vmem:[%s261 + $0x7b0] sm:$0xff]
        %v584 = vld [vmem:[%s261 + $0x7b8] sm:$0xff]
        %v585 = vld [vmem:[%s261 + $0x7c0] sm:$0xff]
        %v586 = vld [vmem:[%s261 + $0x7c8] sm:$0xff]
        %v587 = vld [vmem:[%s261 + $0x7d0] sm:$0xff]
        %v588 = vld [vmem:[%s261 + $0x7d8] sm:$0xff]
        %v589 = vld [vmem:[%s261 + $0x7e0] sm:$0xff]
        %v590 = vld [vmem:[%s261 + $0x7e8] sm:$0xff]
        %v591 = vld [vmem:[%s261 + $0x7f0] sm:$0xff]
        %v592 = vld [vmem:[%s261 + $0x7f8] sm:$0xff]
        %v593 = vld [vmem:[%s261 + $0x800] sm:$0xff]
        %v594 = vld [vmem:[%s261 + $0x808] sm:$0xff]
        %v595 = vld [vmem:[%s261 + $0x810] sm:$0xff]
        %v596 = vld [vmem:[%s261 + $0x818] sm:$0xff]
        %v597 = vld [vmem:[%s261 + $0x820] sm:$0xff]
        %v598 = vld [vmem:[%s261 + $0x828] sm:$0xff]
        %v599 = vld [vmem:[%s261 + $0x830] sm:$0xff]
        %v600 = vld [vmem:[%s261 + $0x838] sm:$0xff]
        %v601 = vld [vmem:[%s261 + $0x840] sm:$0xff]
        %v602 = vld [vmem:[%s261 + $0x848] sm:$0xff]
        %v603 = vld [vmem:[%s261 + $0x850] sm:$0xff]
        %v604 = vld [vmem:[%s261 + $0x858] sm:$0xff]
        %v605 = vld [vmem:[%s261 + $0x860] sm:$0xff]
        %v606 = vld [vmem:[%s261 + $0x868] sm:$0xff]
        %v607 = vld [vmem:[%s261 + $0x870] sm:$0xff]
        %v608 = vld [vmem:[%s261 + $0x878] sm:$0xff]
        %v609 = vld [vmem:[%s261 + $0x880] sm:$0xff]
        %v610 = vld [vmem:[%s261 + $0x888] sm:$0xff]
        %v611 = vld [vmem:[%s261 + $0x890] sm:$0xff]
        %v612 = vld [vmem:[%s261 + $0x898] sm:$0xff]
        %v613 = vld [vmem:[%s261 + $0x8a0] sm:$0xff]
        %v614 = vld [vmem:[%s261 + $0x8a8] sm:$0xff]
        %v615 = vld [vmem:[%s261 + $0x8b0] sm:$0xff]
        %v616 = vld [vmem:[%s261 + $0x8b8] sm:$0xff]
        %v617 = vld [vmem:[%s261 + $0x8c0] sm:$0xff]
        %v618 = vld [vmem:[%s261 + $0x8c8] sm:$0xff]
        %v619 = vld [vmem:[%s261 + $0x8d0] sm:$0xff]
        %v620 = vld [vmem:[%s261 + $0x8d8] sm:$0xff]
        %v621 = vld [vmem:[%s261 + $0x8e0] sm:$0xff]
        %v622 = vld [vmem:[%s261 + $0x8e8] sm:$0xff]
        %v623 = vld [vmem:[%s261 + $0x8f0] sm:$0xff]
        %v624 = vld [vmem:[%s261 + $0x8f8] sm:$0xff]
        %v625 = vld [vmem:[%s261 + $0x900] sm:$0xff]
        %v626 = vld [vmem:[%s261 + $0x908] sm:$0xff]
        %v627 = vld [vmem:[%s261 + $0x910] sm:$0xff]
        %v628 = vld [vmem:[%s261 + $0x918] sm:$0xff]
        %v629 = vld [vmem:[%s261 + $0x920] sm:$0xff]
        %v630 = vld [vmem:[%s261 + $0x928] sm:$0xff]
        %v631 = vld [vmem:[%s261 + $0x930] sm:$0xff]
        %v632 = vld [vmem:[%s261 + $0x938] sm:$0xff]
        %v633 = vld [vmem:[%s261 + $0x940] sm:$0xff]
        %v634 = vld [vmem:[%s261 + $0x948] sm:$0xff]
        %v635 = vld [vmem:[%s261 + $0x950] sm:$0xff]
        %v636 = vld [vmem:[%s261 + $0x958] sm:$0xff]
        %v637 = vld [vmem:[%s261 + $0x960] sm:$0xff]
        %v638 = vld [vmem:[%s261 + $0x968] sm:$0xff]
        %v639 = vld [vmem:[%s261 + $0x970] sm:$0xff]
        %v640 = vld [vmem:[%s261 + $0x978] sm:$0xff]
        %v641 = vld [vmem:[%s261 + $0x980] sm:$0xff]
        %v642 = vld [vmem:[%s261 + $0x988] sm:$0xff]
        %v643 = vld [vmem:[%s261 + $0x990] sm:$0xff]
        %v644 = vld [vmem:[%s261 + $0x998] sm:$0xff]
        %v645 = vld [vmem:[%s261 + $0x9a0] sm:$0xff]
        %v646 = vld [vmem:[%s261 + $0x9a8] sm:$0xff]
        %v647 = vld [vmem:[%s261 + $0x9b0] sm:$0xff]
        %v648 = vld [vmem:[%s261 + $0x9b8] sm:$0xff]
        %v649 = vld [vmem:[%s261 + $0x9c0] sm:$0xff]
        %v650 = vld [vmem:[%s261 + $0x9c8] sm:$0xff]
        %v651 = vld [vmem:[%s261 + $0x9d0] sm:$0xff]
        %v652 = vld [vmem:[%s261 + $0x9d8] sm:$0xff]
        %v653 = vld [vmem:[%s261 + $0x9e0] sm:$0xff]
        %v654 = vld [vmem:[%s261 + $0x9e8] sm:$0xff]
        %v655 = vld [vmem:[%s261 + $0x9f0] sm:$0xff]
        %v656 = vld [vmem:[%s261 + $0x9f8] sm:$0xff]
        %v657 = vld [vmem:[%s261 + $0xa00] sm:$0xff]
        %v658 = vld [vmem:[%s261 + $0xa08] sm:$0xff]
        %v659 = vld [vmem:[%s261 + $0xa10] sm:$0xff]
        %v660 = vld [vmem:[%s261 + $0xa18] sm:$0xff]
        %v661 = vld [vmem:[%s261 + $0xa20] sm:$0xff]
        %v662 = vld [vmem:[%s261 + $0xa28] sm:$0xff]
        %v663 = vld [vmem:[%s261 + $0xa30] sm:$0xff]
        %v664 = vld [vmem:[%s261 + $0xa38] sm:$0xff]
        %v665 = vld [vmem:[%s261 + $0xa40] sm:$0xff]
        %v666 = vld [vmem:[%s261 + $0xa48] sm:$0xff]
        %v667 = vld [vmem:[%s261 + $0xa50] sm:$0xff]
        %v668 = vld [vmem:[%s261 + $0xa58] sm:$0xff]
        %v669 = vld [vmem:[%s261 + $0xa60] sm:$0xff]
        %v670 = vld [vmem:[%s261 + $0xa68] sm:$0xff]
        %v671 = vld [vmem:[%s261 + $0xa70] sm:$0xff]
        %v672 = vld [vmem:[%s261 + $0xa78] sm:$0xff]
        %v673 = vld [vmem:[%s261 + $0xa80] sm:$0xff]
        %v674 = vld [vmem:[%s261 + $0xa88] sm:$0xff]
        %v675 = vld [vmem:[%s261 + $0xa90] sm:$0xff]
        %v676 = vld [vmem:[%s261 + $0xa98] sm:$0xff]
        %v677 = vld [vmem:[%s261 + $0xaa0] sm:$0xff]
        %v678 = vld [vmem:[%s261 + $0xaa8] sm:$0xff]
        %v679 = vld [vmem:[%s261 + $0xab0] sm:$0xff]
        %v680 = vld [vmem:[%s261 + $0xab8] sm:$0xff]
        %v681 = vld [vmem:[%s261 + $0xac0] sm:$0xff]
        %v682 = vld [vmem:[%s261 + $0xac8] sm:$0xff]
        %v683 = vld [vmem:[%s261 + $0xad0] sm:$0xff]
        %v684 = vld [vmem:[%s261 + $0xad8] sm:$0xff]
        %v685 = vld [vmem:[%s261 + $0xae0] sm:$0xff]
        %v686 = vld [vmem:[%s261 + $0xae8] sm:$0xff]
        %v687 = vld [vmem:[%s261 + $0xaf0] sm:$0xff]
        %v688 = vld [vmem:[%s261 + $0xaf8] sm:$0xff]
        %v689 = vld [vmem:[%s261 + $0xb00] sm:$0xff]
        %v690 = vld [vmem:[%s261 + $0xb08] sm:$0xff]
        %v691 = vld [vmem:[%s261 + $0xb10] sm:$0xff]
        %v692 = vld [vmem:[%s261 + $0xb18] sm:$0xff]
        %v693 = vld [vmem:[%s261 + $0xb20] sm:$0xff]
        %v694 = vld [vmem:[%s261 + $0xb28] sm:$0xff]
        %v695 = vld [vmem:[%s261 + $0xb30] sm:$0xff]
        %v696 = vld [vmem:[%s261 + $0xb38] sm:$0xff]
        %v697 = vld [vmem:[%s261 + $0xb40] sm:$0xff]
        %v698 = vld [vmem:[%s261 + $0xb48] sm:$0xff]
        %v699 = vld [vmem:[%s261 + $0xb50] sm:$0xff]
        %v700 = vld [vmem:[%s261 + $0xb58] sm:$0xff]
        %v701 = vld [vmem:[%s261 + $0xb60] sm:$0xff]
        %v702 = vld [vmem:[%s261 + $0xb68] sm:$0xff]
        %v703 = vld [vmem:[%s261 + $0xb70] sm:$0xff]
        %v704 = vld [vmem:[%s261 + $0xb78] sm:$0xff]
        %v705 = vld [vmem:[%s261 + $0xb80] sm:$0xff]
        %v706 = vld [vmem:[%s261 + $0xb88] sm:$0xff]
        %v707 = vld [vmem:[%s261 + $0xb90] sm:$0xff]
        %v708 = vld [vmem:[%s261 + $0xb98] sm:$0xff]
        %v709 = vld [vmem:[%s261 + $0xba0] sm:$0xff]
        %v710 = vld [vmem:[%s261 + $0xba8] sm:$0xff]
        %v711 = vld [vmem:[%s261 + $0xbb0] sm:$0xff]
        %v712 = vld [vmem:[%s261 + $0xbb8] sm:$0xff]
        %v713 = vld [vmem:[%s261 + $0xbc0] sm:$0xff]
        %v714 = vld [vmem:[%s261 + $0xbc8] sm:$0xff]
        %v715 = vld [vmem:[%s261 + $0xbd0] sm:$0xff]
        %v716 = vld [vmem:[%s261 + $0xbd8] sm:$0xff]
        %v717 = vld [vmem:[%s261 + $0xbe0] sm:$0xff]
        %v718 = vld [vmem:[%s261 + $0xbe8] sm:$0xff]
        %v719 = vld [vmem:[%s261 + $0xbf0] sm:$0xff]
        %v720 = vld [vmem:[%s261 + $0xbf8] sm:$0xff]
        %v721 = vld [vmem:[%s261 + $0xc00] sm:$0xff]
        %v722 = vld [vmem:[%s261 + $0xc08] sm:$0xff]
        %v723 = vld [vmem:[%s261 + $0xc10] sm:$0xff]
        %v724 = vld [vmem:[%s261 + $0xc18] sm:$0xff]
        %v725 = vld [vmem:[%s261 + $0xc20] sm:$0xff]
        %v726 = vld [vmem:[%s261 + $0xc28] sm:$0xff]
        %v727 = vld [vmem:[%s261 + $0xc30] sm:$0xff]
        %v728 = vld [vmem:[%s261 + $0xc38] sm:$0xff]
        %v729 = vld [vmem:[%s261 + $0xc40] sm:$0xff]
        %v730 = vld [vmem:[%s261 + $0xc48] sm:$0xff]
        %v731 = vld [vmem:[%s261 + $0xc50] sm:$0xff]
        %v732 = vld [vmem:[%s261 + $0xc58] sm:$0xff]
        %v733 = vld [vmem:[%s261 + $0xc60] sm:$0xff]
        %v734 = vld [vmem:[%s261 + $0xc68] sm:$0xff]
        %v735 = vld [vmem:[%s261 + $0xc70] sm:$0xff]
        %v736 = vld [vmem:[%s261 + $0xc78] sm:$0xff]
        %v737 = vld [vmem:[%s261 + $0xc80] sm:$0xff]
        %v738 = vld [vmem:[%s261 + $0xc88] sm:$0xff]
        %v739 = vld [vmem:[%s261 + $0xc90] sm:$0xff]
        %v740 = vld [vmem:[%s261 + $0xc98] sm:$0xff]
        %v741 = vld [vmem:[%s261 + $0xca0] sm:$0xff]
        %v742 = vld [vmem:[%s261 + $0xca8] sm:$0xff]
        %v743 = vld [vmem:[%s261 + $0xcb0] sm:$0xff]
        %v744 = vld [vmem:[%s261 + $0xcb8] sm:$0xff]
        %v745 = vld [vmem:[%s261 + $0xcc0] sm:$0xff]
        %v746 = vld [vmem:[%s261 + $0xcc8] sm:$0xff]
        %v747 = vld [vmem:[%s261 + $0xcd0] sm:$0xff]
        %v748 = vld [vmem:[%s261 + $0xcd8] sm:$0xff]
        %v749 = vld [vmem:[%s261 + $0xce0] sm:$0xff]
        %v750 = vld [vmem:[%s261 + $0xce8] sm:$0xff]
        %v751 = vld [vmem:[%s261 + $0xcf0] sm:$0xff]
        %v752 = vld [vmem:[%s261 + $0xcf8] sm:$0xff]
        %v753 = vld [vmem:[%s261 + $0xd00] sm:$0xff]
        %v754 = vld [vmem:[%s261 + $0xd08] sm:$0xff]
        %v755 = vld [vmem:[%s261 + $0xd10] sm:$0xff]
        %v756 = vld [vmem:[%s261 + $0xd18] sm:$0xff]
        %v757 = vld [vmem:[%s261 + $0xd20] sm:$0xff]
        %v758 = vld [vmem:[%s261 + $0xd28] sm:$0xff]
        %v759 = vld [vmem:[%s261 + $0xd30] sm:$0xff]
        %v760 = vld [vmem:[%s261 + $0xd38] sm:$0xff]
        %v761 = vld [vmem:[%s261 + $0xd40] sm:$0xff]
        %v762 = vld [vmem:[%s261 + $0xd48] sm:$0xff]
        %v763 = vld [vmem:[%s261 + $0xd50] sm:$0xff]
        %v764 = vld [vmem:[%s261 + $0xd58] sm:$0xff]
        %v765 = vld [vmem:[%s261 + $0xd60] sm:$0xff]
        %v766 = vld [vmem:[%s261 + $0xd68] sm:$0xff]
        %v767 = vld [vmem:[%s261 + $0xd70] sm:$0xff]
        %v768 = vld [vmem:[%s261 + $0xd78] sm:$0xff]
        %v769 = vld [vmem:[%s261 + $0xd80] sm:$0xff]
        %v770 = vld [vmem:[%s261 + $0xd88] sm:$0xff]
        %v771 = vld [vmem:[%s261 + $0xd90] sm:$0xff]
        %v772 = vld [vmem:[%s261 + $0xd98] sm:$0xff]
        %v773 = vld [vmem:[%s261 + $0xda0] sm:$0xff]
        %v774 = vld [vmem:[%s261 + $0xda8] sm:$0xff]
        %v775 = vld [vmem:[%s261 + $0xdb0] sm:$0xff]
        %v776 = vld [vmem:[%s261 + $0xdb8] sm:$0xff]
        %v777 = vld [vmem:[%s261 + $0xdc0] sm:$0xff]
        %v778 = vld [vmem:[%s261 + $0xdc8] sm:$0xff]
        %v779 = vld [vmem:[%s261 + $0xdd0] sm:$0xff]
        %v780 = vld [vmem:[%s261 + $0xdd8] sm:$0xff]
        %v781 = vld [vmem:[%s261 + $0xde0] sm:$0xff]
        %v782 = vld [vmem:[%s261 + $0xde8] sm:$0xff]
        %v783 = vld [vmem:[%s261 + $0xdf0] sm:$0xff]
        %v784 = vld [vmem:[%s261 + $0xdf8] sm:$0xff]
        %v785 = vld [vmem:[%s261 + $0xe00] sm:$0xff]
        %v786 = vld [vmem:[%s261 + $0xe08] sm:$0xff]
        %v787 = vld [vmem:[%s261 + $0xe10] sm:$0xff]
        %v788 = vld [vmem:[%s261 + $0xe18] sm:$0xff]
        %v789 = vld [vmem:[%s261 + $0xe20] sm:$0xff]
        %v790 = vld [vmem:[%s261 + $0xe28] sm:$0xff]
        %v791 = vld [vmem:[%s261 + $0xe30] sm:$0xff]
        %v792 = vld [vmem:[%s261 + $0xe38] sm:$0xff]
        %v793 = vld [vmem:[%s261 + $0xe40] sm:$0xff]
        %v794 = vld [vmem:[%s261 + $0xe48] sm:$0xff]
        %v795 = vld [vmem:[%s261 + $0xe50] sm:$0xff]
        %v796 = vld [vmem:[%s261 + $0xe58] sm:$0xff]
        %v797 = vld [vmem:[%s261 + $0xe60] sm:$0xff]
        %v798 = vld [vmem:[%s261 + $0xe68] sm:$0xff]
        %v799 = vld [vmem:[%s261 + $0xe70] sm:$0xff]
        %v800 = vld [vmem:[%s261 + $0xe78] sm:$0xff]
        %v801 = vld [vmem:[%s261 + $0xe80] sm:$0xff]
        %v802 = vld [vmem:[%s261 + $0xe88] sm:$0xff]
        %v803 = vld [vmem:[%s261 + $0xe90] sm:$0xff]
        %v804 = vld [vmem:[%s261 + $0xe98] sm:$0xff]
        %v805 = vld [vmem:[%s261 + $0xea0] sm:$0xff]
        %v806 = vld [vmem:[%s261 + $0xea8] sm:$0xff]
        %v807 = vld [vmem:[%s261 + $0xeb0] sm:$0xff]
        %v808 = vld [vmem:[%s261 + $0xeb8] sm:$0xff]
        %v809 = vld [vmem:[%s261 + $0xec0] sm:$0xff]
        %v810 = vld [vmem:[%s261 + $0xec8] sm:$0xff]
        %v811 = vld [vmem:[%s261 + $0xed0] sm:$0xff]
        %v812 = vld [vmem:[%s261 + $0xed8] sm:$0xff]
        %v813 = vld [vmem:[%s261 + $0xee0] sm:$0xff]
        %v814 = vld [vmem:[%s261 + $0xee8] sm:$0xff]
        %v815 = vld [vmem:[%s261 + $0xef0] sm:$0xff]
        %v816 = vld [vmem:[%s261 + $0xef8] sm:$0xff]
        %v817 = vld [vmem:[%s261 + $0xf00] sm:$0xff]
        %v818 = vld [vmem:[%s261 + $0xf08] sm:$0xff]
        %v819 = vld [vmem:[%s261 + $0xf10] sm:$0xff]
        %v820 = vld [vmem:[%s261 + $0xf18] sm:$0xff]
        %v821 = vld [vmem:[%s261 + $0xf20] sm:$0xff]
        %v822 = vld [vmem:[%s261 + $0xf28] sm:$0xff]
        %v823 = vld [vmem:[%s261 + $0xf30] sm:$0xff]
        %v824 = vld [vmem:[%s261 + $0xf38] sm:$0xff]
        %v825 = vld [vmem:[%s261 + $0xf40] sm:$0xff]
        %v826 = vld [vmem:[%s261 + $0xf48] sm:$0xff]
        %v827 = vld [vmem:[%s261 + $0xf50] sm:$0xff]
        %v828 = vld [vmem:[%s261 + $0xf58] sm:$0xff]
        %v829 = vld [vmem:[%s261 + $0xf60] sm:$0xff]
        %v830 = vld [vmem:[%s261 + $0xf68] sm:$0xff]
        %v831 = vld [vmem:[%s261 + $0xf70] sm:$0xff]
        %v832 = vld [vmem:[%s261 + $0xf78] sm:$0xff]
        %v833 = vld [vmem:[%s261 + $0xf80] sm:$0xff]
        %v834 = vld [vmem:[%s261 + $0xf88] sm:$0xff]
        %v835 = vld [vmem:[%s261 + $0xf90] sm:$0xff]
        %v836 = vld [vmem:[%s261 + $0xf98] sm:$0xff]
        %v837 = vld [vmem:[%s261 + $0xfa0] sm:$0xff]
        %v838 = vld [vmem:[%s261 + $0xfa8] sm:$0xff]
        %v839 = vld [vmem:[%s261 + $0xfb0] sm:$0xff]
        %v840 = vld [vmem:[%s261 + $0xfb8] sm:$0xff]
        %v841 = vld [vmem:[%s261 + $0xfc0] sm:$0xff]
        %v842 = vld [vmem:[%s261 + $0xfc8] sm:$0xff]
        %v843 = vld [vmem:[%s261 + $0xfd0] sm:$0xff]
        %v844 = vld [vmem:[%s261 + $0xfd8] sm:$0xff]
        %v845 = vld [vmem:[%s261 + $0xfe0] sm:$0xff]
        %v846 = vld [vmem:[%s261 + $0xfe8] sm:$0xff]
        %v847 = vld [vmem:[%s261 + $0xff0] sm:$0xff]
        %v848 = vld [vmem:[%s261 + $0xff8] sm:$0xff]
        %v849 = vld [vmem:[%s261 + $0x1000] sm:$0xff]
        %v850 = vld [vmem:[%s261 + $0x1008] sm:$0xff]
        %v851 = vld [vmem:[%s261 + $0x1010] sm:$0xff]
        %v852 = vld [vmem:[%s261 + $0x1018] sm:$0xff]
        %v853 = vld [vmem:[%s261 + $0x1020] sm:$0xff]
        %v854 = vld [vmem:[%s261 + $0x1028] sm:$0xff]
        %v855 = vld [vmem:[%s261 + $0x1030] sm:$0xff]
        %v856 = vld [vmem:[%s261 + $0x1038] sm:$0xff]
        %v857 = vld [vmem:[%s261 + $0x1040] sm:$0xff]
        %v858 = vld [vmem:[%s261 + $0x1048] sm:$0xff]
        %v859 = vld [vmem:[%s261 + $0x1050] sm:$0xff]
        %v860 = vld [vmem:[%s261 + $0x1058] sm:$0xff]
        %v861 = vld [vmem:[%s261 + $0x1060] sm:$0xff]
        %v862 = vld [vmem:[%s261 + $0x1068] sm:$0xff]
        %v863 = vld [vmem:[%s261 + $0x1070] sm:$0xff]
        %v864 = vld [vmem:[%s261 + $0x1078] sm:$0xff]
        %v865 = vld [vmem:[%s261 + $0x1080] sm:$0xff]
        %v866 = vld [vmem:[%s261 + $0x1088] sm:$0xff]
        %v867 = vld [vmem:[%s261 + $0x1090] sm:$0xff]
        %v868 = vld [vmem:[%s261 + $0x1098] sm:$0xff]
        %v869 = vld [vmem:[%s261 + $0x10a0] sm:$0xff]
        %v870 = vld [vmem:[%s261 + $0x10a8] sm:$0xff]
        %v871 = vld [vmem:[%s261 + $0x10b0] sm:$0xff]
        %v872 = vld [vmem:[%s261 + $0x10b8] sm:$0xff]
        %v873 = vld [vmem:[%s261 + $0x10c0] sm:$0xff]
        %v874 = vld [vmem:[%s261 + $0x10c8] sm:$0xff]
        %v875 = vld [vmem:[%s261 + $0x10d0] sm:$0xff]
        %v876 = vld [vmem:[%s261 + $0x10d8] sm:$0xff]
        %v877 = vld [vmem:[%s261 + $0x10e0] sm:$0xff]
        %v878 = vld [vmem:[%s261 + $0x10e8] sm:$0xff]
        %v879 = vld [vmem:[%s261 + $0x10f0] sm:$0xff]
        %v880 = vld [vmem:[%s261 + $0x10f8] sm:$0xff]
        %v881 = vld [vmem:[%s261 + $0x1100] sm:$0xff]
        %v882 = vld [vmem:[%s261 + $0x1108] sm:$0xff]
        %v883 = vld [vmem:[%s261 + $0x1110] sm:$0xff]
        %v884 = vld [vmem:[%s261 + $0x1118] sm:$0xff]
        %v885 = vld [vmem:[%s261 + $0x1120] sm:$0xff]
        %v886 = vld [vmem:[%s261 + $0x1128] sm:$0xff]
        %v887 = vld [vmem:[%s261 + $0x1130] sm:$0xff]
        %v888 = vld [vmem:[%s261 + $0x1138] sm:$0xff]
        %v889 = vld [vmem:[%s261 + $0x1140] sm:$0xff]
        %v890 = vld [vmem:[%s261 + $0x1148] sm:$0xff]
        %v891 = vld [vmem:[%s261 + $0x1150] sm:$0xff]
        %v892 = vld [vmem:[%s261 + $0x1158] sm:$0xff]
        %v893 = vld [vmem:[%s261 + $0x1160] sm:$0xff]
        %v894 = vld [vmem:[%s261 + $0x1168] sm:$0xff]
        %v895 = vld [vmem:[%s261 + $0x1170] sm:$0xff]
        %v896 = vld [vmem:[%s261 + $0x1178] sm:$0xff]
        %v897 = vld [vmem:[%s261 + $0x1180] sm:$0xff]
        %v898 = vld [vmem:[%s261 + $0x1188] sm:$0xff]
        %v899 = vld [vmem:[%s261 + $0x1190] sm:$0xff]
        %v900 = vld [vmem:[%s261 + $0x1198] sm:$0xff]
        %v901 = vld [vmem:[%s261 + $0x11a0] sm:$0xff]
        %v902 = vld [vmem:[%s261 + $0x11a8] sm:$0xff]
        %v903 = vld [vmem:[%s261 + $0x11b0] sm:$0xff]
        %v904 = vld [vmem:[%s261 + $0x11b8] sm:$0xff]
        %v905 = vld [vmem:[%s261 + $0x11c0] sm:$0xff]
        %v906 = vld [vmem:[%s261 + $0x11c8] sm:$0xff]
        %v907 = vld [vmem:[%s261 + $0x11d0] sm:$0xff]
        %v908 = vld [vmem:[%s261 + $0x11d8] sm:$0xff]
        %v909 = vld [vmem:[%s261 + $0x11e0] sm:$0xff]
        %v910 = vld [vmem:[%s261 + $0x11e8] sm:$0xff]
        %v911 = vld [vmem:[%s261 + $0x11f0] sm:$0xff]
        %v912 = vld [vmem:[%s261 + $0x11f8] sm:$0xff]
        %v913 = vld [vmem:[%s261 + $0x1200] sm:$0xff]
        %v914 = vld [vmem:[%s261 + $0x1208] sm:$0xff]
        %v915 = vld [vmem:[%s261 + $0x1210] sm:$0xff]
        %v916 = vld [vmem:[%s261 + $0x1218] sm:$0xff]
        %v917 = vld [vmem:[%s261 + $0x1220] sm:$0xff]
        %v918 = vld [vmem:[%s261 + $0x1228] sm:$0xff]
        %v919 = vld [vmem:[%s261 + $0x1230] sm:$0xff]
        %v920 = vld [vmem:[%s261 + $0x1238] sm:$0xff]
        %v921 = vld [vmem:[%s261 + $0x1240] sm:$0xff]
        %v922 = vld [vmem:[%s261 + $0x1248] sm:$0xff]
        %v923 = vld [vmem:[%s261 + $0x1250] sm:$0xff]
        %v924 = vld [vmem:[%s261 + $0x1258] sm:$0xff]
        %v925 = vld [vmem:[%s261 + $0x1260] sm:$0xff]
        %v926 = vld [vmem:[%s261 + $0x1268] sm:$0xff]
        %v927 = vld [vmem:[%s261 + $0x1270] sm:$0xff]
        %v928 = vld [vmem:[%s261 + $0x1278] sm:$0xff]
        %v929 = vld [vmem:[%s261 + $0x1280] sm:$0xff]
        %v930 = vld [vmem:[%s261 + $0x1288] sm:$0xff]
        %v931 = vld [vmem:[%s261 + $0x1290] sm:$0xff]
        %v932 = vld [vmem:[%s261 + $0x1298] sm:$0xff]
        %v933 = vld [vmem:[%s261 + $0x12a0] sm:$0xff]
        %v934 = vld [vmem:[%s261 + $0x12a8] sm:$0xff]
        %v935 = vld [vmem:[%s261 + $0x12b0] sm:$0xff]
        %v936 = vld [vmem:[%s261 + $0x12b8] sm:$0xff]
        %v937 = vld [vmem:[%s261 + $0x12c0] sm:$0xff]
        %v938 = vld [vmem:[%s261 + $0x12c8] sm:$0xff]
        %v939 = vld [vmem:[%s261 + $0x12d0] sm:$0xff]
        %v940 = vld [vmem:[%s261 + $0x12d8] sm:$0xff]
        %v941 = vld [vmem:[%s261 + $0x12e0] sm:$0xff]
        %v942 = vld [vmem:[%s261 + $0x12e8] sm:$0xff]
        %v943 = vld [vmem:[%s261 + $0x12f0] sm:$0xff]
        %v944 = vld [vmem:[%s261 + $0x12f8] sm:$0xff]
        %v945 = vld [vmem:[%s261 + $0x1300] sm:$0xff]
        %v946 = vld [vmem:[%s261 + $0x1308] sm:$0xff]
        %v947 = vld [vmem:[%s261 + $0x1310] sm:$0xff]
        %v948 = vld [vmem:[%s261 + $0x1318] sm:$0xff]
        %v949 = vld [vmem:[%s261 + $0x1320] sm:$0xff]
        %v950 = vld [vmem:[%s261 + $0x1328] sm:$0xff]
        %v951 = vld [vmem:[%s261 + $0x1330] sm:$0xff]
        %v952 = vld [vmem:[%s261 + $0x1338] sm:$0xff]
        %v953 = vld [vmem:[%s261 + $0x1340] sm:$0xff]
        %v954 = vld [vmem:[%s261 + $0x1348] sm:$0xff]
        %v955 = vld [vmem:[%s261 + $0x1350] sm:$0xff]
        %v956 = vld [vmem:[%s261 + $0x1358] sm:$0xff]
        %v957 = vld [vmem:[%s261 + $0x1360] sm:$0xff]
        %v958 = vld [vmem:[%s261 + $0x1368] sm:$0xff]
        %v959 = vld [vmem:[%s261 + $0x1370] sm:$0xff]
        %v960 = vld [vmem:[%s261 + $0x1378] sm:$0xff]
        %v961 = vld [vmem:[%s261 + $0x1380] sm:$0xff]
        %v962 = vld [vmem:[%s261 + $0x1388] sm:$0xff]
        %v963 = vld [vmem:[%s261 + $0x1390] sm:$0xff]
        %v964 = vld [vmem:[%s261 + $0x1398] sm:$0xff]
        %v965 = vld [vmem:[%s261 + $0x13a0] sm:$0xff]
        %v966 = vld [vmem:[%s261 + $0x13a8] sm:$0xff]
        %v967 = vld [vmem:[%s261 + $0x13b0] sm:$0xff]
        %v968 = vld [vmem:[%s261 + $0x13b8] sm:$0xff]
        %v969 = vld [vmem:[%s261 + $0x13c0] sm:$0xff]
        %v970 = vld [vmem:[%s261 + $0x13c8] sm:$0xff]
        %v971 = vld [vmem:[%s261 + $0x13d0] sm:$0xff]
        %v972 = vld [vmem:[%s261 + $0x13d8] sm:$0xff]
        %v973 = vld [vmem:[%s261 + $0x13e0] sm:$0xff]
        %v974 = vld [vmem:[%s261 + $0x13e8] sm:$0xff]
        %v975 = vld [vmem:[%s261 + $0x13f0] sm:$0xff]
        %v976 = vld [vmem:[%s261 + $0x13f8] sm:$0xff]
        %v977 = vld [vmem:[%s261 + $0x1400] sm:$0xff]
        %v978 = vld [vmem:[%s261 + $0x1408] sm:$0xff]
        %v979 = vld [vmem:[%s261 + $0x1410] sm:$0xff]
        %v980 = vld [vmem:[%s261 + $0x1418] sm:$0xff]
        %v981 = vld [vmem:[%s261 + $0x1420] sm:$0xff]
        %v982 = vld [vmem:[%s261 + $0x1428] sm:$0xff]
        %v983 = vld [vmem:[%s261 + $0x1430] sm:$0xff]
        %v984 = vld [vmem:[%s261 + $0x1438] sm:$0xff]
        %v985 = vld [vmem:[%s261 + $0x1440] sm:$0xff]
        %v986 = vld [vmem:[%s261 + $0x1448] sm:$0xff]
        %v987 = vld [vmem:[%s261 + $0x1450] sm:$0xff]
        %v988 = vld [vmem:[%s261 + $0x1458] sm:$0xff]
        %v989 = vld [vmem:[%s261 + $0x1460] sm:$0xff]
        %v990 = vld [vmem:[%s261 + $0x1468] sm:$0xff]
        %v991 = vld [vmem:[%s261 + $0x1470] sm:$0xff]
        %v992 = vld [vmem:[%s261 + $0x1478] sm:$0xff]
        %v993 = vld [vmem:[%s261 + $0x1480] sm:$0xff]
        %v994 = vld [vmem:[%s261 + $0x1488] sm:$0xff]
        %v995 = vld [vmem:[%s261 + $0x1490] sm:$0xff]
        %v996 = vld [vmem:[%s261 + $0x1498] sm:$0xff]
        %v997 = vld [vmem:[%s261 + $0x14a0] sm:$0xff]
        %v998 = vld [vmem:[%s261 + $0x14a8] sm:$0xff]
        %v999 = vld [vmem:[%s261 + $0x14b0] sm:$0xff]
        %v1000 = vld [vmem:[%s261 + $0x14b8] sm:$0xff]
        %v1001 = vld [vmem:[%s261 + $0x14c0] sm:$0xff]
        %v1002 = vld [vmem:[%s261 + $0x14c8] sm:$0xff]
        %v1003 = vld [vmem:[%s261 + $0x14d0] sm:$0xff]
        %v1004 = vld [vmem:[%s261 + $0x14d8] sm:$0xff]
        %v1005 = vld [vmem:[%s261 + $0x14e0] sm:$0xff]
        %v1006 = vld [vmem:[%s261 + $0x14e8] sm:$0xff]
        %v1007 = vld [vmem:[%s261 + $0x14f0] sm:$0xff]
        %v1008 = vld [vmem:[%s261 + $0x14f8] sm:$0xff]
        %v1009 = vld [vmem:[%s261 + $0x1500] sm:$0xff]
        %v1010 = vld [vmem:[%s261 + $0x1508] sm:$0xff]
        %v1011 = vld [vmem:[%s261 + $0x1510] sm:$0xff]
        %v1012 = vld [vmem:[%s261 + $0x1518] sm:$0xff]
        %v1013 = vld [vmem:[%s261 + $0x1520] sm:$0xff]
        %v1014 = vld [vmem:[%s261 + $0x1528] sm:$0xff]
        %v1015 = vld [vmem:[%s261 + $0x1530] sm:$0xff]
        %v1016 = vld [vmem:[%s261 + $0x1538] sm:$0xff]
        %v1017 = vld [vmem:[%s261 + $0x1540] sm:$0xff]
        %v1018 = vld [vmem:[%s261 + $0x1548] sm:$0xff]
        %v1019 = vld [vmem:[%s261 + $0x1550] sm:$0xff]
        %v1020 = vld [vmem:[%s261 + $0x1558] sm:$0xff]
        %v1021 = vld [vmem:[%s261 + $0x1560] sm:$0xff]
        %v1022 = vld [vmem:[%s261 + $0x1568] sm:$0xff]
        %v1023 = vld [vmem:[%s261 + $0x1570] sm:$0xff]
        %v1024 = vld [vmem:[%s261 + $0x1578] sm:$0xff]
        %v1025 = vld [vmem:[%s261 + $0x1580] sm:$0xff]
        %v1026 = vld [vmem:[%s261 + $0x1588] sm:$0xff]
        %v1027 = vld [vmem:[%s261 + $0x1590] sm:$0xff]
        %v1028 = vld [vmem:[%s261 + $0x1598] sm:$0xff]
        %v1029 = vld [vmem:[%s261 + $0x15a0] sm:$0xff]
        %v1030 = vld [vmem:[%s261 + $0x15a8] sm:$0xff]
        %v1031 = vld [vmem:[%s261 + $0x15b0] sm:$0xff]
        %v1032 = vld [vmem:[%s261 + $0x15b8] sm:$0xff]
        %v1033 = vld [vmem:[%s261 + $0x15c0] sm:$0xff]
        %v1034 = vld [vmem:[%s261 + $0x15c8] sm:$0xff]
        %v1035 = vld [vmem:[%s261 + $0x15d0] sm:$0xff]
        %v1036 = vld [vmem:[%s261 + $0x15d8] sm:$0xff]
        %v1037 = vld [vmem:[%s261 + $0x15e0] sm:$0xff]
        %v1038 = vld [vmem:[%s261 + $0x15e8] sm:$0xff]
        %v1039 = vld [vmem:[%s261 + $0x15f0] sm:$0xff]
        %v1040 = vld [vmem:[%s261 + $0x15f8] sm:$0xff]
        %v1041 = vld [vmem:[%s261 + $0x1600] sm:$0xff]
        %v1042 = vld [vmem:[%s261 + $0x1608] sm:$0xff]
        %v1043 = vld [vmem:[%s261 + $0x1610] sm:$0xff]
        %v1044 = vld [vmem:[%s261 + $0x1618] sm:$0xff]
        %v1045 = vld [vmem:[%s261 + $0x1620] sm:$0xff]
        %v1046 = vld [vmem:[%s261 + $0x1628] sm:$0xff]
        %v1047 = vld [vmem:[%s261 + $0x1630] sm:$0xff]
        %v1048 = vld [vmem:[%s261 + $0x1638] sm:$0xff]
        %v1049 = vld [vmem:[%s261 + $0x1640] sm:$0xff]
        %v1050 = vld [vmem:[%s261 + $0x1648] sm:$0xff]
        %v1051 = vld [vmem:[%s261 + $0x1650] sm:$0xff]
        %v1052 = vld [vmem:[%s261 + $0x1658] sm:$0xff]
        %v1053 = vld [vmem:[%s261 + $0x1660] sm:$0xff]
        %v1054 = vld [vmem:[%s261 + $0x1668] sm:$0xff]
        %v1055 = vld [vmem:[%s261 + $0x1670] sm:$0xff]
        %v1056 = vld [vmem:[%s261 + $0x1678] sm:$0xff]
        %v1057 = vld [vmem:[%s261 + $0x1680] sm:$0xff]
        %v1058 = vld [vmem:[%s261 + $0x1688] sm:$0xff]
        %v1059 = vld [vmem:[%s261 + $0x1690] sm:$0xff]
        %v1060 = vld [vmem:[%s261 + $0x1698] sm:$0xff]
        %v1061 = vld [vmem:[%s261 + $0x16a0] sm:$0xff]
        %v1062 = vld [vmem:[%s261 + $0x16a8] sm:$0xff]
        %v1063 = vld [vmem:[%s261 + $0x16b0] sm:$0xff]
        %v1064 = vld [vmem:[%s261 + $0x16b8] sm:$0xff]
        %v1065 = vld [vmem:[%s261 + $0x16c0] sm:$0xff]
        %v1066 = vld [vmem:[%s261 + $0x16c8] sm:$0xff]
        %v1067 = vld [vmem:[%s261 + $0x16d0] sm:$0xff]
        %v1068 = vld [vmem:[%s261 + $0x16d8] sm:$0xff]
        %v1069 = vld [vmem:[%s261 + $0x16e0] sm:$0xff]
        %v1070 = vld [vmem:[%s261 + $0x16e8] sm:$0xff]
        %v1071 = vld [vmem:[%s261 + $0x16f0] sm:$0xff]
        %v1072 = vld [vmem:[%s261 + $0x16f8] sm:$0xff]
        %v1073 = vld [vmem:[%s261 + $0x1700] sm:$0xff]
        %v1074 = vld [vmem:[%s261 + $0x1708] sm:$0xff]
        %v1075 = vld [vmem:[%s261 + $0x1710] sm:$0xff]
        %v1076 = vld [vmem:[%s261 + $0x1718] sm:$0xff]
        %v1077 = vld [vmem:[%s261 + $0x1720] sm:$0xff]
        %v1078 = vld [vmem:[%s261 + $0x1728] sm:$0xff]
        %v1079 = vld [vmem:[%s261 + $0x1730] sm:$0xff]
        %v1080 = vld [vmem:[%s261 + $0x1738] sm:$0xff]
        %v1081 = vld [vmem:[%s261 + $0x1740] sm:$0xff]
        %v1082 = vld [vmem:[%s261 + $0x1748] sm:$0xff]
        %v1083 = vld [vmem:[%s261 + $0x1750] sm:$0xff]
        %v1084 = vld [vmem:[%s261 + $0x1758] sm:$0xff]
        %v1085 = vld [vmem:[%s261 + $0x1760] sm:$0xff]
        %v1086 = vld [vmem:[%s261 + $0x1768] sm:$0xff]
        %v1087 = vld [vmem:[%s261 + $0x1770] sm:$0xff]
        %v1088 = vld [vmem:[%s261 + $0x1778] sm:$0xff]
        %v1089 = vld [vmem:[%s261 + $0x1780] sm:$0xff]
        %v1090 = vld [vmem:[%s261 + $0x1788] sm:$0xff]
        %v1091 = vld [vmem:[%s261 + $0x1790] sm:$0xff]
        %v1092 = vld [vmem:[%s261 + $0x1798] sm:$0xff]
        %v1093 = vld [vmem:[%s261 + $0x17a0] sm:$0xff]
        %v1094 = vld [vmem:[%s261 + $0x17a8] sm:$0xff]
        %v1095 = vld [vmem:[%s261 + $0x17b0] sm:$0xff]
        %v1096 = vld [vmem:[%s261 + $0x17b8] sm:$0xff]
        %v1097 = vld [vmem:[%s261 + $0x17c0] sm:$0xff]
        %v1098 = vld [vmem:[%s261 + $0x17c8] sm:$0xff]
        %v1099 = vld [vmem:[%s261 + $0x17d0] sm:$0xff]
        %v1100 = vld [vmem:[%s261 + $0x17d8] sm:$0xff]
        %v1101 = vld [vmem:[%s261 + $0x17e0] sm:$0xff]
        %v1102 = vld [vmem:[%s261 + $0x17e8] sm:$0xff]
        %v1103 = vld [vmem:[%s261 + $0x17f0] sm:$0xff]
        %v1104 = vld [vmem:[%s261 + $0x17f8] sm:$0xff]
        %v1105 = vld [vmem:[%s261 + $0x1800] sm:$0xff]
        %v1106 = vld [vmem:[%s261 + $0x1808] sm:$0xff]
        %v1107 = vld [vmem:[%s261 + $0x1810] sm:$0xff]
        %v1108 = vld [vmem:[%s261 + $0x1818] sm:$0xff]
        %v1109 = vld [vmem:[%s261 + $0x1820] sm:$0xff]
        %v1110 = vld [vmem:[%s261 + $0x1828] sm:$0xff]
        %v1111 = vld [vmem:[%s261 + $0x1830] sm:$0xff]
        %v1112 = vld [vmem:[%s261 + $0x1838] sm:$0xff]
        %v1113 = vld [vmem:[%s261 + $0x1840] sm:$0xff]
        %v1114 = vld [vmem:[%s261 + $0x1848] sm:$0xff]
        %v1115 = vld [vmem:[%s261 + $0x1850] sm:$0xff]
        %v1116 = vld [vmem:[%s261 + $0x1858] sm:$0xff]
        %v1117 = vld [vmem:[%s261 + $0x1860] sm:$0xff]
        %v1118 = vld [vmem:[%s261 + $0x1868] sm:$0xff]
        %v1119 = vld [vmem:[%s261 + $0x1870] sm:$0xff]
        %v1120 = vld [vmem:[%s261 + $0x1878] sm:$0xff]
        %v1121 = vld [vmem:[%s261 + $0x1880] sm:$0xff]
        %v1122 = vld [vmem:[%s261 + $0x1888] sm:$0xff]
        %v1123 = vld [vmem:[%s261 + $0x1890] sm:$0xff]
        %v1124 = vld [vmem:[%s261 + $0x1898] sm:$0xff]
        %v1125 = vld [vmem:[%s261 + $0x18a0] sm:$0xff]
        %v1126 = vld [vmem:[%s261 + $0x18a8] sm:$0xff]
        %v1127 = vld [vmem:[%s261 + $0x18b0] sm:$0xff]
        %v1128 = vld [vmem:[%s261 + $0x18b8] sm:$0xff]
        %v1129 = vld [vmem:[%s261 + $0x18c0] sm:$0xff]
        %v1130 = vld [vmem:[%s261 + $0x18c8] sm:$0xff]
        %v1131 = vld [vmem:[%s261 + $0x18d0] sm:$0xff]
        %v1132 = vld [vmem:[%s261 + $0x18d8] sm:$0xff]
        %v1133 = vld [vmem:[%s261 + $0x18e0] sm:$0xff]
        %v1134 = vld [vmem:[%s261 + $0x18e8] sm:$0xff]
        %v1135 = vld [vmem:[%s261 + $0x18f0] sm:$0xff]
        %v1136 = vld [vmem:[%s261 + $0x18f8] sm:$0xff]
        %v1137 = vld [vmem:[%s261 + $0x1900] sm:$0xff]
        %v1138 = vld [vmem:[%s261 + $0x1908] sm:$0xff]
        %v1139 = vld [vmem:[%s261 + $0x1910] sm:$0xff]
        %v1140 = vld [vmem:[%s261 + $0x1918] sm:$0xff]
        %v1141 = vld [vmem:[%s261 + $0x1920] sm:$0xff]
        %v1142 = vld [vmem:[%s261 + $0x1928] sm:$0xff]
        %v1143 = vld [vmem:[%s261 + $0x1930] sm:$0xff]
        %v1144 = vld [vmem:[%s261 + $0x1938] sm:$0xff]
        %v1145 = vld [vmem:[%s261 + $0x1940] sm:$0xff]
        %v1146 = vld [vmem:[%s261 + $0x1948] sm:$0xff]
        %v1147 = vld [vmem:[%s261 + $0x1950] sm:$0xff]
        %v1148 = vld [vmem:[%s261 + $0x1958] sm:$0xff]
        %v1149 = vld [vmem:[%s261 + $0x1960] sm:$0xff]
        %v1150 = vld [vmem:[%s261 + $0x1968] sm:$0xff]
        %v1151 = vld [vmem:[%s261 + $0x1970] sm:$0xff]
        %v1152 = vld [vmem:[%s261 + $0x1978] sm:$0xff]
        %v1153 = vld [vmem:[%s261 + $0x1980] sm:$0xff]
        %v1154 = vld [vmem:[%s261 + $0x1988] sm:$0xff]
        %v1155 = vld [vmem:[%s261 + $0x1990] sm:$0xff]
        %v1156 = vld [vmem:[%s261 + $0x1998] sm:$0xff]
        %v1157 = vld [vmem:[%s261 + $0x19a0] sm:$0xff]
        %v1158 = vld [vmem:[%s261 + $0x19a8] sm:$0xff]
        %v1159 = vld [vmem:[%s261 + $0x19b0] sm:$0xff]
        %v1160 = vld [vmem:[%s261 + $0x19b8] sm:$0xff]
        %v1161 = vld [vmem:[%s261 + $0x19c0] sm:$0xff]
        %v1162 = vld [vmem:[%s261 + $0x19c8] sm:$0xff]
        %v1163 = vld [vmem:[%s261 + $0x19d0] sm:$0xff]
        %v1164 = vld [vmem:[%s261 + $0x19d8] sm:$0xff]
        %v1165 = vld [vmem:[%s261 + $0x19e0] sm:$0xff]
        %v1166 = vld [vmem:[%s261 + $0x19e8] sm:$0xff]
        %v1167 = vld [vmem:[%s261 + $0x19f0] sm:$0xff]
        %v1168 = vld [vmem:[%s261 + $0x19f8] sm:$0xff]
        %v1169 = vld [vmem:[%s261 + $0x1a00] sm:$0xff]
        %v1170 = vld [vmem:[%s261 + $0x1a08] sm:$0xff]
        %v1171 = vld [vmem:[%s261 + $0x1a10] sm:$0xff]
        %v1172 = vld [vmem:[%s261 + $0x1a18] sm:$0xff]
        %v1173 = vld [vmem:[%s261 + $0x1a20] sm:$0xff]
        %v1174 = vld [vmem:[%s261 + $0x1a28] sm:$0xff]
        %v1175 = vld [vmem:[%s261 + $0x1a30] sm:$0xff]
        %v1176 = vld [vmem:[%s261 + $0x1a38] sm:$0xff]
        %v1177 = vld [vmem:[%s261 + $0x1a40] sm:$0xff]
        %v1178 = vld [vmem:[%s261 + $0x1a48] sm:$0xff]
        %v1179 = vld [vmem:[%s261 + $0x1a50] sm:$0xff]
        %v1180 = vld [vmem:[%s261 + $0x1a58] sm:$0xff]
        %v1181 = vld [vmem:[%s261 + $0x1a60] sm:$0xff]
        %v1182 = vld [vmem:[%s261 + $0x1a68] sm:$0xff]
        %v1183 = vld [vmem:[%s261 + $0x1a70] sm:$0xff]
        %v1184 = vld [vmem:[%s261 + $0x1a78] sm:$0xff]
        %v1185 = vld [vmem:[%s261 + $0x1a80] sm:$0xff]
        %v1186 = vld [vmem:[%s261 + $0x1a88] sm:$0xff]
        %v1187 = vld [vmem:[%s261 + $0x1a90] sm:$0xff]
        %v1188 = vld [vmem:[%s261 + $0x1a98] sm:$0xff]
        %v1189 = vld [vmem:[%s261 + $0x1aa0] sm:$0xff]
        %v1190 = vld [vmem:[%s261 + $0x1aa8] sm:$0xff]
        %v1191 = vld [vmem:[%s261 + $0x1ab0] sm:$0xff]
        %v1192 = vld [vmem:[%s261 + $0x1ab8] sm:$0xff]
        %v1193 = vld [vmem:[%s261 + $0x1ac0] sm:$0xff]
        %v1194 = vld [vmem:[%s261 + $0x1ac8] sm:$0xff]
        %v1195 = vld [vmem:[%s261 + $0x1ad0] sm:$0xff]
        %v1196 = vld [vmem:[%s261 + $0x1ad8] sm:$0xff]
        %v1197 = vld [vmem:[%s261 + $0x1ae0] sm:$0xff]
        %v1198 = vld [vmem:[%s261 + $0x1ae8] sm:$0xff]
        %v1199 = vld [vmem:[%s261 + $0x1af0] sm:$0xff]
        %v1200 = vld [vmem:[%s261 + $0x1af8] sm:$0xff]
        %v1201 = vld [vmem:[%s261 + $0x1b00] sm:$0xff]
        %v1202 = vld [vmem:[%s261 + $0x1b08] sm:$0xff]
        %v1203 = vld [vmem:[%s261 + $0x1b10] sm:$0xff]
        %v1204 = vld [vmem:[%s261 + $0x1b18] sm:$0xff]
        %v1205 = vld [vmem:[%s261 + $0x1b20] sm:$0xff]
        %v1206 = vld [vmem:[%s261 + $0x1b28] sm:$0xff]
        %v1207 = vld [vmem:[%s261 + $0x1b30] sm:$0xff]
        %v1208 = vld [vmem:[%s261 + $0x1b38] sm:$0xff]
        %v1209 = vld [vmem:[%s261 + $0x1b40] sm:$0xff]
        %v1210 = vld [vmem:[%s261 + $0x1b48] sm:$0xff]
        %v1211 = vld [vmem:[%s261 + $0x1b50] sm:$0xff]
        %v1212 = vld [vmem:[%s261 + $0x1b58] sm:$0xff]
        %v1213 = vld [vmem:[%s261 + $0x1b60] sm:$0xff]
        %v1214 = vld [vmem:[%s261 + $0x1b68] sm:$0xff]
        %v1215 = vld [vmem:[%s261 + $0x1b70] sm:$0xff]
        %v1216 = vld [vmem:[%s261 + $0x1b78] sm:$0xff]
        %v1217 = vld [vmem:[%s261 + $0x1b80] sm:$0xff]
        %v1218 = vld [vmem:[%s261 + $0x1b88] sm:$0xff]
        %v1219 = vld [vmem:[%s261 + $0x1b90] sm:$0xff]
        %v1220 = vld [vmem:[%s261 + $0x1b98] sm:$0xff]
        %v1221 = vld [vmem:[%s261 + $0x1ba0] sm:$0xff]
        %v1222 = vld [vmem:[%s261 + $0x1ba8] sm:$0xff]
        %v1223 = vld [vmem:[%s261 + $0x1bb0] sm:$0xff]
        %v1224 = vld [vmem:[%s261 + $0x1bb8] sm:$0xff]
        %v1225 = vld [vmem:[%s261 + $0x1bc0] sm:$0xff]
        %v1226 = vld [vmem:[%s261 + $0x1bc8] sm:$0xff]
        %v1227 = vld [vmem:[%s261 + $0x1bd0] sm:$0xff]
        %v1228 = vld [vmem:[%s261 + $0x1bd8] sm:$0xff]
        %v1229 = vld [vmem:[%s261 + $0x1be0] sm:$0xff]
        %v1230 = vld [vmem:[%s261 + $0x1be8] sm:$0xff]
        %v1231 = vld [vmem:[%s261 + $0x1bf0] sm:$0xff]
        %v1232 = vld [vmem:[%s261 + $0x1bf8] sm:$0xff]
        %v1233 = vld [vmem:[%s261 + $0x1c00] sm:$0xff]
        %v1234 = vld [vmem:[%s261 + $0x1c08] sm:$0xff]
        %v1235 = vld [vmem:[%s261 + $0x1c10] sm:$0xff]
        %v1236 = vld [vmem:[%s261 + $0x1c18] sm:$0xff]
        %v1237 = vld [vmem:[%s261 + $0x1c20] sm:$0xff]
        %v1238 = vld [vmem:[%s261 + $0x1c28] sm:$0xff]
        %v1239 = vld [vmem:[%s261 + $0x1c30] sm:$0xff]
        %v1240 = vld [vmem:[%s261 + $0x1c38] sm:$0xff]
        %v1241 = vld [vmem:[%s261 + $0x1c40] sm:$0xff]
        %v1242 = vld [vmem:[%s261 + $0x1c48] sm:$0xff]
        %v1243 = vld [vmem:[%s261 + $0x1c50] sm:$0xff]
        %v1244 = vld [vmem:[%s261 + $0x1c58] sm:$0xff]
        %v1245 = vld [vmem:[%s261 + $0x1c60] sm:$0xff]
        %v1246 = vld [vmem:[%s261 + $0x1c68] sm:$0xff]
        %v1247 = vld [vmem:[%s261 + $0x1c70] sm:$0xff]
        %v1248 = vld [vmem:[%s261 + $0x1c78] sm:$0xff]
        %v1249 = vld [vmem:[%s261 + $0x1c80] sm:$0xff]
        %v1250 = vld [vmem:[%s261 + $0x1c88] sm:$0xff]
        %v1251 = vld [vmem:[%s261 + $0x1c90] sm:$0xff]
        %v1252 = vld [vmem:[%s261 + $0x1c98] sm:$0xff]
        %v1253 = vld [vmem:[%s261 + $0x1ca0] sm:$0xff]
        %v1254 = vld [vmem:[%s261 + $0x1ca8] sm:$0xff]
        %v1255 = vld [vmem:[%s261 + $0x1cb0] sm:$0xff]
        %v1256 = vld [vmem:[%s261 + $0x1cb8] sm:$0xff]
        %v1257 = vld [vmem:[%s261 + $0x1cc0] sm:$0xff]
        %v1258 = vld [vmem:[%s261 + $0x1cc8] sm:$0xff]
        %v1259 = vld [vmem:[%s261 + $0x1cd0] sm:$0xff]
        %v1260 = vld [vmem:[%s261 + $0x1cd8] sm:$0xff]
        %v1261 = vld [vmem:[%s261 + $0x1ce0] sm:$0xff]
        %v1262 = vld [vmem:[%s261 + $0x1ce8] sm:$0xff]
        %v1263 = vld [vmem:[%s261 + $0x1cf0] sm:$0xff]
        %v1264 = vld [vmem:[%s261 + $0x1cf8] sm:$0xff]
        %v1265 = vld [vmem:[%s261 + $0x1d00] sm:$0xff]
        %v1266 = vld [vmem:[%s261 + $0x1d08] sm:$0xff]
        %v1267 = vld [vmem:[%s261 + $0x1d10] sm:$0xff]
        %v1268 = vld [vmem:[%s261 + $0x1d18] sm:$0xff]
        %v1269 = vld [vmem:[%s261 + $0x1d20] sm:$0xff]
        %v1270 = vld [vmem:[%s261 + $0x1d28] sm:$0xff]
        %v1271 = vld [vmem:[%s261 + $0x1d30] sm:$0xff]
        %v1272 = vld [vmem:[%s261 + $0x1d38] sm:$0xff]
        %v1273 = vld [vmem:[%s261 + $0x1d40] sm:$0xff]
        %v1274 = vld [vmem:[%s261 + $0x1d48] sm:$0xff]
        %v1275 = vld [vmem:[%s261 + $0x1d50] sm:$0xff]
        %v1276 = vld [vmem:[%s261 + $0x1d58] sm:$0xff]
        %v1277 = vld [vmem:[%s261 + $0x1d60] sm:$0xff]
        %v1278 = vld [vmem:[%s261 + $0x1d68] sm:$0xff]
        %v1279 = vld [vmem:[%s261 + $0x1d70] sm:$0xff]
        %v1280 = vld [vmem:[%s261 + $0x1d78] sm:$0xff]
        %v1281 = vld [vmem:[%s261 + $0x1d80] sm:$0xff]
        %v1282 = vld [vmem:[%s261 + $0x1d88] sm:$0xff]
        %v1283 = vld [vmem:[%s261 + $0x1d90] sm:$0xff]
        %v1284 = vld [vmem:[%s261 + $0x1d98] sm:$0xff]
        %v1285 = vld [vmem:[%s261 + $0x1da0] sm:$0xff]
        %v1286 = vld [vmem:[%s261 + $0x1da8] sm:$0xff]
        %v1287 = vld [vmem:[%s261 + $0x1db0] sm:$0xff]
        %v1288 = vld [vmem:[%s261 + $0x1db8] sm:$0xff]
        %v1289 = vld [vmem:[%s261 + $0x1dc0] sm:$0xff]
        %v1290 = vld [vmem:[%s261 + $0x1dc8] sm:$0xff]
        %v1291 = vld [vmem:[%s261 + $0x1dd0] sm:$0xff]
        %v1292 = vld [vmem:[%s261 + $0x1dd8] sm:$0xff]
        %v1293 = vld [vmem:[%s261 + $0x1de0] sm:$0xff]
        %v1294 = vld [vmem:[%s261 + $0x1de8] sm:$0xff]
        %v1295 = vld [vmem:[%s261 + $0x1df0] sm:$0xff]
        %v1296 = vld [vmem:[%s261 + $0x1df8] sm:$0xff]
        %v1297 = vld [vmem:[%s261 + $0x1e00] sm:$0xff]
        %v1298 = vld [vmem:[%s261 + $0x1e08] sm:$0xff]
        %v1299 = vld [vmem:[%s261 + $0x1e10] sm:$0xff]
        %v1300 = vld [vmem:[%s261 + $0x1e18] sm:$0xff]
        %v1301 = vld [vmem:[%s261 + $0x1e20] sm:$0xff]
        %v1302 = vld [vmem:[%s261 + $0x1e28] sm:$0xff]
        %v1303 = vld [vmem:[%s261 + $0x1e30] sm:$0xff]
        %v1304 = vld [vmem:[%s261 + $0x1e38] sm:$0xff]
        %v1305 = vld [vmem:[%s261 + $0x1e40] sm:$0xff]
        %v1306 = vld [vmem:[%s261 + $0x1e48] sm:$0xff]
        %v1307 = vld [vmem:[%s261 + $0x1e50] sm:$0xff]
        %v1308 = vld [vmem:[%s261 + $0x1e58] sm:$0xff]
        %v1309 = vld [vmem:[%s261 + $0x1e60] sm:$0xff]
        %v1310 = vld [vmem:[%s261 + $0x1e68] sm:$0xff]
        %v1311 = vld [vmem:[%s261 + $0x1e70] sm:$0xff]
        %v1312 = vld [vmem:[%s261 + $0x1e78] sm:$0xff]
        %v1313 = vld [vmem:[%s261 + $0x1e80] sm:$0xff]
        %v1314 = vld [vmem:[%s261 + $0x1e88] sm:$0xff]
        %v1315 = vld [vmem:[%s261 + $0x1e90] sm:$0xff]
        %v1316 = vld [vmem:[%s261 + $0x1e98] sm:$0xff]
        %v1317 = vld [vmem:[%s261 + $0x1ea0] sm:$0xff]
        %v1318 = vld [vmem:[%s261 + $0x1ea8] sm:$0xff]
        %v1319 = vld [vmem:[%s261 + $0x1eb0] sm:$0xff]
        %v1320 = vld [vmem:[%s261 + $0x1eb8] sm:$0xff]
        %v1321 = vld [vmem:[%s261 + $0x1ec0] sm:$0xff]
        %v1322 = vld [vmem:[%s261 + $0x1ec8] sm:$0xff]
        %v1323 = vld [vmem:[%s261 + $0x1ed0] sm:$0xff]
        %v1324 = vld [vmem:[%s261 + $0x1ed8] sm:$0xff]
        %v1325 = vld [vmem:[%s261 + $0x1ee0] sm:$0xff]
        %v1326 = vld [vmem:[%s261 + $0x1ee8] sm:$0xff]
        %v1327 = vld [vmem:[%s261 + $0x1ef0] sm:$0xff]
        %v1328 = vld [vmem:[%s261 + $0x1ef8] sm:$0xff]
        %v1329 = vld [vmem:[%s261 + $0x1f00] sm:$0xff]
        %v1330 = vld [vmem:[%s261 + $0x1f08] sm:$0xff]
        %v1331 = vld [vmem:[%s261 + $0x1f10] sm:$0xff]
        %v1332 = vld [vmem:[%s261 + $0x1f18] sm:$0xff]
        %v1333 = vld [vmem:[%s261 + $0x1f20] sm:$0xff]
        %v1334 = vld [vmem:[%s261 + $0x1f28] sm:$0xff]
        %v1335 = vld [vmem:[%s261 + $0x1f30] sm:$0xff]
        %v1336 = vld [vmem:[%s261 + $0x1f38] sm:$0xff]
        %v1337 = vld [vmem:[%s261 + $0x1f40] sm:$0xff]
        %v1338 = vld [vmem:[%s261 + $0x1f48] sm:$0xff]
        %v1339 = vld [vmem:[%s261 + $0x1f50] sm:$0xff]
        %v1340 = vld [vmem:[%s261 + $0x1f58] sm:$0xff]
        %v1341 = vld [vmem:[%s261 + $0x1f60] sm:$0xff]
        %v1342 = vld [vmem:[%s261 + $0x1f68] sm:$0xff]
        %v1343 = vld [vmem:[%s261 + $0x1f70] sm:$0xff]
        %v1344 = vld [vmem:[%s261 + $0x1f78] sm:$0xff]
        %v1345 = vld [vmem:[%s261 + $0x1f80] sm:$0xff]
        %v1346 = vld [vmem:[%s261 + $0x1f88] sm:$0xff]
        %v1347 = vld [vmem:[%s261 + $0x1f90] sm:$0xff]
        %v1348 = vld [vmem:[%s261 + $0x1f98] sm:$0xff]
        %v1349 = vld [vmem:[%s261 + $0x1fa0] sm:$0xff]
        %v1350 = vld [vmem:[%s261 + $0x1fa8] sm:$0xff]
        %v1351 = vld [vmem:[%s261 + $0x1fb0] sm:$0xff]
        %v1352 = vld [vmem:[%s261 + $0x1fb8] sm:$0xff]
        %v1353 = vld [vmem:[%s261 + $0x1fc0] sm:$0xff]
        %v1354 = vld [vmem:[%s261 + $0x1fc8] sm:$0xff]
        %v1355 = vld [vmem:[%s261 + $0x1fd0] sm:$0xff]
        %v1356 = vld [vmem:[%s261 + $0x1fd8] sm:$0xff]
        %v1357 = vld [vmem:[%s261 + $0x1fe0] sm:$0xff]
        %v1358 = vld [vmem:[%s261 + $0x1fe8] sm:$0xff]
        %v1359 = vld [vmem:[%s261 + $0x1ff0] sm:$0xff]
        %v1360 = vld [vmem:[%s261 + $0x1ff8] sm:$0xff]
        %v1361 = vld [vmem:[%s261 + $0x2000] sm:$0xff]
        %v1362 = vld [vmem:[%s261 + $0x2008] sm:$0xff]
        %v1363 = vld [vmem:[%s261 + $0x2010] sm:$0xff]
        %v1364 = vld [vmem:[%s261 + $0x2018] sm:$0xff]
        %v1365 = vld [vmem:[%s261 + $0x2020] sm:$0xff]
        %v1366 = vld [vmem:[%s261 + $0x2028] sm:$0xff]
        %v1367 = vld [vmem:[%s261 + $0x2030] sm:$0xff]
        %v1368 = vld [vmem:[%s261 + $0x2038] sm:$0xff]
        %v1369 = vld [vmem:[%s261 + $0x2040] sm:$0xff]
        %v1370 = vld [vmem:[%s261 + $0x2048] sm:$0xff]
        %v1371 = vld [vmem:[%s261 + $0x2050] sm:$0xff]
        %v1372 = vld [vmem:[%s261 + $0x2058] sm:$0xff]
        %v1373 = vld [vmem:[%s261 + $0x2060] sm:$0xff]
        %v1374 = vld [vmem:[%s261 + $0x2068] sm:$0xff]
        %v1375 = vld [vmem:[%s261 + $0x2070] sm:$0xff]
        %v1376 = vld [vmem:[%s261 + $0x2078] sm:$0xff]
        %v1377 = vld [vmem:[%s261 + $0x2080] sm:$0xff]
        %v1378 = vld [vmem:[%s261 + $0x2088] sm:$0xff]
        %v1379 = vld [vmem:[%s261 + $0x2090] sm:$0xff]
        %v1380 = vld [vmem:[%s261 + $0x2098] sm:$0xff]
        %v1381 = vld [vmem:[%s261 + $0x20a0] sm:$0xff]
        %v1382 = vld [vmem:[%s261 + $0x20a8] sm:$0xff]
        %v1383 = vld [vmem:[%s261 + $0x20b0] sm:$0xff]
        %v1384 = vld [vmem:[%s261 + $0x20b8] sm:$0xff]
        %v1385 = vld [vmem:[%s261 + $0x20c0] sm:$0xff]
        %v1386 = vld [vmem:[%s261 + $0x20c8] sm:$0xff]
        %v1387 = vld [vmem:[%s261 + $0x20d0] sm:$0xff]
        %v1388 = vld [vmem:[%s261 + $0x20d8] sm:$0xff]
        %v1389 = vld [vmem:[%s261 + $0x20e0] sm:$0xff]
        %v1390 = vld [vmem:[%s261 + $0x20e8] sm:$0xff]
        %v1391 = vld [vmem:[%s261 + $0x20f0] sm:$0xff]
        %v1392 = vld [vmem:[%s261 + $0x20f8] sm:$0xff]
        %v1393 = vld [vmem:[%s261 + $0x2100] sm:$0xff]
        %v1394 = vld [vmem:[%s261 + $0x2108] sm:$0xff]
        %v1395 = vld [vmem:[%s261 + $0x2110] sm:$0xff]
        %v1396 = vld [vmem:[%s261 + $0x2118] sm:$0xff]
        %v1397 = vld [vmem:[%s261 + $0x2120] sm:$0xff]
        %v1398 = vld [vmem:[%s261 + $0x2128] sm:$0xff]
        %v1399 = vld [vmem:[%s261 + $0x2130] sm:$0xff]
        %v1400 = vld [vmem:[%s261 + $0x2138] sm:$0xff]
        %v1401 = vld [vmem:[%s261 + $0x2140] sm:$0xff]
        %v1402 = vld [vmem:[%s261 + $0x2148] sm:$0xff]
        %v1403 = vld [vmem:[%s261 + $0x2150] sm:$0xff]
        %v1404 = vld [vmem:[%s261 + $0x2158] sm:$0xff]
        %v1405 = vld [vmem:[%s261 + $0x2160] sm:$0xff]
        %v1406 = vld [vmem:[%s261 + $0x2168] sm:$0xff]
        %v1407 = vld [vmem:[%s261 + $0x2170] sm:$0xff]
        %v1408 = vld [vmem:[%s261 + $0x2178] sm:$0xff]
        %v1409 = vld [vmem:[%s261 + $0x2180] sm:$0xff]
        %v1410 = vld [vmem:[%s261 + $0x2188] sm:$0xff]
        %v1411 = vld [vmem:[%s261 + $0x2190] sm:$0xff]
        %v1412 = vld [vmem:[%s261 + $0x2198] sm:$0xff]
        %v1413 = vld [vmem:[%s261 + $0x21a0] sm:$0xff]
        %v1414 = vld [vmem:[%s261 + $0x21a8] sm:$0xff]
        %v1415 = vld [vmem:[%s261 + $0x21b0] sm:$0xff]
        %v1416 = vld [vmem:[%s261 + $0x21b8] sm:$0xff]
        %v1417 = vld [vmem:[%s261 + $0x21c0] sm:$0xff]
        %v1418 = vld [vmem:[%s261 + $0x21c8] sm:$0xff]
        %v1419 = vld [vmem:[%s261 + $0x21d0] sm:$0xff]
        %v1420 = vld [vmem:[%s261 + $0x21d8] sm:$0xff]
        %v1421 = vld [vmem:[%s261 + $0x21e0] sm:$0xff]
        %v1422 = vld [vmem:[%s261 + $0x21e8] sm:$0xff]
        %v1423 = vld [vmem:[%s261 + $0x21f0] sm:$0xff]
        %v1424 = vld [vmem:[%s261 + $0x21f8] sm:$0xff]
        %v1425 = vld [vmem:[%s261 + $0x2200] sm:$0xff]
        %v1426 = vld [vmem:[%s261 + $0x2208] sm:$0xff]
        %v1427 = vld [vmem:[%s261 + $0x2210] sm:$0xff]
        %v1428 = vld [vmem:[%s261 + $0x2218] sm:$0xff]
        %v1429 = vld [vmem:[%s261 + $0x2220] sm:$0xff]
        %v1430 = vld [vmem:[%s261 + $0x2228] sm:$0xff]
        %v1431 = vld [vmem:[%s261 + $0x2230] sm:$0xff]
        %v1432 = vld [vmem:[%s261 + $0x2238] sm:$0xff]
        %v1433 = vld [vmem:[%s261 + $0x2240] sm:$0xff]
        %v1434 = vld [vmem:[%s261 + $0x2248] sm:$0xff]
        %v1435 = vld [vmem:[%s261 + $0x2250] sm:$0xff]
        %v1436 = vld [vmem:[%s261 + $0x2258] sm:$0xff]
        %v1437 = vld [vmem:[%s261 + $0x2260] sm:$0xff]
        %v1438 = vld [vmem:[%s261 + $0x2268] sm:$0xff]
        %v1439 = vld [vmem:[%s261 + $0x2270] sm:$0xff]
        %v1440 = vld [vmem:[%s261 + $0x2278] sm:$0xff]
        %v1441 = vld [vmem:[%s261 + $0x2280] sm:$0xff]
        %v1442 = vld [vmem:[%s261 + $0x2288] sm:$0xff]
        %v1443 = vld [vmem:[%s261 + $0x2290] sm:$0xff]
        %v1444 = vld [vmem:[%s261 + $0x2298] sm:$0xff]
        %v1445 = vld [vmem:[%s261 + $0x22a0] sm:$0xff]
        %v1446 = vld [vmem:[%s261 + $0x22a8] sm:$0xff]
        %v1447 = vld [vmem:[%s261 + $0x22b0] sm:$0xff]
        %v1448 = vld [vmem:[%s261 + $0x22b8] sm:$0xff]
        %v1449 = vld [vmem:[%s261 + $0x22c0] sm:$0xff]
        %v1450 = vld [vmem:[%s261 + $0x22c8] sm:$0xff]
        %v1451 = vld [vmem:[%s261 + $0x22d0] sm:$0xff]
        %v1452 = vld [vmem:[%s261 + $0x22d8] sm:$0xff]
        %v1453 = vld [vmem:[%s261 + $0x22e0] sm:$0xff]
        %v1454 = vld [vmem:[%s261 + $0x22e8] sm:$0xff]
        %v1455 = vld [vmem:[%s261 + $0x22f0] sm:$0xff]
        %v1456 = vld [vmem:[%s261 + $0x22f8] sm:$0xff]
        %v1466 = vcombine.high %v328, %v328
        %v1468 = vunpack.c.l.s4 1966171168
        %v1469 = vunpack.c.0.s8 %v1468
        %v1470 = vlaneseq
        %v1471 = vshrl.u32 %v1470, 7
        %v1472 = vsub.s32 %v1469, %v1471
        %v1473 = vrot.slane %v328, %v1472
        %v1475 = vunpack.c.l.s4 1966171168
        %v1476 = vunpack.c.0.s8 %v1475
        %v1477 = vlaneseq
        %v1478 = vshrl.u32 %v1477, 7
        %v1479 = vsub.s32 %v1476, %v1478
        %v1480 = vrot.slane %v1466, %v1479
        %v1481 = vcombine.high %v1473, %v1473
        %v1482 = vcombine.high %v1480, %v1480
        %v1484 = vunpack.c.l.s4 1966171168
        %v1485 = vunpack.c.0.s8 %v1484
        %v1486 = vlaneseq
        %v1487 = vshrl.u32 %v1486, 7
        %v1488 = vsub.s32 %v1485, %v1487
        %v1489 = vrot.slane %v1473, %v1488
        %v1491 = vunpack.c.l.s4 1966171168
        %v1492 = vunpack.c.0.s8 %v1491
        %v1493 = vlaneseq
        %v1494 = vshrl.u32 %v1493, 7
        %v1495 = vsub.s32 %v1492, %v1494
        %v1496 = vrot.slane %v1480, %v1495
        %v1498 = vunpack.c.l.s4 1966171168
        %v1499 = vunpack.c.0.s8 %v1498
        %v1500 = vlaneseq
        %v1501 = vshrl.u32 %v1500, 7
        %v1502 = vsub.s32 %v1499, %v1501
        %v1503 = vrot.slane %v1481, %v1502
        %v1505 = vunpack.c.l.s4 1966171168
        %v1506 = vunpack.c.0.s8 %v1505
        %v1507 = vlaneseq
        %v1508 = vshrl.u32 %v1507, 7
        %v1509 = vsub.s32 %v1506, %v1508
        %v1510 = vrot.slane %v1482, %v1509
        %v1511 = vcombine.high %v1489, %v1489
        %v1512 = vcombine.high %v1496, %v1496
        %v1513 = vcombine.high %v1503, %v1503
        %v1514 = vcombine.high %v1510, %v1510
        %v1515 = vcombine.high %v329, %v329
        %v1517 = vunpack.c.l.s4 1966171168
        %v1518 = vunpack.c.0.s8 %v1517
        %v1519 = vlaneseq
        %v1520 = vshrl.u32 %v1519, 7
        %v1521 = vsub.s32 %v1518, %v1520
        %v1522 = vrot.slane %v329, %v1521
        %v1524 = vunpack.c.l.s4 1966171168
        %v1525 = vunpack.c.0.s8 %v1524
        %v1526 = vlaneseq
        %v1527 = vshrl.u32 %v1526, 7
        %v1528 = vsub.s32 %v1525, %v1527
        %v1529 = vrot.slane %v1515, %v1528
        %v1530 = vcombine.high %v1522, %v1522
        %v1531 = vcombine.high %v1529, %v1529
        %v1533 = vunpack.c.l.s4 1966171168
        %v1534 = vunpack.c.0.s8 %v1533
        %v1535 = vlaneseq
        %v1536 = vshrl.u32 %v1535, 7
        %v1537 = vsub.s32 %v1534, %v1536
        %v1538 = vrot.slane %v1522, %v1537
        %v1540 = vunpack.c.l.s4 1966171168
        %v1541 = vunpack.c.0.s8 %v1540
        %v1542 = vlaneseq
        %v1543 = vshrl.u32 %v1542, 7
        %v1544 = vsub.s32 %v1541, %v1543
        %v1545 = vrot.slane %v1529, %v1544
        %v1547 = vunpack.c.l.s4 1966171168
        %v1548 = vunpack.c.0.s8 %v1547
        %v1549 = vlaneseq
        %v1550 = vshrl.u32 %v1549, 7
        %v1551 = vsub.s32 %v1548, %v1550
        %v1552 = vrot.slane %v1530, %v1551
        %v1554 = vunpack.c.l.s4 1966171168
        %v1555 = vunpack.c.0.s8 %v1554
        %v1556 = vlaneseq
        %v1557 = vshrl.u32 %v1556, 7
        %v1558 = vsub.s32 %v1555, %v1557
        %v1559 = vrot.slane %v1531, %v1558
        %v1560 = vcombine.high %v1538, %v1538
        %v1561 = vcombine.high %v1545, %v1545
        %v1562 = vcombine.high %v1552, %v1552
        %v1563 = vcombine.high %v1559, %v1559
        %v1564 = vcombine.high %v330, %v330
        %v1566 = vunpack.c.l.s4 1966171168
        %v1567 = vunpack.c.0.s8 %v1566
        %v1568 = vlaneseq
        %v1569 = vshrl.u32 %v1568, 7
        %v1570 = vsub.s32 %v1567, %v1569
        %v1571 = vrot.slane %v330, %v1570
        %v1573 = vunpack.c.l.s4 1966171168
        %v1574 = vunpack.c.0.s8 %v1573
        %v1575 = vlaneseq
        %v1576 = vshrl.u32 %v1575, 7
        %v1577 = vsub.s32 %v1574, %v1576
        %v1578 = vrot.slane %v1564, %v1577
        %v1579 = vcombine.high %v1571, %v1571
        %v1580 = vcombine.high %v1578, %v1578
        %v1582 = vunpack.c.l.s4 1966171168
        %v1583 = vunpack.c.0.s8 %v1582
        %v1584 = vlaneseq
        %v1585 = vshrl.u32 %v1584, 7
        %v1586 = vsub.s32 %v1583, %v1585
        %v1587 = vrot.slane %v1571, %v1586
        %v1589 = vunpack.c.l.s4 1966171168
        %v1590 = vunpack.c.0.s8 %v1589
        %v1591 = vlaneseq
        %v1592 = vshrl.u32 %v1591, 7
        %v1593 = vsub.s32 %v1590, %v1592
        %v1594 = vrot.slane %v1578, %v1593
        %v1596 = vunpack.c.l.s4 1966171168
        %v1597 = vunpack.c.0.s8 %v1596
        %v1598 = vlaneseq
        %v1599 = vshrl.u32 %v1598, 7
        %v1600 = vsub.s32 %v1597, %v1599
        %v1601 = vrot.slane %v1579, %v1600
        %v1603 = vunpack.c.l.s4 1966171168
        %v1604 = vunpack.c.0.s8 %v1603
        %v1605 = vlaneseq
        %v1606 = vshrl.u32 %v1605, 7
        %v1607 = vsub.s32 %v1604, %v1606
        %v1608 = vrot.slane %v1580, %v1607
        %v1609 = vcombine.high %v1587, %v1587
        %v1610 = vcombine.high %v1594, %v1594
        %v1611 = vcombine.high %v1601, %v1601
        %v1612 = vcombine.high %v1608, %v1608
        %v1613 = vcombine.high %v331, %v331
        %v1615 = vunpack.c.l.s4 1966171168
        %v1616 = vunpack.c.0.s8 %v1615
        %v1617 = vlaneseq
        %v1618 = vshrl.u32 %v1617, 7
        %v1619 = vsub.s32 %v1616, %v1618
        %v1620 = vrot.slane %v331, %v1619
        %v1622 = vunpack.c.l.s4 1966171168
        %v1623 = vunpack.c.0.s8 %v1622
        %v1624 = vlaneseq
        %v1625 = vshrl.u32 %v1624, 7
        %v1626 = vsub.s32 %v1623, %v1625
        %v1627 = vrot.slane %v1613, %v1626
        %v1628 = vcombine.high %v1620, %v1620
        %v1629 = vcombine.high %v1627, %v1627
        %v1631 = vunpack.c.l.s4 1966171168
        %v1632 = vunpack.c.0.s8 %v1631
        %v1633 = vlaneseq
        %v1634 = vshrl.u32 %v1633, 7
        %v1635 = vsub.s32 %v1632, %v1634
        %v1636 = vrot.slane %v1620, %v1635
        %v1638 = vunpack.c.l.s4 1966171168
        %v1639 = vunpack.c.0.s8 %v1638
        %v1640 = vlaneseq
        %v1641 = vshrl.u32 %v1640, 7
        %v1642 = vsub.s32 %v1639, %v1641
        %v1643 = vrot.slane %v1627, %v1642
        %v1645 = vunpack.c.l.s4 1966171168
        %v1646 = vunpack.c.0.s8 %v1645
        %v1647 = vlaneseq
        %v1648 = vshrl.u32 %v1647, 7
        %v1649 = vsub.s32 %v1646, %v1648
        %v1650 = vrot.slane %v1628, %v1649
        %v1652 = vunpack.c.l.s4 1966171168
        %v1653 = vunpack.c.0.s8 %v1652
        %v1654 = vlaneseq
        %v1655 = vshrl.u32 %v1654, 7
        %v1656 = vsub.s32 %v1653, %v1655
        %v1657 = vrot.slane %v1629, %v1656
        %v1658 = vcombine.high %v1636, %v1636
        %v1659 = vcombine.high %v1643, %v1643
        %v1660 = vcombine.high %v1650, %v1650
        %v1661 = vcombine.high %v1657, %v1657
        %v1662 = vcombine.high %v332, %v332
        %v1664 = vunpack.c.l.s4 1966171168
        %v1665 = vunpack.c.0.s8 %v1664
        %v1666 = vlaneseq
        %v1667 = vshrl.u32 %v1666, 7
        %v1668 = vsub.s32 %v1665, %v1667
        %v1669 = vrot.slane %v332, %v1668
        %v1671 = vunpack.c.l.s4 1966171168
        %v1672 = vunpack.c.0.s8 %v1671
        %v1673 = vlaneseq
        %v1674 = vshrl.u32 %v1673, 7
        %v1675 = vsub.s32 %v1672, %v1674
        %v1676 = vrot.slane %v1662, %v1675
        %v1677 = vcombine.high %v1669, %v1669
        %v1678 = vcombine.high %v1676, %v1676
        %v1680 = vunpack.c.l.s4 1966171168
        %v1681 = vunpack.c.0.s8 %v1680
        %v1682 = vlaneseq
        %v1683 = vshrl.u32 %v1682, 7
        %v1684 = vsub.s32 %v1681, %v1683
        %v1685 = vrot.slane %v1669, %v1684
        %v1687 = vunpack.c.l.s4 1966171168
        %v1688 = vunpack.c.0.s8 %v1687
        %v1689 = vlaneseq
        %v1690 = vshrl.u32 %v1689, 7
        %v1691 = vsub.s32 %v1688, %v1690
        %v1692 = vrot.slane %v1676, %v1691
        %v1694 = vunpack.c.l.s4 1966171168
        %v1695 = vunpack.c.0.s8 %v1694
        %v1696 = vlaneseq
        %v1697 = vshrl.u32 %v1696, 7
        %v1698 = vsub.s32 %v1695, %v1697
        %v1699 = vrot.slane %v1677, %v1698
        %v1701 = vunpack.c.l.s4 1966171168
        %v1702 = vunpack.c.0.s8 %v1701
        %v1703 = vlaneseq
        %v1704 = vshrl.u32 %v1703, 7
        %v1705 = vsub.s32 %v1702, %v1704
        %v1706 = vrot.slane %v1678, %v1705
        %v1707 = vcombine.high %v1685, %v1685
        %v1708 = vcombine.high %v1692, %v1692
        %v1709 = vcombine.high %v1699, %v1699
        %v1710 = vcombine.high %v1706, %v1706
        %v1711 = vcombine.high %v333, %v333
        %v1713 = vunpack.c.l.s4 1966171168
        %v1714 = vunpack.c.0.s8 %v1713
        %v1715 = vlaneseq
        %v1716 = vshrl.u32 %v1715, 7
        %v1717 = vsub.s32 %v1714, %v1716
        %v1718 = vrot.slane %v333, %v1717
        %v1720 = vunpack.c.l.s4 1966171168
        %v1721 = vunpack.c.0.s8 %v1720
        %v1722 = vlaneseq
        %v1723 = vshrl.u32 %v1722, 7
        %v1724 = vsub.s32 %v1721, %v1723
        %v1725 = vrot.slane %v1711, %v1724
        %v1726 = vcombine.high %v1718, %v1718
        %v1727 = vcombine.high %v1725, %v1725
        %v1729 = vunpack.c.l.s4 1966171168
        %v1730 = vunpack.c.0.s8 %v1729
        %v1731 = vlaneseq
        %v1732 = vshrl.u32 %v1731, 7
        %v1733 = vsub.s32 %v1730, %v1732
        %v1734 = vrot.slane %v1718, %v1733
        %v1736 = vunpack.c.l.s4 1966171168
        %v1737 = vunpack.c.0.s8 %v1736
        %v1738 = vlaneseq
        %v1739 = vshrl.u32 %v1738, 7
        %v1740 = vsub.s32 %v1737, %v1739
        %v1741 = vrot.slane %v1725, %v1740
        %v1743 = vunpack.c.l.s4 1966171168
        %v1744 = vunpack.c.0.s8 %v1743
        %v1745 = vlaneseq
        %v1746 = vshrl.u32 %v1745, 7
        %v1747 = vsub.s32 %v1744, %v1746
        %v1748 = vrot.slane %v1726, %v1747
        %v1750 = vunpack.c.l.s4 1966171168
        %v1751 = vunpack.c.0.s8 %v1750
        %v1752 = vlaneseq
        %v1753 = vshrl.u32 %v1752, 7
        %v1754 = vsub.s32 %v1751, %v1753
        %v1755 = vrot.slane %v1727, %v1754
        %v1756 = vcombine.high %v1734, %v1734
        %v1757 = vcombine.high %v1741, %v1741
        %v1758 = vcombine.high %v1748, %v1748
        %v1759 = vcombine.high %v1755, %v1755
        %v1760 = vcombine.high %v334, %v334
        %v1762 = vunpack.c.l.s4 1966171168
        %v1763 = vunpack.c.0.s8 %v1762
        %v1764 = vlaneseq
        %v1765 = vshrl.u32 %v1764, 7
        %v1766 = vsub.s32 %v1763, %v1765
        %v1767 = vrot.slane %v334, %v1766
        %v1769 = vunpack.c.l.s4 1966171168
        %v1770 = vunpack.c.0.s8 %v1769
        %v1771 = vlaneseq
        %v1772 = vshrl.u32 %v1771, 7
        %v1773 = vsub.s32 %v1770, %v1772
        %v1774 = vrot.slane %v1760, %v1773
        %v1775 = vcombine.high %v1767, %v1767
        %v1776 = vcombine.high %v1774, %v1774
        %v1778 = vunpack.c.l.s4 1966171168
        %v1779 = vunpack.c.0.s8 %v1778
        %v1780 = vlaneseq
        %v1781 = vshrl.u32 %v1780, 7
        %v1782 = vsub.s32 %v1779, %v1781
        %v1783 = vrot.slane %v1767, %v1782
        %v1785 = vunpack.c.l.s4 1966171168
        %v1786 = vunpack.c.0.s8 %v1785
        %v1787 = vlaneseq
        %v1788 = vshrl.u32 %v1787, 7
        %v1789 = vsub.s32 %v1786, %v1788
        %v1790 = vrot.slane %v1774, %v1789
        %v1792 = vunpack.c.l.s4 1966171168
        %v1793 = vunpack.c.0.s8 %v1792
        %v1794 = vlaneseq
        %v1795 = vshrl.u32 %v1794, 7
        %v1796 = vsub.s32 %v1793, %v1795
        %v1797 = vrot.slane %v1775, %v1796
        %v1799 = vunpack.c.l.s4 1966171168
        %v1800 = vunpack.c.0.s8 %v1799
        %v1801 = vlaneseq
        %v1802 = vshrl.u32 %v1801, 7
        %v1803 = vsub.s32 %v1800, %v1802
        %v1804 = vrot.slane %v1776, %v1803
        %v1805 = vcombine.high %v1783, %v1783
        %v1806 = vcombine.high %v1790, %v1790
        %v1807 = vcombine.high %v1797, %v1797
        %v1808 = vcombine.high %v1804, %v1804
        %v1809 = vcombine.high %v335, %v335
        %v1811 = vunpack.c.l.s4 1966171168
        %v1812 = vunpack.c.0.s8 %v1811
        %v1813 = vlaneseq
        %v1814 = vshrl.u32 %v1813, 7
        %v1815 = vsub.s32 %v1812, %v1814
        %v1816 = vrot.slane %v335, %v1815
        %v1818 = vunpack.c.l.s4 1966171168
        %v1819 = vunpack.c.0.s8 %v1818
        %v1820 = vlaneseq
        %v1821 = vshrl.u32 %v1820, 7
        %v1822 = vsub.s32 %v1819, %v1821
        %v1823 = vrot.slane %v1809, %v1822
        %v1824 = vcombine.high %v1816, %v1816
        %v1825 = vcombine.high %v1823, %v1823
        %v1827 = vunpack.c.l.s4 1966171168
        %v1828 = vunpack.c.0.s8 %v1827
        %v1829 = vlaneseq
        %v1830 = vshrl.u32 %v1829, 7
        %v1831 = vsub.s32 %v1828, %v1830
        %v1832 = vrot.slane %v1816, %v1831
        %v1834 = vunpack.c.l.s4 1966171168
        %v1835 = vunpack.c.0.s8 %v1834
        %v1836 = vlaneseq
        %v1837 = vshrl.u32 %v1836, 7
        %v1838 = vsub.s32 %v1835, %v1837
        %v1839 = vrot.slane %v1823, %v1838
        %v1841 = vunpack.c.l.s4 1966171168
        %v1842 = vunpack.c.0.s8 %v1841
        %v1843 = vlaneseq
        %v1844 = vshrl.u32 %v1843, 7
        %v1845 = vsub.s32 %v1842, %v1844
        %v1846 = vrot.slane %v1824, %v1845
        %v1848 = vunpack.c.l.s4 1966171168
        %v1849 = vunpack.c.0.s8 %v1848
        %v1850 = vlaneseq
        %v1851 = vshrl.u32 %v1850, 7
        %v1852 = vsub.s32 %v1849, %v1851
        %v1853 = vrot.slane %v1825, %v1852
        %v1854 = vcombine.high %v1832, %v1832
        %v1855 = vcombine.high %v1839, %v1839
        %v1856 = vcombine.high %v1846, %v1846
        %v1857 = vcombine.high %v1853, %v1853
        %v1858 = vcombine.high %v336, %v336
        %v1860 = vunpack.c.l.s4 1966171168
        %v1861 = vunpack.c.0.s8 %v1860
        %v1862 = vlaneseq
        %v1863 = vshrl.u32 %v1862, 7
        %v1864 = vsub.s32 %v1861, %v1863
        %v1865 = vrot.slane %v336, %v1864
        %v1867 = vunpack.c.l.s4 1966171168
        %v1868 = vunpack.c.0.s8 %v1867
        %v1869 = vlaneseq
        %v1870 = vshrl.u32 %v1869, 7
        %v1871 = vsub.s32 %v1868, %v1870
        %v1872 = vrot.slane %v1858, %v1871
        %v1873 = vcombine.high %v1865, %v1865
        %v1874 = vcombine.high %v1872, %v1872
        %v1876 = vunpack.c.l.s4 1966171168
        %v1877 = vunpack.c.0.s8 %v1876
        %v1878 = vlaneseq
        %v1879 = vshrl.u32 %v1878, 7
        %v1880 = vsub.s32 %v1877, %v1879
        %v1881 = vrot.slane %v1865, %v1880
        %v1883 = vunpack.c.l.s4 1966171168
        %v1884 = vunpack.c.0.s8 %v1883
        %v1885 = vlaneseq
        %v1886 = vshrl.u32 %v1885, 7
        %v1887 = vsub.s32 %v1884, %v1886
        %v1888 = vrot.slane %v1872, %v1887
        %v1890 = vunpack.c.l.s4 1966171168
        %v1891 = vunpack.c.0.s8 %v1890
        %v1892 = vlaneseq
        %v1893 = vshrl.u32 %v1892, 7
        %v1894 = vsub.s32 %v1891, %v1893
        %v1895 = vrot.slane %v1873, %v1894
        %v1897 = vunpack.c.l.s4 1966171168
        %v1898 = vunpack.c.0.s8 %v1897
        %v1899 = vlaneseq
        %v1900 = vshrl.u32 %v1899, 7
        %v1901 = vsub.s32 %v1898, %v1900
        %v1902 = vrot.slane %v1874, %v1901
        %v1903 = vcombine.high %v1881, %v1881
        %v1904 = vcombine.high %v1895, %v1895
        %v3095 = vunpack.c.l.b16 %v337
        %v3096 = vunpack.c.h.b16 %v337
        %v3097 = vunpack.c.l.b16 %v338
        %v3098 = vunpack.c.h.b16 %v338
        %v3099 = vunpack.c.l.b16 %v339
        %v3100 = vunpack.c.h.b16 %v339
        %v3101 = vunpack.c.l.b16 %v340
        %v3102 = vunpack.c.h.b16 %v340
        %v3103 = vunpack.c.l.b16 %v341
        %v3104 = vunpack.c.h.b16 %v341
        %v3105 = vunpack.c.l.b16 %v342
        %v3106 = vunpack.c.h.b16 %v342
        %v3107 = vunpack.c.l.b16 %v343
        %v3108 = vunpack.c.h.b16 %v343
        %v3109 = vunpack.c.l.b16 %v344
        %v3110 = vunpack.c.h.b16 %v344
        %v3111 = vunpack.c.l.b16 %v345
        %v3112 = vunpack.c.h.b16 %v345
        %v3113 = vunpack.c.l.b16 %v346
        %v3114 = vunpack.c.h.b16 %v346
        %v3115 = vunpack.c.l.b16 %v347
        %v3116 = vunpack.c.h.b16 %v347
        %v3117 = vunpack.c.l.b16 %v348
        %v3118 = vunpack.c.h.b16 %v348
        %v3119 = vunpack.c.l.b16 %v349
        %v3120 = vunpack.c.h.b16 %v349
        %v3121 = vunpack.c.l.b16 %v350
        %v3122 = vunpack.c.h.b16 %v350
        %v3123 = vunpack.c.l.b16 %v351
        %v3124 = vunpack.c.h.b16 %v351
        %v3125 = vunpack.c.l.b16 %v352
        %v3126 = vunpack.c.h.b16 %v352
        %v3127 = vunpack.c.l.b16 %v353
        %v3128 = vunpack.c.h.b16 %v353
        %v3129 = vunpack.c.l.b16 %v354
        %v3130 = vunpack.c.h.b16 %v354
        %v3131 = vunpack.c.l.b16 %v355
        %v3132 = vunpack.c.h.b16 %v355
        %v3133 = vunpack.c.l.b16 %v356
        %v3134 = vunpack.c.h.b16 %v356
        %v3135 = vunpack.c.l.b16 %v357
        %v3136 = vunpack.c.h.b16 %v357
        %v3137 = vunpack.c.l.b16 %v358
        %v3138 = vunpack.c.h.b16 %v358
        %v3139 = vunpack.c.l.b16 %v359
        %v3140 = vunpack.c.h.b16 %v359
        %v3141 = vunpack.c.l.b16 %v360
        %v3142 = vunpack.c.h.b16 %v360
        %v3143 = vunpack.c.l.b16 %v361
        %v3144 = vunpack.c.h.b16 %v361
        %v3145 = vunpack.c.l.b16 %v362
        %v3146 = vunpack.c.h.b16 %v362
        %v3147 = vunpack.c.l.b16 %v363
        %v3148 = vunpack.c.h.b16 %v363
        %v3149 = vunpack.c.l.b16 %v364
        %v3150 = vunpack.c.h.b16 %v364
        %v3151 = vunpack.c.l.b16 %v365
        %v3152 = vunpack.c.h.b16 %v365
        %v3153 = vunpack.c.l.b16 %v366
        %v3154 = vunpack.c.h.b16 %v366
        %v3155 = vunpack.c.l.b16 %v367
        %v3156 = vunpack.c.h.b16 %v367
        %v3157 = vunpack.c.l.b16 %v368
        %v3158 = vunpack.c.h.b16 %v368
        %v3159 = vunpack.c.l.b16 %v369
        %v3160 = vunpack.c.h.b16 %v369
        %v3161 = vunpack.c.l.b16 %v370
        %v3162 = vunpack.c.h.b16 %v370
        %v3163 = vunpack.c.l.b16 %v371
        %v3164 = vunpack.c.h.b16 %v371
        %v3165 = vunpack.c.l.b16 %v372
        %v3166 = vunpack.c.h.b16 %v372
        %v3167 = vunpack.c.l.b16 %v373
        %v3168 = vunpack.c.h.b16 %v373
        %v3169 = vunpack.c.l.b16 %v374
        %v3170 = vunpack.c.h.b16 %v374
        %v3171 = vunpack.c.l.b16 %v375
        %v3172 = vunpack.c.h.b16 %v375
        %v3173 = vunpack.c.l.b16 %v376
        %v3174 = vunpack.c.h.b16 %v376
        %v3175 = vunpack.c.l.b16 %v377
        %v3176 = vunpack.c.h.b16 %v377
        %v3177 = vunpack.c.l.b16 %v378
        %v3178 = vunpack.c.h.b16 %v378
        %v3179 = vunpack.c.l.b16 %v379
        %v3180 = vunpack.c.h.b16 %v379
        %v3181 = vunpack.c.l.b16 %v380
        %v3182 = vunpack.c.h.b16 %v380
        %v3183 = vunpack.c.l.b16 %v381
        %v3184 = vunpack.c.h.b16 %v381
        %v3185 = vunpack.c.l.b16 %v382
        %v3186 = vunpack.c.h.b16 %v382
        %v3187 = vunpack.c.l.b16 %v383
        %v3188 = vunpack.c.h.b16 %v383
        %v3189 = vunpack.c.l.b16 %v384
        %v3190 = vunpack.c.h.b16 %v384
        %v3191 = vunpack.c.l.b16 %v385
        %v3192 = vunpack.c.h.b16 %v385
        %v3193 = vunpack.c.l.b16 %v386
        %v3194 = vunpack.c.h.b16 %v386
        %v3195 = vunpack.c.l.b16 %v387
        %v3196 = vunpack.c.h.b16 %v387
        %v3197 = vunpack.c.l.b16 %v388
        %v3198 = vunpack.c.h.b16 %v388
        %v3199 = vunpack.c.l.b16 %v389
        %v3200 = vunpack.c.h.b16 %v389
        %v3201 = vunpack.c.l.b16 %v390
        %v3202 = vunpack.c.h.b16 %v390
        %v3203 = vunpack.c.l.b16 %v391
        %v3204 = vunpack.c.h.b16 %v391
        %v3205 = vunpack.c.l.b16 %v392
        %v3206 = vunpack.c.h.b16 %v392
        %v3207 = vunpack.c.l.b16 %v393
        %v3208 = vunpack.c.h.b16 %v393
        %v3209 = vunpack.c.l.b16 %v394
        %v3210 = vunpack.c.h.b16 %v394
        %v3211 = vunpack.c.l.b16 %v395
        %v3212 = vunpack.c.h.b16 %v395
        %v3213 = vunpack.c.l.b16 %v396
        %v3214 = vunpack.c.h.b16 %v396
        %v3215 = vunpack.c.l.b16 %v397
        %v3216 = vunpack.c.h.b16 %v397
        %v3217 = vunpack.c.l.b16 %v398
        %v3218 = vunpack.c.h.b16 %v398
        %v3219 = vunpack.c.l.b16 %v399
        %v3220 = vunpack.c.h.b16 %v399
        %v3221 = vunpack.c.l.b16 %v400
        %v3222 = vunpack.c.h.b16 %v400
        %v3223 = vunpack.c.l.b16 %v401
        %v3224 = vunpack.c.h.b16 %v401
        %v3225 = vunpack.c.l.b16 %v402
        %v3226 = vunpack.c.h.b16 %v402
        %v3227 = vunpack.c.l.b16 %v403
        %v3228 = vunpack.c.h.b16 %v403
        %v3229 = vunpack.c.l.b16 %v404
        %v3230 = vunpack.c.h.b16 %v404
        %v3231 = vunpack.c.l.b16 %v405
        %v3232 = vunpack.c.h.b16 %v405
        %v3233 = vunpack.c.l.b16 %v406
        %v3234 = vunpack.c.h.b16 %v406
        %v3235 = vunpack.c.l.b16 %v407
        %v3236 = vunpack.c.h.b16 %v407
        %v3237 = vunpack.c.l.b16 %v408
        %v3238 = vunpack.c.h.b16 %v408
        %v3239 = vunpack.c.l.b16 %v409
        %v3240 = vunpack.c.h.b16 %v409
        %v3241 = vunpack.c.l.b16 %v410
        %v3242 = vunpack.c.h.b16 %v410
        %v3243 = vunpack.c.l.b16 %v411
        %v3244 = vunpack.c.h.b16 %v411
        %v3245 = vunpack.c.l.b16 %v412
        %v3246 = vunpack.c.h.b16 %v412
        %v3247 = vunpack.c.l.b16 %v413
        %v3248 = vunpack.c.h.b16 %v413
        %v3249 = vunpack.c.l.b16 %v414
        %v3250 = vunpack.c.h.b16 %v414
        %v3251 = vunpack.c.l.b16 %v415
        %v3252 = vunpack.c.h.b16 %v415
        %v3253 = vunpack.c.l.b16 %v416
        %v3254 = vunpack.c.h.b16 %v416
        %v3255 = vunpack.c.l.b16 %v417
        %v3256 = vunpack.c.h.b16 %v417
        %v3257 = vunpack.c.l.b16 %v418
        %v3258 = vunpack.c.h.b16 %v418
        %v3259 = vunpack.c.l.b16 %v419
        %v3260 = vunpack.c.h.b16 %v419
        %v3261 = vunpack.c.l.b16 %v420
        %v3262 = vunpack.c.h.b16 %v420
        %v3263 = vunpack.c.l.b16 %v421
        %v3264 = vunpack.c.h.b16 %v421
        %v3265 = vunpack.c.l.b16 %v422
        %v3266 = vunpack.c.h.b16 %v422
        %v3267 = vunpack.c.l.b16 %v423
        %v3268 = vunpack.c.h.b16 %v423
        %v3269 = vunpack.c.l.b16 %v424
        %v3270 = vunpack.c.h.b16 %v424
        %v3271 = vunpack.c.l.b16 %v425
        %v3272 = vunpack.c.h.b16 %v425
        %v3273 = vunpack.c.l.b16 %v426
        %v3274 = vunpack.c.h.b16 %v426
        %v3275 = vunpack.c.l.b16 %v427
        %v3276 = vunpack.c.h.b16 %v427
        %v3277 = vunpack.c.l.b16 %v428
        %v3278 = vunpack.c.h.b16 %v428
        %v3279 = vunpack.c.l.b16 %v429
        %v3280 = vunpack.c.h.b16 %v429
        %v3281 = vunpack.c.l.b16 %v430
        %v3282 = vunpack.c.h.b16 %v430
        %v3283 = vunpack.c.l.b16 %v431
        %v3284 = vunpack.c.h.b16 %v431
        %v3285 = vunpack.c.l.b16 %v432
        %v3286 = vunpack.c.h.b16 %v432
        %v3287 = vunpack.c.l.b16 %v433
        %v3288 = vunpack.c.h.b16 %v433
        %v3289 = vunpack.c.l.b16 %v434
        %v3290 = vunpack.c.h.b16 %v434
        %v3291 = vunpack.c.l.b16 %v435
        %v3292 = vunpack.c.h.b16 %v435
        %v3293 = vunpack.c.l.b16 %v436
        %v3294 = vunpack.c.h.b16 %v436
        %v3295 = vunpack.c.l.b16 %v437
        %v3296 = vunpack.c.h.b16 %v437
        %v3297 = vunpack.c.l.b16 %v438
        %v3298 = vunpack.c.h.b16 %v438
        %v3299 = vunpack.c.l.b16 %v439
        %v3300 = vunpack.c.h.b16 %v439
        %v3301 = vunpack.c.l.b16 %v440
        %v3302 = vunpack.c.h.b16 %v440
        %v3303 = vunpack.c.l.b16 %v441
        %v3304 = vunpack.c.h.b16 %v441
        %v3305 = vunpack.c.l.b16 %v442
        %v3306 = vunpack.c.h.b16 %v442
        %v3307 = vunpack.c.l.b16 %v443
        %v3308 = vunpack.c.h.b16 %v443
        %v3309 = vunpack.c.l.b16 %v444
        %v3310 = vunpack.c.h.b16 %v444
        %v3311 = vunpack.c.l.b16 %v445
        %v3312 = vunpack.c.h.b16 %v445
        %v3313 = vunpack.c.l.b16 %v446
        %v3314 = vunpack.c.h.b16 %v446
        %v3315 = vunpack.c.l.b16 %v447
        %v3316 = vunpack.c.h.b16 %v447
        %v3317 = vunpack.c.l.b16 %v448
        %v3318 = vunpack.c.h.b16 %v448
        %v3319 = vunpack.c.l.b16 %v449
        %v3320 = vunpack.c.h.b16 %v449
        %v3321 = vunpack.c.l.b16 %v450
        %v3322 = vunpack.c.h.b16 %v450
        %v3323 = vunpack.c.l.b16 %v451
        %v3324 = vunpack.c.h.b16 %v451
        %v3325 = vunpack.c.l.b16 %v452
        %v3326 = vunpack.c.h.b16 %v452
        %v3327 = vunpack.c.l.b16 %v453
        %v3328 = vunpack.c.h.b16 %v453
        %v3329 = vunpack.c.l.b16 %v454
        %v3330 = vunpack.c.h.b16 %v454
        %v3331 = vunpack.c.l.b16 %v455
        %v3332 = vunpack.c.h.b16 %v455
        %v3333 = vunpack.c.l.b16 %v456
        %v3334 = vunpack.c.h.b16 %v456
        %v3335 = vunpack.c.l.b16 %v457
        %v3336 = vunpack.c.h.b16 %v457
        %v3337 = vunpack.c.l.b16 %v458
        %v3338 = vunpack.c.h.b16 %v458
        %v3339 = vunpack.c.l.b16 %v459
        %v3340 = vunpack.c.h.b16 %v459
        %v3341 = vunpack.c.l.b16 %v460
        %v3342 = vunpack.c.h.b16 %v460
        %v3343 = vunpack.c.l.b16 %v461
        %v3344 = vunpack.c.h.b16 %v461
        %v3345 = vunpack.c.l.b16 %v462
        %v3346 = vunpack.c.h.b16 %v462
        %v3347 = vunpack.c.l.b16 %v463
        %v3348 = vunpack.c.h.b16 %v463
        %v3349 = vunpack.c.l.b16 %v464
        %v3350 = vunpack.c.h.b16 %v464
        %v3351 = vunpack.c.l.b16 %v465
        %v3352 = vunpack.c.h.b16 %v465
        %v3353 = vunpack.c.l.b16 %v466
        %v3354 = vunpack.c.h.b16 %v466
        %v3355 = vunpack.c.l.b16 %v467
        %v3356 = vunpack.c.h.b16 %v467
        %v3357 = vunpack.c.l.b16 %v468
        %v3358 = vunpack.c.h.b16 %v468
        %v3359 = vunpack.c.l.b16 %v469
        %v3360 = vunpack.c.h.b16 %v469
        %v3361 = vunpack.c.l.b16 %v470
        %v3362 = vunpack.c.h.b16 %v470
        %v3363 = vunpack.c.l.b16 %v471
        %v3364 = vunpack.c.h.b16 %v471
        %v3365 = vunpack.c.l.b16 %v472
        %v3366 = vunpack.c.h.b16 %v472
        %v3367 = vunpack.c.l.b16 %v473
        %v3368 = vunpack.c.h.b16 %v473
        %v3369 = vunpack.c.l.b16 %v474
        %v3370 = vunpack.c.h.b16 %v474
        %v3371 = vunpack.c.l.b16 %v475
        %v3372 = vunpack.c.h.b16 %v475
        %v3373 = vunpack.c.l.b16 %v476
        %v3374 = vunpack.c.h.b16 %v476
        %v3375 = vunpack.c.l.b16 %v477
        %v3376 = vunpack.c.h.b16 %v477
        %v3377 = vunpack.c.l.b16 %v478
        %v3378 = vunpack.c.h.b16 %v478
        %v3379 = vunpack.c.l.b16 %v479
        %v3380 = vunpack.c.h.b16 %v479
        %v3381 = vunpack.c.l.b16 %v480
        %v3382 = vunpack.c.h.b16 %v480
        %v3383 = vunpack.c.l.b16 %v481
        %v3384 = vunpack.c.h.b16 %v481
        %v3385 = vunpack.c.l.b16 %v482
        %v3386 = vunpack.c.h.b16 %v482
        %v3387 = vunpack.c.l.b16 %v483
        %v3388 = vunpack.c.h.b16 %v483
        %v3389 = vunpack.c.l.b16 %v484
        %v3390 = vunpack.c.h.b16 %v484
        %v3391 = vunpack.c.l.b16 %v485
        %v3392 = vunpack.c.h.b16 %v485
        %v3393 = vunpack.c.l.b16 %v486
        %v3394 = vunpack.c.h.b16 %v486
        %v3395 = vunpack.c.l.b16 %v487
        %v3396 = vunpack.c.h.b16 %v487
        %v3397 = vunpack.c.l.b16 %v488
        %v3398 = vunpack.c.h.b16 %v488
        %v3399 = vunpack.c.l.b16 %v489
        %v3400 = vunpack.c.h.b16 %v489
        %v3401 = vunpack.c.l.b16 %v490
        %v3402 = vunpack.c.h.b16 %v490
        %v3403 = vunpack.c.l.b16 %v491
        %v3404 = vunpack.c.h.b16 %v491
        %v3405 = vunpack.c.l.b16 %v492
        %v3406 = vunpack.c.h.b16 %v492
        %v3407 = vunpack.c.l.b16 %v493
        %v3408 = vunpack.c.h.b16 %v493
        %v3409 = vunpack.c.l.b16 %v494
        %v3410 = vunpack.c.h.b16 %v494
        %v3411 = vunpack.c.l.b16 %v495
        %v3412 = vunpack.c.h.b16 %v495
        %v3413 = vunpack.c.l.b16 %v496
        %v3414 = vunpack.c.h.b16 %v496
        %v3415 = vunpack.c.l.b16 %v497
        %v3416 = vunpack.c.h.b16 %v497
        %v3417 = vunpack.c.l.b16 %v498
        %v3418 = vunpack.c.h.b16 %v498
        %v3419 = vunpack.c.l.b16 %v499
        %v3420 = vunpack.c.h.b16 %v499
        %v3421 = vunpack.c.l.b16 %v500
        %v3422 = vunpack.c.h.b16 %v500
        %v3423 = vunpack.c.l.b16 %v501
        %v3424 = vunpack.c.h.b16 %v501
        %v3425 = vunpack.c.l.b16 %v502
        %v3426 = vunpack.c.h.b16 %v502
        %v3427 = vunpack.c.l.b16 %v503
        %v3428 = vunpack.c.h.b16 %v503
        %v3429 = vunpack.c.l.b16 %v504
        %v3430 = vunpack.c.h.b16 %v504
        %v3431 = vunpack.c.l.b16 %v505
        %v3432 = vunpack.c.h.b16 %v505
        %v3433 = vunpack.c.l.b16 %v506
        %v3434 = vunpack.c.h.b16 %v506
        %v3435 = vunpack.c.l.b16 %v507
        %v3436 = vunpack.c.h.b16 %v507
        %v3437 = vunpack.c.l.b16 %v508
        %v3438 = vunpack.c.h.b16 %v508
        %v3439 = vunpack.c.l.b16 %v509
        %v3440 = vunpack.c.h.b16 %v509
        %v3441 = vunpack.c.l.b16 %v510
        %v3442 = vunpack.c.h.b16 %v510
        %v3443 = vunpack.c.l.b16 %v511
        %v3444 = vunpack.c.h.b16 %v511
        %v3445 = vunpack.c.l.b16 %v512
        %v3446 = vunpack.c.h.b16 %v512
        %v3447 = vunpack.c.l.b16 %v513
        %v3448 = vunpack.c.h.b16 %v513
        %v3449 = vunpack.c.l.b16 %v514
        %v3450 = vunpack.c.h.b16 %v514
        %v3451 = vunpack.c.l.b16 %v515
        %v3452 = vunpack.c.h.b16 %v515
        %v3453 = vunpack.c.l.b16 %v516
        %v3454 = vunpack.c.h.b16 %v516
        %v3455 = vunpack.c.l.b16 %v517
        %v3456 = vunpack.c.h.b16 %v517
        %v3457 = vunpack.c.l.b16 %v518
        %v3458 = vunpack.c.h.b16 %v518
        %v3459 = vunpack.c.l.b16 %v519
        %v3460 = vunpack.c.h.b16 %v519
        %v3461 = vunpack.c.l.b16 %v520
        %v3462 = vunpack.c.h.b16 %v520
        %v3463 = vunpack.c.l.b16 %v521
        %v3464 = vunpack.c.h.b16 %v521
        %v3465 = vunpack.c.l.b16 %v522
        %v3466 = vunpack.c.h.b16 %v522
        %v3467 = vunpack.c.l.b16 %v523
        %v3468 = vunpack.c.h.b16 %v523
        %v3469 = vunpack.c.l.b16 %v524
        %v3470 = vunpack.c.h.b16 %v524
        %v3471 = vunpack.c.l.b16 %v525
        %v3472 = vunpack.c.h.b16 %v525
        %v3473 = vunpack.c.l.b16 %v526
        %v3474 = vunpack.c.h.b16 %v526
        %v3475 = vunpack.c.l.b16 %v527
        %v3476 = vunpack.c.h.b16 %v527
        %v3477 = vunpack.c.l.b16 %v528
        %v3478 = vunpack.c.h.b16 %v528
        %v3479 = vunpack.c.l.b16 %v529
        %v3480 = vunpack.c.h.b16 %v529
        %v3481 = vunpack.c.l.b16 %v530
        %v3482 = vunpack.c.h.b16 %v530
        %v3483 = vunpack.c.l.b16 %v531
        %v3484 = vunpack.c.h.b16 %v531
        %v3485 = vunpack.c.l.b16 %v532
        %v3486 = vunpack.c.h.b16 %v532
        %v3487 = vunpack.c.l.b16 %v533
        %v3488 = vunpack.c.h.b16 %v533
        %v3489 = vunpack.c.l.b16 %v534
        %v3490 = vunpack.c.h.b16 %v534
        %v3491 = vunpack.c.l.b16 %v535
        %v3492 = vunpack.c.h.b16 %v535
        %v3493 = vunpack.c.l.b16 %v536
        %v3494 = vunpack.c.h.b16 %v536
        %v3495 = vunpack.c.l.b16 %v537
        %v3496 = vunpack.c.h.b16 %v537
        %v3497 = vunpack.c.l.b16 %v538
        %v3498 = vunpack.c.h.b16 %v538
        %v3499 = vunpack.c.l.b16 %v539
        %v3500 = vunpack.c.h.b16 %v539
        %v3501 = vunpack.c.l.b16 %v540
        %v3502 = vunpack.c.h.b16 %v540
        %v3503 = vunpack.c.l.b16 %v541
        %v3504 = vunpack.c.h.b16 %v541
        %v3505 = vunpack.c.l.b16 %v542
        %v3506 = vunpack.c.h.b16 %v542
        %v3507 = vunpack.c.l.b16 %v543
        %v3508 = vunpack.c.h.b16 %v543
        %v3509 = vunpack.c.l.b16 %v544
        %v3510 = vunpack.c.h.b16 %v544
        %v3511 = vunpack.c.l.b16 %v545
        %v3512 = vunpack.c.h.b16 %v545
        %v3513 = vunpack.c.l.b16 %v546
        %v3514 = vunpack.c.h.b16 %v546
        %v3515 = vunpack.c.l.b16 %v547
        %v3516 = vunpack.c.h.b16 %v547
        %v3517 = vunpack.c.l.b16 %v548
        %v3518 = vunpack.c.h.b16 %v548
        %v3519 = vunpack.c.l.b16 %v549
        %v3520 = vunpack.c.h.b16 %v549
        %v3521 = vunpack.c.l.b16 %v550
        %v3522 = vunpack.c.h.b16 %v550
        %v3523 = vunpack.c.l.b16 %v551
        %v3524 = vunpack.c.h.b16 %v551
        %v3525 = vunpack.c.l.b16 %v552
        %v3526 = vunpack.c.h.b16 %v552
        %v3527 = vunpack.c.l.b16 %v553
        %v3528 = vunpack.c.h.b16 %v553
        %v3529 = vunpack.c.l.b16 %v554
        %v3530 = vunpack.c.h.b16 %v554
        %v3531 = vunpack.c.l.b16 %v555
        %v3532 = vunpack.c.h.b16 %v555
        %v3533 = vunpack.c.l.b16 %v556
        %v3534 = vunpack.c.h.b16 %v556
        %v3535 = vunpack.c.l.b16 %v557
        %v3536 = vunpack.c.h.b16 %v557
        %v3537 = vunpack.c.l.b16 %v558
        %v3538 = vunpack.c.h.b16 %v558
        %v3539 = vunpack.c.l.b16 %v559
        %v3540 = vunpack.c.h.b16 %v559
        %v3541 = vunpack.c.l.b16 %v560
        %v3542 = vunpack.c.h.b16 %v560
        %v3543 = vunpack.c.l.b16 %v561
        %v3544 = vunpack.c.h.b16 %v561
        %v3545 = vunpack.c.l.b16 %v562
        %v3546 = vunpack.c.h.b16 %v562
        %v3547 = vunpack.c.l.b16 %v563
        %v3548 = vunpack.c.h.b16 %v563
        %v3549 = vunpack.c.l.b16 %v564
        %v3550 = vunpack.c.h.b16 %v564
        %v3551 = vunpack.c.l.b16 %v565
        %v3552 = vunpack.c.h.b16 %v565
        %v3553 = vunpack.c.l.b16 %v566
        %v3554 = vunpack.c.h.b16 %v566
        %v3555 = vunpack.c.l.b16 %v567
        %v3556 = vunpack.c.h.b16 %v567
        %v3557 = vunpack.c.l.b16 %v568
        %v3558 = vunpack.c.h.b16 %v568
        %v3559 = vunpack.c.l.b16 %v569
        %v3560 = vunpack.c.h.b16 %v569
        %v3561 = vunpack.c.l.b16 %v570
        %v3562 = vunpack.c.h.b16 %v570
        %v3563 = vunpack.c.l.b16 %v571
        %v3564 = vunpack.c.h.b16 %v571
        %v3565 = vunpack.c.l.b16 %v572
        %v3566 = vunpack.c.h.b16 %v572
        %v3567 = vunpack.c.l.b16 %v573
        %v3568 = vunpack.c.h.b16 %v573
        %v3569 = vunpack.c.l.b16 %v574
        %v3570 = vunpack.c.h.b16 %v574
        %v3571 = vunpack.c.l.b16 %v575
        %v3572 = vunpack.c.h.b16 %v575
        %v3573 = vunpack.c.l.b16 %v576
        %v3574 = vunpack.c.h.b16 %v576
        %v3575 = vunpack.c.l.b16 %v577
        %v3576 = vunpack.c.h.b16 %v577
        %v3577 = vunpack.c.l.b16 %v578
        %v3578 = vunpack.c.h.b16 %v578
        %v3579 = vunpack.c.l.b16 %v579
        %v3580 = vunpack.c.h.b16 %v579
        %v3581 = vunpack.c.l.b16 %v580
        %v3582 = vunpack.c.h.b16 %v580
        %v3583 = vunpack.c.l.b16 %v581
        %v3584 = vunpack.c.h.b16 %v581
        %v3585 = vunpack.c.l.b16 %v582
        %v3586 = vunpack.c.h.b16 %v582
        %v3587 = vunpack.c.l.b16 %v583
        %v3588 = vunpack.c.h.b16 %v583
        %v3589 = vunpack.c.l.b16 %v584
        %v3590 = vunpack.c.h.b16 %v584
        %v3591 = vunpack.c.l.b16 %v585
        %v3592 = vunpack.c.h.b16 %v585
        %v3593 = vunpack.c.l.b16 %v586
        %v3594 = vunpack.c.h.b16 %v586
        %v3595 = vunpack.c.l.b16 %v587
        %v3596 = vunpack.c.h.b16 %v587
        %v3597 = vunpack.c.l.b16 %v588
        %v3598 = vunpack.c.h.b16 %v588
        %v3599 = vunpack.c.l.b16 %v589
        %v3600 = vunpack.c.h.b16 %v589
        %v3601 = vunpack.c.l.b16 %v590
        %v3602 = vunpack.c.h.b16 %v590
        %v3603 = vunpack.c.l.b16 %v591
        %v3604 = vunpack.c.h.b16 %v591
        %v3605 = vunpack.c.l.b16 %v592
        %v3606 = vunpack.c.h.b16 %v592
        %v3607 = vunpack.c.l.b16 %v593
        %v3608 = vunpack.c.h.b16 %v593
        %v3609 = vunpack.c.l.b16 %v594
        %v3610 = vunpack.c.h.b16 %v594
        %v3611 = vunpack.c.l.b16 %v595
        %v3612 = vunpack.c.h.b16 %v595
        %v3613 = vunpack.c.l.b16 %v596
        %v3614 = vunpack.c.h.b16 %v596
        %v3615 = vunpack.c.l.b16 %v597
        %v3616 = vunpack.c.h.b16 %v597
        %v3617 = vunpack.c.l.b16 %v598
        %v3618 = vunpack.c.h.b16 %v598
        %v3619 = vunpack.c.l.b16 %v599
        %v3620 = vunpack.c.h.b16 %v599
        %v3621 = vunpack.c.l.b16 %v600
        %v3622 = vunpack.c.h.b16 %v600
        %v3623 = vunpack.c.l.b16 %v601
        %v3624 = vunpack.c.h.b16 %v601
        %v3625 = vunpack.c.l.b16 %v602
        %v3626 = vunpack.c.h.b16 %v602
        %v3627 = vunpack.c.l.b16 %v603
        %v3628 = vunpack.c.h.b16 %v603
        %v3629 = vunpack.c.l.b16 %v604
        %v3630 = vunpack.c.h.b16 %v604
        %v3631 = vunpack.c.l.b16 %v605
        %v3632 = vunpack.c.h.b16 %v605
        %v3633 = vunpack.c.l.b16 %v606
        %v3634 = vunpack.c.h.b16 %v606
        %v3635 = vunpack.c.l.b16 %v607
        %v3636 = vunpack.c.h.b16 %v607
        %v3637 = vunpack.c.l.b16 %v608
        %v3638 = vunpack.c.h.b16 %v608
        %v3639 = vunpack.c.l.b16 %v609
        %v3640 = vunpack.c.h.b16 %v609
        %v3641 = vunpack.c.l.b16 %v610
        %v3642 = vunpack.c.h.b16 %v610
        %v3643 = vunpack.c.l.b16 %v611
        %v3644 = vunpack.c.h.b16 %v611
        %v3645 = vunpack.c.l.b16 %v612
        %v3646 = vunpack.c.h.b16 %v612
        %v3647 = vunpack.c.l.b16 %v613
        %v3648 = vunpack.c.h.b16 %v613
        %v3649 = vunpack.c.l.b16 %v614
        %v3650 = vunpack.c.h.b16 %v614
        %v3651 = vunpack.c.l.b16 %v615
        %v3652 = vunpack.c.h.b16 %v615
        %v3653 = vunpack.c.l.b16 %v616
        %v3654 = vunpack.c.h.b16 %v616
        %v3655 = vunpack.c.l.b16 %v617
        %v3656 = vunpack.c.h.b16 %v617
        %v3657 = vunpack.c.l.b16 %v618
        %v3658 = vunpack.c.h.b16 %v618
        %v3659 = vunpack.c.l.b16 %v619
        %v3660 = vunpack.c.h.b16 %v619
        %v3661 = vunpack.c.l.b16 %v620
        %v3662 = vunpack.c.h.b16 %v620
        %v3663 = vunpack.c.l.b16 %v621
        %v3664 = vunpack.c.h.b16 %v621
        %v3665 = vunpack.c.l.b16 %v622
        %v3666 = vunpack.c.h.b16 %v622
        %v3667 = vunpack.c.l.b16 %v623
        %v3668 = vunpack.c.h.b16 %v623
        %v3669 = vunpack.c.l.b16 %v624
        %v3670 = vunpack.c.h.b16 %v624
        %v3671 = vunpack.c.l.b16 %v625
        %v3672 = vunpack.c.h.b16 %v625
        %v3673 = vunpack.c.l.b16 %v626
        %v3674 = vunpack.c.h.b16 %v626
        %v3675 = vunpack.c.l.b16 %v627
        %v3676 = vunpack.c.h.b16 %v627
        %v3677 = vunpack.c.l.b16 %v628
        %v3678 = vunpack.c.h.b16 %v628
        %v3679 = vunpack.c.l.b16 %v629
        %v3680 = vunpack.c.h.b16 %v629
        %v3681 = vunpack.c.l.b16 %v630
        %v3682 = vunpack.c.h.b16 %v630
        %v3683 = vunpack.c.l.b16 %v631
        %v3684 = vunpack.c.h.b16 %v631
        %v3685 = vunpack.c.l.b16 %v632
        %v3686 = vunpack.c.h.b16 %v632
        %v3687 = vunpack.c.l.b16 %v633
        %v3688 = vunpack.c.h.b16 %v633
        %v3689 = vunpack.c.l.b16 %v634
        %v3690 = vunpack.c.h.b16 %v634
        %v3691 = vunpack.c.l.b16 %v635
        %v3692 = vunpack.c.h.b16 %v635
        %v3693 = vunpack.c.l.b16 %v636
        %v3694 = vunpack.c.h.b16 %v636
        %v3695 = vunpack.c.l.b16 %v637
        %v3696 = vunpack.c.h.b16 %v637
        %v3697 = vunpack.c.l.b16 %v638
        %v3698 = vunpack.c.h.b16 %v638
        %v3699 = vunpack.c.l.b16 %v639
        %v3700 = vunpack.c.h.b16 %v639
        %v3701 = vunpack.c.l.b16 %v640
        %v3702 = vunpack.c.h.b16 %v640
        %v3703 = vunpack.c.l.b16 %v641
        %v3704 = vunpack.c.h.b16 %v641
        %v3705 = vunpack.c.l.b16 %v642
        %v3706 = vunpack.c.h.b16 %v642
        %v3707 = vunpack.c.l.b16 %v643
        %v3708 = vunpack.c.h.b16 %v643
        %v3709 = vunpack.c.l.b16 %v644
        %v3710 = vunpack.c.h.b16 %v644
        %v3711 = vunpack.c.l.b16 %v645
        %v3712 = vunpack.c.h.b16 %v645
        %v3713 = vunpack.c.l.b16 %v646
        %v3714 = vunpack.c.h.b16 %v646
        %v3715 = vunpack.c.l.b16 %v647
        %v3716 = vunpack.c.h.b16 %v647
        %v3717 = vunpack.c.l.b16 %v648
        %v3718 = vunpack.c.h.b16 %v648
        %v3719 = vunpack.c.l.b16 %v649
        %v3720 = vunpack.c.h.b16 %v649
        %v3721 = vunpack.c.l.b16 %v650
        %v3722 = vunpack.c.h.b16 %v650
        %v3723 = vunpack.c.l.b16 %v651
        %v3724 = vunpack.c.h.b16 %v651
        %v3725 = vunpack.c.l.b16 %v652
        %v3726 = vunpack.c.h.b16 %v652
        %v3727 = vunpack.c.l.b16 %v653
        %v3728 = vunpack.c.h.b16 %v653
        %v3729 = vunpack.c.l.b16 %v654
        %v3730 = vunpack.c.h.b16 %v654
        %v3731 = vunpack.c.l.b16 %v655
        %v3732 = vunpack.c.h.b16 %v655
        %v3733 = vunpack.c.l.b16 %v656
        %v3734 = vunpack.c.h.b16 %v656
        %v3735 = vunpack.c.l.b16 %v657
        %v3736 = vunpack.c.h.b16 %v657
        %v3737 = vunpack.c.l.b16 %v658
        %v3738 = vunpack.c.h.b16 %v658
        %v3739 = vunpack.c.l.b16 %v659
        %v3740 = vunpack.c.h.b16 %v659
        %v3741 = vunpack.c.l.b16 %v660
        %v3742 = vunpack.c.h.b16 %v660
        %v3743 = vunpack.c.l.b16 %v661
        %v3744 = vunpack.c.h.b16 %v661
        %v3745 = vunpack.c.l.b16 %v662
        %v3746 = vunpack.c.h.b16 %v662
        %v3747 = vunpack.c.l.b16 %v663
        %v3748 = vunpack.c.h.b16 %v663
        %v3749 = vunpack.c.l.b16 %v664
        %v3750 = vunpack.c.h.b16 %v664
        %v3751 = vunpack.c.l.b16 %v665
        %v3752 = vunpack.c.h.b16 %v665
        %v3753 = vunpack.c.l.b16 %v666
        %v3754 = vunpack.c.h.b16 %v666
        %v3755 = vunpack.c.l.b16 %v667
        %v3756 = vunpack.c.h.b16 %v667
        %v3757 = vunpack.c.l.b16 %v668
        %v3758 = vunpack.c.h.b16 %v668
        %v3759 = vunpack.c.l.b16 %v669
        %v3760 = vunpack.c.h.b16 %v669
        %v3761 = vunpack.c.l.b16 %v670
        %v3762 = vunpack.c.h.b16 %v670
        %v3763 = vunpack.c.l.b16 %v671
        %v3764 = vunpack.c.h.b16 %v671
        %v3765 = vunpack.c.l.b16 %v672
        %v3766 = vunpack.c.h.b16 %v672
        %v3767 = vunpack.c.l.b16 %v673
        %v3768 = vunpack.c.h.b16 %v673
        %v3769 = vunpack.c.l.b16 %v674
        %v3770 = vunpack.c.h.b16 %v674
        %v3771 = vunpack.c.l.b16 %v675
        %v3772 = vunpack.c.h.b16 %v675
        %v3773 = vunpack.c.l.b16 %v676
        %v3774 = vunpack.c.h.b16 %v676
        %v3775 = vunpack.c.l.b16 %v677
        %v3776 = vunpack.c.h.b16 %v677
        %v3777 = vunpack.c.l.b16 %v678
        %v3778 = vunpack.c.h.b16 %v678
        %v3779 = vunpack.c.l.b16 %v679
        %v3780 = vunpack.c.h.b16 %v679
        %v3781 = vunpack.c.l.b16 %v680
        %v3782 = vunpack.c.h.b16 %v680
        %v3783 = vunpack.c.l.b16 %v681
        %v3784 = vunpack.c.h.b16 %v681
        %v3785 = vunpack.c.l.b16 %v682
        %v3786 = vunpack.c.h.b16 %v682
        %v3787 = vunpack.c.l.b16 %v683
        %v3788 = vunpack.c.h.b16 %v683
        %v3789 = vunpack.c.l.b16 %v684
        %v3790 = vunpack.c.h.b16 %v684
        %v3791 = vunpack.c.l.b16 %v685
        %v3792 = vunpack.c.h.b16 %v685
        %v3793 = vunpack.c.l.b16 %v686
        %v3794 = vunpack.c.h.b16 %v686
        %v3795 = vunpack.c.l.b16 %v687
        %v3796 = vunpack.c.h.b16 %v687
        %v3797 = vunpack.c.l.b16 %v688
        %v3798 = vunpack.c.h.b16 %v688
        %v3799 = vunpack.c.l.b16 %v689
        %v3800 = vunpack.c.h.b16 %v689
        %v3801 = vunpack.c.l.b16 %v690
        %v3802 = vunpack.c.h.b16 %v690
        %v3803 = vunpack.c.l.b16 %v691
        %v3804 = vunpack.c.h.b16 %v691
        %v3805 = vunpack.c.l.b16 %v692
        %v3806 = vunpack.c.h.b16 %v692
        %v3807 = vunpack.c.l.b16 %v693
        %v3808 = vunpack.c.h.b16 %v693
        %v3809 = vunpack.c.l.b16 %v694
        %v3810 = vunpack.c.h.b16 %v694
        %v3811 = vunpack.c.l.b16 %v695
        %v3812 = vunpack.c.h.b16 %v695
        %v3813 = vunpack.c.l.b16 %v696
        %v3814 = vunpack.c.h.b16 %v696
        %v3815 = vunpack.c.l.b16 %v697
        %v3816 = vunpack.c.h.b16 %v697
        %v3817 = vunpack.c.l.b16 %v698
        %v3818 = vunpack.c.h.b16 %v698
        %v3819 = vunpack.c.l.b16 %v699
        %v3820 = vunpack.c.h.b16 %v699
        %v3821 = vunpack.c.l.b16 %v700
        %v3822 = vunpack.c.h.b16 %v700
        %v3823 = vunpack.c.l.b16 %v701
        %v3824 = vunpack.c.h.b16 %v701
        %v3825 = vunpack.c.l.b16 %v702
        %v3826 = vunpack.c.h.b16 %v702
        %v3827 = vunpack.c.l.b16 %v703
        %v3828 = vunpack.c.h.b16 %v703
        %v3829 = vunpack.c.l.b16 %v704
        %v3830 = vunpack.c.h.b16 %v704
        %v3831 = vunpack.c.l.b16 %v705
        %v3832 = vunpack.c.h.b16 %v705
        %v3833 = vunpack.c.l.b16 %v706
        %v3834 = vunpack.c.h.b16 %v706
        %v3835 = vunpack.c.l.b16 %v707
        %v3836 = vunpack.c.h.b16 %v707
        %v3837 = vunpack.c.l.b16 %v708
        %v3838 = vunpack.c.h.b16 %v708
        %v3839 = vunpack.c.l.b16 %v709
        %v3840 = vunpack.c.h.b16 %v709
        %v3841 = vunpack.c.l.b16 %v710
        %v3842 = vunpack.c.h.b16 %v710
        %v3843 = vunpack.c.l.b16 %v711
        %v3844 = vunpack.c.h.b16 %v711
        %v3845 = vunpack.c.l.b16 %v712
        %v3846 = vunpack.c.h.b16 %v712
        %v3847 = vunpack.c.l.b16 %v713
        %v3848 = vunpack.c.h.b16 %v713
        %v3849 = vunpack.c.l.b16 %v714
        %v3850 = vunpack.c.h.b16 %v714
        %v3851 = vunpack.c.l.b16 %v715
        %v3852 = vunpack.c.h.b16 %v715
        %v3853 = vunpack.c.l.b16 %v716
        %v3854 = vunpack.c.h.b16 %v716
        %v3855 = vunpack.c.l.b16 %v717
        %v3856 = vunpack.c.h.b16 %v717
        %v3857 = vunpack.c.l.b16 %v718
        %v3858 = vunpack.c.h.b16 %v718
        %v3859 = vunpack.c.l.b16 %v719
        %v3860 = vunpack.c.h.b16 %v719
        %v3861 = vunpack.c.l.b16 %v720
        %v3862 = vunpack.c.h.b16 %v720
        %v3863 = vunpack.c.l.b16 %v721
        %v3864 = vunpack.c.h.b16 %v721
        %v3865 = vunpack.c.l.b16 %v722
        %v3866 = vunpack.c.h.b16 %v722
        %v3867 = vunpack.c.l.b16 %v723
        %v3868 = vunpack.c.h.b16 %v723
        %v3869 = vunpack.c.l.b16 %v724
        %v3870 = vunpack.c.h.b16 %v724
        %v3871 = vunpack.c.l.b16 %v725
        %v3872 = vunpack.c.h.b16 %v725
        %v3873 = vunpack.c.l.b16 %v726
        %v3874 = vunpack.c.h.b16 %v726
        %v3875 = vunpack.c.l.b16 %v727
        %v3876 = vunpack.c.h.b16 %v727
        %v3877 = vunpack.c.l.b16 %v728
        %v3878 = vunpack.c.h.b16 %v728
        %v3879 = vunpack.c.l.b16 %v729
        %v3880 = vunpack.c.h.b16 %v729
        %v3881 = vunpack.c.l.b16 %v730
        %v3882 = vunpack.c.h.b16 %v730
        %v3883 = vunpack.c.l.b16 %v731
        %v3884 = vunpack.c.h.b16 %v731
        %v3885 = vunpack.c.l.b16 %v732
        %v3886 = vunpack.c.h.b16 %v732
        %v3887 = vunpack.c.l.b16 %v733
        %v3888 = vunpack.c.h.b16 %v733
        %v3889 = vunpack.c.l.b16 %v734
        %v3890 = vunpack.c.h.b16 %v734
        %v3891 = vunpack.c.l.b16 %v735
        %v3892 = vunpack.c.h.b16 %v735
        %v3893 = vunpack.c.l.b16 %v736
        %v3894 = vunpack.c.h.b16 %v736
        %v3895 = vunpack.c.l.b16 %v737
        %v3896 = vunpack.c.h.b16 %v737
        %v3897 = vunpack.c.l.b16 %v738
        %v3898 = vunpack.c.h.b16 %v738
        %v3899 = vunpack.c.l.b16 %v739
        %v3900 = vunpack.c.h.b16 %v739
        %v3901 = vunpack.c.l.b16 %v740
        %v3902 = vunpack.c.h.b16 %v740
        %v3903 = vunpack.c.l.b16 %v741
        %v3904 = vunpack.c.h.b16 %v741
        %v3905 = vunpack.c.l.b16 %v742
        %v3906 = vunpack.c.h.b16 %v742
        %v3907 = vunpack.c.l.b16 %v743
        %v3908 = vunpack.c.h.b16 %v743
        %v3909 = vunpack.c.l.b16 %v744
        %v3910 = vunpack.c.h.b16 %v744
        %v3911 = vunpack.c.l.b16 %v745
        %v3912 = vunpack.c.h.b16 %v745
        %v3913 = vunpack.c.l.b16 %v746
        %v3914 = vunpack.c.h.b16 %v746
        %v3915 = vunpack.c.l.b16 %v747
        %v3916 = vunpack.c.h.b16 %v747
        %v3917 = vunpack.c.l.b16 %v748
        %v3918 = vunpack.c.h.b16 %v748
        %v3919 = vunpack.c.l.b16 %v749
        %v3920 = vunpack.c.h.b16 %v749
        %v3921 = vunpack.c.l.b16 %v750
        %v3922 = vunpack.c.h.b16 %v750
        %v3923 = vunpack.c.l.b16 %v751
        %v3924 = vunpack.c.h.b16 %v751
        %v3925 = vunpack.c.l.b16 %v752
        %v3926 = vunpack.c.h.b16 %v752
        %v3927 = vunpack.c.l.b16 %v753
        %v3928 = vunpack.c.h.b16 %v753
        %v3929 = vunpack.c.l.b16 %v754
        %v3930 = vunpack.c.h.b16 %v754
        %v3931 = vunpack.c.l.b16 %v755
        %v3932 = vunpack.c.h.b16 %v755
        %v3933 = vunpack.c.l.b16 %v756
        %v3934 = vunpack.c.h.b16 %v756
        %v3935 = vunpack.c.l.b16 %v757
        %v3936 = vunpack.c.h.b16 %v757
        %v3937 = vunpack.c.l.b16 %v758
        %v3938 = vunpack.c.h.b16 %v758
        %v3939 = vunpack.c.l.b16 %v759
        %v3940 = vunpack.c.h.b16 %v759
        %v3941 = vunpack.c.l.b16 %v760
        %v3942 = vunpack.c.h.b16 %v760
        %v3943 = vunpack.c.l.b16 %v761
        %v3944 = vunpack.c.h.b16 %v761
        %v3945 = vunpack.c.l.b16 %v762
        %v3946 = vunpack.c.h.b16 %v762
        %v3947 = vunpack.c.l.b16 %v763
        %v3948 = vunpack.c.h.b16 %v763
        %v3949 = vunpack.c.l.b16 %v764
        %v3950 = vunpack.c.h.b16 %v764
        %v3951 = vunpack.c.l.b16 %v765
        %v3952 = vunpack.c.h.b16 %v765
        %v3953 = vunpack.c.l.b16 %v766
        %v3954 = vunpack.c.h.b16 %v766
        %v3955 = vunpack.c.l.b16 %v767
        %v3956 = vunpack.c.h.b16 %v767
        %v3957 = vunpack.c.l.b16 %v768
        %v3958 = vunpack.c.h.b16 %v768
        %v3959 = vunpack.c.l.b16 %v769
        %v3960 = vunpack.c.h.b16 %v769
        %v3961 = vunpack.c.l.b16 %v770
        %v3962 = vunpack.c.h.b16 %v770
        %v3963 = vunpack.c.l.b16 %v771
        %v3964 = vunpack.c.h.b16 %v771
        %v3965 = vunpack.c.l.b16 %v772
        %v3966 = vunpack.c.h.b16 %v772
        %v3967 = vunpack.c.l.b16 %v773
        %v3968 = vunpack.c.h.b16 %v773
        %v3969 = vunpack.c.l.b16 %v774
        %v3970 = vunpack.c.h.b16 %v774
        %v3971 = vunpack.c.l.b16 %v775
        %v3972 = vunpack.c.h.b16 %v775
        %v3973 = vunpack.c.l.b16 %v776
        %v3974 = vunpack.c.h.b16 %v776
        %v3975 = vunpack.c.l.b16 %v777
        %v3976 = vunpack.c.h.b16 %v777
        %v3977 = vunpack.c.l.b16 %v778
        %v3978 = vunpack.c.h.b16 %v778
        %v3979 = vunpack.c.l.b16 %v779
        %v3980 = vunpack.c.h.b16 %v779
        %v3981 = vunpack.c.l.b16 %v780
        %v3982 = vunpack.c.h.b16 %v780
        %v3983 = vunpack.c.l.b16 %v781
        %v3984 = vunpack.c.h.b16 %v781
        %v3985 = vunpack.c.l.b16 %v782
        %v3986 = vunpack.c.h.b16 %v782
        %v3987 = vunpack.c.l.b16 %v783
        %v3988 = vunpack.c.h.b16 %v783
        %v3989 = vunpack.c.l.b16 %v784
        %v3990 = vunpack.c.h.b16 %v784
        %v3991 = vunpack.c.l.b16 %v785
        %v3992 = vunpack.c.h.b16 %v785
        %v3993 = vunpack.c.l.b16 %v786
        %v3994 = vunpack.c.h.b16 %v786
        %v3995 = vunpack.c.l.b16 %v787
        %v3996 = vunpack.c.h.b16 %v787
        %v3997 = vunpack.c.l.b16 %v788
        %v3998 = vunpack.c.h.b16 %v788
        %v3999 = vunpack.c.l.b16 %v789
        %v4000 = vunpack.c.h.b16 %v789
        %v4001 = vunpack.c.l.b16 %v790
        %v4002 = vunpack.c.h.b16 %v790
        %v4003 = vunpack.c.l.b16 %v791
        %v4004 = vunpack.c.h.b16 %v791
        %v4005 = vunpack.c.l.b16 %v792
        %v4006 = vunpack.c.h.b16 %v792
        %v4007 = vunpack.c.l.b16 %v793
        %v4008 = vunpack.c.h.b16 %v793
        %v4009 = vunpack.c.l.b16 %v794
        %v4010 = vunpack.c.h.b16 %v794
        %v4011 = vunpack.c.l.b16 %v795
        %v4012 = vunpack.c.h.b16 %v795
        %v4013 = vunpack.c.l.b16 %v796
        %v4014 = vunpack.c.h.b16 %v796
        %v4015 = vunpack.c.l.b16 %v797
        %v4016 = vunpack.c.h.b16 %v797
        %v4017 = vunpack.c.l.b16 %v798
        %v4018 = vunpack.c.h.b16 %v798
        %v4019 = vunpack.c.l.b16 %v799
        %v4020 = vunpack.c.h.b16 %v799
        %v4021 = vunpack.c.l.b16 %v800
        %v4022 = vunpack.c.h.b16 %v800
        %v4023 = vunpack.c.l.b16 %v801
        %v4024 = vunpack.c.h.b16 %v801
        %v4025 = vunpack.c.l.b16 %v802
        %v4026 = vunpack.c.h.b16 %v802
        %v4027 = vunpack.c.l.b16 %v803
        %v4028 = vunpack.c.h.b16 %v803
        %v4029 = vunpack.c.l.b16 %v804
        %v4030 = vunpack.c.h.b16 %v804
        %v4031 = vunpack.c.l.b16 %v805
        %v4032 = vunpack.c.h.b16 %v805
        %v4033 = vunpack.c.l.b16 %v806
        %v4034 = vunpack.c.h.b16 %v806
        %v4035 = vunpack.c.l.b16 %v807
        %v4036 = vunpack.c.h.b16 %v807
        %v4037 = vunpack.c.l.b16 %v808
        %v4038 = vunpack.c.h.b16 %v808
        %v4039 = vunpack.c.l.b16 %v809
        %v4040 = vunpack.c.h.b16 %v809
        %v4041 = vunpack.c.l.b16 %v810
        %v4042 = vunpack.c.h.b16 %v810
        %v4043 = vunpack.c.l.b16 %v811
        %v4044 = vunpack.c.h.b16 %v811
        %v4045 = vunpack.c.l.b16 %v812
        %v4046 = vunpack.c.h.b16 %v812
        %v4047 = vunpack.c.l.b16 %v813
        %v4048 = vunpack.c.h.b16 %v813
        %v4049 = vunpack.c.l.b16 %v814
        %v4050 = vunpack.c.h.b16 %v814
        %v4051 = vunpack.c.l.b16 %v815
        %v4052 = vunpack.c.h.b16 %v815
        %v4053 = vunpack.c.l.b16 %v816
        %v4054 = vunpack.c.h.b16 %v816
        %v4055 = vunpack.c.l.b16 %v817
        %v4056 = vunpack.c.h.b16 %v817
        %v4057 = vunpack.c.l.b16 %v818
        %v4058 = vunpack.c.h.b16 %v818
        %v4059 = vunpack.c.l.b16 %v819
        %v4060 = vunpack.c.h.b16 %v819
        %v4061 = vunpack.c.l.b16 %v820
        %v4062 = vunpack.c.h.b16 %v820
        %v4063 = vunpack.c.l.b16 %v821
        %v4064 = vunpack.c.h.b16 %v821
        %v4065 = vunpack.c.l.b16 %v822
        %v4066 = vunpack.c.h.b16 %v822
        %v4067 = vunpack.c.l.b16 %v823
        %v4068 = vunpack.c.h.b16 %v823
        %v4069 = vunpack.c.l.b16 %v824
        %v4070 = vunpack.c.h.b16 %v824
        %v4071 = vunpack.c.l.b16 %v825
        %v4072 = vunpack.c.h.b16 %v825
        %v4073 = vunpack.c.l.b16 %v826
        %v4074 = vunpack.c.h.b16 %v826
        %v4075 = vunpack.c.l.b16 %v827
        %v4076 = vunpack.c.h.b16 %v827
        %v4077 = vunpack.c.l.b16 %v828
        %v4078 = vunpack.c.h.b16 %v828
        %v4079 = vunpack.c.l.b16 %v829
        %v4080 = vunpack.c.h.b16 %v829
        %v4081 = vunpack.c.l.b16 %v830
        %v4082 = vunpack.c.h.b16 %v830
        %v4083 = vunpack.c.l.b16 %v831
        %v4084 = vunpack.c.h.b16 %v831
        %v4085 = vunpack.c.l.b16 %v832
        %v4086 = vunpack.c.h.b16 %v832
        %v4087 = vunpack.c.l.b16 %v833
        %v4088 = vunpack.c.h.b16 %v833
        %v4089 = vunpack.c.l.b16 %v834
        %v4090 = vunpack.c.h.b16 %v834
        %v4091 = vunpack.c.l.b16 %v835
        %v4092 = vunpack.c.h.b16 %v835
        %v4093 = vunpack.c.l.b16 %v836
        %v4094 = vunpack.c.h.b16 %v836
        %v4095 = vunpack.c.l.b16 %v837
        %v4096 = vunpack.c.h.b16 %v837
        %v4097 = vunpack.c.l.b16 %v838
        %v4098 = vunpack.c.h.b16 %v838
        %v4099 = vunpack.c.l.b16 %v839
        %v4100 = vunpack.c.h.b16 %v839
        %v4101 = vunpack.c.l.b16 %v840
        %v4102 = vunpack.c.h.b16 %v840
        %v4103 = vunpack.c.l.b16 %v841
        %v4104 = vunpack.c.h.b16 %v841
        %v4105 = vunpack.c.l.b16 %v842
        %v4106 = vunpack.c.h.b16 %v842
        %v4107 = vunpack.c.l.b16 %v843
        %v4108 = vunpack.c.h.b16 %v843
        %v4109 = vunpack.c.l.b16 %v844
        %v4110 = vunpack.c.h.b16 %v844
        %v4111 = vunpack.c.l.b16 %v845
        %v4112 = vunpack.c.h.b16 %v845
        %v4113 = vunpack.c.l.b16 %v846
        %v4114 = vunpack.c.h.b16 %v846
        %v4115 = vunpack.c.l.b16 %v847
        %v4116 = vunpack.c.h.b16 %v847
        %v4117 = vunpack.c.l.b16 %v848
        %v4118 = vunpack.c.h.b16 %v848
        %v4119 = vunpack.c.l.b16 %v849
        %v4120 = vunpack.c.h.b16 %v849
        %v4121 = vunpack.c.l.b16 %v850
        %v4122 = vunpack.c.h.b16 %v850
        %v4123 = vunpack.c.l.b16 %v851
        %v4124 = vunpack.c.h.b16 %v851
        %v4125 = vunpack.c.l.b16 %v852
        %v4126 = vunpack.c.h.b16 %v852
        %v4127 = vunpack.c.l.b16 %v853
        %v4128 = vunpack.c.h.b16 %v853
        %v4129 = vunpack.c.l.b16 %v854
        %v4130 = vunpack.c.h.b16 %v854
        %v4131 = vunpack.c.l.b16 %v855
        %v4132 = vunpack.c.h.b16 %v855
        %v4133 = vunpack.c.l.b16 %v856
        %v4134 = vunpack.c.h.b16 %v856
        %v4135 = vunpack.c.l.b16 %v857
        %v4136 = vunpack.c.h.b16 %v857
        %v4137 = vunpack.c.l.b16 %v858
        %v4138 = vunpack.c.h.b16 %v858
        %v4139 = vunpack.c.l.b16 %v859
        %v4140 = vunpack.c.h.b16 %v859
        %v4141 = vunpack.c.l.b16 %v860
        %v4142 = vunpack.c.h.b16 %v860
        %v4143 = vunpack.c.l.b16 %v861
        %v4144 = vunpack.c.h.b16 %v861
        %v4145 = vunpack.c.l.b16 %v862
        %v4146 = vunpack.c.h.b16 %v862
        %v4147 = vunpack.c.l.b16 %v863
        %v4148 = vunpack.c.h.b16 %v863
        %v4149 = vunpack.c.l.b16 %v864
        %v4150 = vunpack.c.h.b16 %v864
        %v4151 = vunpack.c.l.b16 %v865
        %v4152 = vunpack.c.h.b16 %v865
        %v4153 = vunpack.c.l.b16 %v866
        %v4154 = vunpack.c.h.b16 %v866
        %v4155 = vunpack.c.l.b16 %v867
        %v4156 = vunpack.c.h.b16 %v867
        %v4157 = vunpack.c.l.b16 %v868
        %v4158 = vunpack.c.h.b16 %v868
        %v4159 = vunpack.c.l.b16 %v869
        %v4160 = vunpack.c.h.b16 %v869
        %v4161 = vunpack.c.l.b16 %v870
        %v4162 = vunpack.c.h.b16 %v870
        %v4163 = vunpack.c.l.b16 %v871
        %v4164 = vunpack.c.h.b16 %v871
        %v4165 = vunpack.c.l.b16 %v872
        %v4166 = vunpack.c.h.b16 %v872
        %v4167 = vunpack.c.l.b16 %v873
        %v4168 = vunpack.c.h.b16 %v873
        %v4169 = vunpack.c.l.b16 %v874
        %v4170 = vunpack.c.h.b16 %v874
        %v4171 = vunpack.c.l.b16 %v875
        %v4172 = vunpack.c.h.b16 %v875
        %v4173 = vunpack.c.l.b16 %v876
        %v4174 = vunpack.c.h.b16 %v876
        %v4175 = vunpack.c.l.b16 %v877
        %v4176 = vunpack.c.h.b16 %v877
        %v4177 = vunpack.c.l.b16 %v878
        %v4178 = vunpack.c.h.b16 %v878
        %v4179 = vunpack.c.l.b16 %v879
        %v4180 = vunpack.c.h.b16 %v879
        %v4181 = vunpack.c.l.b16 %v880
        %v4182 = vunpack.c.h.b16 %v880
        %v4183 = vunpack.c.l.b16 %v881
        %v4184 = vunpack.c.h.b16 %v881
        %v4185 = vunpack.c.l.b16 %v882
        %v4186 = vunpack.c.h.b16 %v882
        %v4187 = vunpack.c.l.b16 %v883
        %v4188 = vunpack.c.h.b16 %v883
        %v4189 = vunpack.c.l.b16 %v884
        %v4190 = vunpack.c.h.b16 %v884
        %v4191 = vunpack.c.l.b16 %v885
        %v4192 = vunpack.c.h.b16 %v885
        %v4193 = vunpack.c.l.b16 %v886
        %v4194 = vunpack.c.h.b16 %v886
        %v4195 = vunpack.c.l.b16 %v887
        %v4196 = vunpack.c.h.b16 %v887
        %v4197 = vunpack.c.l.b16 %v888
        %v4198 = vunpack.c.h.b16 %v888
        %v4199 = vunpack.c.l.b16 %v889
        %v4200 = vunpack.c.h.b16 %v889
        %v4201 = vunpack.c.l.b16 %v890
        %v4202 = vunpack.c.h.b16 %v890
        %v4203 = vunpack.c.l.b16 %v891
        %v4204 = vunpack.c.h.b16 %v891
        %v4205 = vunpack.c.l.b16 %v892
        %v4206 = vunpack.c.h.b16 %v892
        %v4207 = vunpack.c.l.b16 %v893
        %v4208 = vunpack.c.h.b16 %v893
        %v4209 = vunpack.c.l.b16 %v894
        %v4210 = vunpack.c.h.b16 %v894
        %v4211 = vunpack.c.l.b16 %v895
        %v4212 = vunpack.c.h.b16 %v895
        %v4213 = vunpack.c.l.b16 %v896
        %v4214 = vunpack.c.h.b16 %v896
        %v4215 = vunpack.c.l.b16 %v897
        %v4216 = vunpack.c.h.b16 %v897
        %v4217 = vunpack.c.l.b16 %v898
        %v4218 = vunpack.c.h.b16 %v898
        %v4219 = vunpack.c.l.b16 %v899
        %v4220 = vunpack.c.h.b16 %v899
        %v4221 = vunpack.c.l.b16 %v900
        %v4222 = vunpack.c.h.b16 %v900
        %v4223 = vunpack.c.l.b16 %v901
        %v4224 = vunpack.c.h.b16 %v901
        %v4225 = vunpack.c.l.b16 %v902
        %v4226 = vunpack.c.h.b16 %v902
        %v4227 = vunpack.c.l.b16 %v903
        %v4228 = vunpack.c.h.b16 %v903
        %v4229 = vunpack.c.l.b16 %v904
        %v4230 = vunpack.c.h.b16 %v904
        %v4231 = vunpack.c.l.b16 %v905
        %v4232 = vunpack.c.h.b16 %v905
        %v4233 = vunpack.c.l.b16 %v906
        %v4234 = vunpack.c.h.b16 %v906
        %v4235 = vunpack.c.l.b16 %v907
        %v4236 = vunpack.c.h.b16 %v907
        %v4237 = vunpack.c.l.b16 %v908
        %v4238 = vunpack.c.h.b16 %v908
        %v4239 = vunpack.c.l.b16 %v909
        %v4240 = vunpack.c.h.b16 %v909
        %v4241 = vunpack.c.l.b16 %v910
        %v4242 = vunpack.c.h.b16 %v910
        %v4243 = vunpack.c.l.b16 %v911
        %v4244 = vunpack.c.h.b16 %v911
        %v4245 = vunpack.c.l.b16 %v912
        %v4246 = vunpack.c.h.b16 %v912
        %v4247 = vunpack.c.l.b16 %v913
        %v4248 = vunpack.c.h.b16 %v913
        %v4249 = vunpack.c.l.b16 %v914
        %v4250 = vunpack.c.h.b16 %v914
        %v4251 = vunpack.c.l.b16 %v915
        %v4252 = vunpack.c.h.b16 %v915
        %v4253 = vunpack.c.l.b16 %v916
        %v4254 = vunpack.c.h.b16 %v916
        %v4255 = vunpack.c.l.b16 %v917
        %v4256 = vunpack.c.h.b16 %v917
        %v4257 = vunpack.c.l.b16 %v918
        %v4258 = vunpack.c.h.b16 %v918
        %v4259 = vunpack.c.l.b16 %v919
        %v4260 = vunpack.c.h.b16 %v919
        %v4261 = vunpack.c.l.b16 %v920
        %v4262 = vunpack.c.h.b16 %v920
        %v4263 = vunpack.c.l.b16 %v921
        %v4264 = vunpack.c.h.b16 %v921
        %v4265 = vunpack.c.l.b16 %v922
        %v4266 = vunpack.c.h.b16 %v922
        %v4267 = vunpack.c.l.b16 %v923
        %v4268 = vunpack.c.h.b16 %v923
        %v4269 = vunpack.c.l.b16 %v924
        %v4270 = vunpack.c.h.b16 %v924
        %v4271 = vunpack.c.l.b16 %v925
        %v4272 = vunpack.c.h.b16 %v925
        %v4273 = vunpack.c.l.b16 %v926
        %v4274 = vunpack.c.h.b16 %v926
        %v4275 = vunpack.c.l.b16 %v927
        %v4276 = vunpack.c.h.b16 %v927
        %v4277 = vunpack.c.l.b16 %v928
        %v4278 = vunpack.c.h.b16 %v928
        %v4279 = vunpack.c.l.b16 %v929
        %v4280 = vunpack.c.h.b16 %v929
        %v4281 = vunpack.c.l.b16 %v930
        %v4282 = vunpack.c.h.b16 %v930
        %v4283 = vunpack.c.l.b16 %v931
        %v4284 = vunpack.c.h.b16 %v931
        %v4285 = vunpack.c.l.b16 %v932
        %v4286 = vunpack.c.h.b16 %v932
        %v4287 = vunpack.c.l.b16 %v933
        %v4288 = vunpack.c.h.b16 %v933
        %v4289 = vunpack.c.l.b16 %v934
        %v4290 = vunpack.c.h.b16 %v934
        %v4291 = vunpack.c.l.b16 %v935
        %v4292 = vunpack.c.h.b16 %v935
        %v4293 = vunpack.c.l.b16 %v936
        %v4294 = vunpack.c.h.b16 %v936
        %v4295 = vunpack.c.l.b16 %v937
        %v4296 = vunpack.c.h.b16 %v937
        %v4297 = vunpack.c.l.b16 %v938
        %v4298 = vunpack.c.h.b16 %v938
        %v4299 = vunpack.c.l.b16 %v939
        %v4300 = vunpack.c.h.b16 %v939
        %v4301 = vunpack.c.l.b16 %v940
        %v4302 = vunpack.c.h.b16 %v940
        %v4303 = vunpack.c.l.b16 %v941
        %v4304 = vunpack.c.h.b16 %v941
        %v4305 = vunpack.c.l.b16 %v942
        %v4306 = vunpack.c.h.b16 %v942
        %v4307 = vunpack.c.l.b16 %v943
        %v4308 = vunpack.c.h.b16 %v943
        %v4309 = vunpack.c.l.b16 %v944
        %v4310 = vunpack.c.h.b16 %v944
        %v4311 = vunpack.c.l.b16 %v945
        %v4312 = vunpack.c.h.b16 %v945
        %v4313 = vunpack.c.l.b16 %v946
        %v4314 = vunpack.c.h.b16 %v946
        %v4315 = vunpack.c.l.b16 %v947
        %v4316 = vunpack.c.h.b16 %v947
        %v4317 = vunpack.c.l.b16 %v948
        %v4318 = vunpack.c.h.b16 %v948
        %v4319 = vunpack.c.l.b16 %v949
        %v4320 = vunpack.c.h.b16 %v949
        %v4321 = vunpack.c.l.b16 %v950
        %v4322 = vunpack.c.h.b16 %v950
        %v4323 = vunpack.c.l.b16 %v951
        %v4324 = vunpack.c.h.b16 %v951
        %v4325 = vunpack.c.l.b16 %v952
        %v4326 = vunpack.c.h.b16 %v952
        %v4327 = vunpack.c.l.b16 %v953
        %v4328 = vunpack.c.h.b16 %v953
        %v4329 = vunpack.c.l.b16 %v954
        %v4330 = vunpack.c.h.b16 %v954
        %v4331 = vunpack.c.l.b16 %v955
        %v4332 = vunpack.c.h.b16 %v955
        %v4333 = vunpack.c.l.b16 %v956
        %v4334 = vunpack.c.h.b16 %v956
        %v4335 = vunpack.c.l.b16 %v957
        %v4336 = vunpack.c.h.b16 %v957
        %v4337 = vunpack.c.l.b16 %v958
        %v4338 = vunpack.c.h.b16 %v958
        %v4339 = vunpack.c.l.b16 %v959
        %v4340 = vunpack.c.h.b16 %v959
        %v4341 = vunpack.c.l.b16 %v960
        %v4342 = vunpack.c.h.b16 %v960
        %v4343 = vunpack.c.l.b16 %v961
        %v4344 = vunpack.c.h.b16 %v961
        %v4345 = vunpack.c.l.b16 %v962
        %v4346 = vunpack.c.h.b16 %v962
        %v4347 = vunpack.c.l.b16 %v963
        %v4348 = vunpack.c.h.b16 %v963
        %v4349 = vunpack.c.l.b16 %v964
        %v4350 = vunpack.c.h.b16 %v964
        %v4351 = vunpack.c.l.b16 %v965
        %v4352 = vunpack.c.h.b16 %v965
        %v4353 = vunpack.c.l.b16 %v966
        %v4354 = vunpack.c.h.b16 %v966
        %v4355 = vunpack.c.l.b16 %v967
        %v4356 = vunpack.c.h.b16 %v967
        %v4357 = vunpack.c.l.b16 %v968
        %v4358 = vunpack.c.h.b16 %v968
        %v4359 = vunpack.c.l.b16 %v969
        %v4360 = vunpack.c.h.b16 %v969
        %v4361 = vunpack.c.l.b16 %v970
        %v4362 = vunpack.c.h.b16 %v970
        %v4363 = vunpack.c.l.b16 %v971
        %v4364 = vunpack.c.h.b16 %v971
        %v4365 = vunpack.c.l.b16 %v972
        %v4366 = vunpack.c.h.b16 %v972
        %v4367 = vunpack.c.l.b16 %v973
        %v4368 = vunpack.c.h.b16 %v973
        %v4369 = vunpack.c.l.b16 %v974
        %v4370 = vunpack.c.h.b16 %v974
        %v4371 = vunpack.c.l.b16 %v975
        %v4372 = vunpack.c.h.b16 %v975
        %v4373 = vunpack.c.l.b16 %v976
        %v4374 = vunpack.c.h.b16 %v976
        %v4375 = vunpack.c.l.b16 %v977
        %v4376 = vunpack.c.h.b16 %v977
        %v4377 = vunpack.c.l.b16 %v978
        %v4378 = vunpack.c.h.b16 %v978
        %v4379 = vunpack.c.l.b16 %v979
        %v4380 = vunpack.c.h.b16 %v979
        %v4381 = vunpack.c.l.b16 %v980
        %v4382 = vunpack.c.h.b16 %v980
        %v4383 = vunpack.c.l.b16 %v981
        %v4384 = vunpack.c.h.b16 %v981
        %v4385 = vunpack.c.l.b16 %v982
        %v4386 = vunpack.c.h.b16 %v982
        %v4387 = vunpack.c.l.b16 %v983
        %v4388 = vunpack.c.h.b16 %v983
        %v4389 = vunpack.c.l.b16 %v984
        %v4390 = vunpack.c.h.b16 %v984
        %v4391 = vunpack.c.l.b16 %v985
        %v4392 = vunpack.c.h.b16 %v985
        %v4393 = vunpack.c.l.b16 %v986
        %v4394 = vunpack.c.h.b16 %v986
        %v4395 = vunpack.c.l.b16 %v987
        %v4396 = vunpack.c.h.b16 %v987
        %v4397 = vunpack.c.l.b16 %v988
        %v4398 = vunpack.c.h.b16 %v988
        %v4399 = vunpack.c.l.b16 %v989
        %v4400 = vunpack.c.h.b16 %v989
        %v4401 = vunpack.c.l.b16 %v990
        %v4402 = vunpack.c.h.b16 %v990
        %v4403 = vunpack.c.l.b16 %v991
        %v4404 = vunpack.c.h.b16 %v991
        %v4405 = vunpack.c.l.b16 %v992
        %v4406 = vunpack.c.h.b16 %v992
        %v4407 = vunpack.c.l.b16 %v993
        %v4408 = vunpack.c.h.b16 %v993
        %v4409 = vunpack.c.l.b16 %v994
        %v4410 = vunpack.c.h.b16 %v994
        %v4411 = vunpack.c.l.b16 %v995
        %v4412 = vunpack.c.h.b16 %v995
        %v4413 = vunpack.c.l.b16 %v996
        %v4414 = vunpack.c.h.b16 %v996
        %v4415 = vunpack.c.l.b16 %v997
        %v4416 = vunpack.c.h.b16 %v997
        %v4417 = vunpack.c.l.b16 %v998
        %v4418 = vunpack.c.h.b16 %v998
        %v4419 = vunpack.c.l.b16 %v999
        %v4420 = vunpack.c.h.b16 %v999
        %v4421 = vunpack.c.l.b16 %v1000
        %v4422 = vunpack.c.h.b16 %v1000
        %v4423 = vunpack.c.l.b16 %v1001
        %v4424 = vunpack.c.h.b16 %v1001
        %v4425 = vunpack.c.l.b16 %v1002
        %v4426 = vunpack.c.h.b16 %v1002
        %v4427 = vunpack.c.l.b16 %v1003
        %v4428 = vunpack.c.h.b16 %v1003
        %v4429 = vunpack.c.l.b16 %v1004
        %v4430 = vunpack.c.h.b16 %v1004
        %v4431 = vunpack.c.l.b16 %v1005
        %v4432 = vunpack.c.h.b16 %v1005
        %v4433 = vunpack.c.l.b16 %v1006
        %v4434 = vunpack.c.h.b16 %v1006
        %v4435 = vunpack.c.l.b16 %v1007
        %v4436 = vunpack.c.h.b16 %v1007
        %v4437 = vunpack.c.l.b16 %v1008
        %v4438 = vunpack.c.h.b16 %v1008
        %v4439 = vunpack.c.l.b16 %v1009
        %v4440 = vunpack.c.h.b16 %v1009
        %v4441 = vunpack.c.l.b16 %v1010
        %v4442 = vunpack.c.h.b16 %v1010
        %v4443 = vunpack.c.l.b16 %v1011
        %v4444 = vunpack.c.h.b16 %v1011
        %v4445 = vunpack.c.l.b16 %v1012
        %v4446 = vunpack.c.h.b16 %v1012
        %v4447 = vunpack.c.l.b16 %v1013
        %v4448 = vunpack.c.h.b16 %v1013
        %v4449 = vunpack.c.l.b16 %v1014
        %v4450 = vunpack.c.h.b16 %v1014
        %v4451 = vunpack.c.l.b16 %v1015
        %v4452 = vunpack.c.h.b16 %v1015
        %v4453 = vunpack.c.l.b16 %v1016
        %v4454 = vunpack.c.h.b16 %v1016
        %v4455 = vunpack.c.l.b16 %v1017
        %v4456 = vunpack.c.h.b16 %v1017
        %v4457 = vunpack.c.l.b16 %v1018
        %v4458 = vunpack.c.h.b16 %v1018
        %v4459 = vunpack.c.l.b16 %v1019
        %v4460 = vunpack.c.h.b16 %v1019
        %v4461 = vunpack.c.l.b16 %v1020
        %v4462 = vunpack.c.h.b16 %v1020
        %v4463 = vunpack.c.l.b16 %v1021
        %v4464 = vunpack.c.h.b16 %v1021
        %v4465 = vunpack.c.l.b16 %v1022
        %v4466 = vunpack.c.h.b16 %v1022
        %v4467 = vunpack.c.l.b16 %v1023
        %v4468 = vunpack.c.h.b16 %v1023
        %v4469 = vunpack.c.l.b16 %v1024
        %v4470 = vunpack.c.h.b16 %v1024
        %v4471 = vunpack.c.l.b16 %v1025
        %v4472 = vunpack.c.h.b16 %v1025
        %v4473 = vunpack.c.l.b16 %v1026
        %v4474 = vunpack.c.h.b16 %v1026
        %v4475 = vunpack.c.l.b16 %v1027
        %v4476 = vunpack.c.h.b16 %v1027
        %v4477 = vunpack.c.l.b16 %v1028
        %v4478 = vunpack.c.h.b16 %v1028
        %v4479 = vunpack.c.l.b16 %v1029
        %v4480 = vunpack.c.h.b16 %v1029
        %v4481 = vunpack.c.l.b16 %v1030
        %v4482 = vunpack.c.h.b16 %v1030
        %v4483 = vunpack.c.l.b16 %v1031
        %v4484 = vunpack.c.h.b16 %v1031
        %v4485 = vunpack.c.l.b16 %v1032
        %v4486 = vunpack.c.h.b16 %v1032
        %v4487 = vunpack.c.l.b16 %v1033
        %v4488 = vunpack.c.h.b16 %v1033
        %v4489 = vunpack.c.l.b16 %v1034
        %v4490 = vunpack.c.h.b16 %v1034
        %v4491 = vunpack.c.l.b16 %v1035
        %v4492 = vunpack.c.h.b16 %v1035
        %v4493 = vunpack.c.l.b16 %v1036
        %v4494 = vunpack.c.h.b16 %v1036
        %v4495 = vunpack.c.l.b16 %v1037
        %v4496 = vunpack.c.h.b16 %v1037
        %v4497 = vunpack.c.l.b16 %v1038
        %v4498 = vunpack.c.h.b16 %v1038
        %v4499 = vunpack.c.l.b16 %v1039
        %v4500 = vunpack.c.h.b16 %v1039
        %v4501 = vunpack.c.l.b16 %v1040
        %v4502 = vunpack.c.h.b16 %v1040
        %v4503 = vunpack.c.l.b16 %v1041
        %v4504 = vunpack.c.h.b16 %v1041
        %v4505 = vunpack.c.l.b16 %v1042
        %v4506 = vunpack.c.h.b16 %v1042
        %v4507 = vunpack.c.l.b16 %v1043
        %v4508 = vunpack.c.h.b16 %v1043
        %v4509 = vunpack.c.l.b16 %v1044
        %v4510 = vunpack.c.h.b16 %v1044
        %v4511 = vunpack.c.l.b16 %v1045
        %v4512 = vunpack.c.h.b16 %v1045
        %v4513 = vunpack.c.l.b16 %v1046
        %v4514 = vunpack.c.h.b16 %v1046
        %v4515 = vunpack.c.l.b16 %v1047
        %v4516 = vunpack.c.h.b16 %v1047
        %v4517 = vunpack.c.l.b16 %v1048
        %v4518 = vunpack.c.h.b16 %v1048
        %v4519 = vunpack.c.l.b16 %v1049
        %v4520 = vunpack.c.h.b16 %v1049
        %v4521 = vunpack.c.l.b16 %v1050
        %v4522 = vunpack.c.h.b16 %v1050
        %v4523 = vunpack.c.l.b16 %v1051
        %v4524 = vunpack.c.h.b16 %v1051
        %v4525 = vunpack.c.l.b16 %v1052
        %v4526 = vunpack.c.h.b16 %v1052
        %v4527 = vunpack.c.l.b16 %v1053
        %v4528 = vunpack.c.h.b16 %v1053
        %v4529 = vunpack.c.l.b16 %v1054
        %v4530 = vunpack.c.h.b16 %v1054
        %v4531 = vunpack.c.l.b16 %v1055
        %v4532 = vunpack.c.h.b16 %v1055
        %v4533 = vunpack.c.l.b16 %v1056
        %v4534 = vunpack.c.h.b16 %v1056
        %v4535 = vunpack.c.l.b16 %v1057
        %v4536 = vunpack.c.h.b16 %v1057
        %v4537 = vunpack.c.l.b16 %v1058
        %v4538 = vunpack.c.h.b16 %v1058
        %v4539 = vunpack.c.l.b16 %v1059
        %v4540 = vunpack.c.h.b16 %v1059
        %v4541 = vunpack.c.l.b16 %v1060
        %v4542 = vunpack.c.h.b16 %v1060
        %v4543 = vunpack.c.l.b16 %v1061
        %v4544 = vunpack.c.h.b16 %v1061
        %v4545 = vunpack.c.l.b16 %v1062
        %v4546 = vunpack.c.h.b16 %v1062
        %v4547 = vunpack.c.l.b16 %v1063
        %v4548 = vunpack.c.h.b16 %v1063
        %v4549 = vunpack.c.l.b16 %v1064
        %v4550 = vunpack.c.h.b16 %v1064
        %v4551 = vunpack.c.l.b16 %v1065
        %v4552 = vunpack.c.h.b16 %v1065
        %v4553 = vunpack.c.l.b16 %v1066
        %v4554 = vunpack.c.h.b16 %v1066
        %v4555 = vunpack.c.l.b16 %v1067
        %v4556 = vunpack.c.h.b16 %v1067
        %v4557 = vunpack.c.l.b16 %v1068
        %v4558 = vunpack.c.h.b16 %v1068
        %v4559 = vunpack.c.l.b16 %v1069
        %v4560 = vunpack.c.h.b16 %v1069
        %v4561 = vunpack.c.l.b16 %v1070
        %v4562 = vunpack.c.h.b16 %v1070
        %v4563 = vunpack.c.l.b16 %v1071
        %v4564 = vunpack.c.h.b16 %v1071
        %v4565 = vunpack.c.l.b16 %v1072
        %v4566 = vunpack.c.h.b16 %v1072
        %v4567 = vunpack.c.l.b16 %v1073
        %v4568 = vunpack.c.h.b16 %v1073
        %v4569 = vunpack.c.l.b16 %v1074
        %v4570 = vunpack.c.h.b16 %v1074
        %v4571 = vunpack.c.l.b16 %v1075
        %v4572 = vunpack.c.h.b16 %v1075
        %v4573 = vunpack.c.l.b16 %v1076
        %v4574 = vunpack.c.h.b16 %v1076
        %v4575 = vunpack.c.l.b16 %v1077
        %v4576 = vunpack.c.h.b16 %v1077
        %v4577 = vunpack.c.l.b16 %v1078
        %v4578 = vunpack.c.h.b16 %v1078
        %v4579 = vunpack.c.l.b16 %v1079
        %v4580 = vunpack.c.h.b16 %v1079
        %v4581 = vunpack.c.l.b16 %v1080
        %v4582 = vunpack.c.h.b16 %v1080
        %v4583 = vunpack.c.l.b16 %v1081
        %v4584 = vunpack.c.h.b16 %v1081
        %v4585 = vunpack.c.l.b16 %v1082
        %v4586 = vunpack.c.h.b16 %v1082
        %v4587 = vunpack.c.l.b16 %v1083
        %v4588 = vunpack.c.h.b16 %v1083
        %v4589 = vunpack.c.l.b16 %v1084
        %v4590 = vunpack.c.h.b16 %v1084
        %v4591 = vunpack.c.l.b16 %v1085
        %v4592 = vunpack.c.h.b16 %v1085
        %v4593 = vunpack.c.l.b16 %v1086
        %v4594 = vunpack.c.h.b16 %v1086
        %v4595 = vunpack.c.l.b16 %v1087
        %v4596 = vunpack.c.h.b16 %v1087
        %v4597 = vunpack.c.l.b16 %v1088
        %v4598 = vunpack.c.h.b16 %v1088
        %v4599 = vunpack.c.l.b16 %v1089
        %v4600 = vunpack.c.h.b16 %v1089
        %v4601 = vunpack.c.l.b16 %v1090
        %v4602 = vunpack.c.h.b16 %v1090
        %v4603 = vunpack.c.l.b16 %v1091
        %v4604 = vunpack.c.h.b16 %v1091
        %v4605 = vunpack.c.l.b16 %v1092
        %v4606 = vunpack.c.h.b16 %v1092
        %v4607 = vunpack.c.l.b16 %v1093
        %v4608 = vunpack.c.h.b16 %v1093
        %v4609 = vunpack.c.l.b16 %v1094
        %v4610 = vunpack.c.h.b16 %v1094
        %v4611 = vunpack.c.l.b16 %v1095
        %v4612 = vunpack.c.h.b16 %v1095
        %v4613 = vunpack.c.l.b16 %v1096
        %v4614 = vunpack.c.h.b16 %v1096
        %v4615 = vunpack.c.l.b16 %v1097
        %v4616 = vunpack.c.h.b16 %v1097
        %v4617 = vunpack.c.l.b16 %v1098
        %v4618 = vunpack.c.h.b16 %v1098
        %v4619 = vunpack.c.l.b16 %v1099
        %v4620 = vunpack.c.h.b16 %v1099
        %v4621 = vunpack.c.l.b16 %v1100
        %v4622 = vunpack.c.h.b16 %v1100
        %v4623 = vunpack.c.l.b16 %v1101
        %v4624 = vunpack.c.h.b16 %v1101
        %v4625 = vunpack.c.l.b16 %v1102
        %v4626 = vunpack.c.h.b16 %v1102
        %v4627 = vunpack.c.l.b16 %v1103
        %v4628 = vunpack.c.h.b16 %v1103
        %v4629 = vunpack.c.l.b16 %v1104
        %v4630 = vunpack.c.h.b16 %v1104
        %v4631 = vunpack.c.l.b16 %v1105
        %v4632 = vunpack.c.h.b16 %v1105
        %v4633 = vunpack.c.l.b16 %v1106
        %v4634 = vunpack.c.h.b16 %v1106
        %v4635 = vunpack.c.l.b16 %v1107
        %v4636 = vunpack.c.h.b16 %v1107
        %v4637 = vunpack.c.l.b16 %v1108
        %v4638 = vunpack.c.h.b16 %v1108
        %v4639 = vunpack.c.l.b16 %v1109
        %v4640 = vunpack.c.h.b16 %v1109
        %v4641 = vunpack.c.l.b16 %v1110
        %v4642 = vunpack.c.h.b16 %v1110
        %v4643 = vunpack.c.l.b16 %v1111
        %v4644 = vunpack.c.h.b16 %v1111
        %v4645 = vunpack.c.l.b16 %v1112
        %v4646 = vunpack.c.h.b16 %v1112
        %v4647 = vunpack.c.l.b16 %v1113
        %v4648 = vunpack.c.h.b16 %v1113
        %v4649 = vunpack.c.l.b16 %v1114
        %v4650 = vunpack.c.h.b16 %v1114
        %v4651 = vunpack.c.l.b16 %v1115
        %v4652 = vunpack.c.h.b16 %v1115
        %v4653 = vunpack.c.l.b16 %v1116
        %v4654 = vunpack.c.h.b16 %v1116
        %v4655 = vunpack.c.l.b16 %v1117
        %v4656 = vunpack.c.h.b16 %v1117
        %v4657 = vunpack.c.l.b16 %v1118
        %v4658 = vunpack.c.h.b16 %v1118
        %v4659 = vunpack.c.l.b16 %v1119
        %v4660 = vunpack.c.h.b16 %v1119
        %v4661 = vunpack.c.l.b16 %v1120
        %v4662 = vunpack.c.h.b16 %v1120
        %v4663 = vunpack.c.l.b16 %v1121
        %v4664 = vunpack.c.h.b16 %v1121
        %v4665 = vunpack.c.l.b16 %v1122
        %v4666 = vunpack.c.h.b16 %v1122
        %v4667 = vunpack.c.l.b16 %v1123
        %v4668 = vunpack.c.h.b16 %v1123
        %v4669 = vunpack.c.l.b16 %v1124
        %v4670 = vunpack.c.h.b16 %v1124
        %v4671 = vunpack.c.l.b16 %v1125
        %v4672 = vunpack.c.h.b16 %v1125
        %v4673 = vunpack.c.l.b16 %v1126
        %v4674 = vunpack.c.h.b16 %v1126
        %v4675 = vunpack.c.l.b16 %v1127
        %v4676 = vunpack.c.h.b16 %v1127
        %v4677 = vunpack.c.l.b16 %v1128
        %v4678 = vunpack.c.h.b16 %v1128
        %v4679 = vunpack.c.l.b16 %v1129
        %v4680 = vunpack.c.h.b16 %v1129
        %v4681 = vunpack.c.l.b16 %v1130
        %v4682 = vunpack.c.h.b16 %v1130
        %v4683 = vunpack.c.l.b16 %v1131
        %v4684 = vunpack.c.h.b16 %v1131
        %v4685 = vunpack.c.l.b16 %v1132
        %v4686 = vunpack.c.h.b16 %v1132
        %v4687 = vunpack.c.l.b16 %v1133
        %v4688 = vunpack.c.h.b16 %v1133
        %v4689 = vunpack.c.l.b16 %v1134
        %v4690 = vunpack.c.h.b16 %v1134
        %v4691 = vunpack.c.l.b16 %v1135
        %v4692 = vunpack.c.h.b16 %v1135
        %v4693 = vunpack.c.l.b16 %v1136
        %v4694 = vunpack.c.h.b16 %v1136
        %v4695 = vunpack.c.l.b16 %v1137
        %v4696 = vunpack.c.h.b16 %v1137
        %v4697 = vunpack.c.l.b16 %v1138
        %v4698 = vunpack.c.h.b16 %v1138
        %v4699 = vunpack.c.l.b16 %v1139
        %v4700 = vunpack.c.h.b16 %v1139
        %v4701 = vunpack.c.l.b16 %v1140
        %v4702 = vunpack.c.h.b16 %v1140
        %v4703 = vunpack.c.l.b16 %v1141
        %v4704 = vunpack.c.h.b16 %v1141
        %v4705 = vunpack.c.l.b16 %v1142
        %v4706 = vunpack.c.h.b16 %v1142
        %v4707 = vunpack.c.l.b16 %v1143
        %v4708 = vunpack.c.h.b16 %v1143
        %v4709 = vunpack.c.l.b16 %v1144
        %v4710 = vunpack.c.h.b16 %v1144
        %v4711 = vunpack.c.l.b16 %v1145
        %v4712 = vunpack.c.h.b16 %v1145
        %v4713 = vunpack.c.l.b16 %v1146
        %v4714 = vunpack.c.h.b16 %v1146
        %v4715 = vunpack.c.l.b16 %v1147
        %v4716 = vunpack.c.h.b16 %v1147
        %v4717 = vunpack.c.l.b16 %v1148
        %v4718 = vunpack.c.h.b16 %v1148
        %v4719 = vunpack.c.l.b16 %v1149
        %v4720 = vunpack.c.h.b16 %v1149
        %v4721 = vunpack.c.l.b16 %v1150
        %v4722 = vunpack.c.h.b16 %v1150
        %v4723 = vunpack.c.l.b16 %v1151
        %v4724 = vunpack.c.h.b16 %v1151
        %v4725 = vunpack.c.l.b16 %v1152
        %v4726 = vunpack.c.h.b16 %v1152
        %v4727 = vunpack.c.l.b16 %v1153
        %v4728 = vunpack.c.h.b16 %v1153
        %v4729 = vunpack.c.l.b16 %v1154
        %v4730 = vunpack.c.h.b16 %v1154
        %v4731 = vunpack.c.l.b16 %v1155
        %v4732 = vunpack.c.h.b16 %v1155
        %v4733 = vunpack.c.l.b16 %v1156
        %v4734 = vunpack.c.h.b16 %v1156
        %v4735 = vunpack.c.l.b16 %v1157
        %v4736 = vunpack.c.h.b16 %v1157
        %v4737 = vunpack.c.l.b16 %v1158
        %v4738 = vunpack.c.h.b16 %v1158
        %v4739 = vunpack.c.l.b16 %v1159
        %v4740 = vunpack.c.h.b16 %v1159
        %v4741 = vunpack.c.l.b16 %v1160
        %v4742 = vunpack.c.h.b16 %v1160
        %v4743 = vunpack.c.l.b16 %v1161
        %v4744 = vunpack.c.h.b16 %v1161
        %v4745 = vunpack.c.l.b16 %v1162
        %v4746 = vunpack.c.h.b16 %v1162
        %v4747 = vunpack.c.l.b16 %v1163
        %v4748 = vunpack.c.h.b16 %v1163
        %v4749 = vunpack.c.l.b16 %v1164
        %v4750 = vunpack.c.h.b16 %v1164
        %v4751 = vunpack.c.l.b16 %v1165
        %v4752 = vunpack.c.h.b16 %v1165
        %v4753 = vunpack.c.l.b16 %v1166
        %v4754 = vunpack.c.h.b16 %v1166
        %v4755 = vunpack.c.l.b16 %v1167
        %v4756 = vunpack.c.h.b16 %v1167
        %v4757 = vunpack.c.l.b16 %v1168
        %v4758 = vunpack.c.h.b16 %v1168
        %v4759 = vunpack.c.l.b16 %v1169
        %v4760 = vunpack.c.h.b16 %v1169
        %v4761 = vunpack.c.l.b16 %v1170
        %v4762 = vunpack.c.h.b16 %v1170
        %v4763 = vunpack.c.l.b16 %v1171
        %v4764 = vunpack.c.h.b16 %v1171
        %v4765 = vunpack.c.l.b16 %v1172
        %v4766 = vunpack.c.h.b16 %v1172
        %v4767 = vunpack.c.l.b16 %v1173
        %v4768 = vunpack.c.h.b16 %v1173
        %v4769 = vunpack.c.l.b16 %v1174
        %v4770 = vunpack.c.h.b16 %v1174
        %v4771 = vunpack.c.l.b16 %v1175
        %v4772 = vunpack.c.h.b16 %v1175
        %v4773 = vunpack.c.l.b16 %v1176
        %v4774 = vunpack.c.h.b16 %v1176
        %v4775 = vunpack.c.l.b16 %v1177
        %v4776 = vunpack.c.h.b16 %v1177
        %v4777 = vunpack.c.l.b16 %v1178
        %v4778 = vunpack.c.h.b16 %v1178
        %v4779 = vunpack.c.l.b16 %v1179
        %v4780 = vunpack.c.h.b16 %v1179
        %v4781 = vunpack.c.l.b16 %v1180
        %v4782 = vunpack.c.h.b16 %v1180
        %v4783 = vunpack.c.l.b16 %v1181
        %v4784 = vunpack.c.h.b16 %v1181
        %v4785 = vunpack.c.l.b16 %v1182
        %v4786 = vunpack.c.h.b16 %v1182
        %v4787 = vunpack.c.l.b16 %v1183
        %v4788 = vunpack.c.h.b16 %v1183
        %v4789 = vunpack.c.l.b16 %v1184
        %v4790 = vunpack.c.h.b16 %v1184
        %v4791 = vunpack.c.l.b16 %v1185
        %v4792 = vunpack.c.h.b16 %v1185
        %v4793 = vunpack.c.l.b16 %v1186
        %v4794 = vunpack.c.h.b16 %v1186
        %v4795 = vunpack.c.l.b16 %v1187
        %v4796 = vunpack.c.h.b16 %v1187
        %v4797 = vunpack.c.l.b16 %v1188
        %v4798 = vunpack.c.h.b16 %v1188
        %v4799 = vunpack.c.l.b16 %v1189
        %v4800 = vunpack.c.h.b16 %v1189
        %v4801 = vunpack.c.l.b16 %v1190
        %v4802 = vunpack.c.h.b16 %v1190
        %v4803 = vunpack.c.l.b16 %v1191
        %v4804 = vunpack.c.h.b16 %v1191
        %v4805 = vunpack.c.l.b16 %v1192
        %v4806 = vunpack.c.h.b16 %v1192
        %v4807 = vunpack.c.l.b16 %v1193
        %v4808 = vunpack.c.h.b16 %v1193
        %v4809 = vunpack.c.l.b16 %v1194
        %v4810 = vunpack.c.h.b16 %v1194
        %v4811 = vunpack.c.l.b16 %v1195
        %v4812 = vunpack.c.h.b16 %v1195
        %v4813 = vunpack.c.l.b16 %v1196
        %v4814 = vunpack.c.h.b16 %v1196
        %v4815 = vunpack.c.l.b16 %v1197
        %v4816 = vunpack.c.h.b16 %v1197
        %v4817 = vunpack.c.l.b16 %v1198
        %v4818 = vunpack.c.h.b16 %v1198
        %v4819 = vunpack.c.l.b16 %v1199
        %v4820 = vunpack.c.h.b16 %v1199
        %v4821 = vunpack.c.l.b16 %v1200
        %v4822 = vunpack.c.h.b16 %v1200
        %v4823 = vunpack.c.l.b16 %v1201
        %v4824 = vunpack.c.h.b16 %v1201
        %v4825 = vunpack.c.l.b16 %v1202
        %v4826 = vunpack.c.h.b16 %v1202
        %v4827 = vunpack.c.l.b16 %v1203
        %v4828 = vunpack.c.h.b16 %v1203
        %v4829 = vunpack.c.l.b16 %v1204
        %v4830 = vunpack.c.h.b16 %v1204
        %v4831 = vunpack.c.l.b16 %v1205
        %v4832 = vunpack.c.h.b16 %v1205
        %v4833 = vunpack.c.l.b16 %v1206
        %v4834 = vunpack.c.h.b16 %v1206
        %v4835 = vunpack.c.l.b16 %v1207
        %v4836 = vunpack.c.h.b16 %v1207
        %v4837 = vunpack.c.l.b16 %v1208
        %v4838 = vunpack.c.h.b16 %v1208
        %v4839 = vunpack.c.l.b16 %v1209
        %v4840 = vunpack.c.h.b16 %v1209
        %v4841 = vunpack.c.l.b16 %v1210
        %v4842 = vunpack.c.h.b16 %v1210
        %v4843 = vunpack.c.l.b16 %v1211
        %v4844 = vunpack.c.h.b16 %v1211
        %v4845 = vunpack.c.l.b16 %v1212
        %v4846 = vunpack.c.h.b16 %v1212
        %v4847 = vunpack.c.l.b16 %v1213
        %v4848 = vunpack.c.h.b16 %v1213
        %v4849 = vunpack.c.l.b16 %v1214
        %v4850 = vunpack.c.h.b16 %v1214
        %v4851 = vunpack.c.l.b16 %v1215
        %v4852 = vunpack.c.h.b16 %v1215
        %v4853 = vunpack.c.l.b16 %v1216
        %v4854 = vunpack.c.h.b16 %v1216
        %v4855 = vunpack.c.l.b16 %v1217
        %v4856 = vunpack.c.h.b16 %v1217
        %v4857 = vunpack.c.l.b16 %v1218
        %v4858 = vunpack.c.h.b16 %v1218
        %v4859 = vunpack.c.l.b16 %v1219
        %v4860 = vunpack.c.h.b16 %v1219
        %v4861 = vunpack.c.l.b16 %v1220
        %v4862 = vunpack.c.h.b16 %v1220
        %v4863 = vunpack.c.l.b16 %v1221
        %v4864 = vunpack.c.h.b16 %v1221
        %v4865 = vunpack.c.l.b16 %v1222
        %v4866 = vunpack.c.h.b16 %v1222
        %v4867 = vunpack.c.l.b16 %v1223
        %v4868 = vunpack.c.h.b16 %v1223
        %v4869 = vunpack.c.l.b16 %v1224
        %v4870 = vunpack.c.h.b16 %v1224
        %v4871 = vunpack.c.l.b16 %v1225
        %v4872 = vunpack.c.h.b16 %v1225
        %v4873 = vunpack.c.l.b16 %v1226
        %v4874 = vunpack.c.h.b16 %v1226
        %v4875 = vunpack.c.l.b16 %v1227
        %v4876 = vunpack.c.h.b16 %v1227
        %v4877 = vunpack.c.l.b16 %v1228
        %v4878 = vunpack.c.h.b16 %v1228
        %v4879 = vunpack.c.l.b16 %v1229
        %v4880 = vunpack.c.h.b16 %v1229
        %v4881 = vunpack.c.l.b16 %v1230
        %v4882 = vunpack.c.h.b16 %v1230
        %v4883 = vunpack.c.l.b16 %v1231
        %v4884 = vunpack.c.h.b16 %v1231
        %v4885 = vunpack.c.l.b16 %v1232
        %v4886 = vunpack.c.h.b16 %v1232
        %v4887 = vunpack.c.l.b16 %v1233
        %v4888 = vunpack.c.h.b16 %v1233
        %v4889 = vunpack.c.l.b16 %v1234
        %v4890 = vunpack.c.h.b16 %v1234
        %v4891 = vunpack.c.l.b16 %v1235
        %v4892 = vunpack.c.h.b16 %v1235
        %v4893 = vunpack.c.l.b16 %v1236
        %v4894 = vunpack.c.h.b16 %v1236
        %v4895 = vunpack.c.l.b16 %v1237
        %v4896 = vunpack.c.h.b16 %v1237
        %v4897 = vunpack.c.l.b16 %v1238
        %v4898 = vunpack.c.h.b16 %v1238
        %v4899 = vunpack.c.l.b16 %v1239
        %v4900 = vunpack.c.h.b16 %v1239
        %v4901 = vunpack.c.l.b16 %v1240
        %v4902 = vunpack.c.h.b16 %v1240
        %v4903 = vunpack.c.l.b16 %v1241
        %v4904 = vunpack.c.h.b16 %v1241
        %v4905 = vunpack.c.l.b16 %v1242
        %v4906 = vunpack.c.h.b16 %v1242
        %v4907 = vunpack.c.l.b16 %v1243
        %v4908 = vunpack.c.h.b16 %v1243
        %v4909 = vunpack.c.l.b16 %v1244
        %v4910 = vunpack.c.h.b16 %v1244
        %v4911 = vunpack.c.l.b16 %v1245
        %v4912 = vunpack.c.h.b16 %v1245
        %v4913 = vunpack.c.l.b16 %v1246
        %v4914 = vunpack.c.h.b16 %v1246
        %v4915 = vunpack.c.l.b16 %v1247
        %v4916 = vunpack.c.h.b16 %v1247
        %v4917 = vunpack.c.l.b16 %v1248
        %v4918 = vunpack.c.h.b16 %v1248
        %v4919 = vunpack.c.l.b16 %v1249
        %v4920 = vunpack.c.h.b16 %v1249
        %v4921 = vunpack.c.l.b16 %v1250
        %v4922 = vunpack.c.h.b16 %v1250
        %v4923 = vunpack.c.l.b16 %v1251
        %v4924 = vunpack.c.h.b16 %v1251
        %v4925 = vunpack.c.l.b16 %v1252
        %v4926 = vunpack.c.h.b16 %v1252
        %v4927 = vunpack.c.l.b16 %v1253
        %v4928 = vunpack.c.h.b16 %v1253
        %v4929 = vunpack.c.l.b16 %v1254
        %v4930 = vunpack.c.h.b16 %v1254
        %v4931 = vunpack.c.l.b16 %v1255
        %v4932 = vunpack.c.h.b16 %v1255
        %v4933 = vunpack.c.l.b16 %v1256
        %v4934 = vunpack.c.h.b16 %v1256
        %v4935 = vunpack.c.l.b16 %v1257
        %v4936 = vunpack.c.h.b16 %v1257
        %v4937 = vunpack.c.l.b16 %v1258
        %v4938 = vunpack.c.h.b16 %v1258
        %v4939 = vunpack.c.l.b16 %v1259
        %v4940 = vunpack.c.h.b16 %v1259
        %v4941 = vunpack.c.l.b16 %v1260
        %v4942 = vunpack.c.h.b16 %v1260
        %v4943 = vunpack.c.l.b16 %v1261
        %v4944 = vunpack.c.h.b16 %v1261
        %v4945 = vunpack.c.l.b16 %v1262
        %v4946 = vunpack.c.h.b16 %v1262
        %v4947 = vunpack.c.l.b16 %v1263
        %v4948 = vunpack.c.h.b16 %v1263
        %v4949 = vunpack.c.l.b16 %v1264
        %v4950 = vunpack.c.h.b16 %v1264
        %v4951 = vunpack.c.l.b16 %v1265
        %v4952 = vunpack.c.h.b16 %v1265
        %v4953 = vunpack.c.l.b16 %v1266
        %v4954 = vunpack.c.h.b16 %v1266
        %v4955 = vunpack.c.l.b16 %v1267
        %v4956 = vunpack.c.h.b16 %v1267
        %v4957 = vunpack.c.l.b16 %v1268
        %v4958 = vunpack.c.h.b16 %v1268
        %v4959 = vunpack.c.l.b16 %v1269
        %v4960 = vunpack.c.h.b16 %v1269
        %v4961 = vunpack.c.l.b16 %v1270
        %v4962 = vunpack.c.h.b16 %v1270
        %v4963 = vunpack.c.l.b16 %v1271
        %v4964 = vunpack.c.h.b16 %v1271
        %v4965 = vunpack.c.l.b16 %v1272
        %v4966 = vunpack.c.h.b16 %v1272
        %v4967 = vunpack.c.l.b16 %v1273
        %v4968 = vunpack.c.h.b16 %v1273
        %v4969 = vunpack.c.l.b16 %v1274
        %v4970 = vunpack.c.h.b16 %v1274
        %v4971 = vunpack.c.l.b16 %v1275
        %v4972 = vunpack.c.h.b16 %v1275
        %v4973 = vunpack.c.l.b16 %v1276
        %v4974 = vunpack.c.h.b16 %v1276
        %v4975 = vunpack.c.l.b16 %v1277
        %v4976 = vunpack.c.h.b16 %v1277
        %v4977 = vunpack.c.l.b16 %v1278
        %v4978 = vunpack.c.h.b16 %v1278
        %v4979 = vunpack.c.l.b16 %v1279
        %v4980 = vunpack.c.h.b16 %v1279
        %v4981 = vunpack.c.l.b16 %v1280
        %v4982 = vunpack.c.h.b16 %v1280
        %v4983 = vunpack.c.l.b16 %v1281
        %v4984 = vunpack.c.h.b16 %v1281
        %v4985 = vunpack.c.l.b16 %v1282
        %v4986 = vunpack.c.h.b16 %v1282
        %v4987 = vunpack.c.l.b16 %v1283
        %v4988 = vunpack.c.h.b16 %v1283
        %v4989 = vunpack.c.l.b16 %v1284
        %v4990 = vunpack.c.h.b16 %v1284
        %v4991 = vunpack.c.l.b16 %v1285
        %v4992 = vunpack.c.h.b16 %v1285
        %v4993 = vunpack.c.l.b16 %v1286
        %v4994 = vunpack.c.h.b16 %v1286
        %v4995 = vunpack.c.l.b16 %v1287
        %v4996 = vunpack.c.h.b16 %v1287
        %v4997 = vunpack.c.l.b16 %v1288
        %v4998 = vunpack.c.h.b16 %v1288
        %v4999 = vunpack.c.l.b16 %v1289
        %v5000 = vunpack.c.h.b16 %v1289
        %v5001 = vunpack.c.l.b16 %v1290
        %v5002 = vunpack.c.h.b16 %v1290
        %v5003 = vunpack.c.l.b16 %v1291
        %v5004 = vunpack.c.h.b16 %v1291
        %v5005 = vunpack.c.l.b16 %v1292
        %v5006 = vunpack.c.h.b16 %v1292
        %v5007 = vunpack.c.l.b16 %v1293
        %v5008 = vunpack.c.h.b16 %v1293
        %v5009 = vunpack.c.l.b16 %v1294
        %v5010 = vunpack.c.h.b16 %v1294
        %v5011 = vunpack.c.l.b16 %v1295
        %v5012 = vunpack.c.h.b16 %v1295
        %v5013 = vunpack.c.l.b16 %v1296
        %v5014 = vunpack.c.h.b16 %v1296
        %v5015 = vunpack.c.l.b16 %v1297
        %v5016 = vunpack.c.h.b16 %v1297
        %v5017 = vunpack.c.l.b16 %v1298
        %v5018 = vunpack.c.h.b16 %v1298
        %v5019 = vunpack.c.l.b16 %v1299
        %v5020 = vunpack.c.h.b16 %v1299
        %v5021 = vunpack.c.l.b16 %v1300
        %v5022 = vunpack.c.h.b16 %v1300
        %v5023 = vunpack.c.l.b16 %v1301
        %v5024 = vunpack.c.h.b16 %v1301
        %v5025 = vunpack.c.l.b16 %v1302
        %v5026 = vunpack.c.h.b16 %v1302
        %v5027 = vunpack.c.l.b16 %v1303
        %v5028 = vunpack.c.h.b16 %v1303
        %v5029 = vunpack.c.l.b16 %v1304
        %v5030 = vunpack.c.h.b16 %v1304
        %v5031 = vunpack.c.l.b16 %v1305
        %v5032 = vunpack.c.h.b16 %v1305
        %v5033 = vunpack.c.l.b16 %v1306
        %v5034 = vunpack.c.h.b16 %v1306
        %v5035 = vunpack.c.l.b16 %v1307
        %v5036 = vunpack.c.h.b16 %v1307
        %v5037 = vunpack.c.l.b16 %v1308
        %v5038 = vunpack.c.h.b16 %v1308
        %v5039 = vunpack.c.l.b16 %v1309
        %v5040 = vunpack.c.h.b16 %v1309
        %v5041 = vunpack.c.l.b16 %v1310
        %v5042 = vunpack.c.h.b16 %v1310
        %v5043 = vunpack.c.l.b16 %v1311
        %v5044 = vunpack.c.h.b16 %v1311
        %v5045 = vunpack.c.l.b16 %v1312
        %v5046 = vunpack.c.h.b16 %v1312
        %v5047 = vunpack.c.l.b16 %v1313
        %v5048 = vunpack.c.h.b16 %v1313
        %v5049 = vunpack.c.l.b16 %v1314
        %v5050 = vunpack.c.h.b16 %v1314
        %v5051 = vunpack.c.l.b16 %v1315
        %v5052 = vunpack.c.h.b16 %v1315
        %v5053 = vunpack.c.l.b16 %v1316
        %v5054 = vunpack.c.h.b16 %v1316
        %v5055 = vunpack.c.l.b16 %v1317
        %v5056 = vunpack.c.h.b16 %v1317
        %v5057 = vunpack.c.l.b16 %v1318
        %v5058 = vunpack.c.h.b16 %v1318
        %v5059 = vunpack.c.l.b16 %v1319
        %v5060 = vunpack.c.h.b16 %v1319
        %v5061 = vunpack.c.l.b16 %v1320
        %v5062 = vunpack.c.h.b16 %v1320
        %v5063 = vunpack.c.l.b16 %v1321
        %v5064 = vunpack.c.h.b16 %v1321
        %v5065 = vunpack.c.l.b16 %v1322
        %v5066 = vunpack.c.h.b16 %v1322
        %v5067 = vunpack.c.l.b16 %v1323
        %v5068 = vunpack.c.h.b16 %v1323
        %v5069 = vunpack.c.l.b16 %v1324
        %v5070 = vunpack.c.h.b16 %v1324
        %v5071 = vunpack.c.l.b16 %v1325
        %v5072 = vunpack.c.h.b16 %v1325
        %v5073 = vunpack.c.l.b16 %v1326
        %v5074 = vunpack.c.h.b16 %v1326
        %v5075 = vunpack.c.l.b16 %v1327
        %v5076 = vunpack.c.h.b16 %v1327
        %v5077 = vunpack.c.l.b16 %v1328
        %v5078 = vunpack.c.h.b16 %v1328
        %v5079 = vunpack.c.l.b16 %v1329
        %v5080 = vunpack.c.h.b16 %v1329
        %v5081 = vunpack.c.l.b16 %v1330
        %v5082 = vunpack.c.h.b16 %v1330
        %v5083 = vunpack.c.l.b16 %v1331
        %v5084 = vunpack.c.h.b16 %v1331
        %v5085 = vunpack.c.l.b16 %v1332
        %v5086 = vunpack.c.h.b16 %v1332
        %v5087 = vunpack.c.l.b16 %v1333
        %v5088 = vunpack.c.h.b16 %v1333
        %v5089 = vunpack.c.l.b16 %v1334
        %v5090 = vunpack.c.h.b16 %v1334
        %v5091 = vunpack.c.l.b16 %v1335
        %v5092 = vunpack.c.h.b16 %v1335
        %v5093 = vunpack.c.l.b16 %v1336
        %v5094 = vunpack.c.h.b16 %v1336
        %v5095 = vunpack.c.l.b16 %v1337
        %v5096 = vunpack.c.h.b16 %v1337
        %v5097 = vunpack.c.l.b16 %v1338
        %v5098 = vunpack.c.h.b16 %v1338
        %v5099 = vunpack.c.l.b16 %v1339
        %v5100 = vunpack.c.h.b16 %v1339
        %v5101 = vunpack.c.l.b16 %v1340
        %v5102 = vunpack.c.h.b16 %v1340
        %v5103 = vunpack.c.l.b16 %v1341
        %v5104 = vunpack.c.h.b16 %v1341
        %v5105 = vunpack.c.l.b16 %v1342
        %v5106 = vunpack.c.h.b16 %v1342
        %v5107 = vunpack.c.l.b16 %v1343
        %v5108 = vunpack.c.h.b16 %v1343
        %v5109 = vunpack.c.l.b16 %v1344
        %v5110 = vunpack.c.h.b16 %v1344
        %v5111 = vunpack.c.l.b16 %v1345
        %v5112 = vunpack.c.h.b16 %v1345
        %v5113 = vunpack.c.l.b16 %v1346
        %v5114 = vunpack.c.h.b16 %v1346
        %v5115 = vunpack.c.l.b16 %v1347
        %v5116 = vunpack.c.h.b16 %v1347
        %v5117 = vunpack.c.l.b16 %v1348
        %v5118 = vunpack.c.h.b16 %v1348
        %v5119 = vunpack.c.l.b16 %v1349
        %v5120 = vunpack.c.h.b16 %v1349
        %v5121 = vunpack.c.l.b16 %v1350
        %v5122 = vunpack.c.h.b16 %v1350
        %v5123 = vunpack.c.l.b16 %v1351
        %v5124 = vunpack.c.h.b16 %v1351
        %v5125 = vunpack.c.l.b16 %v1352
        %v5126 = vunpack.c.h.b16 %v1352
        %v5127 = vunpack.c.l.b16 %v1353
        %v5128 = vunpack.c.h.b16 %v1353
        %v5129 = vunpack.c.l.b16 %v1354
        %v5130 = vunpack.c.h.b16 %v1354
        %v5131 = vunpack.c.l.b16 %v1355
        %v5132 = vunpack.c.h.b16 %v1355
        %v5133 = vunpack.c.l.b16 %v1356
        %v5134 = vunpack.c.h.b16 %v1356
        %v5135 = vunpack.c.l.b16 %v1357
        %v5136 = vunpack.c.h.b16 %v1357
        %v5137 = vunpack.c.l.b16 %v1358
        %v5138 = vunpack.c.h.b16 %v1358
        %v5139 = vunpack.c.l.b16 %v1359
        %v5140 = vunpack.c.h.b16 %v1359
        %v5141 = vunpack.c.l.b16 %v1360
        %v5142 = vunpack.c.h.b16 %v1360
        %v5143 = vunpack.c.l.b16 %v1361
        %v5144 = vunpack.c.h.b16 %v1361
        %v5145 = vunpack.c.l.b16 %v1362
        %v5146 = vunpack.c.h.b16 %v1362
        %v5147 = vunpack.c.l.b16 %v1363
        %v5148 = vunpack.c.h.b16 %v1363
        %v5149 = vunpack.c.l.b16 %v1364
        %v5150 = vunpack.c.h.b16 %v1364
        %v5151 = vunpack.c.l.b16 %v1365
        %v5152 = vunpack.c.h.b16 %v1365
        %v5153 = vunpack.c.l.b16 %v1366
        %v5154 = vunpack.c.h.b16 %v1366
        %v5155 = vunpack.c.l.b16 %v1367
        %v5156 = vunpack.c.h.b16 %v1367
        %v5157 = vunpack.c.l.b16 %v1368
        %v5158 = vunpack.c.h.b16 %v1368
        %v5159 = vunpack.c.l.b16 %v1369
        %v5160 = vunpack.c.h.b16 %v1369
        %v5161 = vunpack.c.l.b16 %v1370
        %v5162 = vunpack.c.h.b16 %v1370
        %v5163 = vunpack.c.l.b16 %v1371
        %v5164 = vunpack.c.h.b16 %v1371
        %v5165 = vunpack.c.l.b16 %v1372
        %v5166 = vunpack.c.h.b16 %v1372
        %v5167 = vunpack.c.l.b16 %v1373
        %v5168 = vunpack.c.h.b16 %v1373
        %v5169 = vunpack.c.l.b16 %v1374
        %v5170 = vunpack.c.h.b16 %v1374
        %v5171 = vunpack.c.l.b16 %v1375
        %v5172 = vunpack.c.h.b16 %v1375
        %v5173 = vunpack.c.l.b16 %v1376
        %v5174 = vunpack.c.h.b16 %v1376
        %v5175 = vunpack.c.l.b16 %v1377
        %v5176 = vunpack.c.h.b16 %v1377
        %v5177 = vunpack.c.l.b16 %v1378
        %v5178 = vunpack.c.h.b16 %v1378
        %v5179 = vunpack.c.l.b16 %v1379
        %v5180 = vunpack.c.h.b16 %v1379
        %v5181 = vunpack.c.l.b16 %v1380
        %v5182 = vunpack.c.h.b16 %v1380
        %v5183 = vunpack.c.l.b16 %v1381
        %v5184 = vunpack.c.h.b16 %v1381
        %v5185 = vunpack.c.l.b16 %v1382
        %v5186 = vunpack.c.h.b16 %v1382
        %v5187 = vunpack.c.l.b16 %v1383
        %v5188 = vunpack.c.h.b16 %v1383
        %v5189 = vunpack.c.l.b16 %v1384
        %v5190 = vunpack.c.h.b16 %v1384
        %v5191 = vunpack.c.l.b16 %v1385
        %v5192 = vunpack.c.h.b16 %v1385
        %v5193 = vunpack.c.l.b16 %v1386
        %v5194 = vunpack.c.h.b16 %v1386
        %v5195 = vunpack.c.l.b16 %v1387
        %v5196 = vunpack.c.h.b16 %v1387
        %v5197 = vunpack.c.l.b16 %v1388
        %v5198 = vunpack.c.h.b16 %v1388
        %v5199 = vunpack.c.l.b16 %v1389
        %v5200 = vunpack.c.h.b16 %v1389
        %v5201 = vunpack.c.l.b16 %v1390
        %v5202 = vunpack.c.h.b16 %v1390
        %v5203 = vunpack.c.l.b16 %v1391
        %v5204 = vunpack.c.h.b16 %v1391
        %v5205 = vunpack.c.l.b16 %v1392
        %v5206 = vunpack.c.h.b16 %v1392
        %v5207 = vunpack.c.l.b16 %v1393
        %v5208 = vunpack.c.h.b16 %v1393
        %v5209 = vunpack.c.l.b16 %v1394
        %v5210 = vunpack.c.h.b16 %v1394
        %v5211 = vunpack.c.l.b16 %v1395
        %v5212 = vunpack.c.h.b16 %v1395
        %v5213 = vunpack.c.l.b16 %v1396
        %v5214 = vunpack.c.h.b16 %v1396
        %v5215 = vunpack.c.l.b16 %v1397
        %v5216 = vunpack.c.h.b16 %v1397
        %v5217 = vunpack.c.l.b16 %v1398
        %v5218 = vunpack.c.h.b16 %v1398
        %v5219 = vunpack.c.l.b16 %v1399
        %v5220 = vunpack.c.h.b16 %v1399
        %v5221 = vunpack.c.l.b16 %v1400
        %v5222 = vunpack.c.h.b16 %v1400
        %v5223 = vunpack.c.l.b16 %v1401
        %v5224 = vunpack.c.h.b16 %v1401
        %v5225 = vunpack.c.l.b16 %v1402
        %v5226 = vunpack.c.h.b16 %v1402
        %v5227 = vunpack.c.l.b16 %v1403
        %v5228 = vunpack.c.h.b16 %v1403
        %v5229 = vunpack.c.l.b16 %v1404
        %v5230 = vunpack.c.h.b16 %v1404
        %v5231 = vunpack.c.l.b16 %v1405
        %v5232 = vunpack.c.h.b16 %v1405
        %v5233 = vunpack.c.l.b16 %v1406
        %v5234 = vunpack.c.h.b16 %v1406
        %v5235 = vunpack.c.l.b16 %v1407
        %v5236 = vunpack.c.h.b16 %v1407
        %v5237 = vunpack.c.l.b16 %v1408
        %v5238 = vunpack.c.h.b16 %v1408
        %v5239 = vunpack.c.l.b16 %v1409
        %v5240 = vunpack.c.h.b16 %v1409
        %v5241 = vunpack.c.l.b16 %v1410
        %v5242 = vunpack.c.h.b16 %v1410
        %v5243 = vunpack.c.l.b16 %v1411
        %v5244 = vunpack.c.h.b16 %v1411
        %v5245 = vunpack.c.l.b16 %v1412
        %v5246 = vunpack.c.h.b16 %v1412
        %v5247 = vunpack.c.l.b16 %v1413
        %v5248 = vunpack.c.h.b16 %v1413
        %v5249 = vunpack.c.l.b16 %v1414
        %v5250 = vunpack.c.h.b16 %v1414
        %v5251 = vunpack.c.l.b16 %v1415
        %v5252 = vunpack.c.h.b16 %v1415
        %v5253 = vunpack.c.l.b16 %v1416
        %v5254 = vunpack.c.h.b16 %v1416
        %v5255 = vunpack.c.l.b16 %v1417
        %v5256 = vunpack.c.h.b16 %v1417
        %v5257 = vunpack.c.l.b16 %v1418
        %v5258 = vunpack.c.h.b16 %v1418
        %v5259 = vunpack.c.l.b16 %v1419
        %v5260 = vunpack.c.h.b16 %v1419
        %v5261 = vunpack.c.l.b16 %v1420
        %v5262 = vunpack.c.h.b16 %v1420
        %v5263 = vunpack.c.l.b16 %v1421
        %v5264 = vunpack.c.h.b16 %v1421
        %v5265 = vunpack.c.l.b16 %v1422
        %v5266 = vunpack.c.h.b16 %v1422
        %v5267 = vunpack.c.l.b16 %v1423
        %v5268 = vunpack.c.h.b16 %v1423
        %v5269 = vunpack.c.l.b16 %v1424
        %v5270 = vunpack.c.h.b16 %v1424
        %v5271 = vunpack.c.l.b16 %v1425
        %v5272 = vunpack.c.h.b16 %v1425
        %v5273 = vunpack.c.l.b16 %v1426
        %v5274 = vunpack.c.h.b16 %v1426
        %v5275 = vunpack.c.l.b16 %v1427
        %v5276 = vunpack.c.h.b16 %v1427
        %v5277 = vunpack.c.l.b16 %v1428
        %v5278 = vunpack.c.h.b16 %v1428
        %v5279 = vunpack.c.l.b16 %v1429
        %v5280 = vunpack.c.h.b16 %v1429
        %v5281 = vunpack.c.l.b16 %v1430
        %v5282 = vunpack.c.h.b16 %v1430
        %v5283 = vunpack.c.l.b16 %v1431
        %v5284 = vunpack.c.h.b16 %v1431
        %v5285 = vunpack.c.l.b16 %v1432
        %v5286 = vunpack.c.h.b16 %v1432
        %v5287 = vunpack.c.l.b16 %v1433
        %v5288 = vunpack.c.h.b16 %v1433
        %v5289 = vunpack.c.l.b16 %v1434
        %v5290 = vunpack.c.h.b16 %v1434
        %v5291 = vunpack.c.l.b16 %v1435
        %v5292 = vunpack.c.h.b16 %v1435
        %v5293 = vunpack.c.l.b16 %v1436
        %v5294 = vunpack.c.h.b16 %v1436
        %v5295 = vunpack.c.l.b16 %v1437
        %v5296 = vunpack.c.h.b16 %v1437
        %v5297 = vunpack.c.l.b16 %v1438
        %v5298 = vunpack.c.h.b16 %v1438
        %v5299 = vunpack.c.l.b16 %v1439
        %v5300 = vunpack.c.h.b16 %v1439
        %v5301 = vunpack.c.l.b16 %v1440
        %v5302 = vunpack.c.h.b16 %v1440
        %v5303 = vunpack.c.l.b16 %v1441
        %v5304 = vunpack.c.h.b16 %v1441
        %v5305 = vunpack.c.l.b16 %v1442
        %v5306 = vunpack.c.h.b16 %v1442
        %v5307 = vunpack.c.l.b16 %v1443
        %v5308 = vunpack.c.h.b16 %v1443
        %v5309 = vunpack.c.l.b16 %v1444
        %v5310 = vunpack.c.h.b16 %v1444
        %v5311 = vunpack.c.l.b16 %v1445
        %v5312 = vunpack.c.h.b16 %v1445
        %v5313 = vunpack.c.l.b16 %v1446
        %v5314 = vunpack.c.h.b16 %v1446
        %v5315 = vunpack.c.l.b16 %v1447
        %v5316 = vunpack.c.h.b16 %v1447
        %v5317 = vunpack.c.l.b16 %v1448
        %v5318 = vunpack.c.h.b16 %v1448
        %v5319 = vunpack.c.l.b16 %v1449
        %v5320 = vunpack.c.h.b16 %v1449
        %v5321 = vunpack.c.l.b16 %v1450
        %v5322 = vunpack.c.h.b16 %v1450
        %v5323 = vunpack.c.l.b16 %v1451
        %v5324 = vunpack.c.h.b16 %v1451
        %v5325 = vunpack.c.l.b16 %v1452
        %v5326 = vunpack.c.h.b16 %v1452
        %v5327 = vunpack.c.l.b16 %v1453
        %v5328 = vunpack.c.h.b16 %v1453
        %v5329 = vunpack.c.l.b16 %v1454
        %v5330 = vunpack.c.h.b16 %v1454
        %v5331 = vunpack.c.l.b16 %v1455
        %v5332 = vunpack.c.h.b16 %v1455
        %v5333 = vunpack.c.l.b16 %v1456
        %v5334 = vunpack.c.h.b16 %v1456
        %v5335 = vpack.c.b16 %v3097, %v3095
        %v5336 = vpack.c.b16 %v3098, %v3096
        %v5337 = vpack.c.b16 %v3101, %v3099
        %v5338 = vpack.c.b16 %v3102, %v3100
        %v5339 = vpack.c.b16 %v3105, %v3103
        %v5340 = vpack.c.b16 %v3106, %v3104
        %v5341 = vpack.c.b16 %v3109, %v3107
        %v5342 = vpack.c.b16 %v3110, %v3108
        %v5343 = vpack.c.b16 %v3113, %v3111
        %v5344 = vpack.c.b16 %v3114, %v3112
        %v5345 = vpack.c.b16 %v3117, %v3115
        %v5346 = vpack.c.b16 %v3118, %v3116
        %v5347 = vpack.c.b16 %v3121, %v3119
        %v5348 = vpack.c.b16 %v3122, %v3120
        %v5349 = vpack.c.b16 %v3125, %v3123
        %v5350 = vpack.c.b16 %v3126, %v3124
        %v5351 = vpack.c.b16 %v3129, %v3127
        %v5352 = vpack.c.b16 %v3130, %v3128
        %v5353 = vpack.c.b16 %v3133, %v3131
        %v5354 = vpack.c.b16 %v3134, %v3132
        %v5355 = vpack.c.b16 %v3137, %v3135
        %v5356 = vpack.c.b16 %v3138, %v3136
        %v5357 = vpack.c.b16 %v3141, %v3139
        %v5358 = vpack.c.b16 %v3142, %v3140
        %v5359 = vpack.c.b16 %v3145, %v3143
        %v5360 = vpack.c.b16 %v3146, %v3144
        %v5361 = vpack.c.b16 %v3149, %v3147
        %v5362 = vpack.c.b16 %v3150, %v3148
        %v5363 = vpack.c.b16 %v3153, %v3151
        %v5364 = vpack.c.b16 %v3154, %v3152
        %v5365 = vpack.c.b16 %v3157, %v3155
        %v5366 = vpack.c.b16 %v3158, %v3156
        %v5367 = vpack.c.b16 %v3161, %v3159
        %v5368 = vpack.c.b16 %v3162, %v3160
        %v5369 = vpack.c.b16 %v3165, %v3163
        %v5370 = vpack.c.b16 %v3166, %v3164
        %v5371 = vpack.c.b16 %v3169, %v3167
        %v5372 = vpack.c.b16 %v3170, %v3168
        %v5373 = vpack.c.b16 %v3173, %v3171
        %v5374 = vpack.c.b16 %v3174, %v3172
        %v5375 = vpack.c.b16 %v3177, %v3175
        %v5376 = vpack.c.b16 %v3178, %v3176
        %v5377 = vpack.c.b16 %v3181, %v3179
        %v5378 = vpack.c.b16 %v3182, %v3180
        %v5379 = vpack.c.b16 %v3185, %v3183
        %v5380 = vpack.c.b16 %v3186, %v3184
        %v5381 = vpack.c.b16 %v3189, %v3187
        %v5382 = vpack.c.b16 %v3190, %v3188
        %v5383 = vpack.c.b16 %v3193, %v3191
        %v5384 = vpack.c.b16 %v3194, %v3192
        %v5385 = vpack.c.b16 %v3197, %v3195
        %v5386 = vpack.c.b16 %v3198, %v3196
        %v5387 = vpack.c.b16 %v3201, %v3199
        %v5388 = vpack.c.b16 %v3202, %v3200
        %v5389 = vpack.c.b16 %v3205, %v3203
        %v5390 = vpack.c.b16 %v3206, %v3204
        %v5391 = vpack.c.b16 %v3209, %v3207
        %v5392 = vpack.c.b16 %v3210, %v3208
        %v5393 = vpack.c.b16 %v3213, %v3211
        %v5394 = vpack.c.b16 %v3214, %v3212
        %v5395 = vpack.c.b16 %v3217, %v3215
        %v5396 = vpack.c.b16 %v3218, %v3216
        %v5397 = vpack.c.b16 %v3221, %v3219
        %v5398 = vpack.c.b16 %v3222, %v3220
        %v5399 = vpack.c.b16 %v3225, %v3223
        %v5400 = vpack.c.b16 %v3226, %v3224
        %v5401 = vpack.c.b16 %v3229, %v3227
        %v5402 = vpack.c.b16 %v3230, %v3228
        %v5403 = vpack.c.b16 %v3233, %v3231
        %v5404 = vpack.c.b16 %v3234, %v3232
        %v5405 = vpack.c.b16 %v3237, %v3235
        %v5406 = vpack.c.b16 %v3238, %v3236
        %v5407 = vpack.c.b16 %v3241, %v3239
        %v5408 = vpack.c.b16 %v3242, %v3240
        %v5409 = vpack.c.b16 %v3245, %v3243
        %v5410 = vpack.c.b16 %v3246, %v3244
        %v5411 = vpack.c.b16 %v3249, %v3247
        %v5412 = vpack.c.b16 %v3250, %v3248
        %v5413 = vpack.c.b16 %v3253, %v3251
        %v5414 = vpack.c.b16 %v3254, %v3252
        %v5415 = vpack.c.b16 %v3257, %v3255
        %v5416 = vpack.c.b16 %v3258, %v3256
        %v5417 = vpack.c.b16 %v3261, %v3259
        %v5418 = vpack.c.b16 %v3262, %v3260
        %v5419 = vpack.c.b16 %v3265, %v3263
        %v5420 = vpack.c.b16 %v3266, %v3264
        %v5421 = vpack.c.b16 %v3269, %v3267
        %v5422 = vpack.c.b16 %v3270, %v3268
        %v5423 = vpack.c.b16 %v3273, %v3271
        %v5424 = vpack.c.b16 %v3274, %v3272
        %v5425 = vpack.c.b16 %v3277, %v3275
        %v5426 = vpack.c.b16 %v3278, %v3276
        %v5427 = vpack.c.b16 %v3281, %v3279
        %v5428 = vpack.c.b16 %v3282, %v3280
        %v5429 = vpack.c.b16 %v3285, %v3283
        %v5430 = vpack.c.b16 %v3286, %v3284
        %v5431 = vpack.c.b16 %v3289, %v3287
        %v5432 = vpack.c.b16 %v3290, %v3288
        %v5433 = vpack.c.b16 %v3293, %v3291
        %v5434 = vpack.c.b16 %v3294, %v3292
        %v5435 = vpack.c.b16 %v3297, %v3295
        %v5436 = vpack.c.b16 %v3298, %v3296
        %v5437 = vpack.c.b16 %v3301, %v3299
        %v5438 = vpack.c.b16 %v3302, %v3300
        %v5439 = vpack.c.b16 %v3305, %v3303
        %v5440 = vpack.c.b16 %v3306, %v3304
        %v5441 = vpack.c.b16 %v3309, %v3307
        %v5442 = vpack.c.b16 %v3310, %v3308
        %v5443 = vpack.c.b16 %v3313, %v3311
        %v5444 = vpack.c.b16 %v3314, %v3312
        %v5445 = vpack.c.b16 %v3317, %v3315
        %v5446 = vpack.c.b16 %v3318, %v3316
        %v5447 = vpack.c.b16 %v3321, %v3319
        %v5448 = vpack.c.b16 %v3322, %v3320
        %v5449 = vpack.c.b16 %v3325, %v3323
        %v5450 = vpack.c.b16 %v3326, %v3324
        %v5451 = vpack.c.b16 %v3329, %v3327
        %v5452 = vpack.c.b16 %v3330, %v3328
        %v5453 = vpack.c.b16 %v3333, %v3331
        %v5454 = vpack.c.b16 %v3334, %v3332
        %v5455 = vpack.c.b16 %v3337, %v3335
        %v5456 = vpack.c.b16 %v3338, %v3336
        %v5457 = vpack.c.b16 %v3341, %v3339
        %v5458 = vpack.c.b16 %v3342, %v3340
        %v5459 = vpack.c.b16 %v3345, %v3343
        %v5460 = vpack.c.b16 %v3346, %v3344
        %v5461 = vpack.c.b16 %v3349, %v3347
        %v5462 = vpack.c.b16 %v3350, %v3348
        %v5463 = vpack.c.b16 %v3353, %v3351
        %v5464 = vpack.c.b16 %v3354, %v3352
        %v5465 = vpack.c.b16 %v3357, %v3355
        %v5466 = vpack.c.b16 %v3358, %v3356
        %v5467 = vpack.c.b16 %v3361, %v3359
        %v5468 = vpack.c.b16 %v3362, %v3360
        %v5469 = vpack.c.b16 %v3365, %v3363
        %v5470 = vpack.c.b16 %v3366, %v3364
        %v5471 = vpack.c.b16 %v3369, %v3367
        %v5472 = vpack.c.b16 %v3370, %v3368
        %v5473 = vpack.c.b16 %v3373, %v3371
        %v5474 = vpack.c.b16 %v3374, %v3372
        %v5475 = vpack.c.b16 %v3377, %v3375
        %v5476 = vpack.c.b16 %v3378, %v3376
        %v5477 = vpack.c.b16 %v3381, %v3379
        %v5478 = vpack.c.b16 %v3382, %v3380
        %v5479 = vpack.c.b16 %v3385, %v3383
        %v5480 = vpack.c.b16 %v3386, %v3384
        %v5481 = vpack.c.b16 %v3389, %v3387
        %v5482 = vpack.c.b16 %v3390, %v3388
        %v5483 = vpack.c.b16 %v3393, %v3391
        %v5484 = vpack.c.b16 %v3394, %v3392
        %v5485 = vpack.c.b16 %v3397, %v3395
        %v5486 = vpack.c.b16 %v3398, %v3396
        %v5487 = vpack.c.b16 %v3401, %v3399
        %v5488 = vpack.c.b16 %v3402, %v3400
        %v5489 = vpack.c.b16 %v3405, %v3403
        %v5490 = vpack.c.b16 %v3406, %v3404
        %v5491 = vpack.c.b16 %v3409, %v3407
        %v5492 = vpack.c.b16 %v3410, %v3408
        %v5493 = vpack.c.b16 %v3413, %v3411
        %v5494 = vpack.c.b16 %v3414, %v3412
        %v5495 = vpack.c.b16 %v3417, %v3415
        %v5496 = vpack.c.b16 %v3418, %v3416
        %v5497 = vpack.c.b16 %v3421, %v3419
        %v5498 = vpack.c.b16 %v3422, %v3420
        %v5499 = vpack.c.b16 %v3425, %v3423
        %v5500 = vpack.c.b16 %v3426, %v3424
        %v5501 = vpack.c.b16 %v3429, %v3427
        %v5502 = vpack.c.b16 %v3430, %v3428
        %v5503 = vpack.c.b16 %v3433, %v3431
        %v5504 = vpack.c.b16 %v3434, %v3432
        %v5505 = vpack.c.b16 %v3437, %v3435
        %v5506 = vpack.c.b16 %v3438, %v3436
        %v5507 = vpack.c.b16 %v3441, %v3439
        %v5508 = vpack.c.b16 %v3442, %v3440
        %v5509 = vpack.c.b16 %v3445, %v3443
        %v5510 = vpack.c.b16 %v3446, %v3444
        %v5511 = vpack.c.b16 %v3449, %v3447
        %v5512 = vpack.c.b16 %v3450, %v3448
        %v5513 = vpack.c.b16 %v3453, %v3451
        %v5514 = vpack.c.b16 %v3454, %v3452
        %v5515 = vpack.c.b16 %v3457, %v3455
        %v5516 = vpack.c.b16 %v3458, %v3456
        %v5517 = vpack.c.b16 %v3461, %v3459
        %v5518 = vpack.c.b16 %v3462, %v3460
        %v5519 = vpack.c.b16 %v3465, %v3463
        %v5520 = vpack.c.b16 %v3466, %v3464
        %v5521 = vpack.c.b16 %v3469, %v3467
        %v5522 = vpack.c.b16 %v3470, %v3468
        %v5523 = vpack.c.b16 %v3473, %v3471
        %v5524 = vpack.c.b16 %v3474, %v3472
        %v5525 = vpack.c.b16 %v3477, %v3475
        %v5526 = vpack.c.b16 %v3478, %v3476
        %v5527 = vpack.c.b16 %v3481, %v3479
        %v5528 = vpack.c.b16 %v3482, %v3480
        %v5529 = vpack.c.b16 %v3485, %v3483
        %v5530 = vpack.c.b16 %v3486, %v3484
        %v5531 = vpack.c.b16 %v3489, %v3487
        %v5532 = vpack.c.b16 %v3490, %v3488
        %v5533 = vpack.c.b16 %v3493, %v3491
        %v5534 = vpack.c.b16 %v3494, %v3492
        %v5535 = vpack.c.b16 %v3497, %v3495
        %v5536 = vpack.c.b16 %v3498, %v3496
        %v5537 = vpack.c.b16 %v3501, %v3499
        %v5538 = vpack.c.b16 %v3502, %v3500
        %v5539 = vpack.c.b16 %v3505, %v3503
        %v5540 = vpack.c.b16 %v3506, %v3504
        %v5541 = vpack.c.b16 %v3509, %v3507
        %v5542 = vpack.c.b16 %v3510, %v3508
        %v5543 = vpack.c.b16 %v3513, %v3511
        %v5544 = vpack.c.b16 %v3514, %v3512
        %v5545 = vpack.c.b16 %v3517, %v3515
        %v5546 = vpack.c.b16 %v3518, %v3516
        %v5547 = vpack.c.b16 %v3521, %v3519
        %v5548 = vpack.c.b16 %v3522, %v3520
        %v5549 = vpack.c.b16 %v3525, %v3523
        %v5550 = vpack.c.b16 %v3526, %v3524
        %v5551 = vpack.c.b16 %v3529, %v3527
        %v5552 = vpack.c.b16 %v3530, %v3528
        %v5553 = vpack.c.b16 %v3533, %v3531
        %v5554 = vpack.c.b16 %v3534, %v3532
        %v5555 = vpack.c.b16 %v3537, %v3535
        %v5556 = vpack.c.b16 %v3538, %v3536
        %v5557 = vpack.c.b16 %v3541, %v3539
        %v5558 = vpack.c.b16 %v3542, %v3540
        %v5559 = vpack.c.b16 %v3545, %v3543
        %v5560 = vpack.c.b16 %v3546, %v3544
        %v5561 = vpack.c.b16 %v3549, %v3547
        %v5562 = vpack.c.b16 %v3550, %v3548
        %v5563 = vpack.c.b16 %v3553, %v3551
        %v5564 = vpack.c.b16 %v3554, %v3552
        %v5565 = vpack.c.b16 %v3557, %v3555
        %v5566 = vpack.c.b16 %v3558, %v3556
        %v5567 = vpack.c.b16 %v3561, %v3559
        %v5568 = vpack.c.b16 %v3562, %v3560
        %v5569 = vpack.c.b16 %v3565, %v3563
        %v5570 = vpack.c.b16 %v3566, %v3564
        %v5571 = vpack.c.b16 %v3569, %v3567
        %v5572 = vpack.c.b16 %v3570, %v3568
        %v5573 = vpack.c.b16 %v3573, %v3571
        %v5574 = vpack.c.b16 %v3574, %v3572
        %v5575 = vpack.c.b16 %v3577, %v3575
        %v5576 = vpack.c.b16 %v3578, %v3576
        %v5577 = vpack.c.b16 %v3581, %v3579
        %v5578 = vpack.c.b16 %v3582, %v3580
        %v5579 = vpack.c.b16 %v3585, %v3583
        %v5580 = vpack.c.b16 %v3586, %v3584
        %v5581 = vpack.c.b16 %v3589, %v3587
        %v5582 = vpack.c.b16 %v3590, %v3588
        %v5583 = vpack.c.b16 %v3593, %v3591
        %v5584 = vpack.c.b16 %v3594, %v3592
        %v5585 = vpack.c.b16 %v3597, %v3595
        %v5586 = vpack.c.b16 %v3598, %v3596
        %v5587 = vpack.c.b16 %v3601, %v3599
        %v5588 = vpack.c.b16 %v3602, %v3600
        %v5589 = vpack.c.b16 %v3605, %v3603
        %v5590 = vpack.c.b16 %v3606, %v3604
        %v5591 = vpack.c.b16 %v3609, %v3607
        %v5592 = vpack.c.b16 %v3610, %v3608
        %v5593 = vpack.c.b16 %v3613, %v3611
        %v5594 = vpack.c.b16 %v3614, %v3612
        %v5595 = vpack.c.b16 %v3617, %v3615
        %v5596 = vpack.c.b16 %v3618, %v3616
        %v5597 = vpack.c.b16 %v3621, %v3619
        %v5598 = vpack.c.b16 %v3622, %v3620
        %v5599 = vpack.c.b16 %v3625, %v3623
        %v5600 = vpack.c.b16 %v3626, %v3624
        %v5601 = vpack.c.b16 %v3629, %v3627
        %v5602 = vpack.c.b16 %v3630, %v3628
        %v5603 = vpack.c.b16 %v3633, %v3631
        %v5604 = vpack.c.b16 %v3634, %v3632
        %v5605 = vpack.c.b16 %v3637, %v3635
        %v5606 = vpack.c.b16 %v3638, %v3636
        %v5607 = vpack.c.b16 %v3641, %v3639
        %v5608 = vpack.c.b16 %v3642, %v3640
        %v5609 = vpack.c.b16 %v3645, %v3643
        %v5610 = vpack.c.b16 %v3646, %v3644
        %v5611 = vpack.c.b16 %v3649, %v3647
        %v5612 = vpack.c.b16 %v3650, %v3648
        %v5613 = vpack.c.b16 %v3653, %v3651
        %v5614 = vpack.c.b16 %v3654, %v3652
        %v5615 = vpack.c.b16 %v3657, %v3655
        %v5616 = vpack.c.b16 %v3658, %v3656
        %v5617 = vpack.c.b16 %v3661, %v3659
        %v5618 = vpack.c.b16 %v3662, %v3660
        %v5619 = vpack.c.b16 %v3665, %v3663
        %v5620 = vpack.c.b16 %v3666, %v3664
        %v5621 = vpack.c.b16 %v3669, %v3667
        %v5622 = vpack.c.b16 %v3670, %v3668
        %v5623 = vpack.c.b16 %v3673, %v3671
        %v5624 = vpack.c.b16 %v3674, %v3672
        %v5625 = vpack.c.b16 %v3677, %v3675
        %v5626 = vpack.c.b16 %v3678, %v3676
        %v5627 = vpack.c.b16 %v3681, %v3679
        %v5628 = vpack.c.b16 %v3682, %v3680
        %v5629 = vpack.c.b16 %v3685, %v3683
        %v5630 = vpack.c.b16 %v3686, %v3684
        %v5631 = vpack.c.b16 %v3689, %v3687
        %v5632 = vpack.c.b16 %v3690, %v3688
        %v5633 = vpack.c.b16 %v3693, %v3691
        %v5634 = vpack.c.b16 %v3694, %v3692
        %v5635 = vpack.c.b16 %v3697, %v3695
        %v5636 = vpack.c.b16 %v3698, %v3696
        %v5637 = vpack.c.b16 %v3701, %v3699
        %v5638 = vpack.c.b16 %v3702, %v3700
        %v5639 = vpack.c.b16 %v3705, %v3703
        %v5640 = vpack.c.b16 %v3706, %v3704
        %v5641 = vpack.c.b16 %v3709, %v3707
        %v5642 = vpack.c.b16 %v3710, %v3708
        %v5643 = vpack.c.b16 %v3713, %v3711
        %v5644 = vpack.c.b16 %v3714, %v3712
        %v5645 = vpack.c.b16 %v3717, %v3715
        %v5646 = vpack.c.b16 %v3718, %v3716
        %v5647 = vpack.c.b16 %v3721, %v3719
        %v5648 = vpack.c.b16 %v3722, %v3720
        %v5649 = vpack.c.b16 %v3725, %v3723
        %v5650 = vpack.c.b16 %v3726, %v3724
        %v5651 = vpack.c.b16 %v3729, %v3727
        %v5652 = vpack.c.b16 %v3730, %v3728
        %v5653 = vpack.c.b16 %v3733, %v3731
        %v5654 = vpack.c.b16 %v3734, %v3732
        %v5655 = vpack.c.b16 %v3737, %v3735
        %v5656 = vpack.c.b16 %v3738, %v3736
        %v5657 = vpack.c.b16 %v3741, %v3739
        %v5658 = vpack.c.b16 %v3742, %v3740
        %v5659 = vpack.c.b16 %v3745, %v3743
        %v5660 = vpack.c.b16 %v3746, %v3744
        %v5661 = vpack.c.b16 %v3749, %v3747
        %v5662 = vpack.c.b16 %v3750, %v3748
        %v5663 = vpack.c.b16 %v3753, %v3751
        %v5664 = vpack.c.b16 %v3754, %v3752
        %v5665 = vpack.c.b16 %v3757, %v3755
        %v5666 = vpack.c.b16 %v3758, %v3756
        %v5667 = vpack.c.b16 %v3761, %v3759
        %v5668 = vpack.c.b16 %v3762, %v3760
        %v5669 = vpack.c.b16 %v3765, %v3763
        %v5670 = vpack.c.b16 %v3766, %v3764
        %v5671 = vpack.c.b16 %v3769, %v3767
        %v5672 = vpack.c.b16 %v3770, %v3768
        %v5673 = vpack.c.b16 %v3773, %v3771
        %v5674 = vpack.c.b16 %v3774, %v3772
        %v5675 = vpack.c.b16 %v3777, %v3775
        %v5676 = vpack.c.b16 %v3778, %v3776
        %v5677 = vpack.c.b16 %v3781, %v3779
        %v5678 = vpack.c.b16 %v3782, %v3780
        %v5679 = vpack.c.b16 %v3785, %v3783
        %v5680 = vpack.c.b16 %v3786, %v3784
        %v5681 = vpack.c.b16 %v3789, %v3787
        %v5682 = vpack.c.b16 %v3790, %v3788
        %v5683 = vpack.c.b16 %v3793, %v3791
        %v5684 = vpack.c.b16 %v3794, %v3792
        %v5685 = vpack.c.b16 %v3797, %v3795
        %v5686 = vpack.c.b16 %v3798, %v3796
        %v5687 = vpack.c.b16 %v3801, %v3799
        %v5688 = vpack.c.b16 %v3802, %v3800
        %v5689 = vpack.c.b16 %v3805, %v3803
        %v5690 = vpack.c.b16 %v3806, %v3804
        %v5691 = vpack.c.b16 %v3809, %v3807
        %v5692 = vpack.c.b16 %v3810, %v3808
        %v5693 = vpack.c.b16 %v3813, %v3811
        %v5694 = vpack.c.b16 %v3814, %v3812
        %v5695 = vpack.c.b16 %v3817, %v3815
        %v5696 = vpack.c.b16 %v3818, %v3816
        %v5697 = vpack.c.b16 %v3821, %v3819
        %v5698 = vpack.c.b16 %v3822, %v3820
        %v5699 = vpack.c.b16 %v3825, %v3823
        %v5700 = vpack.c.b16 %v3826, %v3824
        %v5701 = vpack.c.b16 %v3829, %v3827
        %v5702 = vpack.c.b16 %v3830, %v3828
        %v5703 = vpack.c.b16 %v3833, %v3831
        %v5704 = vpack.c.b16 %v3834, %v3832
        %v5705 = vpack.c.b16 %v3837, %v3835
        %v5706 = vpack.c.b16 %v3838, %v3836
        %v5707 = vpack.c.b16 %v3841, %v3839
        %v5708 = vpack.c.b16 %v3842, %v3840
        %v5709 = vpack.c.b16 %v3845, %v3843
        %v5710 = vpack.c.b16 %v3846, %v3844
        %v5711 = vpack.c.b16 %v3849, %v3847
        %v5712 = vpack.c.b16 %v3850, %v3848
        %v5713 = vpack.c.b16 %v3853, %v3851
        %v5714 = vpack.c.b16 %v3854, %v3852
        %v5715 = vpack.c.b16 %v3857, %v3855
        %v5716 = vpack.c.b16 %v3858, %v3856
        %v5717 = vpack.c.b16 %v3861, %v3859
        %v5718 = vpack.c.b16 %v3862, %v3860
        %v5719 = vpack.c.b16 %v3865, %v3863
        %v5720 = vpack.c.b16 %v3866, %v3864
        %v5721 = vpack.c.b16 %v3869, %v3867
        %v5722 = vpack.c.b16 %v3870, %v3868
        %v5723 = vpack.c.b16 %v3873, %v3871
        %v5724 = vpack.c.b16 %v3874, %v3872
        %v5725 = vpack.c.b16 %v3877, %v3875
        %v5726 = vpack.c.b16 %v3878, %v3876
        %v5727 = vpack.c.b16 %v3881, %v3879
        %v5728 = vpack.c.b16 %v3882, %v3880
        %v5729 = vpack.c.b16 %v3885, %v3883
        %v5730 = vpack.c.b16 %v3886, %v3884
        %v5731 = vpack.c.b16 %v3889, %v3887
        %v5732 = vpack.c.b16 %v3890, %v3888
        %v5733 = vpack.c.b16 %v3893, %v3891
        %v5734 = vpack.c.b16 %v3894, %v3892
        %v5735 = vpack.c.b16 %v3897, %v3895
        %v5736 = vpack.c.b16 %v3898, %v3896
        %v5737 = vpack.c.b16 %v3901, %v3899
        %v5738 = vpack.c.b16 %v3902, %v3900
        %v5739 = vpack.c.b16 %v3905, %v3903
        %v5740 = vpack.c.b16 %v3906, %v3904
        %v5741 = vpack.c.b16 %v3909, %v3907
        %v5742 = vpack.c.b16 %v3910, %v3908
        %v5743 = vpack.c.b16 %v3913, %v3911
        %v5744 = vpack.c.b16 %v3914, %v3912
        %v5745 = vpack.c.b16 %v3917, %v3915
        %v5746 = vpack.c.b16 %v3918, %v3916
        %v5747 = vpack.c.b16 %v3921, %v3919
        %v5748 = vpack.c.b16 %v3922, %v3920
        %v5749 = vpack.c.b16 %v3925, %v3923
        %v5750 = vpack.c.b16 %v3926, %v3924
        %v5751 = vpack.c.b16 %v3929, %v3927
        %v5752 = vpack.c.b16 %v3930, %v3928
        %v5753 = vpack.c.b16 %v3933, %v3931
        %v5754 = vpack.c.b16 %v3934, %v3932
        %v5755 = vpack.c.b16 %v3937, %v3935
        %v5756 = vpack.c.b16 %v3938, %v3936
        %v5757 = vpack.c.b16 %v3941, %v3939
        %v5758 = vpack.c.b16 %v3942, %v3940
        %v5759 = vpack.c.b16 %v3945, %v3943
        %v5760 = vpack.c.b16 %v3946, %v3944
        %v5761 = vpack.c.b16 %v3949, %v3947
        %v5762 = vpack.c.b16 %v3950, %v3948
        %v5763 = vpack.c.b16 %v3953, %v3951
        %v5764 = vpack.c.b16 %v3954, %v3952
        %v5765 = vpack.c.b16 %v3957, %v3955
        %v5766 = vpack.c.b16 %v3958, %v3956
        %v5767 = vpack.c.b16 %v3961, %v3959
        %v5768 = vpack.c.b16 %v3962, %v3960
        %v5769 = vpack.c.b16 %v3965, %v3963
        %v5770 = vpack.c.b16 %v3966, %v3964
        %v5771 = vpack.c.b16 %v3969, %v3967
        %v5772 = vpack.c.b16 %v3970, %v3968
        %v5773 = vpack.c.b16 %v3973, %v3971
        %v5774 = vpack.c.b16 %v3974, %v3972
        %v5775 = vpack.c.b16 %v3977, %v3975
        %v5776 = vpack.c.b16 %v3978, %v3976
        %v5777 = vpack.c.b16 %v3981, %v3979
        %v5778 = vpack.c.b16 %v3982, %v3980
        %v5779 = vpack.c.b16 %v3985, %v3983
        %v5780 = vpack.c.b16 %v3986, %v3984
        %v5781 = vpack.c.b16 %v3989, %v3987
        %v5782 = vpack.c.b16 %v3990, %v3988
        %v5783 = vpack.c.b16 %v3993, %v3991
        %v5784 = vpack.c.b16 %v3994, %v3992
        %v5785 = vpack.c.b16 %v3997, %v3995
        %v5786 = vpack.c.b16 %v3998, %v3996
        %v5787 = vpack.c.b16 %v4001, %v3999
        %v5788 = vpack.c.b16 %v4002, %v4000
        %v5789 = vpack.c.b16 %v4005, %v4003
        %v5790 = vpack.c.b16 %v4006, %v4004
        %v5791 = vpack.c.b16 %v4009, %v4007
        %v5792 = vpack.c.b16 %v4010, %v4008
        %v5793 = vpack.c.b16 %v4013, %v4011
        %v5794 = vpack.c.b16 %v4014, %v4012
        %v5795 = vpack.c.b16 %v4017, %v4015
        %v5796 = vpack.c.b16 %v4018, %v4016
        %v5797 = vpack.c.b16 %v4021, %v4019
        %v5798 = vpack.c.b16 %v4022, %v4020
        %v5799 = vpack.c.b16 %v4025, %v4023
        %v5800 = vpack.c.b16 %v4026, %v4024
        %v5801 = vpack.c.b16 %v4029, %v4027
        %v5802 = vpack.c.b16 %v4030, %v4028
        %v5803 = vpack.c.b16 %v4033, %v4031
        %v5804 = vpack.c.b16 %v4034, %v4032
        %v5805 = vpack.c.b16 %v4037, %v4035
        %v5806 = vpack.c.b16 %v4038, %v4036
        %v5807 = vpack.c.b16 %v4041, %v4039
        %v5808 = vpack.c.b16 %v4042, %v4040
        %v5809 = vpack.c.b16 %v4045, %v4043
        %v5810 = vpack.c.b16 %v4046, %v4044
        %v5811 = vpack.c.b16 %v4049, %v4047
        %v5812 = vpack.c.b16 %v4050, %v4048
        %v5813 = vpack.c.b16 %v4053, %v4051
        %v5814 = vpack.c.b16 %v4054, %v4052
        %v5815 = vpack.c.b16 %v4057, %v4055
        %v5816 = vpack.c.b16 %v4058, %v4056
        %v5817 = vpack.c.b16 %v4061, %v4059
        %v5818 = vpack.c.b16 %v4062, %v4060
        %v5819 = vpack.c.b16 %v4065, %v4063
        %v5820 = vpack.c.b16 %v4066, %v4064
        %v5821 = vpack.c.b16 %v4069, %v4067
        %v5822 = vpack.c.b16 %v4070, %v4068
        %v5823 = vpack.c.b16 %v4073, %v4071
        %v5824 = vpack.c.b16 %v4074, %v4072
        %v5825 = vpack.c.b16 %v4077, %v4075
        %v5826 = vpack.c.b16 %v4078, %v4076
        %v5827 = vpack.c.b16 %v4081, %v4079
        %v5828 = vpack.c.b16 %v4082, %v4080
        %v5829 = vpack.c.b16 %v4085, %v4083
        %v5830 = vpack.c.b16 %v4086, %v4084
        %v5831 = vpack.c.b16 %v4089, %v4087
        %v5832 = vpack.c.b16 %v4090, %v4088
        %v5833 = vpack.c.b16 %v4093, %v4091
        %v5834 = vpack.c.b16 %v4094, %v4092
        %v5835 = vpack.c.b16 %v4097, %v4095
        %v5836 = vpack.c.b16 %v4098, %v4096
        %v5837 = vpack.c.b16 %v4101, %v4099
        %v5838 = vpack.c.b16 %v4102, %v4100
        %v5839 = vpack.c.b16 %v4105, %v4103
        %v5840 = vpack.c.b16 %v4106, %v4104
        %v5841 = vpack.c.b16 %v4109, %v4107
        %v5842 = vpack.c.b16 %v4110, %v4108
        %v5843 = vpack.c.b16 %v4113, %v4111
        %v5844 = vpack.c.b16 %v4114, %v4112
        %v5845 = vpack.c.b16 %v4117, %v4115
        %v5846 = vpack.c.b16 %v4118, %v4116
        %v5847 = vpack.c.b16 %v4121, %v4119
        %v5848 = vpack.c.b16 %v4122, %v4120
        %v5849 = vpack.c.b16 %v4125, %v4123
        %v5850 = vpack.c.b16 %v4126, %v4124
        %v5851 = vpack.c.b16 %v4129, %v4127
        %v5852 = vpack.c.b16 %v4130, %v4128
        %v5853 = vpack.c.b16 %v4133, %v4131
        %v5854 = vpack.c.b16 %v4134, %v4132
        %v5855 = vpack.c.b16 %v4137, %v4135
        %v5856 = vpack.c.b16 %v4138, %v4136
        %v5857 = vpack.c.b16 %v4141, %v4139
        %v5858 = vpack.c.b16 %v4142, %v4140
        %v5859 = vpack.c.b16 %v4145, %v4143
        %v5860 = vpack.c.b16 %v4146, %v4144
        %v5861 = vpack.c.b16 %v4149, %v4147
        %v5862 = vpack.c.b16 %v4150, %v4148
        %v5863 = vpack.c.b16 %v4153, %v4151
        %v5864 = vpack.c.b16 %v4154, %v4152
        %v5865 = vpack.c.b16 %v4157, %v4155
        %v5866 = vpack.c.b16 %v4158, %v4156
        %v5867 = vpack.c.b16 %v4161, %v4159
        %v5868 = vpack.c.b16 %v4162, %v4160
        %v5869 = vpack.c.b16 %v4165, %v4163
        %v5870 = vpack.c.b16 %v4166, %v4164
        %v5871 = vpack.c.b16 %v4169, %v4167
        %v5872 = vpack.c.b16 %v4170, %v4168
        %v5873 = vpack.c.b16 %v4173, %v4171
        %v5874 = vpack.c.b16 %v4174, %v4172
        %v5875 = vpack.c.b16 %v4177, %v4175
        %v5876 = vpack.c.b16 %v4178, %v4176
        %v5877 = vpack.c.b16 %v4181, %v4179
        %v5878 = vpack.c.b16 %v4182, %v4180
        %v5879 = vpack.c.b16 %v4185, %v4183
        %v5880 = vpack.c.b16 %v4186, %v4184
        %v5881 = vpack.c.b16 %v4189, %v4187
        %v5882 = vpack.c.b16 %v4190, %v4188
        %v5883 = vpack.c.b16 %v4193, %v4191
        %v5884 = vpack.c.b16 %v4194, %v4192
        %v5885 = vpack.c.b16 %v4197, %v4195
        %v5886 = vpack.c.b16 %v4198, %v4196
        %v5887 = vpack.c.b16 %v4201, %v4199
        %v5888 = vpack.c.b16 %v4202, %v4200
        %v5889 = vpack.c.b16 %v4205, %v4203
        %v5890 = vpack.c.b16 %v4206, %v4204
        %v5891 = vpack.c.b16 %v4209, %v4207
        %v5892 = vpack.c.b16 %v4210, %v4208
        %v5893 = vpack.c.b16 %v4213, %v4211
        %v5894 = vpack.c.b16 %v4214, %v4212
        %v5895 = vpack.c.b16 %v4217, %v4215
        %v5896 = vpack.c.b16 %v4218, %v4216
        %v5897 = vpack.c.b16 %v4221, %v4219
        %v5898 = vpack.c.b16 %v4222, %v4220
        %v5899 = vpack.c.b16 %v4225, %v4223
        %v5900 = vpack.c.b16 %v4226, %v4224
        %v5901 = vpack.c.b16 %v4229, %v4227
        %v5902 = vpack.c.b16 %v4230, %v4228
        %v5903 = vpack.c.b16 %v4233, %v4231
        %v5904 = vpack.c.b16 %v4234, %v4232
        %v5905 = vpack.c.b16 %v4237, %v4235
        %v5906 = vpack.c.b16 %v4238, %v4236
        %v5907 = vpack.c.b16 %v4241, %v4239
        %v5908 = vpack.c.b16 %v4242, %v4240
        %v5909 = vpack.c.b16 %v4245, %v4243
        %v5910 = vpack.c.b16 %v4246, %v4244
        %v5911 = vpack.c.b16 %v4249, %v4247
        %v5912 = vpack.c.b16 %v4250, %v4248
        %v5913 = vpack.c.b16 %v4253, %v4251
        %v5914 = vpack.c.b16 %v4254, %v4252
        %v5915 = vpack.c.b16 %v4257, %v4255
        %v5916 = vpack.c.b16 %v4258, %v4256
        %v5917 = vpack.c.b16 %v4261, %v4259
        %v5918 = vpack.c.b16 %v4262, %v4260
        %v5919 = vpack.c.b16 %v4265, %v4263
        %v5920 = vpack.c.b16 %v4266, %v4264
        %v5921 = vpack.c.b16 %v4269, %v4267
        %v5922 = vpack.c.b16 %v4270, %v4268
        %v5923 = vpack.c.b16 %v4273, %v4271
        %v5924 = vpack.c.b16 %v4274, %v4272
        %v5925 = vpack.c.b16 %v4277, %v4275
        %v5926 = vpack.c.b16 %v4278, %v4276
        %v5927 = vpack.c.b16 %v4281, %v4279
        %v5928 = vpack.c.b16 %v4282, %v4280
        %v5929 = vpack.c.b16 %v4285, %v4283
        %v5930 = vpack.c.b16 %v4286, %v4284
        %v5931 = vpack.c.b16 %v4289, %v4287
        %v5932 = vpack.c.b16 %v4290, %v4288
        %v5933 = vpack.c.b16 %v4293, %v4291
        %v5934 = vpack.c.b16 %v4294, %v4292
        %v5935 = vpack.c.b16 %v4297, %v4295
        %v5936 = vpack.c.b16 %v4298, %v4296
        %v5937 = vpack.c.b16 %v4301, %v4299
        %v5938 = vpack.c.b16 %v4302, %v4300
        %v5939 = vpack.c.b16 %v4305, %v4303
        %v5940 = vpack.c.b16 %v4306, %v4304
        %v5941 = vpack.c.b16 %v4309, %v4307
        %v5942 = vpack.c.b16 %v4310, %v4308
        %v5943 = vpack.c.b16 %v4313, %v4311
        %v5944 = vpack.c.b16 %v4314, %v4312
        %v5945 = vpack.c.b16 %v4317, %v4315
        %v5946 = vpack.c.b16 %v4318, %v4316
        %v5947 = vpack.c.b16 %v4321, %v4319
        %v5948 = vpack.c.b16 %v4322, %v4320
        %v5949 = vpack.c.b16 %v4325, %v4323
        %v5950 = vpack.c.b16 %v4326, %v4324
        %v5951 = vpack.c.b16 %v4329, %v4327
        %v5952 = vpack.c.b16 %v4330, %v4328
        %v5953 = vpack.c.b16 %v4333, %v4331
        %v5954 = vpack.c.b16 %v4334, %v4332
        %v5955 = vpack.c.b16 %v4337, %v4335
        %v5956 = vpack.c.b16 %v4338, %v4336
        %v5957 = vpack.c.b16 %v4341, %v4339
        %v5958 = vpack.c.b16 %v4342, %v4340
        %v5959 = vpack.c.b16 %v4345, %v4343
        %v5960 = vpack.c.b16 %v4346, %v4344
        %v5961 = vpack.c.b16 %v4349, %v4347
        %v5962 = vpack.c.b16 %v4350, %v4348
        %v5963 = vpack.c.b16 %v4353, %v4351
        %v5964 = vpack.c.b16 %v4354, %v4352
        %v5965 = vpack.c.b16 %v4357, %v4355
        %v5966 = vpack.c.b16 %v4358, %v4356
        %v5967 = vpack.c.b16 %v4361, %v4359
        %v5968 = vpack.c.b16 %v4362, %v4360
        %v5969 = vpack.c.b16 %v4365, %v4363
        %v5970 = vpack.c.b16 %v4366, %v4364
        %v5971 = vpack.c.b16 %v4369, %v4367
        %v5972 = vpack.c.b16 %v4370, %v4368
        %v5973 = vpack.c.b16 %v4373, %v4371
        %v5974 = vpack.c.b16 %v4374, %v4372
        %v5975 = vpack.c.b16 %v4377, %v4375
        %v5976 = vpack.c.b16 %v4378, %v4376
        %v5977 = vpack.c.b16 %v4381, %v4379
        %v5978 = vpack.c.b16 %v4382, %v4380
        %v5979 = vpack.c.b16 %v4385, %v4383
        %v5980 = vpack.c.b16 %v4386, %v4384
        %v5981 = vpack.c.b16 %v4389, %v4387
        %v5982 = vpack.c.b16 %v4390, %v4388
        %v5983 = vpack.c.b16 %v4393, %v4391
        %v5984 = vpack.c.b16 %v4394, %v4392
        %v5985 = vpack.c.b16 %v4397, %v4395
        %v5986 = vpack.c.b16 %v4398, %v4396
        %v5987 = vpack.c.b16 %v4401, %v4399
        %v5988 = vpack.c.b16 %v4402, %v4400
        %v5989 = vpack.c.b16 %v4405, %v4403
        %v5990 = vpack.c.b16 %v4406, %v4404
        %v5991 = vpack.c.b16 %v4409, %v4407
        %v5992 = vpack.c.b16 %v4410, %v4408
        %v5993 = vpack.c.b16 %v4413, %v4411
        %v5994 = vpack.c.b16 %v4414, %v4412
        %v5995 = vpack.c.b16 %v4417, %v4415
        %v5996 = vpack.c.b16 %v4418, %v4416
        %v5997 = vpack.c.b16 %v4421, %v4419
        %v5998 = vpack.c.b16 %v4422, %v4420
        %v5999 = vpack.c.b16 %v4425, %v4423
        %v6000 = vpack.c.b16 %v4426, %v4424
        %v6001 = vpack.c.b16 %v4429, %v4427
        %v6002 = vpack.c.b16 %v4430, %v4428
        %v6003 = vpack.c.b16 %v4433, %v4431
        %v6004 = vpack.c.b16 %v4434, %v4432
        %v6005 = vpack.c.b16 %v4437, %v4435
        %v6006 = vpack.c.b16 %v4438, %v4436
        %v6007 = vpack.c.b16 %v4441, %v4439
        %v6008 = vpack.c.b16 %v4442, %v4440
        %v6009 = vpack.c.b16 %v4445, %v4443
        %v6010 = vpack.c.b16 %v4446, %v4444
        %v6011 = vpack.c.b16 %v4449, %v4447
        %v6012 = vpack.c.b16 %v4450, %v4448
        %v6013 = vpack.c.b16 %v4453, %v4451
        %v6014 = vpack.c.b16 %v4454, %v4452
        %v6015 = vpack.c.b16 %v4457, %v4455
        %v6016 = vpack.c.b16 %v4458, %v4456
        %v6017 = vpack.c.b16 %v4461, %v4459
        %v6018 = vpack.c.b16 %v4462, %v4460
        %v6019 = vpack.c.b16 %v4465, %v4463
        %v6020 = vpack.c.b16 %v4466, %v4464
        %v6021 = vpack.c.b16 %v4469, %v4467
        %v6022 = vpack.c.b16 %v4470, %v4468
        %v6023 = vpack.c.b16 %v4473, %v4471
        %v6024 = vpack.c.b16 %v4474, %v4472
        %v6025 = vpack.c.b16 %v4477, %v4475
        %v6026 = vpack.c.b16 %v4478, %v4476
        %v6027 = vpack.c.b16 %v4481, %v4479
        %v6028 = vpack.c.b16 %v4482, %v4480
        %v6029 = vpack.c.b16 %v4485, %v4483
        %v6030 = vpack.c.b16 %v4486, %v4484
        %v6031 = vpack.c.b16 %v4489, %v4487
        %v6032 = vpack.c.b16 %v4490, %v4488
        %v6033 = vpack.c.b16 %v4493, %v4491
        %v6034 = vpack.c.b16 %v4494, %v4492
        %v6035 = vpack.c.b16 %v4497, %v4495
        %v6036 = vpack.c.b16 %v4498, %v4496
        %v6037 = vpack.c.b16 %v4501, %v4499
        %v6038 = vpack.c.b16 %v4502, %v4500
        %v6039 = vpack.c.b16 %v4505, %v4503
        %v6040 = vpack.c.b16 %v4506, %v4504
        %v6041 = vpack.c.b16 %v4509, %v4507
        %v6042 = vpack.c.b16 %v4510, %v4508
        %v6043 = vpack.c.b16 %v4513, %v4511
        %v6044 = vpack.c.b16 %v4514, %v4512
        %v6045 = vpack.c.b16 %v4517, %v4515
        %v6046 = vpack.c.b16 %v4518, %v4516
        %v6047 = vpack.c.b16 %v4521, %v4519
        %v6048 = vpack.c.b16 %v4522, %v4520
        %v6049 = vpack.c.b16 %v4525, %v4523
        %v6050 = vpack.c.b16 %v4526, %v4524
        %v6051 = vpack.c.b16 %v4529, %v4527
        %v6052 = vpack.c.b16 %v4530, %v4528
        %v6053 = vpack.c.b16 %v4533, %v4531
        %v6054 = vpack.c.b16 %v4534, %v4532
        %v6055 = vpack.c.b16 %v4537, %v4535
        %v6056 = vpack.c.b16 %v4538, %v4536
        %v6057 = vpack.c.b16 %v4541, %v4539
        %v6058 = vpack.c.b16 %v4542, %v4540
        %v6059 = vpack.c.b16 %v4545, %v4543
        %v6060 = vpack.c.b16 %v4546, %v4544
        %v6061 = vpack.c.b16 %v4549, %v4547
        %v6062 = vpack.c.b16 %v4550, %v4548
        %v6063 = vpack.c.b16 %v4553, %v4551
        %v6064 = vpack.c.b16 %v4554, %v4552
        %v6065 = vpack.c.b16 %v4557, %v4555
        %v6066 = vpack.c.b16 %v4558, %v4556
        %v6067 = vpack.c.b16 %v4561, %v4559
        %v6068 = vpack.c.b16 %v4562, %v4560
        %v6069 = vpack.c.b16 %v4565, %v4563
        %v6070 = vpack.c.b16 %v4566, %v4564
        %v6071 = vpack.c.b16 %v4569, %v4567
        %v6072 = vpack.c.b16 %v4570, %v4568
        %v6073 = vpack.c.b16 %v4573, %v4571
        %v6074 = vpack.c.b16 %v4574, %v4572
        %v6075 = vpack.c.b16 %v4577, %v4575
        %v6076 = vpack.c.b16 %v4578, %v4576
        %v6077 = vpack.c.b16 %v4581, %v4579
        %v6078 = vpack.c.b16 %v4582, %v4580
        %v6079 = vpack.c.b16 %v4585, %v4583
        %v6080 = vpack.c.b16 %v4586, %v4584
        %v6081 = vpack.c.b16 %v4589, %v4587
        %v6082 = vpack.c.b16 %v4590, %v4588
        %v6083 = vpack.c.b16 %v4593, %v4591
        %v6084 = vpack.c.b16 %v4594, %v4592
        %v6085 = vpack.c.b16 %v4597, %v4595
        %v6086 = vpack.c.b16 %v4598, %v4596
        %v6087 = vpack.c.b16 %v4601, %v4599
        %v6088 = vpack.c.b16 %v4602, %v4600
        %v6089 = vpack.c.b16 %v4605, %v4603
        %v6090 = vpack.c.b16 %v4606, %v4604
        %v6091 = vpack.c.b16 %v4609, %v4607
        %v6092 = vpack.c.b16 %v4610, %v4608
        %v6093 = vpack.c.b16 %v4613, %v4611
        %v6094 = vpack.c.b16 %v4614, %v4612
        %v6095 = vpack.c.b16 %v4617, %v4615
        %v6096 = vpack.c.b16 %v4618, %v4616
        %v6097 = vpack.c.b16 %v4621, %v4619
        %v6098 = vpack.c.b16 %v4622, %v4620
        %v6099 = vpack.c.b16 %v4625, %v4623
        %v6100 = vpack.c.b16 %v4626, %v4624
        %v6101 = vpack.c.b16 %v4629, %v4627
        %v6102 = vpack.c.b16 %v4630, %v4628
        %v6103 = vpack.c.b16 %v4633, %v4631
        %v6104 = vpack.c.b16 %v4634, %v4632
        %v6105 = vpack.c.b16 %v4637, %v4635
        %v6106 = vpack.c.b16 %v4638, %v4636
        %v6107 = vpack.c.b16 %v4641, %v4639
        %v6108 = vpack.c.b16 %v4642, %v4640
        %v6109 = vpack.c.b16 %v4645, %v4643
        %v6110 = vpack.c.b16 %v4646, %v4644
        %v6111 = vpack.c.b16 %v4649, %v4647
        %v6112 = vpack.c.b16 %v4650, %v4648
        %v6113 = vpack.c.b16 %v4653, %v4651
        %v6114 = vpack.c.b16 %v4654, %v4652
        %v6115 = vpack.c.b16 %v4657, %v4655
        %v6116 = vpack.c.b16 %v4658, %v4656
        %v6117 = vpack.c.b16 %v4661, %v4659
        %v6118 = vpack.c.b16 %v4662, %v4660
        %v6119 = vpack.c.b16 %v4665, %v4663
        %v6120 = vpack.c.b16 %v4666, %v4664
        %v6121 = vpack.c.b16 %v4669, %v4667
        %v6122 = vpack.c.b16 %v4670, %v4668
        %v6123 = vpack.c.b16 %v4673, %v4671
        %v6124 = vpack.c.b16 %v4674, %v4672
        %v6125 = vpack.c.b16 %v4677, %v4675
        %v6126 = vpack.c.b16 %v4678, %v4676
        %v6127 = vpack.c.b16 %v4681, %v4679
        %v6128 = vpack.c.b16 %v4682, %v4680
        %v6129 = vpack.c.b16 %v4685, %v4683
        %v6130 = vpack.c.b16 %v4686, %v4684
        %v6131 = vpack.c.b16 %v4689, %v4687
        %v6132 = vpack.c.b16 %v4690, %v4688
        %v6133 = vpack.c.b16 %v4693, %v4691
        %v6134 = vpack.c.b16 %v4694, %v4692
        %v6135 = vpack.c.b16 %v4697, %v4695
        %v6136 = vpack.c.b16 %v4698, %v4696
        %v6137 = vpack.c.b16 %v4701, %v4699
        %v6138 = vpack.c.b16 %v4702, %v4700
        %v6139 = vpack.c.b16 %v4705, %v4703
        %v6140 = vpack.c.b16 %v4706, %v4704
        %v6141 = vpack.c.b16 %v4709, %v4707
        %v6142 = vpack.c.b16 %v4710, %v4708
        %v6143 = vpack.c.b16 %v4713, %v4711
        %v6144 = vpack.c.b16 %v4714, %v4712
        %v6145 = vpack.c.b16 %v4717, %v4715
        %v6146 = vpack.c.b16 %v4718, %v4716
        %v6147 = vpack.c.b16 %v4721, %v4719
        %v6148 = vpack.c.b16 %v4722, %v4720
        %v6149 = vpack.c.b16 %v4725, %v4723
        %v6150 = vpack.c.b16 %v4726, %v4724
        %v6151 = vpack.c.b16 %v4729, %v4727
        %v6152 = vpack.c.b16 %v4730, %v4728
        %v6153 = vpack.c.b16 %v4733, %v4731
        %v6154 = vpack.c.b16 %v4734, %v4732
        %v6155 = vpack.c.b16 %v4737, %v4735
        %v6156 = vpack.c.b16 %v4738, %v4736
        %v6157 = vpack.c.b16 %v4741, %v4739
        %v6158 = vpack.c.b16 %v4742, %v4740
        %v6159 = vpack.c.b16 %v4745, %v4743
        %v6160 = vpack.c.b16 %v4746, %v4744
        %v6161 = vpack.c.b16 %v4749, %v4747
        %v6162 = vpack.c.b16 %v4750, %v4748
        %v6163 = vpack.c.b16 %v4753, %v4751
        %v6164 = vpack.c.b16 %v4754, %v4752
        %v6165 = vpack.c.b16 %v4757, %v4755
        %v6166 = vpack.c.b16 %v4758, %v4756
        %v6167 = vpack.c.b16 %v4761, %v4759
        %v6168 = vpack.c.b16 %v4762, %v4760
        %v6169 = vpack.c.b16 %v4765, %v4763
        %v6170 = vpack.c.b16 %v4766, %v4764
        %v6171 = vpack.c.b16 %v4769, %v4767
        %v6172 = vpack.c.b16 %v4770, %v4768
        %v6173 = vpack.c.b16 %v4773, %v4771
        %v6174 = vpack.c.b16 %v4774, %v4772
        %v6175 = vpack.c.b16 %v4777, %v4775
        %v6176 = vpack.c.b16 %v4778, %v4776
        %v6177 = vpack.c.b16 %v4781, %v4779
        %v6178 = vpack.c.b16 %v4782, %v4780
        %v6179 = vpack.c.b16 %v4785, %v4783
        %v6180 = vpack.c.b16 %v4786, %v4784
        %v6181 = vpack.c.b16 %v4789, %v4787
        %v6182 = vpack.c.b16 %v4790, %v4788
        %v6183 = vpack.c.b16 %v4793, %v4791
        %v6184 = vpack.c.b16 %v4794, %v4792
        %v6185 = vpack.c.b16 %v4797, %v4795
        %v6186 = vpack.c.b16 %v4798, %v4796
        %v6187 = vpack.c.b16 %v4801, %v4799
        %v6188 = vpack.c.b16 %v4802, %v4800
        %v6189 = vpack.c.b16 %v4805, %v4803
        %v6190 = vpack.c.b16 %v4806, %v4804
        %v6191 = vpack.c.b16 %v4809, %v4807
        %v6192 = vpack.c.b16 %v4810, %v4808
        %v6193 = vpack.c.b16 %v4813, %v4811
        %v6194 = vpack.c.b16 %v4814, %v4812
        %v6195 = vpack.c.b16 %v4817, %v4815
        %v6196 = vpack.c.b16 %v4818, %v4816
        %v6197 = vpack.c.b16 %v4821, %v4819
        %v6198 = vpack.c.b16 %v4822, %v4820
        %v6199 = vpack.c.b16 %v4825, %v4823
        %v6200 = vpack.c.b16 %v4826, %v4824
        %v6201 = vpack.c.b16 %v4829, %v4827
        %v6202 = vpack.c.b16 %v4830, %v4828
        %v6203 = vpack.c.b16 %v4833, %v4831
        %v6204 = vpack.c.b16 %v4834, %v4832
        %v6205 = vpack.c.b16 %v4837, %v4835
        %v6206 = vpack.c.b16 %v4838, %v4836
        %v6207 = vpack.c.b16 %v4841, %v4839
        %v6208 = vpack.c.b16 %v4842, %v4840
        %v6209 = vpack.c.b16 %v4845, %v4843
        %v6210 = vpack.c.b16 %v4846, %v4844
        %v6211 = vpack.c.b16 %v4849, %v4847
        %v6212 = vpack.c.b16 %v4850, %v4848
        %v6213 = vpack.c.b16 %v4853, %v4851
        %v6214 = vpack.c.b16 %v4854, %v4852
        %v6215 = vpack.c.b16 %v4857, %v4855
        %v6216 = vpack.c.b16 %v4858, %v4856
        %v6217 = vpack.c.b16 %v4861, %v4859
        %v6218 = vpack.c.b16 %v4862, %v4860
        %v6219 = vpack.c.b16 %v4865, %v4863
        %v6220 = vpack.c.b16 %v4866, %v4864
        %v6221 = vpack.c.b16 %v4869, %v4867
        %v6222 = vpack.c.b16 %v4870, %v4868
        %v6223 = vpack.c.b16 %v4873, %v4871
        %v6224 = vpack.c.b16 %v4874, %v4872
        %v6225 = vpack.c.b16 %v4877, %v4875
        %v6226 = vpack.c.b16 %v4878, %v4876
        %v6227 = vpack.c.b16 %v4881, %v4879
        %v6228 = vpack.c.b16 %v4882, %v4880
        %v6229 = vpack.c.b16 %v4885, %v4883
        %v6230 = vpack.c.b16 %v4886, %v4884
        %v6231 = vpack.c.b16 %v4889, %v4887
        %v6232 = vpack.c.b16 %v4890, %v4888
        %v6233 = vpack.c.b16 %v4893, %v4891
        %v6234 = vpack.c.b16 %v4894, %v4892
        %v6235 = vpack.c.b16 %v4897, %v4895
        %v6236 = vpack.c.b16 %v4898, %v4896
        %v6237 = vpack.c.b16 %v4901, %v4899
        %v6238 = vpack.c.b16 %v4902, %v4900
        %v6239 = vpack.c.b16 %v4905, %v4903
        %v6240 = vpack.c.b16 %v4906, %v4904
        %v6241 = vpack.c.b16 %v4909, %v4907
        %v6242 = vpack.c.b16 %v4910, %v4908
        %v6243 = vpack.c.b16 %v4913, %v4911
        %v6244 = vpack.c.b16 %v4914, %v4912
        %v6245 = vpack.c.b16 %v4917, %v4915
        %v6246 = vpack.c.b16 %v4918, %v4916
        %v6247 = vpack.c.b16 %v4921, %v4919
        %v6248 = vpack.c.b16 %v4922, %v4920
        %v6249 = vpack.c.b16 %v4925, %v4923
        %v6250 = vpack.c.b16 %v4926, %v4924
        %v6251 = vpack.c.b16 %v4929, %v4927
        %v6252 = vpack.c.b16 %v4930, %v4928
        %v6253 = vpack.c.b16 %v4933, %v4931
        %v6254 = vpack.c.b16 %v4934, %v4932
        %v6255 = vpack.c.b16 %v4937, %v4935
        %v6256 = vpack.c.b16 %v4938, %v4936
        %v6257 = vpack.c.b16 %v4941, %v4939
        %v6258 = vpack.c.b16 %v4942, %v4940
        %v6259 = vpack.c.b16 %v4945, %v4943
        %v6260 = vpack.c.b16 %v4946, %v4944
        %v6261 = vpack.c.b16 %v4949, %v4947
        %v6262 = vpack.c.b16 %v4950, %v4948
        %v6263 = vpack.c.b16 %v4953, %v4951
        %v6264 = vpack.c.b16 %v4954, %v4952
        %v6265 = vpack.c.b16 %v4957, %v4955
        %v6266 = vpack.c.b16 %v4958, %v4956
        %v6267 = vpack.c.b16 %v4961, %v4959
        %v6268 = vpack.c.b16 %v4962, %v4960
        %v6269 = vpack.c.b16 %v4965, %v4963
        %v6270 = vpack.c.b16 %v4966, %v4964
        %v6271 = vpack.c.b16 %v4969, %v4967
        %v6272 = vpack.c.b16 %v4970, %v4968
        %v6273 = vpack.c.b16 %v4973, %v4971
        %v6274 = vpack.c.b16 %v4974, %v4972
        %v6275 = vpack.c.b16 %v4977, %v4975
        %v6276 = vpack.c.b16 %v4978, %v4976
        %v6277 = vpack.c.b16 %v4981, %v4979
        %v6278 = vpack.c.b16 %v4982, %v4980
        %v6279 = vpack.c.b16 %v4985, %v4983
        %v6280 = vpack.c.b16 %v4986, %v4984
        %v6281 = vpack.c.b16 %v4989, %v4987
        %v6282 = vpack.c.b16 %v4990, %v4988
        %v6283 = vpack.c.b16 %v4993, %v4991
        %v6284 = vpack.c.b16 %v4994, %v4992
        %v6285 = vpack.c.b16 %v4997, %v4995
        %v6286 = vpack.c.b16 %v4998, %v4996
        %v6287 = vpack.c.b16 %v5001, %v4999
        %v6288 = vpack.c.b16 %v5002, %v5000
        %v6289 = vpack.c.b16 %v5005, %v5003
        %v6290 = vpack.c.b16 %v5006, %v5004
        %v6291 = vpack.c.b16 %v5009, %v5007
        %v6292 = vpack.c.b16 %v5010, %v5008
        %v6293 = vpack.c.b16 %v5013, %v5011
        %v6294 = vpack.c.b16 %v5014, %v5012
        %v6295 = vpack.c.b16 %v5017, %v5015
        %v6296 = vpack.c.b16 %v5018, %v5016
        %v6297 = vpack.c.b16 %v5021, %v5019
        %v6298 = vpack.c.b16 %v5022, %v5020
        %v6299 = vpack.c.b16 %v5025, %v5023
        %v6300 = vpack.c.b16 %v5026, %v5024
        %v6301 = vpack.c.b16 %v5029, %v5027
        %v6302 = vpack.c.b16 %v5030, %v5028
        %v6303 = vpack.c.b16 %v5033, %v5031
        %v6304 = vpack.c.b16 %v5034, %v5032
        %v6305 = vpack.c.b16 %v5037, %v5035
        %v6306 = vpack.c.b16 %v5038, %v5036
        %v6307 = vpack.c.b16 %v5041, %v5039
        %v6308 = vpack.c.b16 %v5042, %v5040
        %v6309 = vpack.c.b16 %v5045, %v5043
        %v6310 = vpack.c.b16 %v5046, %v5044
        %v6311 = vpack.c.b16 %v5049, %v5047
        %v6312 = vpack.c.b16 %v5050, %v5048
        %v6313 = vpack.c.b16 %v5053, %v5051
        %v6314 = vpack.c.b16 %v5054, %v5052
        %v6315 = vpack.c.b16 %v5057, %v5055
        %v6316 = vpack.c.b16 %v5058, %v5056
        %v6317 = vpack.c.b16 %v5061, %v5059
        %v6318 = vpack.c.b16 %v5062, %v5060
        %v6319 = vpack.c.b16 %v5065, %v5063
        %v6320 = vpack.c.b16 %v5066, %v5064
        %v6321 = vpack.c.b16 %v5069, %v5067
        %v6322 = vpack.c.b16 %v5070, %v5068
        %v6323 = vpack.c.b16 %v5073, %v5071
        %v6324 = vpack.c.b16 %v5074, %v5072
        %v6325 = vpack.c.b16 %v5077, %v5075
        %v6326 = vpack.c.b16 %v5078, %v5076
        %v6327 = vpack.c.b16 %v5081, %v5079
        %v6328 = vpack.c.b16 %v5082, %v5080
        %v6329 = vpack.c.b16 %v5085, %v5083
        %v6330 = vpack.c.b16 %v5086, %v5084
        %v6331 = vpack.c.b16 %v5089, %v5087
        %v6332 = vpack.c.b16 %v5090, %v5088
        %v6333 = vpack.c.b16 %v5093, %v5091
        %v6334 = vpack.c.b16 %v5094, %v5092
        %v6335 = vpack.c.b16 %v5097, %v5095
        %v6336 = vpack.c.b16 %v5098, %v5096
        %v6337 = vpack.c.b16 %v5101, %v5099
        %v6338 = vpack.c.b16 %v5102, %v5100
        %v6339 = vpack.c.b16 %v5105, %v5103
        %v6340 = vpack.c.b16 %v5106, %v5104
        %v6341 = vpack.c.b16 %v5109, %v5107
        %v6342 = vpack.c.b16 %v5110, %v5108
        %v6343 = vpack.c.b16 %v5113, %v5111
        %v6344 = vpack.c.b16 %v5114, %v5112
        %v6345 = vpack.c.b16 %v5117, %v5115
        %v6346 = vpack.c.b16 %v5118, %v5116
        %v6347 = vpack.c.b16 %v5121, %v5119
        %v6348 = vpack.c.b16 %v5122, %v5120
        %v6349 = vpack.c.b16 %v5125, %v5123
        %v6350 = vpack.c.b16 %v5126, %v5124
        %v6351 = vpack.c.b16 %v5129, %v5127
        %v6352 = vpack.c.b16 %v5130, %v5128
        %v6353 = vpack.c.b16 %v5133, %v5131
        %v6354 = vpack.c.b16 %v5134, %v5132
        %v6355 = vpack.c.b16 %v5137, %v5135
        %v6356 = vpack.c.b16 %v5138, %v5136
        %v6357 = vpack.c.b16 %v5141, %v5139
        %v6358 = vpack.c.b16 %v5142, %v5140
        %v6359 = vpack.c.b16 %v5145, %v5143
        %v6360 = vpack.c.b16 %v5146, %v5144
        %v6361 = vpack.c.b16 %v5149, %v5147
        %v6362 = vpack.c.b16 %v5150, %v5148
        %v6363 = vpack.c.b16 %v5153, %v5151
        %v6364 = vpack.c.b16 %v5154, %v5152
        %v6365 = vpack.c.b16 %v5157, %v5155
        %v6366 = vpack.c.b16 %v5158, %v5156
        %v6367 = vpack.c.b16 %v5161, %v5159
        %v6368 = vpack.c.b16 %v5162, %v5160
        %v6369 = vpack.c.b16 %v5165, %v5163
        %v6370 = vpack.c.b16 %v5166, %v5164
        %v6371 = vpack.c.b16 %v5169, %v5167
        %v6372 = vpack.c.b16 %v5170, %v5168
        %v6373 = vpack.c.b16 %v5173, %v5171
        %v6374 = vpack.c.b16 %v5174, %v5172
        %v6375 = vpack.c.b16 %v5177, %v5175
        %v6376 = vpack.c.b16 %v5178, %v5176
        %v6377 = vpack.c.b16 %v5181, %v5179
        %v6378 = vpack.c.b16 %v5182, %v5180
        %v6379 = vpack.c.b16 %v5185, %v5183
        %v6380 = vpack.c.b16 %v5186, %v5184
        %v6381 = vpack.c.b16 %v5189, %v5187
        %v6382 = vpack.c.b16 %v5190, %v5188
        %v6383 = vpack.c.b16 %v5193, %v5191
        %v6384 = vpack.c.b16 %v5194, %v5192
        %v6385 = vpack.c.b16 %v5197, %v5195
        %v6386 = vpack.c.b16 %v5198, %v5196
        %v6387 = vpack.c.b16 %v5201, %v5199
        %v6388 = vpack.c.b16 %v5202, %v5200
        %v6389 = vpack.c.b16 %v5205, %v5203
        %v6390 = vpack.c.b16 %v5206, %v5204
        %v6391 = vpack.c.b16 %v5209, %v5207
        %v6392 = vpack.c.b16 %v5210, %v5208
        %v6393 = vpack.c.b16 %v5213, %v5211
        %v6394 = vpack.c.b16 %v5214, %v5212
        %v6395 = vpack.c.b16 %v5217, %v5215
        %v6396 = vpack.c.b16 %v5218, %v5216
        %v6397 = vpack.c.b16 %v5221, %v5219
        %v6398 = vpack.c.b16 %v5222, %v5220
        %v6399 = vpack.c.b16 %v5225, %v5223
        %v6400 = vpack.c.b16 %v5226, %v5224
        %v6401 = vpack.c.b16 %v5229, %v5227
        %v6402 = vpack.c.b16 %v5230, %v5228
        %v6403 = vpack.c.b16 %v5233, %v5231
        %v6404 = vpack.c.b16 %v5234, %v5232
        %v6405 = vpack.c.b16 %v5237, %v5235
        %v6406 = vpack.c.b16 %v5238, %v5236
        %v6407 = vpack.c.b16 %v5241, %v5239
        %v6408 = vpack.c.b16 %v5242, %v5240
        %v6409 = vpack.c.b16 %v5245, %v5243
        %v6410 = vpack.c.b16 %v5246, %v5244
        %v6411 = vpack.c.b16 %v5249, %v5247
        %v6412 = vpack.c.b16 %v5250, %v5248
        %v6413 = vpack.c.b16 %v5253, %v5251
        %v6414 = vpack.c.b16 %v5254, %v5252
        %v6415 = vpack.c.b16 %v5257, %v5255
        %v6416 = vpack.c.b16 %v5258, %v5256
        %v6417 = vpack.c.b16 %v5261, %v5259
        %v6418 = vpack.c.b16 %v5262, %v5260
        %v6419 = vpack.c.b16 %v5265, %v5263
        %v6420 = vpack.c.b16 %v5266, %v5264
        %v6421 = vpack.c.b16 %v5269, %v5267
        %v6422 = vpack.c.b16 %v5270, %v5268
        %v6423 = vpack.c.b16 %v5273, %v5271
        %v6424 = vpack.c.b16 %v5274, %v5272
        %v6425 = vpack.c.b16 %v5277, %v5275
        %v6426 = vpack.c.b16 %v5278, %v5276
        %v6427 = vpack.c.b16 %v5281, %v5279
        %v6428 = vpack.c.b16 %v5282, %v5280
        %v6429 = vpack.c.b16 %v5285, %v5283
        %v6430 = vpack.c.b16 %v5286, %v5284
        %v6431 = vpack.c.b16 %v5289, %v5287
        %v6432 = vpack.c.b16 %v5290, %v5288
        %v6433 = vpack.c.b16 %v5293, %v5291
        %v6434 = vpack.c.b16 %v5294, %v5292
        %v6435 = vpack.c.b16 %v5297, %v5295
        %v6436 = vpack.c.b16 %v5298, %v5296
        %v6437 = vpack.c.b16 %v5301, %v5299
        %v6438 = vpack.c.b16 %v5302, %v5300
        %v6439 = vpack.c.b16 %v5305, %v5303
        %v6440 = vpack.c.b16 %v5306, %v5304
        %v6441 = vpack.c.b16 %v5309, %v5307
        %v6442 = vpack.c.b16 %v5310, %v5308
        %v6443 = vpack.c.b16 %v5313, %v5311
        %v6444 = vpack.c.b16 %v5314, %v5312
        %v6445 = vpack.c.b16 %v5317, %v5315
        %v6446 = vpack.c.b16 %v5318, %v5316
        %v6447 = vpack.c.b16 %v5321, %v5319
        %v6448 = vpack.c.b16 %v5322, %v5320
        %v6449 = vpack.c.b16 %v5325, %v5323
        %v6450 = vpack.c.b16 %v5326, %v5324
        %v6451 = vpack.c.b16 %v5329, %v5327
        %v6452 = vpack.c.b16 %v5330, %v5328
        %v6453 = vpack.c.b16 %v5333, %v5331
        %v6454 = vpack.c.b16 %v5334, %v5332
        %7575 = vmatprep.subr.bf16.mxu0 %v5336
        %7576 = vmatpush1.bf16.msra.mxu0 %v5335
        %7577 = vmatprep.subr.bf16.mxu0 %v5338
        %7578 = vmatpush1.bf16.msra.mxu0 %v5337
        %7579 = vmatprep.subr.bf16.mxu0 %v5340
        %7580 = vmatpush1.bf16.msra.mxu0 %v5339
        %7581 = vmatprep.subr.bf16.mxu0 %v5342
        %7582 = vmatpush1.bf16.msra.mxu0 %v5341
        %7583 = vmatprep.subr.bf16.mxu0 %v5344
        %7584 = vmatpush1.bf16.msra.mxu0 %v5343
        %7585 = vmatprep.subr.bf16.mxu0 %v5346
        %7586 = vmatpush1.bf16.msra.mxu0 %v5345
        %7587 = vmatprep.subr.bf16.mxu0 %v5348
        %7588 = vmatpush1.bf16.msra.mxu0 %v5347
        %7589 = vmatprep.subr.bf16.mxu0 %v5350
        %7590 = vmatpush1.bf16.msra.mxu0 %v5349
        %7591 = vmatprep.subr.bf16.mxu0 %v5352
        %7592 = vmatpush1.bf16.msra.mxu0 %v5351
        %7593 = vmatprep.subr.bf16.mxu0 %v5354
        %7594 = vmatpush1.bf16.msra.mxu0 %v5353
        %7595 = vmatprep.subr.bf16.mxu0 %v5356
        %7596 = vmatpush1.bf16.msra.mxu0 %v5355
        %7597 = vmatprep.subr.bf16.mxu0 %v5358
        %7598 = vmatpush1.bf16.msra.mxu0 %v5357
        %7599 = vmatprep.subr.bf16.mxu0 %v5360
        %7600 = vmatpush1.bf16.msra.mxu0 %v5359
        %7601 = vmatprep.subr.bf16.mxu0 %v5362
        %7602 = vmatpush1.bf16.msra.mxu0 %v5361
        %7603 = vmatprep.subr.bf16.mxu0 %v5364
        %7604 = vmatpush1.bf16.msra.mxu0 %v5363
        %7605 = vmatprep.subr.bf16.mxu0 %v5366
        %7606 = vmatpush1.bf16.msra.mxu0 %v5365
        %7607 = vmatprep.mubr.bf16.mxu0 %v1503
        %7608 = vmatmul.mubr.bf16.gmra.mrb[0].mxu0 %v1489
        %v7609 = vpop.f32.mrb[0].mxu0
        %v7610 = vadd.f32 0.0, %v7609
        %v7611 = vpop.f32.mrb[0].mxu0
        %v7612 = vadd.f32 0.0, %v7611
        %v7613 = vpop.f32.mrb[0].mxu0
        %v7614 = vpop.f32.mrb[0].mxu0
        %7615 = vdwg.mxu0
        %7616 = vmatprep.subr.bf16.mxu0 %v5368
        %7617 = vmatpush1.bf16.msra.mxu0 %v5367
        %7618 = vmatprep.subr.bf16.mxu0 %v5370
        %7619 = vmatpush1.bf16.msra.mxu0 %v5369
        %7620 = vmatprep.subr.bf16.mxu0 %v5372
        %7621 = vmatpush1.bf16.msra.mxu0 %v5371
        %7622 = vmatprep.subr.bf16.mxu0 %v5374
        %7623 = vmatpush1.bf16.msra.mxu0 %v5373
        %7624 = vmatprep.subr.bf16.mxu0 %v5376
        %7625 = vmatpush1.bf16.msra.mxu0 %v5375
        %7626 = vmatprep.subr.bf16.mxu0 %v5378
        %7627 = vmatpush1.bf16.msra.mxu0 %v5377
        %7628 = vmatprep.subr.bf16.mxu0 %v5380
        %7629 = vmatpush1.bf16.msra.mxu0 %v5379
        %7630 = vmatprep.subr.bf16.mxu0 %v5382
        %7631 = vmatpush1.bf16.msra.mxu0 %v5381
        %7632 = vmatprep.subr.bf16.mxu0 %v5384
        %7633 = vmatpush1.bf16.msra.mxu0 %v5383
        %7634 = vmatprep.subr.bf16.mxu0 %v5386
        %7635 = vmatpush1.bf16.msra.mxu0 %v5385
        %7636 = vmatprep.subr.bf16.mxu0 %v5388
        %7637 = vmatpush1.bf16.msra.mxu0 %v5387
        %7638 = vmatprep.subr.bf16.mxu0 %v5390
        %7639 = vmatpush1.bf16.msra.mxu0 %v5389
        %7640 = vmatprep.subr.bf16.mxu0 %v5392
        %7641 = vmatpush1.bf16.msra.mxu0 %v5391
        %7642 = vmatprep.subr.bf16.mxu0 %v5394
        %7643 = vmatpush1.bf16.msra.mxu0 %v5393
        %7644 = vmatprep.subr.bf16.mxu0 %v5396
        %7645 = vmatpush1.bf16.msra.mxu0 %v5395
        %7646 = vmatprep.subr.bf16.mxu0 %v5398
        %7647 = vmatpush1.bf16.msra.mxu0 %v5397
        %7648 = vmatprep.mubr.bf16.mxu0 %v1513
        %7649 = vmatmul.mubr.bf16.gmra.mrb[0].mxu0 %v1511
        %v7650 = vpop.f32.mrb[0].mxu0
        %v7651 = vadd.f32 %v7610, %v7650
        %v7652 = vpop.f32.mrb[0].mxu0
        %v7653 = vadd.f32 %v7612, %v7652
        %v7654 = vpop.f32.mrb[0].mxu0
        %v7655 = vpop.f32.mrb[0].mxu0
        %7656 = vdwg.mxu0
        %7657 = vmatprep.subr.bf16.mxu0 %v5400
        %7658 = vmatpush1.bf16.msra.mxu0 %v5399
        %7659 = vmatprep.subr.bf16.mxu0 %v5402
        %7660 = vmatpush1.bf16.msra.mxu0 %v5401
        %7661 = vmatprep.subr.bf16.mxu0 %v5404
        %7662 = vmatpush1.bf16.msra.mxu0 %v5403
        %7663 = vmatprep.subr.bf16.mxu0 %v5406
        %7664 = vmatpush1.bf16.msra.mxu0 %v5405
        %7665 = vmatprep.subr.bf16.mxu0 %v5408
        %7666 = vmatpush1.bf16.msra.mxu0 %v5407
        %7667 = vmatprep.subr.bf16.mxu0 %v5410
        %7668 = vmatpush1.bf16.msra.mxu0 %v5409
        %7669 = vmatprep.subr.bf16.mxu0 %v5412
        %7670 = vmatpush1.bf16.msra.mxu0 %v5411
        %7671 = vmatprep.subr.bf16.mxu0 %v5414
        %7672 = vmatpush1.bf16.msra.mxu0 %v5413
        %7673 = vmatprep.subr.bf16.mxu0 %v5416
        %7674 = vmatpush1.bf16.msra.mxu0 %v5415
        %7675 = vmatprep.subr.bf16.mxu0 %v5418
        %7676 = vmatpush1.bf16.msra.mxu0 %v5417
        %7677 = vmatprep.subr.bf16.mxu0 %v5420
        %7678 = vmatpush1.bf16.msra.mxu0 %v5419
        %7679 = vmatprep.subr.bf16.mxu0 %v5422
        %7680 = vmatpush1.bf16.msra.mxu0 %v5421
        %7681 = vmatprep.subr.bf16.mxu0 %v5424
        %7682 = vmatpush1.bf16.msra.mxu0 %v5423
        %7683 = vmatprep.subr.bf16.mxu0 %v5426
        %7684 = vmatpush1.bf16.msra.mxu0 %v5425
        %7685 = vmatprep.subr.bf16.mxu0 %v5428
        %7686 = vmatpush1.bf16.msra.mxu0 %v5427
        %7687 = vmatprep.subr.bf16.mxu0 %v5430
        %7688 = vmatpush1.bf16.msra.mxu0 %v5429
        %7689 = vmatprep.mubr.bf16.mxu0 %v1510
        %7690 = vmatmul.mubr.bf16.gmra.mrb[0].mxu0 %v1496
        %v7691 = vpop.f32.mrb[0].mxu0
        %v7692 = vadd.f32 %v7651, %v7691
        %v7693 = vpop.f32.mrb[0].mxu0
        %v7694 = vadd.f32 %v7653, %v7693
        %v7695 = vpop.f32.mrb[0].mxu0
        %v7696 = vpop.f32.mrb[0].mxu0
        %7697 = vdwg.mxu0
        %7698 = vmatprep.subr.bf16.mxu0 %v5432
        %7699 = vmatpush1.bf16.msra.mxu0 %v5431
        %7700 = vmatprep.subr.bf16.mxu0 %v5434
        %7701 = vmatpush1.bf16.msra.mxu0 %v5433
        %7702 = vmatprep.subr.bf16.mxu0 %v5436
        %7703 = vmatpush1.bf16.msra.mxu0 %v5435
        %7704 = vmatprep.subr.bf16.mxu0 %v5438
        %7705 = vmatpush1.bf16.msra.mxu0 %v5437
        %7706 = vmatprep.subr.bf16.mxu0 %v5440
        %7707 = vmatpush1.bf16.msra.mxu0 %v5439
        %7708 = vmatprep.subr.bf16.mxu0 %v5442
        %7709 = vmatpush1.bf16.msra.mxu0 %v5441
        %7710 = vmatprep.subr.bf16.mxu0 %v5444
        %7711 = vmatpush1.bf16.msra.mxu0 %v5443
        %7712 = vmatprep.subr.bf16.mxu0 %v5446
        %7713 = vmatpush1.bf16.msra.mxu0 %v5445
        %7714 = vmatprep.subr.bf16.mxu0 %v5448
        %7715 = vmatpush1.bf16.msra.mxu0 %v5447
        %7716 = vmatprep.subr.bf16.mxu0 %v5450
        %7717 = vmatpush1.bf16.msra.mxu0 %v5449
        %7718 = vmatprep.subr.bf16.mxu0 %v5452
        %7719 = vmatpush1.bf16.msra.mxu0 %v5451
        %7720 = vmatprep.subr.bf16.mxu0 %v5454
        %7721 = vmatpush1.bf16.msra.mxu0 %v5453
        %7722 = vmatprep.subr.bf16.mxu0 %v5456
        %7723 = vmatpush1.bf16.msra.mxu0 %v5455
        %7724 = vmatprep.subr.bf16.mxu0 %v5458
        %7725 = vmatpush1.bf16.msra.mxu0 %v5457
        %7726 = vmatprep.subr.bf16.mxu0 %v5460
        %7727 = vmatpush1.bf16.msra.mxu0 %v5459
        %7728 = vmatprep.subr.bf16.mxu0 %v5462
        %7729 = vmatpush1.bf16.msra.mxu0 %v5461
        %7730 = vmatprep.mubr.bf16.mxu0 %v1514
        %7731 = vmatmul.mubr.bf16.gmra.mrb[0].mxu0 %v1512
        %v7732 = vpop.f32.mrb[0].mxu0
        %v7733 = vadd.f32 %v7692, %v7732
        %v7734 = vpop.f32.mrb[0].mxu0
        %v7735 = vadd.f32 %v7694, %v7734
        %v7736 = vpop.f32.mrb[0].mxu0
        %v7737 = vpop.f32.mrb[0].mxu0
        %7738 = vdwg.mxu0
        %7739 = vmatprep.subr.bf16.mxu0 %v5464
        %7740 = vmatpush1.bf16.msra.mxu0 %v5463
        %7741 = vmatprep.subr.bf16.mxu0 %v5466
        %7742 = vmatpush1.bf16.msra.mxu0 %v5465
        %7743 = vmatprep.subr.bf16.mxu0 %v5468
        %7744 = vmatpush1.bf16.msra.mxu0 %v5467
        %7745 = vmatprep.subr.bf16.mxu0 %v5470
        %7746 = vmatpush1.bf16.msra.mxu0 %v5469
        %7747 = vmatprep.subr.bf16.mxu0 %v5472
        %7748 = vmatpush1.bf16.msra.mxu0 %v5471
        %7749 = vmatprep.subr.bf16.mxu0 %v5474
        %7750 = vmatpush1.bf16.msra.mxu0 %v5473
        %7751 = vmatprep.subr.bf16.mxu0 %v5476
        %7752 = vmatpush1.bf16.msra.mxu0 %v5475
        %7753 = vmatprep.subr.bf16.mxu0 %v5478
        %7754 = vmatpush1.bf16.msra.mxu0 %v5477
        %7755 = vmatprep.subr.bf16.mxu0 %v5480
        %7756 = vmatpush1.bf16.msra.mxu0 %v5479
        %7757 = vmatprep.subr.bf16.mxu0 %v5482
        %7758 = vmatpush1.bf16.msra.mxu0 %v5481
        %7759 = vmatprep.subr.bf16.mxu0 %v5484
        %7760 = vmatpush1.bf16.msra.mxu0 %v5483
        %7761 = vmatprep.subr.bf16.mxu0 %v5486
        %7762 = vmatpush1.bf16.msra.mxu0 %v5485
        %7763 = vmatprep.subr.bf16.mxu0 %v5488
        %7764 = vmatpush1.bf16.msra.mxu0 %v5487
        %7765 = vmatprep.subr.bf16.mxu0 %v5490
        %7766 = vmatpush1.bf16.msra.mxu0 %v5489
        %7767 = vmatprep.subr.bf16.mxu0 %v5492
        %7768 = vmatpush1.bf16.msra.mxu0 %v5491
        %7769 = vmatprep.subr.bf16.mxu0 %v5494
        %7770 = vmatpush1.bf16.msra.mxu0 %v5493
        %7771 = vmatprep.mubr.bf16.mxu0 %v1552
        %7772 = vmatmul.mubr.bf16.gmra.mrb[0].mxu0 %v1538
        %v7773 = vpop.f32.mrb[0].mxu0
        %v7774 = vadd.f32 %v7733, %v7773
        %v7775 = vpop.f32.mrb[0].mxu0
        %v7776 = vadd.f32 %v7735, %v7775
        %v7777 = vpop.f32.mrb[0].mxu0
        %v7778 = vpop.f32.mrb[0].mxu0
        %7779 = vdwg.mxu0
        %7780 = vmatprep.subr.bf16.mxu0 %v5496
        %7781 = vmatpush1.bf16.msra.mxu0 %v5495
        %7782 = vmatprep.subr.bf16.mxu0 %v5498
        %7783 = vmatpush1.bf16.msra.mxu0 %v5497
        %7784 = vmatprep.subr.bf16.mxu0 %v5500
        %7785 = vmatpush1.bf16.msra.mxu0 %v5499
        %7786 = vmatprep.subr.bf16.mxu0 %v5502
        %7787 = vmatpush1.bf16.msra.mxu0 %v5501
        %7788 = vmatprep.subr.bf16.mxu0 %v5504
        %7789 = vmatpush1.bf16.msra.mxu0 %v5503
        %7790 = vmatprep.subr.bf16.mxu0 %v5506
        %7791 = vmatpush1.bf16.msra.mxu0 %v5505
        %7792 = vmatprep.subr.bf16.mxu0 %v5508
        %7793 = vmatpush1.bf16.msra.mxu0 %v5507
        %7794 = vmatprep.subr.bf16.mxu0 %v5510
        %7795 = vmatpush1.bf16.msra.mxu0 %v5509
        %7796 = vmatprep.subr.bf16.mxu0 %v5512
        %7797 = vmatpush1.bf16.msra.mxu0 %v5511
        %7798 = vmatprep.subr.bf16.mxu0 %v5514
        %7799 = vmatpush1.bf16.msra.mxu0 %v5513
        %7800 = vmatprep.subr.bf16.mxu0 %v5516
        %7801 = vmatpush1.bf16.msra.mxu0 %v5515
        %7802 = vmatprep.subr.bf16.mxu0 %v5518
        %7803 = vmatpush1.bf16.msra.mxu0 %v5517
        %7804 = vmatprep.subr.bf16.mxu0 %v5520
        %7805 = vmatpush1.bf16.msra.mxu0 %v5519
        %7806 = vmatprep.subr.bf16.mxu0 %v5522
        %7807 = vmatpush1.bf16.msra.mxu0 %v5521
        %7808 = vmatprep.subr.bf16.mxu0 %v5524
        %7809 = vmatpush1.bf16.msra.mxu0 %v5523
        %7810 = vmatprep.subr.bf16.mxu0 %v5526
        %7811 = vmatpush1.bf16.msra.mxu0 %v5525
        %7812 = vmatprep.mubr.bf16.mxu0 %v1562
        %7813 = vmatmul.mubr.bf16.gmra.mrb[0].mxu0 %v1560
        %v7814 = vpop.f32.mrb[0].mxu0
        %v7815 = vadd.f32 %v7774, %v7814
        %v7816 = vpop.f32.mrb[0].mxu0
        %v7817 = vadd.f32 %v7776, %v7816
        %v7818 = vpop.f32.mrb[0].mxu0
        %v7819 = vpop.f32.mrb[0].mxu0
        %7820 = vdwg.mxu0
        %7821 = vmatprep.subr.bf16.mxu0 %v5528
        %7822 = vmatpush1.bf16.msra.mxu0 %v5527
        %7823 = vmatprep.subr.bf16.mxu0 %v5530
        %7824 = vmatpush1.bf16.msra.mxu0 %v5529
        %7825 = vmatprep.subr.bf16.mxu0 %v5532
        %7826 = vmatpush1.bf16.msra.mxu0 %v5531
        %7827 = vmatprep.subr.bf16.mxu0 %v5534
        %7828 = vmatpush1.bf16.msra.mxu0 %v5533
        %7829 = vmatprep.subr.bf16.mxu0 %v5536
        %7830 = vmatpush1.bf16.msra.mxu0 %v5535
        %7831 = vmatprep.subr.bf16.mxu0 %v5538
        %7832 = vmatpush1.bf16.msra.mxu0 %v5537
        %7833 = vmatprep.subr.bf16.mxu0 %v5540
        %7834 = vmatpush1.bf16.msra.mxu0 %v5539
        %7835 = vmatprep.subr.bf16.mxu0 %v5542
        %7836 = vmatpush1.bf16.msra.mxu0 %v5541
        %7837 = vmatprep.subr.bf16.mxu0 %v5544
        %7838 = vmatpush1.bf16.msra.mxu0 %v5543
        %7839 = vmatprep.subr.bf16.mxu0 %v5546
        %7840 = vmatpush1.bf16.msra.mxu0 %v5545
        %7841 = vmatprep.subr.bf16.mxu0 %v5548
        %7842 = vmatpush1.bf16.msra.mxu0 %v5547
        %7843 = vmatprep.subr.bf16.mxu0 %v5550
        %7844 = vmatpush1.bf16.msra.mxu0 %v5549
        %7845 = vmatprep.subr.bf16.mxu0 %v5552
        %7846 = vmatpush1.bf16.msra.mxu0 %v5551
        %7847 = vmatprep.subr.bf16.mxu0 %v5554
        %7848 = vmatpush1.bf16.msra.mxu0 %v5553
        %7849 = vmatprep.subr.bf16.mxu0 %v5556
        %7850 = vmatpush1.bf16.msra.mxu0 %v5555
        %7851 = vmatprep.subr.bf16.mxu0 %v5558
        %7852 = vmatpush1.bf16.msra.mxu0 %v5557
        %7853 = vmatprep.mubr.bf16.mxu0 %v1559
        %7854 = vmatmul.mubr.bf16.gmra.mrb[0].mxu0 %v1545
        %v7855 = vpop.f32.mrb[0].mxu0
        %v7856 = vadd.f32 %v7815, %v7855
        %v7857 = vpop.f32.mrb[0].mxu0
        %v7858 = vadd.f32 %v7817, %v7857
        %v7859 = vpop.f32.mrb[0].mxu0
        %v7860 = vpop.f32.mrb[0].mxu0
        %7861 = vdwg.mxu0
        %7862 = vmatprep.subr.bf16.mxu0 %v5560
        %7863 = vmatpush1.bf16.msra.mxu0 %v5559
        %7864 = vmatprep.subr.bf16.mxu0 %v5562
        %7865 = vmatpush1.bf16.msra.mxu0 %v5561
        %7866 = vmatprep.subr.bf16.mxu0 %v5564
        %7867 = vmatpush1.bf16.msra.mxu0 %v5563
        %7868 = vmatprep.subr.bf16.mxu0 %v5566
        %7869 = vmatpush1.bf16.msra.mxu0 %v5565
        %7870 = vmatprep.subr.bf16.mxu0 %v5568
        %7871 = vmatpush1.bf16.msra.mxu0 %v5567
        %7872 = vmatprep.subr.bf16.mxu0 %v5570
        %7873 = vmatpush1.bf16.msra.mxu0 %v5569
        %7874 = vmatprep.subr.bf16.mxu0 %v5572
        %7875 = vmatpush1.bf16.msra.mxu0 %v5571
        %7876 = vmatprep.subr.bf16.mxu0 %v5574
        %7877 = vmatpush1.bf16.msra.mxu0 %v5573
        %7878 = vmatprep.subr.bf16.mxu0 %v5576
        %7879 = vmatpush1.bf16.msra.mxu0 %v5575
        %7880 = vmatprep.subr.bf16.mxu0 %v5578
        %7881 = vmatpush1.bf16.msra.mxu0 %v5577
        %7882 = vmatprep.subr.bf16.mxu0 %v5580
        %7883 = vmatpush1.bf16.msra.mxu0 %v5579
        %7884 = vmatprep.subr.bf16.mxu0 %v5582
        %7885 = vmatpush1.bf16.msra.mxu0 %v5581
        %7886 = vmatprep.subr.bf16.mxu0 %v5584
        %7887 = vmatpush1.bf16.msra.mxu0 %v5583
        %7888 = vmatprep.subr.bf16.mxu0 %v5586
        %7889 = vmatpush1.bf16.msra.mxu0 %v5585
        %7890 = vmatprep.subr.bf16.mxu0 %v5588
        %7891 = vmatpush1.bf16.msra.mxu0 %v5587
        %7892 = vmatprep.subr.bf16.mxu0 %v5590
        %7893 = vmatpush1.bf16.msra.mxu0 %v5589
        %7894 = vmatprep.mubr.bf16.mxu0 %v1563
        %7895 = vmatmul.mubr.bf16.gmra.mrb[0].mxu0 %v1561
        %v7896 = vpop.f32.mrb[0].mxu0
        %v7897 = vadd.f32 %v7856, %v7896
        %v7898 = vpop.f32.mrb[0].mxu0
        %v7899 = vadd.f32 %v7858, %v7898
        %v7900 = vpop.f32.mrb[0].mxu0
        %v7901 = vpop.f32.mrb[0].mxu0
        %7902 = vdwg.mxu0
        %7903 = vmatprep.subr.bf16.mxu0 %v5592
        %7904 = vmatpush1.bf16.msra.mxu0 %v5591
        %7905 = vmatprep.subr.bf16.mxu0 %v5594
        %7906 = vmatpush1.bf16.msra.mxu0 %v5593
        %7907 = vmatprep.subr.bf16.mxu0 %v5596
        %7908 = vmatpush1.bf16.msra.mxu0 %v5595
        %7909 = vmatprep.subr.bf16.mxu0 %v5598
        %7910 = vmatpush1.bf16.msra.mxu0 %v5597
        %7911 = vmatprep.subr.bf16.mxu0 %v5600
        %7912 = vmatpush1.bf16.msra.mxu0 %v5599
        %7913 = vmatprep.subr.bf16.mxu0 %v5602
        %7914 = vmatpush1.bf16.msra.mxu0 %v5601
        %7915 = vmatprep.subr.bf16.mxu0 %v5604
        %7916 = vmatpush1.bf16.msra.mxu0 %v5603
        %7917 = vmatprep.subr.bf16.mxu0 %v5606
        %7918 = vmatpush1.bf16.msra.mxu0 %v5605
        %7919 = vmatprep.subr.bf16.mxu0 %v5608
        %7920 = vmatpush1.bf16.msra.mxu0 %v5607
        %7921 = vmatprep.subr.bf16.mxu0 %v5610
        %7922 = vmatpush1.bf16.msra.mxu0 %v5609
        %7923 = vmatprep.subr.bf16.mxu0 %v5612
        %7924 = vmatpush1.bf16.msra.mxu0 %v5611
        %7925 = vmatprep.subr.bf16.mxu0 %v5614
        %7926 = vmatpush1.bf16.msra.mxu0 %v5613
        %7927 = vmatprep.subr.bf16.mxu0 %v5616
        %7928 = vmatpush1.bf16.msra.mxu0 %v5615
        %7929 = vmatprep.subr.bf16.mxu0 %v5618
        %7930 = vmatpush1.bf16.msra.mxu0 %v5617
        %7931 = vmatprep.subr.bf16.mxu0 %v5620
        %7932 = vmatpush1.bf16.msra.mxu0 %v5619
        %7933 = vmatprep.subr.bf16.mxu0 %v5622
        %7934 = vmatpush1.bf16.msra.mxu0 %v5621
        %7935 = vmatprep.mubr.bf16.mxu0 %v1601
        %7936 = vmatmul.mubr.bf16.gmra.mrb[0].mxu0 %v1587
        %v7937 = vpop.f32.mrb[0].mxu0
        %v7938 = vadd.f32 %v7897, %v7937
        %v7939 = vpop.f32.mrb[0].mxu0
        %v7940 = vadd.f32 %v7899, %v7939
        %v7941 = vpop.f32.mrb[0].mxu0
        %v7942 = vpop.f32.mrb[0].mxu0
        %7943 = vdwg.mxu0
        %7944 = vmatprep.subr.bf16.mxu0 %v5624
        %7945 = vmatpush1.bf16.msra.mxu0 %v5623
        %7946 = vmatprep.subr.bf16.mxu0 %v5626
        %7947 = vmatpush1.bf16.msra.mxu0 %v5625
        %7948 = vmatprep.subr.bf16.mxu0 %v5628
        %7949 = vmatpush1.bf16.msra.mxu0 %v5627
        %7950 = vmatprep.subr.bf16.mxu0 %v5630
        %7951 = vmatpush1.bf16.msra.mxu0 %v5629
        %7952 = vmatprep.subr.bf16.mxu0 %v5632
        %7953 = vmatpush1.bf16.msra.mxu0 %v5631
        %7954 = vmatprep.subr.bf16.mxu0 %v5634
        %7955 = vmatpush1.bf16.msra.mxu0 %v5633
        %7956 = vmatprep.subr.bf16.mxu0 %v5636
        %7957 = vmatpush1.bf16.msra.mxu0 %v5635
        %7958 = vmatprep.subr.bf16.mxu0 %v5638
        %7959 = vmatpush1.bf16.msra.mxu0 %v5637
        %7960 = vmatprep.subr.bf16.mxu0 %v5640
        %7961 = vmatpush1.bf16.msra.mxu0 %v5639
        %7962 = vmatprep.subr.bf16.mxu0 %v5642
        %7963 = vmatpush1.bf16.msra.mxu0 %v5641
        %7964 = vmatprep.subr.bf16.mxu0 %v5644
        %7965 = vmatpush1.bf16.msra.mxu0 %v5643
        %7966 = vmatprep.subr.bf16.mxu0 %v5646
        %7967 = vmatpush1.bf16.msra.mxu0 %v5645
        %7968 = vmatprep.subr.bf16.mxu0 %v5648
        %7969 = vmatpush1.bf16.msra.mxu0 %v5647
        %7970 = vmatprep.subr.bf16.mxu0 %v5650
        %7971 = vmatpush1.bf16.msra.mxu0 %v5649
        %7972 = vmatprep.subr.bf16.mxu0 %v5652
        %7973 = vmatpush1.bf16.msra.mxu0 %v5651
        %7974 = vmatprep.subr.bf16.mxu0 %v5654
        %7975 = vmatpush1.bf16.msra.mxu0 %v5653
        %7976 = vmatprep.mubr.bf16.mxu0 %v1611
        %7977 = vmatmul.mubr.bf16.gmra.mrb[0].mxu0 %v1609
        %v7978 = vpop.f32.mrb[0].mxu0
        %v7979 = vadd.f32 %v7938, %v7978
        %v7980 = vpop.f32.mrb[0].mxu0
        %v7981 = vadd.f32 %v7940, %v7980
        %v7982 = vpop.f32.mrb[0].mxu0
        %v7983 = vpop.f32.mrb[0].mxu0
        %7984 = vdwg.mxu0
        %7985 = vmatprep.subr.bf16.mxu0 %v5656
        %7986 = vmatpush1.bf16.msra.mxu0 %v5655
        %7987 = vmatprep.subr.bf16.mxu0 %v5658
        %7988 = vmatpush1.bf16.msra.mxu0 %v5657
        %7989 = vmatprep.subr.bf16.mxu0 %v5660
        %7990 = vmatpush1.bf16.msra.mxu0 %v5659
        %7991 = vmatprep.subr.bf16.mxu0 %v5662
        %7992 = vmatpush1.bf16.msra.mxu0 %v5661
        %7993 = vmatprep.subr.bf16.mxu0 %v5664
        %7994 = vmatpush1.bf16.msra.mxu0 %v5663
        %7995 = vmatprep.subr.bf16.mxu0 %v5666
        %7996 = vmatpush1.bf16.msra.mxu0 %v5665
        %7997 = vmatprep.subr.bf16.mxu0 %v5668
        %7998 = vmatpush1.bf16.msra.mxu0 %v5667
        %7999 = vmatprep.subr.bf16.mxu0 %v5670
        %8000 = vmatpush1.bf16.msra.mxu0 %v5669
        %8001 = vmatprep.subr.bf16.mxu0 %v5672
        %8002 = vmatpush1.bf16.msra.mxu0 %v5671
        %8003 = vmatprep.subr.bf16.mxu0 %v5674
        %8004 = vmatpush1.bf16.msra.mxu0 %v5673
        %8005 = vmatprep.subr.bf16.mxu0 %v5676
        %8006 = vmatpush1.bf16.msra.mxu0 %v5675
        %8007 = vmatprep.subr.bf16.mxu0 %v5678
        %8008 = vmatpush1.bf16.msra.mxu0 %v5677
        %8009 = vmatprep.subr.bf16.mxu0 %v5680
        %8010 = vmatpush1.bf16.msra.mxu0 %v5679
        %8011 = vmatprep.subr.bf16.mxu0 %v5682
        %8012 = vmatpush1.bf16.msra.mxu0 %v5681
        %8013 = vmatprep.subr.bf16.mxu0 %v5684
        %8014 = vmatpush1.bf16.msra.mxu0 %v5683
        %8015 = vmatprep.subr.bf16.mxu0 %v5686
        %8016 = vmatpush1.bf16.msra.mxu0 %v5685
        %8017 = vmatprep.mubr.bf16.mxu0 %v1608
        %8018 = vmatmul.mubr.bf16.gmra.mrb[0].mxu0 %v1594
        %v8019 = vpop.f32.mrb[0].mxu0
        %v8020 = vadd.f32 %v7979, %v8019
        %v8021 = vpop.f32.mrb[0].mxu0
        %v8022 = vadd.f32 %v7981, %v8021
        %v8023 = vpop.f32.mrb[0].mxu0
        %v8024 = vpop.f32.mrb[0].mxu0
        %8025 = vdwg.mxu0
        %8026 = vmatprep.subr.bf16.mxu0 %v5688
        %8027 = vmatpush1.bf16.msra.mxu0 %v5687
        %8028 = vmatprep.subr.bf16.mxu0 %v5690
        %8029 = vmatpush1.bf16.msra.mxu0 %v5689
        %8030 = vmatprep.subr.bf16.mxu0 %v5692
        %8031 = vmatpush1.bf16.msra.mxu0 %v5691
        %8032 = vmatprep.subr.bf16.mxu0 %v5694
        %8033 = vmatpush1.bf16.msra.mxu0 %v5693
        %8034 = vmatprep.subr.bf16.mxu0 %v5696
        %8035 = vmatpush1.bf16.msra.mxu0 %v5695
        %8036 = vmatprep.subr.bf16.mxu0 %v5698
        %8037 = vmatpush1.bf16.msra.mxu0 %v5697
        %8038 = vmatprep.subr.bf16.mxu0 %v5700
        %8039 = vmatpush1.bf16.msra.mxu0 %v5699
        %8040 = vmatprep.subr.bf16.mxu0 %v5702
        %8041 = vmatpush1.bf16.msra.mxu0 %v5701
        %8042 = vmatprep.subr.bf16.mxu0 %v5704
        %8043 = vmatpush1.bf16.msra.mxu0 %v5703
        %8044 = vmatprep.subr.bf16.mxu0 %v5706
        %8045 = vmatpush1.bf16.msra.mxu0 %v5705
        %8046 = vmatprep.subr.bf16.mxu0 %v5708
        %8047 = vmatpush1.bf16.msra.mxu0 %v5707
        %8048 = vmatprep.subr.bf16.mxu0 %v5710
        %8049 = vmatpush1.bf16.msra.mxu0 %v5709
        %8050 = vmatprep.subr.bf16.mxu0 %v5712
        %8051 = vmatpush1.bf16.msra.mxu0 %v5711
        %8052 = vmatprep.subr.bf16.mxu0 %v5714
        %8053 = vmatpush1.bf16.msra.mxu0 %v5713
        %8054 = vmatprep.subr.bf16.mxu0 %v5716
        %8055 = vmatpush1.bf16.msra.mxu0 %v5715
        %8056 = vmatprep.subr.bf16.mxu0 %v5718
        %8057 = vmatpush1.bf16.msra.mxu0 %v5717
        %8058 = vmatprep.mubr.bf16.mxu0 %v1612
        %8059 = vmatmul.mubr.bf16.gmra.mrb[0].mxu0 %v1610
        %v8060 = vpop.f32.mrb[0].mxu0
        %v8061 = vadd.f32 %v8020, %v8060
        %v8062 = vpop.f32.mrb[0].mxu0
        %v8063 = vadd.f32 %v8022, %v8062
        %v8064 = vpop.f32.mrb[0].mxu0
        %v8065 = vpop.f32.mrb[0].mxu0
        %8066 = vdwg.mxu0
        %8067 = vmatprep.subr.bf16.mxu0 %v5720
        %8068 = vmatpush1.bf16.msra.mxu0 %v5719
        %8069 = vmatprep.subr.bf16.mxu0 %v5722
        %8070 = vmatpush1.bf16.msra.mxu0 %v5721
        %8071 = vmatprep.subr.bf16.mxu0 %v5724
        %8072 = vmatpush1.bf16.msra.mxu0 %v5723
        %8073 = vmatprep.subr.bf16.mxu0 %v5726
        %8074 = vmatpush1.bf16.msra.mxu0 %v5725
        %8075 = vmatprep.subr.bf16.mxu0 %v5728
        %8076 = vmatpush1.bf16.msra.mxu0 %v5727
        %8077 = vmatprep.subr.bf16.mxu0 %v5730
        %8078 = vmatpush1.bf16.msra.mxu0 %v5729
        %8079 = vmatprep.subr.bf16.mxu0 %v5732
        %8080 = vmatpush1.bf16.msra.mxu0 %v5731
        %8081 = vmatprep.subr.bf16.mxu0 %v5734
        %8082 = vmatpush1.bf16.msra.mxu0 %v5733
        %8083 = vmatprep.subr.bf16.mxu0 %v5736
        %8084 = vmatpush1.bf16.msra.mxu0 %v5735
        %8085 = vmatprep.subr.bf16.mxu0 %v5738
        %8086 = vmatpush1.bf16.msra.mxu0 %v5737
        %8087 = vmatprep.subr.bf16.mxu0 %v5740
        %8088 = vmatpush1.bf16.msra.mxu0 %v5739
        %8089 = vmatprep.subr.bf16.mxu0 %v5742
        %8090 = vmatpush1.bf16.msra.mxu0 %v5741
        %8091 = vmatprep.subr.bf16.mxu0 %v5744
        %8092 = vmatpush1.bf16.msra.mxu0 %v5743
        %8093 = vmatprep.subr.bf16.mxu0 %v5746
        %8094 = vmatpush1.bf16.msra.mxu0 %v5745
        %8095 = vmatprep.subr.bf16.mxu0 %v5748
        %8096 = vmatpush1.bf16.msra.mxu0 %v5747
        %8097 = vmatprep.subr.bf16.mxu0 %v5750
        %8098 = vmatpush1.bf16.msra.mxu0 %v5749
        %8099 = vmatprep.mubr.bf16.mxu0 %v1650
        %8100 = vmatmul.mubr.bf16.gmra.mrb[0].mxu0 %v1636
        %v8101 = vpop.f32.mrb[0].mxu0
        %v8102 = vadd.f32 %v8061, %v8101
        %v8103 = vpop.f32.mrb[0].mxu0
        %v8104 = vadd.f32 %v8063, %v8103
        %v8105 = vpop.f32.mrb[0].mxu0
        %v8106 = vpop.f32.mrb[0].mxu0
        %8107 = vdwg.mxu0
        %8108 = vmatprep.subr.bf16.mxu0 %v5752
        %8109 = vmatpush1.bf16.msra.mxu0 %v5751
        %8110 = vmatprep.subr.bf16.mxu0 %v5754
        %8111 = vmatpush1.bf16.msra.mxu0 %v5753
        %8112 = vmatprep.subr.bf16.mxu0 %v5756
        %8113 = vmatpush1.bf16.msra.mxu0 %v5755
        %8114 = vmatprep.subr.bf16.mxu0 %v5758
        %8115 = vmatpush1.bf16.msra.mxu0 %v5757
        %8116 = vmatprep.subr.bf16.mxu0 %v5760
        %8117 = vmatpush1.bf16.msra.mxu0 %v5759
        %8118 = vmatprep.subr.bf16.mxu0 %v5762
        %8119 = vmatpush1.bf16.msra.mxu0 %v5761
        %8120 = vmatprep.subr.bf16.mxu0 %v5764
        %8121 = vmatpush1.bf16.msra.mxu0 %v5763
        %8122 = vmatprep.subr.bf16.mxu0 %v5766
        %8123 = vmatpush1.bf16.msra.mxu0 %v5765
        %8124 = vmatprep.subr.bf16.mxu0 %v5768
        %8125 = vmatpush1.bf16.msra.mxu0 %v5767
        %8126 = vmatprep.subr.bf16.mxu0 %v5770
        %8127 = vmatpush1.bf16.msra.mxu0 %v5769
        %8128 = vmatprep.subr.bf16.mxu0 %v5772
        %8129 = vmatpush1.bf16.msra.mxu0 %v5771
        %8130 = vmatprep.subr.bf16.mxu0 %v5774
        %8131 = vmatpush1.bf16.msra.mxu0 %v5773
        %8132 = vmatprep.subr.bf16.mxu0 %v5776
        %8133 = vmatpush1.bf16.msra.mxu0 %v5775
        %8134 = vmatprep.subr.bf16.mxu0 %v5778
        %8135 = vmatpush1.bf16.msra.mxu0 %v5777
        %8136 = vmatprep.subr.bf16.mxu0 %v5780
        %8137 = vmatpush1.bf16.msra.mxu0 %v5779
        %8138 = vmatprep.subr.bf16.mxu0 %v5782
        %8139 = vmatpush1.bf16.msra.mxu0 %v5781
        %8140 = vmatprep.mubr.bf16.mxu0 %v1660
        %8141 = vmatmul.mubr.bf16.gmra.mrb[0].mxu0 %v1658
        %v8142 = vpop.f32.mrb[0].mxu0
        %v8143 = vadd.f32 %v8102, %v8142
        %v8144 = vpop.f32.mrb[0].mxu0
        %v8145 = vadd.f32 %v8104, %v8144
        %v8146 = vpop.f32.mrb[0].mxu0
        %v8147 = vpop.f32.mrb[0].mxu0
        %8148 = vdwg.mxu0
        %8149 = vmatprep.subr.bf16.mxu0 %v5784
        %8150 = vmatpush1.bf16.msra.mxu0 %v5783
        %8151 = vmatprep.subr.bf16.mxu0 %v5786
        %8152 = vmatpush1.bf16.msra.mxu0 %v5785
        %8153 = vmatprep.subr.bf16.mxu0 %v5788
        %8154 = vmatpush1.bf16.msra.mxu0 %v5787
        %8155 = vmatprep.subr.bf16.mxu0 %v5790
        %8156 = vmatpush1.bf16.msra.mxu0 %v5789
        %8157 = vmatprep.subr.bf16.mxu0 %v5792
        %8158 = vmatpush1.bf16.msra.mxu0 %v5791
        %8159 = vmatprep.subr.bf16.mxu0 %v5794
        %8160 = vmatpush1.bf16.msra.mxu0 %v5793
        %8161 = vmatprep.subr.bf16.mxu0 %v5796
        %8162 = vmatpush1.bf16.msra.mxu0 %v5795
        %8163 = vmatprep.subr.bf16.mxu0 %v5798
        %8164 = vmatpush1.bf16.msra.mxu0 %v5797
        %8165 = vmatprep.subr.bf16.mxu0 %v5800
        %8166 = vmatpush1.bf16.msra.mxu0 %v5799
        %8167 = vmatprep.subr.bf16.mxu0 %v5802
        %8168 = vmatpush1.bf16.msra.mxu0 %v5801
        %8169 = vmatprep.subr.bf16.mxu0 %v5804
        %8170 = vmatpush1.bf16.msra.mxu0 %v5803
        %8171 = vmatprep.subr.bf16.mxu0 %v5806
        %8172 = vmatpush1.bf16.msra.mxu0 %v5805
        %8173 = vmatprep.subr.bf16.mxu0 %v5808
        %8174 = vmatpush1.bf16.msra.mxu0 %v5807
        %8175 = vmatprep.subr.bf16.mxu0 %v5810
        %8176 = vmatpush1.bf16.msra.mxu0 %v5809
        %8177 = vmatprep.subr.bf16.mxu0 %v5812
        %8178 = vmatpush1.bf16.msra.mxu0 %v5811
        %8179 = vmatprep.subr.bf16.mxu0 %v5814
        %8180 = vmatpush1.bf16.msra.mxu0 %v5813
        %8181 = vmatprep.mubr.bf16.mxu0 %v1657
        %8182 = vmatmul.mubr.bf16.gmra.mrb[0].mxu0 %v1643
        %v8183 = vpop.f32.mrb[0].mxu0
        %v8184 = vadd.f32 %v8143, %v8183
        %v8185 = vpop.f32.mrb[0].mxu0
        %v8186 = vadd.f32 %v8145, %v8185
        %v8187 = vpop.f32.mrb[0].mxu0
        %v8188 = vpop.f32.mrb[0].mxu0
        %8189 = vdwg.mxu0
        %8190 = vmatprep.subr.bf16.mxu0 %v5816
        %8191 = vmatpush1.bf16.msra.mxu0 %v5815
        %8192 = vmatprep.subr.bf16.mxu0 %v5818
        %8193 = vmatpush1.bf16.msra.mxu0 %v5817
        %8194 = vmatprep.subr.bf16.mxu0 %v5820
        %8195 = vmatpush1.bf16.msra.mxu0 %v5819
        %8196 = vmatprep.subr.bf16.mxu0 %v5822
        %8197 = vmatpush1.bf16.msra.mxu0 %v5821
        %8198 = vmatprep.subr.bf16.mxu0 %v5824
        %8199 = vmatpush1.bf16.msra.mxu0 %v5823
        %8200 = vmatprep.subr.bf16.mxu0 %v5826
        %8201 = vmatpush1.bf16.msra.mxu0 %v5825
        %8202 = vmatprep.subr.bf16.mxu0 %v5828
        %8203 = vmatpush1.bf16.msra.mxu0 %v5827
        %8204 = vmatprep.subr.bf16.mxu0 %v5830
        %8205 = vmatpush1.bf16.msra.mxu0 %v5829
        %8206 = vmatprep.subr.bf16.mxu0 %v5832
        %8207 = vmatpush1.bf16.msra.mxu0 %v5831
        %8208 = vmatprep.subr.bf16.mxu0 %v5834
        %8209 = vmatpush1.bf16.msra.mxu0 %v5833
        %8210 = vmatprep.subr.bf16.mxu0 %v5836
        %8211 = vmatpush1.bf16.msra.mxu0 %v5835
        %8212 = vmatprep.subr.bf16.mxu0 %v5838
        %8213 = vmatpush1.bf16.msra.mxu0 %v5837
        %8214 = vmatprep.subr.bf16.mxu0 %v5840
        %8215 = vmatpush1.bf16.msra.mxu0 %v5839
        %8216 = vmatprep.subr.bf16.mxu0 %v5842
        %8217 = vmatpush1.bf16.msra.mxu0 %v5841
        %8218 = vmatprep.subr.bf16.mxu0 %v5844
        %8219 = vmatpush1.bf16.msra.mxu0 %v5843
        %8220 = vmatprep.subr.bf16.mxu0 %v5846
        %8221 = vmatpush1.bf16.msra.mxu0 %v5845
        %8222 = vmatprep.mubr.bf16.mxu0 %v1661
        %8223 = vmatmul.mubr.bf16.gmra.mrb[0].mxu0 %v1659
        %v8224 = vpop.f32.mrb[0].mxu0
        %v8225 = vadd.f32 %v8184, %v8224
        %v8226 = vpop.f32.mrb[0].mxu0
        %v8227 = vadd.f32 %v8186, %v8226
        %v8228 = vpop.f32.mrb[0].mxu0
        %v8229 = vpop.f32.mrb[0].mxu0
        %8230 = vdwg.mxu0
        %8231 = vmatprep.subr.bf16.mxu0 %v5848
        %8232 = vmatpush1.bf16.msra.mxu0 %v5847
        %8233 = vmatprep.subr.bf16.mxu0 %v5850
        %8234 = vmatpush1.bf16.msra.mxu0 %v5849
        %8235 = vmatprep.subr.bf16.mxu0 %v5852
        %8236 = vmatpush1.bf16.msra.mxu0 %v5851
        %8237 = vmatprep.subr.bf16.mxu0 %v5854
        %8238 = vmatpush1.bf16.msra.mxu0 %v5853
        %8239 = vmatprep.subr.bf16.mxu0 %v5856
        %8240 = vmatpush1.bf16.msra.mxu0 %v5855
        %8241 = vmatprep.subr.bf16.mxu0 %v5858
        %8242 = vmatpush1.bf16.msra.mxu0 %v5857
        %8243 = vmatprep.subr.bf16.mxu0 %v5860
        %8244 = vmatpush1.bf16.msra.mxu0 %v5859
        %8245 = vmatprep.subr.bf16.mxu0 %v5862
        %8246 = vmatpush1.bf16.msra.mxu0 %v5861
        %8247 = vmatprep.subr.bf16.mxu0 %v5864
        %8248 = vmatpush1.bf16.msra.mxu0 %v5863
        %8249 = vmatprep.subr.bf16.mxu0 %v5866
        %8250 = vmatpush1.bf16.msra.mxu0 %v5865
        %8251 = vmatprep.subr.bf16.mxu0 %v5868
        %8252 = vmatpush1.bf16.msra.mxu0 %v5867
        %8253 = vmatprep.subr.bf16.mxu0 %v5870
        %8254 = vmatpush1.bf16.msra.mxu0 %v5869
        %8255 = vmatprep.subr.bf16.mxu0 %v5872
        %8256 = vmatpush1.bf16.msra.mxu0 %v5871
        %8257 = vmatprep.subr.bf16.mxu0 %v5874
        %8258 = vmatpush1.bf16.msra.mxu0 %v5873
        %8259 = vmatprep.subr.bf16.mxu0 %v5876
        %8260 = vmatpush1.bf16.msra.mxu0 %v5875
        %8261 = vmatprep.subr.bf16.mxu0 %v5878
        %8262 = vmatpush1.bf16.msra.mxu0 %v5877
        %8263 = vmatprep.mubr.bf16.mxu0 %v1699
        %8264 = vmatmul.mubr.bf16.gmra.mrb[0].mxu0 %v1685
        %v8265 = vpop.f32.mrb[0].mxu0
        %v8266 = vadd.f32 %v8225, %v8265
        %v8267 = vpop.f32.mrb[0].mxu0
        %v8268 = vadd.f32 %v8227, %v8267
        %v8269 = vpop.f32.mrb[0].mxu0
        %v8270 = vpop.f32.mrb[0].mxu0
        %8271 = vdwg.mxu0
        %8272 = vmatprep.subr.bf16.mxu0 %v5880
        %8273 = vmatpush1.bf16.msra.mxu0 %v5879
        %8274 = vmatprep.subr.bf16.mxu0 %v5882
        %8275 = vmatpush1.bf16.msra.mxu0 %v5881
        %8276 = vmatprep.subr.bf16.mxu0 %v5884
        %8277 = vmatpush1.bf16.msra.mxu0 %v5883
        %8278 = vmatprep.subr.bf16.mxu0 %v5886
        %8279 = vmatpush1.bf16.msra.mxu0 %v5885
        %8280 = vmatprep.subr.bf16.mxu0 %v5888
        %8281 = vmatpush1.bf16.msra.mxu0 %v5887
        %8282 = vmatprep.subr.bf16.mxu0 %v5890
        %8283 = vmatpush1.bf16.msra.mxu0 %v5889
        %8284 = vmatprep.subr.bf16.mxu0 %v5892
        %8285 = vmatpush1.bf16.msra.mxu0 %v5891
        %8286 = vmatprep.subr.bf16.mxu0 %v5894
        %8287 = vmatpush1.bf16.msra.mxu0 %v5893
        %8288 = vmatprep.subr.bf16.mxu0 %v5896
        %8289 = vmatpush1.bf16.msra.mxu0 %v5895
        %8290 = vmatprep.subr.bf16.mxu0 %v5898
        %8291 = vmatpush1.bf16.msra.mxu0 %v5897
        %8292 = vmatprep.subr.bf16.mxu0 %v5900
        %8293 = vmatpush1.bf16.msra.mxu0 %v5899
        %8294 = vmatprep.subr.bf16.mxu0 %v5902
        %8295 = vmatpush1.bf16.msra.mxu0 %v5901
        %8296 = vmatprep.subr.bf16.mxu0 %v5904
        %8297 = vmatpush1.bf16.msra.mxu0 %v5903
        %8298 = vmatprep.subr.bf16.mxu0 %v5906
        %8299 = vmatpush1.bf16.msra.mxu0 %v5905
        %8300 = vmatprep.subr.bf16.mxu0 %v5908
        %8301 = vmatpush1.bf16.msra.mxu0 %v5907
        %8302 = vmatprep.subr.bf16.mxu0 %v5910
        %8303 = vmatpush1.bf16.msra.mxu0 %v5909
        %8304 = vmatprep.mubr.bf16.mxu0 %v1709
        %8305 = vmatmul.mubr.bf16.gmra.mrb[0].mxu0 %v1707
        %v8306 = vpop.f32.mrb[0].mxu0
        %v8307 = vadd.f32 %v8266, %v8306
        %v8308 = vpop.f32.mrb[0].mxu0
        %v8309 = vadd.f32 %v8268, %v8308
        %v8310 = vpop.f32.mrb[0].mxu0
        %v8311 = vpop.f32.mrb[0].mxu0
        %8312 = vdwg.mxu0
        %8313 = vmatprep.subr.bf16.mxu0 %v5912
        %8314 = vmatpush1.bf16.msra.mxu0 %v5911
        %8315 = vmatprep.subr.bf16.mxu0 %v5914
        %8316 = vmatpush1.bf16.msra.mxu0 %v5913
        %8317 = vmatprep.subr.bf16.mxu0 %v5916
        %8318 = vmatpush1.bf16.msra.mxu0 %v5915
        %8319 = vmatprep.subr.bf16.mxu0 %v5918
        %8320 = vmatpush1.bf16.msra.mxu0 %v5917
        %8321 = vmatprep.subr.bf16.mxu0 %v5920
        %8322 = vmatpush1.bf16.msra.mxu0 %v5919
        %8323 = vmatprep.subr.bf16.mxu0 %v5922
        %8324 = vmatpush1.bf16.msra.mxu0 %v5921
        %8325 = vmatprep.subr.bf16.mxu0 %v5924
        %8326 = vmatpush1.bf16.msra.mxu0 %v5923
        %8327 = vmatprep.subr.bf16.mxu0 %v5926
        %8328 = vmatpush1.bf16.msra.mxu0 %v5925
        %8329 = vmatprep.subr.bf16.mxu0 %v5928
        %8330 = vmatpush1.bf16.msra.mxu0 %v5927
        %8331 = vmatprep.subr.bf16.mxu0 %v5930
        %8332 = vmatpush1.bf16.msra.mxu0 %v5929
        %8333 = vmatprep.subr.bf16.mxu0 %v5932
        %8334 = vmatpush1.bf16.msra.mxu0 %v5931
        %8335 = vmatprep.subr.bf16.mxu0 %v5934
        %8336 = vmatpush1.bf16.msra.mxu0 %v5933
        %8337 = vmatprep.subr.bf16.mxu0 %v5936
        %8338 = vmatpush1.bf16.msra.mxu0 %v5935
        %8339 = vmatprep.subr.bf16.mxu0 %v5938
        %8340 = vmatpush1.bf16.msra.mxu0 %v5937
        %8341 = vmatprep.subr.bf16.mxu0 %v5940
        %8342 = vmatpush1.bf16.msra.mxu0 %v5939
        %8343 = vmatprep.subr.bf16.mxu0 %v5942
        %8344 = vmatpush1.bf16.msra.mxu0 %v5941
        %8345 = vmatprep.mubr.bf16.mxu0 %v1706
        %8346 = vmatmul.mubr.bf16.gmra.mrb[0].mxu0 %v1692
        %v8347 = vpop.f32.mrb[0].mxu0
        %v8348 = vadd.f32 %v8307, %v8347
        %v8349 = vpop.f32.mrb[0].mxu0
        %v8350 = vadd.f32 %v8309, %v8349
        %v8351 = vpop.f32.mrb[0].mxu0
        %v8352 = vpop.f32.mrb[0].mxu0
        %8353 = vdwg.mxu0
        %8354 = vmatprep.subr.bf16.mxu0 %v5944
        %8355 = vmatpush1.bf16.msra.mxu0 %v5943
        %8356 = vmatprep.subr.bf16.mxu0 %v5946
        %8357 = vmatpush1.bf16.msra.mxu0 %v5945
        %8358 = vmatprep.subr.bf16.mxu0 %v5948
        %8359 = vmatpush1.bf16.msra.mxu0 %v5947
        %8360 = vmatprep.subr.bf16.mxu0 %v5950
        %8361 = vmatpush1.bf16.msra.mxu0 %v5949
        %8362 = vmatprep.subr.bf16.mxu0 %v5952
        %8363 = vmatpush1.bf16.msra.mxu0 %v5951
        %8364 = vmatprep.subr.bf16.mxu0 %v5954
        %8365 = vmatpush1.bf16.msra.mxu0 %v5953
        %8366 = vmatprep.subr.bf16.mxu0 %v5956
        %8367 = vmatpush1.bf16.msra.mxu0 %v5955
        %8368 = vmatprep.subr.bf16.mxu0 %v5958
        %8369 = vmatpush1.bf16.msra.mxu0 %v5957
        %8370 = vmatprep.subr.bf16.mxu0 %v5960
        %8371 = vmatpush1.bf16.msra.mxu0 %v5959
        %8372 = vmatprep.subr.bf16.mxu0 %v5962
        %8373 = vmatpush1.bf16.msra.mxu0 %v5961
        %8374 = vmatprep.subr.bf16.mxu0 %v5964
        %8375 = vmatpush1.bf16.msra.mxu0 %v5963
        %8376 = vmatprep.subr.bf16.mxu0 %v5966
        %8377 = vmatpush1.bf16.msra.mxu0 %v5965
        %8378 = vmatprep.subr.bf16.mxu0 %v5968
        %8379 = vmatpush1.bf16.msra.mxu0 %v5967
        %8380 = vmatprep.subr.bf16.mxu0 %v5970
        %8381 = vmatpush1.bf16.msra.mxu0 %v5969
        %8382 = vmatprep.subr.bf16.mxu0 %v5972
        %8383 = vmatpush1.bf16.msra.mxu0 %v5971
        %8384 = vmatprep.subr.bf16.mxu0 %v5974
        %8385 = vmatpush1.bf16.msra.mxu0 %v5973
        %8386 = vmatprep.mubr.bf16.mxu0 %v1710
        %8387 = vmatmul.mubr.bf16.gmra.mrb[0].mxu0 %v1708
        %v8388 = vpop.f32.mrb[0].mxu0
        %v8389 = vadd.f32 %v8348, %v8388
        %v8390 = vpop.f32.mrb[0].mxu0
        %v8391 = vadd.f32 %v8350, %v8390
        %v8392 = vpop.f32.mrb[0].mxu0
        %v8393 = vpop.f32.mrb[0].mxu0
        %8394 = vdwg.mxu0
        %8395 = vmatprep.subr.bf16.mxu0 %v5976
        %8396 = vmatpush1.bf16.msra.mxu0 %v5975
        %8397 = vmatprep.subr.bf16.mxu0 %v5978
        %8398 = vmatpush1.bf16.msra.mxu0 %v5977
        %8399 = vmatprep.subr.bf16.mxu0 %v5980
        %8400 = vmatpush1.bf16.msra.mxu0 %v5979
        %8401 = vmatprep.subr.bf16.mxu0 %v5982
        %8402 = vmatpush1.bf16.msra.mxu0 %v5981
        %8403 = vmatprep.subr.bf16.mxu0 %v5984
        %8404 = vmatpush1.bf16.msra.mxu0 %v5983
        %8405 = vmatprep.subr.bf16.mxu0 %v5986
        %8406 = vmatpush1.bf16.msra.mxu0 %v5985
        %8407 = vmatprep.subr.bf16.mxu0 %v5988
        %8408 = vmatpush1.bf16.msra.mxu0 %v5987
        %8409 = vmatprep.subr.bf16.mxu0 %v5990
        %8410 = vmatpush1.bf16.msra.mxu0 %v5989
        %8411 = vmatprep.subr.bf16.mxu0 %v5992
        %8412 = vmatpush1.bf16.msra.mxu0 %v5991
        %8413 = vmatprep.subr.bf16.mxu0 %v5994
        %8414 = vmatpush1.bf16.msra.mxu0 %v5993
        %8415 = vmatprep.subr.bf16.mxu0 %v5996
        %8416 = vmatpush1.bf16.msra.mxu0 %v5995
        %8417 = vmatprep.subr.bf16.mxu0 %v5998
        %8418 = vmatpush1.bf16.msra.mxu0 %v5997
        %8419 = vmatprep.subr.bf16.mxu0 %v6000
        %8420 = vmatpush1.bf16.msra.mxu0 %v5999
        %8421 = vmatprep.subr.bf16.mxu0 %v6002
        %8422 = vmatpush1.bf16.msra.mxu0 %v6001
        %8423 = vmatprep.subr.bf16.mxu0 %v6004
        %8424 = vmatpush1.bf16.msra.mxu0 %v6003
        %8425 = vmatprep.subr.bf16.mxu0 %v6006
        %8426 = vmatpush1.bf16.msra.mxu0 %v6005
        %8427 = vmatprep.mubr.bf16.mxu0 %v1748
        %8428 = vmatmul.mubr.bf16.gmra.mrb[0].mxu0 %v1734
        %v8429 = vpop.f32.mrb[0].mxu0
        %v8430 = vadd.f32 %v8389, %v8429
        %v8431 = vpop.f32.mrb[0].mxu0
        %v8432 = vadd.f32 %v8391, %v8431
        %v8433 = vpop.f32.mrb[0].mxu0
        %v8434 = vpop.f32.mrb[0].mxu0
        %8435 = vdwg.mxu0
        %8436 = vmatprep.subr.bf16.mxu0 %v6008
        %8437 = vmatpush1.bf16.msra.mxu0 %v6007
        %8438 = vmatprep.subr.bf16.mxu0 %v6010
        %8439 = vmatpush1.bf16.msra.mxu0 %v6009
        %8440 = vmatprep.subr.bf16.mxu0 %v6012
        %8441 = vmatpush1.bf16.msra.mxu0 %v6011
        %8442 = vmatprep.subr.bf16.mxu0 %v6014
        %8443 = vmatpush1.bf16.msra.mxu0 %v6013
        %8444 = vmatprep.subr.bf16.mxu0 %v6016
        %8445 = vmatpush1.bf16.msra.mxu0 %v6015
        %8446 = vmatprep.subr.bf16.mxu0 %v6018
        %8447 = vmatpush1.bf16.msra.mxu0 %v6017
        %8448 = vmatprep.subr.bf16.mxu0 %v6020
        %8449 = vmatpush1.bf16.msra.mxu0 %v6019
        %8450 = vmatprep.subr.bf16.mxu0 %v6022
        %8451 = vmatpush1.bf16.msra.mxu0 %v6021
        %8452 = vmatprep.subr.bf16.mxu0 %v6024
        %8453 = vmatpush1.bf16.msra.mxu0 %v6023
        %8454 = vmatprep.subr.bf16.mxu0 %v6026
        %8455 = vmatpush1.bf16.msra.mxu0 %v6025
        %8456 = vmatprep.subr.bf16.mxu0 %v6028
        %8457 = vmatpush1.bf16.msra.mxu0 %v6027
        %8458 = vmatprep.subr.bf16.mxu0 %v6030
        %8459 = vmatpush1.bf16.msra.mxu0 %v6029
        %8460 = vmatprep.subr.bf16.mxu0 %v6032
        %8461 = vmatpush1.bf16.msra.mxu0 %v6031
        %8462 = vmatprep.subr.bf16.mxu0 %v6034
        %8463 = vmatpush1.bf16.msra.mxu0 %v6033
        %8464 = vmatprep.subr.bf16.mxu0 %v6036
        %8465 = vmatpush1.bf16.msra.mxu0 %v6035
        %8466 = vmatprep.subr.bf16.mxu0 %v6038
        %8467 = vmatpush1.bf16.msra.mxu0 %v6037
        %8468 = vmatprep.mubr.bf16.mxu0 %v1758
        %8469 = vmatmul.mubr.bf16.gmra.mrb[0].mxu0 %v1756
        %v8470 = vpop.f32.mrb[0].mxu0
        %v8471 = vadd.f32 %v8430, %v8470
        %v8472 = vpop.f32.mrb[0].mxu0
        %v8473 = vadd.f32 %v8432, %v8472
        %v8474 = vpop.f32.mrb[0].mxu0
        %v8475 = vpop.f32.mrb[0].mxu0
        %8476 = vdwg.mxu0
        %8477 = vmatprep.subr.bf16.mxu0 %v6040
        %8478 = vmatpush1.bf16.msra.mxu0 %v6039
        %8479 = vmatprep.subr.bf16.mxu0 %v6042
        %8480 = vmatpush1.bf16.msra.mxu0 %v6041
        %8481 = vmatprep.subr.bf16.mxu0 %v6044
        %8482 = vmatpush1.bf16.msra.mxu0 %v6043
        %8483 = vmatprep.subr.bf16.mxu0 %v6046
        %8484 = vmatpush1.bf16.msra.mxu0 %v6045
        %8485 = vmatprep.subr.bf16.mxu0 %v6048
        %8486 = vmatpush1.bf16.msra.mxu0 %v6047
        %8487 = vmatprep.subr.bf16.mxu0 %v6050
        %8488 = vmatpush1.bf16.msra.mxu0 %v6049
        %8489 = vmatprep.subr.bf16.mxu0 %v6052
        %8490 = vmatpush1.bf16.msra.mxu0 %v6051
        %8491 = vmatprep.subr.bf16.mxu0 %v6054
        %8492 = vmatpush1.bf16.msra.mxu0 %v6053
        %8493 = vmatprep.subr.bf16.mxu0 %v6056
        %8494 = vmatpush1.bf16.msra.mxu0 %v6055
        %8495 = vmatprep.subr.bf16.mxu0 %v6058
        %8496 = vmatpush1.bf16.msra.mxu0 %v6057
        %8497 = vmatprep.subr.bf16.mxu0 %v6060
        %8498 = vmatpush1.bf16.msra.mxu0 %v6059
        %8499 = vmatprep.subr.bf16.mxu0 %v6062
        %8500 = vmatpush1.bf16.msra.mxu0 %v6061
        %8501 = vmatprep.subr.bf16.mxu0 %v6064
        %8502 = vmatpush1.bf16.msra.mxu0 %v6063
        %8503 = vmatprep.subr.bf16.mxu0 %v6066
        %8504 = vmatpush1.bf16.msra.mxu0 %v6065
        %8505 = vmatprep.subr.bf16.mxu0 %v6068
        %8506 = vmatpush1.bf16.msra.mxu0 %v6067
        %8507 = vmatprep.subr.bf16.mxu0 %v6070
        %8508 = vmatpush1.bf16.msra.mxu0 %v6069
        %8509 = vmatprep.mubr.bf16.mxu0 %v1755
        %8510 = vmatmul.mubr.bf16.gmra.mrb[0].mxu0 %v1741
        %v8511 = vpop.f32.mrb[0].mxu0
        %v8512 = vadd.f32 %v8471, %v8511
        %v8513 = vpop.f32.mrb[0].mxu0
        %v8514 = vadd.f32 %v8473, %v8513
        %v8515 = vpop.f32.mrb[0].mxu0
        %v8516 = vpop.f32.mrb[0].mxu0
        %8517 = vdwg.mxu0
        %8518 = vmatprep.subr.bf16.mxu0 %v6072
        %8519 = vmatpush1.bf16.msra.mxu0 %v6071
        %8520 = vmatprep.subr.bf16.mxu0 %v6074
        %8521 = vmatpush1.bf16.msra.mxu0 %v6073
        %8522 = vmatprep.subr.bf16.mxu0 %v6076
        %8523 = vmatpush1.bf16.msra.mxu0 %v6075
        %8524 = vmatprep.subr.bf16.mxu0 %v6078
        %8525 = vmatpush1.bf16.msra.mxu0 %v6077
        %8526 = vmatprep.subr.bf16.mxu0 %v6080
        %8527 = vmatpush1.bf16.msra.mxu0 %v6079
        %8528 = vmatprep.subr.bf16.mxu0 %v6082
        %8529 = vmatpush1.bf16.msra.mxu0 %v6081
        %8530 = vmatprep.subr.bf16.mxu0 %v6084
        %8531 = vmatpush1.bf16.msra.mxu0 %v6083
        %8532 = vmatprep.subr.bf16.mxu0 %v6086
        %8533 = vmatpush1.bf16.msra.mxu0 %v6085
        %8534 = vmatprep.subr.bf16.mxu0 %v6088
        %8535 = vmatpush1.bf16.msra.mxu0 %v6087
        %8536 = vmatprep.subr.bf16.mxu0 %v6090
        %8537 = vmatpush1.bf16.msra.mxu0 %v6089
        %8538 = vmatprep.subr.bf16.mxu0 %v6092
        %8539 = vmatpush1.bf16.msra.mxu0 %v6091
        %8540 = vmatprep.subr.bf16.mxu0 %v6094
        %8541 = vmatpush1.bf16.msra.mxu0 %v6093
        %8542 = vmatprep.subr.bf16.mxu0 %v6096
        %8543 = vmatpush1.bf16.msra.mxu0 %v6095
        %8544 = vmatprep.subr.bf16.mxu0 %v6098
        %8545 = vmatpush1.bf16.msra.mxu0 %v6097
        %8546 = vmatprep.subr.bf16.mxu0 %v6100
        %8547 = vmatpush1.bf16.msra.mxu0 %v6099
        %8548 = vmatprep.subr.bf16.mxu0 %v6102
        %8549 = vmatpush1.bf16.msra.mxu0 %v6101
        %8550 = vmatprep.mubr.bf16.mxu0 %v1759
        %8551 = vmatmul.mubr.bf16.gmra.mrb[0].mxu0 %v1757
        %v8552 = vpop.f32.mrb[0].mxu0
        %v8553 = vadd.f32 %v8512, %v8552
        %v8554 = vpop.f32.mrb[0].mxu0
        %v8555 = vadd.f32 %v8514, %v8554
        %v8556 = vpop.f32.mrb[0].mxu0
        %v8557 = vpop.f32.mrb[0].mxu0
        %8558 = vdwg.mxu0
        %8559 = vmatprep.subr.bf16.mxu0 %v6104
        %8560 = vmatpush1.bf16.msra.mxu0 %v6103
        %8561 = vmatprep.subr.bf16.mxu0 %v6106
        %8562 = vmatpush1.bf16.msra.mxu0 %v6105
        %8563 = vmatprep.subr.bf16.mxu0 %v6108
        %8564 = vmatpush1.bf16.msra.mxu0 %v6107
        %8565 = vmatprep.subr.bf16.mxu0 %v6110
        %8566 = vmatpush1.bf16.msra.mxu0 %v6109
        %8567 = vmatprep.subr.bf16.mxu0 %v6112
        %8568 = vmatpush1.bf16.msra.mxu0 %v6111
        %8569 = vmatprep.subr.bf16.mxu0 %v6114
        %8570 = vmatpush1.bf16.msra.mxu0 %v6113
        %8571 = vmatprep.subr.bf16.mxu0 %v6116
        %8572 = vmatpush1.bf16.msra.mxu0 %v6115
        %8573 = vmatprep.subr.bf16.mxu0 %v6118
        %8574 = vmatpush1.bf16.msra.mxu0 %v6117
        %8575 = vmatprep.subr.bf16.mxu0 %v6120
        %8576 = vmatpush1.bf16.msra.mxu0 %v6119
        %8577 = vmatprep.subr.bf16.mxu0 %v6122
        %8578 = vmatpush1.bf16.msra.mxu0 %v6121
        %8579 = vmatprep.subr.bf16.mxu0 %v6124
        %8580 = vmatpush1.bf16.msra.mxu0 %v6123
        %8581 = vmatprep.subr.bf16.mxu0 %v6126
        %8582 = vmatpush1.bf16.msra.mxu0 %v6125
        %8583 = vmatprep.subr.bf16.mxu0 %v6128
        %8584 = vmatpush1.bf16.msra.mxu0 %v6127
        %8585 = vmatprep.subr.bf16.mxu0 %v6130
        %8586 = vmatpush1.bf16.msra.mxu0 %v6129
        %8587 = vmatprep.subr.bf16.mxu0 %v6132
        %8588 = vmatpush1.bf16.msra.mxu0 %v6131
        %8589 = vmatprep.subr.bf16.mxu0 %v6134
        %8590 = vmatpush1.bf16.msra.mxu0 %v6133
        %8591 = vmatprep.mubr.bf16.mxu0 %v1797
        %8592 = vmatmul.mubr.bf16.gmra.mrb[0].mxu0 %v1783
        %v8593 = vpop.f32.mrb[0].mxu0
        %v8594 = vadd.f32 %v8553, %v8593
        %v8595 = vpop.f32.mrb[0].mxu0
        %v8596 = vadd.f32 %v8555, %v8595
        %v8597 = vpop.f32.mrb[0].mxu0
        %v8598 = vpop.f32.mrb[0].mxu0
        %8599 = vdwg.mxu0
        %8600 = vmatprep.subr.bf16.mxu0 %v6136
        %8601 = vmatpush1.bf16.msra.mxu0 %v6135
        %8602 = vmatprep.subr.bf16.mxu0 %v6138
        %8603 = vmatpush1.bf16.msra.mxu0 %v6137
        %8604 = vmatprep.subr.bf16.mxu0 %v6140
        %8605 = vmatpush1.bf16.msra.mxu0 %v6139
        %8606 = vmatprep.subr.bf16.mxu0 %v6142
        %8607 = vmatpush1.bf16.msra.mxu0 %v6141
        %8608 = vmatprep.subr.bf16.mxu0 %v6144
        %8609 = vmatpush1.bf16.msra.mxu0 %v6143
        %8610 = vmatprep.subr.bf16.mxu0 %v6146
        %8611 = vmatpush1.bf16.msra.mxu0 %v6145
        %8612 = vmatprep.subr.bf16.mxu0 %v6148
        %8613 = vmatpush1.bf16.msra.mxu0 %v6147
        %8614 = vmatprep.subr.bf16.mxu0 %v6150
        %8615 = vmatpush1.bf16.msra.mxu0 %v6149
        %8616 = vmatprep.subr.bf16.mxu0 %v6152
        %8617 = vmatpush1.bf16.msra.mxu0 %v6151
        %8618 = vmatprep.subr.bf16.mxu0 %v6154
        %8619 = vmatpush1.bf16.msra.mxu0 %v6153
        %8620 = vmatprep.subr.bf16.mxu0 %v6156
        %8621 = vmatpush1.bf16.msra.mxu0 %v6155
        %8622 = vmatprep.subr.bf16.mxu0 %v6158
        %8623 = vmatpush1.bf16.msra.mxu0 %v6157
        %8624 = vmatprep.subr.bf16.mxu0 %v6160
        %8625 = vmatpush1.bf16.msra.mxu0 %v6159
        %8626 = vmatprep.subr.bf16.mxu0 %v6162
        %8627 = vmatpush1.bf16.msra.mxu0 %v6161
        %8628 = vmatprep.subr.bf16.mxu0 %v6164
        %8629 = vmatpush1.bf16.msra.mxu0 %v6163
        %8630 = vmatprep.subr.bf16.mxu0 %v6166
        %8631 = vmatpush1.bf16.msra.mxu0 %v6165
        %8632 = vmatprep.mubr.bf16.mxu0 %v1807
        %8633 = vmatmul.mubr.bf16.gmra.mrb[0].mxu0 %v1805
        %v8634 = vpop.f32.mrb[0].mxu0
        %v8635 = vadd.f32 %v8594, %v8634
        %v8636 = vpop.f32.mrb[0].mxu0
        %v8637 = vadd.f32 %v8596, %v8636
        %v8638 = vpop.f32.mrb[0].mxu0
        %v8639 = vpop.f32.mrb[0].mxu0
        %8640 = vdwg.mxu0
        %8641 = vmatprep.subr.bf16.mxu0 %v6168
        %8642 = vmatpush1.bf16.msra.mxu0 %v6167
        %8643 = vmatprep.subr.bf16.mxu0 %v6170
        %8644 = vmatpush1.bf16.msra.mxu0 %v6169
        %8645 = vmatprep.subr.bf16.mxu0 %v6172
        %8646 = vmatpush1.bf16.msra.mxu0 %v6171
        %8647 = vmatprep.subr.bf16.mxu0 %v6174
        %8648 = vmatpush1.bf16.msra.mxu0 %v6173
        %8649 = vmatprep.subr.bf16.mxu0 %v6176
        %8650 = vmatpush1.bf16.msra.mxu0 %v6175
        %8651 = vmatprep.subr.bf16.mxu0 %v6178
        %8652 = vmatpush1.bf16.msra.mxu0 %v6177
        %8653 = vmatprep.subr.bf16.mxu0 %v6180
        %8654 = vmatpush1.bf16.msra.mxu0 %v6179
        %8655 = vmatprep.subr.bf16.mxu0 %v6182
        %8656 = vmatpush1.bf16.msra.mxu0 %v6181
        %8657 = vmatprep.subr.bf16.mxu0 %v6184
        %8658 = vmatpush1.bf16.msra.mxu0 %v6183
        %8659 = vmatprep.subr.bf16.mxu0 %v6186
        %8660 = vmatpush1.bf16.msra.mxu0 %v6185
        %8661 = vmatprep.subr.bf16.mxu0 %v6188
        %8662 = vmatpush1.bf16.msra.mxu0 %v6187
        %8663 = vmatprep.subr.bf16.mxu0 %v6190
        %8664 = vmatpush1.bf16.msra.mxu0 %v6189
        %8665 = vmatprep.subr.bf16.mxu0 %v6192
        %8666 = vmatpush1.bf16.msra.mxu0 %v6191
        %8667 = vmatprep.subr.bf16.mxu0 %v6194
        %8668 = vmatpush1.bf16.msra.mxu0 %v6193
        %8669 = vmatprep.subr.bf16.mxu0 %v6196
        %8670 = vmatpush1.bf16.msra.mxu0 %v6195
        %8671 = vmatprep.subr.bf16.mxu0 %v6198
        %8672 = vmatpush1.bf16.msra.mxu0 %v6197
        %8673 = vmatprep.mubr.bf16.mxu0 %v1804
        %8674 = vmatmul.mubr.bf16.gmra.mrb[0].mxu0 %v1790
        %v8675 = vpop.f32.mrb[0].mxu0
        %v8676 = vadd.f32 %v8635, %v8675
        %v8677 = vpop.f32.mrb[0].mxu0
        %v8678 = vadd.f32 %v8637, %v8677
        %v8679 = vpop.f32.mrb[0].mxu0
        %v8680 = vpop.f32.mrb[0].mxu0
        %8681 = vdwg.mxu0
        %8682 = vmatprep.subr.bf16.mxu0 %v6200
        %8683 = vmatpush1.bf16.msra.mxu0 %v6199
        %8684 = vmatprep.subr.bf16.mxu0 %v6202
        %8685 = vmatpush1.bf16.msra.mxu0 %v6201
        %8686 = vmatprep.subr.bf16.mxu0 %v6204
        %8687 = vmatpush1.bf16.msra.mxu0 %v6203
        %8688 = vmatprep.subr.bf16.mxu0 %v6206
        %8689 = vmatpush1.bf16.msra.mxu0 %v6205
        %8690 = vmatprep.subr.bf16.mxu0 %v6208
        %8691 = vmatpush1.bf16.msra.mxu0 %v6207
        %8692 = vmatprep.subr.bf16.mxu0 %v6210
        %8693 = vmatpush1.bf16.msra.mxu0 %v6209
        %8694 = vmatprep.subr.bf16.mxu0 %v6212
        %8695 = vmatpush1.bf16.msra.mxu0 %v6211
        %8696 = vmatprep.subr.bf16.mxu0 %v6214
        %8697 = vmatpush1.bf16.msra.mxu0 %v6213
        %8698 = vmatprep.subr.bf16.mxu0 %v6216
        %8699 = vmatpush1.bf16.msra.mxu0 %v6215
        %8700 = vmatprep.subr.bf16.mxu0 %v6218
        %8701 = vmatpush1.bf16.msra.mxu0 %v6217
        %8702 = vmatprep.subr.bf16.mxu0 %v6220
        %8703 = vmatpush1.bf16.msra.mxu0 %v6219
        %8704 = vmatprep.subr.bf16.mxu0 %v6222
        %8705 = vmatpush1.bf16.msra.mxu0 %v6221
        %8706 = vmatprep.subr.bf16.mxu0 %v6224
        %8707 = vmatpush1.bf16.msra.mxu0 %v6223
        %8708 = vmatprep.subr.bf16.mxu0 %v6226
        %8709 = vmatpush1.bf16.msra.mxu0 %v6225
        %8710 = vmatprep.subr.bf16.mxu0 %v6228
        %8711 = vmatpush1.bf16.msra.mxu0 %v6227
        %8712 = vmatprep.subr.bf16.mxu0 %v6230
        %8713 = vmatpush1.bf16.msra.mxu0 %v6229
        %8714 = vmatprep.mubr.bf16.mxu0 %v1808
        %8715 = vmatmul.mubr.bf16.gmra.mrb[0].mxu0 %v1806
        %v8716 = vpop.f32.mrb[0].mxu0
        %v8717 = vadd.f32 %v8676, %v8716
        %v8718 = vpop.f32.mrb[0].mxu0
        %v8719 = vadd.f32 %v8678, %v8718
        %v8720 = vpop.f32.mrb[0].mxu0
        %v8721 = vpop.f32.mrb[0].mxu0
        %8722 = vdwg.mxu0
        %8723 = vmatprep.subr.bf16.mxu0 %v6232
        %8724 = vmatpush1.bf16.msra.mxu0 %v6231
        %8725 = vmatprep.subr.bf16.mxu0 %v6234
        %8726 = vmatpush1.bf16.msra.mxu0 %v6233
        %8727 = vmatprep.subr.bf16.mxu0 %v6236
        %8728 = vmatpush1.bf16.msra.mxu0 %v6235
        %8729 = vmatprep.subr.bf16.mxu0 %v6238
        %8730 = vmatpush1.bf16.msra.mxu0 %v6237
        %8731 = vmatprep.subr.bf16.mxu0 %v6240
        %8732 = vmatpush1.bf16.msra.mxu0 %v6239
        %8733 = vmatprep.subr.bf16.mxu0 %v6242
        %8734 = vmatpush1.bf16.msra.mxu0 %v6241
        %8735 = vmatprep.subr.bf16.mxu0 %v6244
        %8736 = vmatpush1.bf16.msra.mxu0 %v6243
        %8737 = vmatprep.subr.bf16.mxu0 %v6246
        %8738 = vmatpush1.bf16.msra.mxu0 %v6245
        %8739 = vmatprep.subr.bf16.mxu0 %v6248
        %8740 = vmatpush1.bf16.msra.mxu0 %v6247
        %8741 = vmatprep.subr.bf16.mxu0 %v6250
        %8742 = vmatpush1.bf16.msra.mxu0 %v6249
        %8743 = vmatprep.subr.bf16.mxu0 %v6252
        %8744 = vmatpush1.bf16.msra.mxu0 %v6251
        %8745 = vmatprep.subr.bf16.mxu0 %v6254
        %8746 = vmatpush1.bf16.msra.mxu0 %v6253
        %8747 = vmatprep.subr.bf16.mxu0 %v6256
        %8748 = vmatpush1.bf16.msra.mxu0 %v6255
        %8749 = vmatprep.subr.bf16.mxu0 %v6258
        %8750 = vmatpush1.bf16.msra.mxu0 %v6257
        %8751 = vmatprep.subr.bf16.mxu0 %v6260
        %8752 = vmatpush1.bf16.msra.mxu0 %v6259
        %8753 = vmatprep.subr.bf16.mxu0 %v6262
        %8754 = vmatpush1.bf16.msra.mxu0 %v6261
        %8755 = vmatprep.mubr.bf16.mxu0 %v1846
        %8756 = vmatmul.mubr.bf16.gmra.mrb[0].mxu0 %v1832
        %v8757 = vpop.f32.mrb[0].mxu0
        %v8758 = vadd.f32 %v8717, %v8757
        %v8759 = vpop.f32.mrb[0].mxu0
        %v8760 = vadd.f32 %v8719, %v8759
        %v8761 = vpop.f32.mrb[0].mxu0
        %v8762 = vpop.f32.mrb[0].mxu0
        %8763 = vdwg.mxu0
        %8764 = vmatprep.subr.bf16.mxu0 %v6264
        %8765 = vmatpush1.bf16.msra.mxu0 %v6263
        %8766 = vmatprep.subr.bf16.mxu0 %v6266
        %8767 = vmatpush1.bf16.msra.mxu0 %v6265
        %8768 = vmatprep.subr.bf16.mxu0 %v6268
        %8769 = vmatpush1.bf16.msra.mxu0 %v6267
        %8770 = vmatprep.subr.bf16.mxu0 %v6270
        %8771 = vmatpush1.bf16.msra.mxu0 %v6269
        %8772 = vmatprep.subr.bf16.mxu0 %v6272
        %8773 = vmatpush1.bf16.msra.mxu0 %v6271
        %8774 = vmatprep.subr.bf16.mxu0 %v6274
        %8775 = vmatpush1.bf16.msra.mxu0 %v6273
        %8776 = vmatprep.subr.bf16.mxu0 %v6276
        %8777 = vmatpush1.bf16.msra.mxu0 %v6275
        %8778 = vmatprep.subr.bf16.mxu0 %v6278
        %8779 = vmatpush1.bf16.msra.mxu0 %v6277
        %8780 = vmatprep.subr.bf16.mxu0 %v6280
        %8781 = vmatpush1.bf16.msra.mxu0 %v6279
        %8782 = vmatprep.subr.bf16.mxu0 %v6282
        %8783 = vmatpush1.bf16.msra.mxu0 %v6281
        %8784 = vmatprep.subr.bf16.mxu0 %v6284
        %8785 = vmatpush1.bf16.msra.mxu0 %v6283
        %8786 = vmatprep.subr.bf16.mxu0 %v6286
        %8787 = vmatpush1.bf16.msra.mxu0 %v6285
        %8788 = vmatprep.subr.bf16.mxu0 %v6288
        %8789 = vmatpush1.bf16.msra.mxu0 %v6287
        %8790 = vmatprep.subr.bf16.mxu0 %v6290
        %8791 = vmatpush1.bf16.msra.mxu0 %v6289
        %8792 = vmatprep.subr.bf16.mxu0 %v6292
        %8793 = vmatpush1.bf16.msra.mxu0 %v6291
        %8794 = vmatprep.subr.bf16.mxu0 %v6294
        %8795 = vmatpush1.bf16.msra.mxu0 %v6293
        %8796 = vmatprep.mubr.bf16.mxu0 %v1856
        %8797 = vmatmul.mubr.bf16.gmra.mrb[0].mxu0 %v1854
        %v8798 = vpop.f32.mrb[0].mxu0
        %v8799 = vadd.f32 %v8758, %v8798
        %v8800 = vpop.f32.mrb[0].mxu0
        %v8801 = vadd.f32 %v8760, %v8800
        %v8802 = vpop.f32.mrb[0].mxu0
        %v8803 = vpop.f32.mrb[0].mxu0
        %8804 = vdwg.mxu0
        %8805 = vmatprep.subr.bf16.mxu0 %v6296
        %8806 = vmatpush1.bf16.msra.mxu0 %v6295
        %8807 = vmatprep.subr.bf16.mxu0 %v6298
        %8808 = vmatpush1.bf16.msra.mxu0 %v6297
        %8809 = vmatprep.subr.bf16.mxu0 %v6300
        %8810 = vmatpush1.bf16.msra.mxu0 %v6299
        %8811 = vmatprep.subr.bf16.mxu0 %v6302
        %8812 = vmatpush1.bf16.msra.mxu0 %v6301
        %8813 = vmatprep.subr.bf16.mxu0 %v6304
        %8814 = vmatpush1.bf16.msra.mxu0 %v6303
        %8815 = vmatprep.subr.bf16.mxu0 %v6306
        %8816 = vmatpush1.bf16.msra.mxu0 %v6305
        %8817 = vmatprep.subr.bf16.mxu0 %v6308
        %8818 = vmatpush1.bf16.msra.mxu0 %v6307
        %8819 = vmatprep.subr.bf16.mxu0 %v6310
        %8820 = vmatpush1.bf16.msra.mxu0 %v6309
        %8821 = vmatprep.subr.bf16.mxu0 %v6312
        %8822 = vmatpush1.bf16.msra.mxu0 %v6311
        %8823 = vmatprep.subr.bf16.mxu0 %v6314
        %8824 = vmatpush1.bf16.msra.mxu0 %v6313
        %8825 = vmatprep.subr.bf16.mxu0 %v6316
        %8826 = vmatpush1.bf16.msra.mxu0 %v6315
        %8827 = vmatprep.subr.bf16.mxu0 %v6318
        %8828 = vmatpush1.bf16.msra.mxu0 %v6317
        %8829 = vmatprep.subr.bf16.mxu0 %v6320
        %8830 = vmatpush1.bf16.msra.mxu0 %v6319
        %8831 = vmatprep.subr.bf16.mxu0 %v6322
        %8832 = vmatpush1.bf16.msra.mxu0 %v6321
        %8833 = vmatprep.subr.bf16.mxu0 %v6324
        %8834 = vmatpush1.bf16.msra.mxu0 %v6323
        %8835 = vmatprep.subr.bf16.mxu0 %v6326
        %8836 = vmatpush1.bf16.msra.mxu0 %v6325
        %8837 = vmatprep.mubr.bf16.mxu0 %v1853
        %8838 = vmatmul.mubr.bf16.gmra.mrb[0].mxu0 %v1839
        %v8839 = vpop.f32.mrb[0].mxu0
        %v8840 = vadd.f32 %v8799, %v8839
        %v8841 = vpop.f32.mrb[0].mxu0
        %v8842 = vadd.f32 %v8801, %v8841
        %v8843 = vpop.f32.mrb[0].mxu0
        %v8844 = vpop.f32.mrb[0].mxu0
        %8845 = vdwg.mxu0
        %8846 = vmatprep.subr.bf16.mxu0 %v6328
        %8847 = vmatpush1.bf16.msra.mxu0 %v6327
        %8848 = vmatprep.subr.bf16.mxu0 %v6330
        %8849 = vmatpush1.bf16.msra.mxu0 %v6329
        %8850 = vmatprep.subr.bf16.mxu0 %v6332
        %8851 = vmatpush1.bf16.msra.mxu0 %v6331
        %8852 = vmatprep.subr.bf16.mxu0 %v6334
        %8853 = vmatpush1.bf16.msra.mxu0 %v6333
        %8854 = vmatprep.subr.bf16.mxu0 %v6336
        %8855 = vmatpush1.bf16.msra.mxu0 %v6335
        %8856 = vmatprep.subr.bf16.mxu0 %v6338
        %8857 = vmatpush1.bf16.msra.mxu0 %v6337
        %8858 = vmatprep.subr.bf16.mxu0 %v6340
        %8859 = vmatpush1.bf16.msra.mxu0 %v6339
        %8860 = vmatprep.subr.bf16.mxu0 %v6342
        %8861 = vmatpush1.bf16.msra.mxu0 %v6341
        %8862 = vmatprep.subr.bf16.mxu0 %v6344
        %8863 = vmatpush1.bf16.msra.mxu0 %v6343
        %8864 = vmatprep.subr.bf16.mxu0 %v6346
        %8865 = vmatpush1.bf16.msra.mxu0 %v6345
        %8866 = vmatprep.subr.bf16.mxu0 %v6348
        %8867 = vmatpush1.bf16.msra.mxu0 %v6347
        %8868 = vmatprep.subr.bf16.mxu0 %v6350
        %8869 = vmatpush1.bf16.msra.mxu0 %v6349
        %8870 = vmatprep.subr.bf16.mxu0 %v6352
        %8871 = vmatpush1.bf16.msra.mxu0 %v6351
        %8872 = vmatprep.subr.bf16.mxu0 %v6354
        %8873 = vmatpush1.bf16.msra.mxu0 %v6353
        %8874 = vmatprep.subr.bf16.mxu0 %v6356
        %8875 = vmatpush1.bf16.msra.mxu0 %v6355
        %8876 = vmatprep.subr.bf16.mxu0 %v6358
        %8877 = vmatpush1.bf16.msra.mxu0 %v6357
        %8878 = vmatprep.mubr.bf16.mxu0 %v1857
        %8879 = vmatmul.mubr.bf16.gmra.mrb[0].mxu0 %v1855
        %v8880 = vpop.f32.mrb[0].mxu0
        %v8881 = vadd.f32 %v8840, %v8880
        %v8882 = vpop.f32.mrb[0].mxu0
        %v8883 = vadd.f32 %v8842, %v8882
        %v8884 = vpop.f32.mrb[0].mxu0
        %v8885 = vpop.f32.mrb[0].mxu0
        %8886 = vdwg.mxu0
        %8887 = vmatprep.subr.bf16.mxu0 %v6360
        %8888 = vmatpush1.bf16.msra.mxu0 %v6359
        %8889 = vmatprep.subr.bf16.mxu0 %v6362
        %8890 = vmatpush1.bf16.msra.mxu0 %v6361
        %8891 = vmatprep.subr.bf16.mxu0 %v6364
        %8892 = vmatpush1.bf16.msra.mxu0 %v6363
        %8893 = vmatprep.subr.bf16.mxu0 %v6366
        %8894 = vmatpush1.bf16.msra.mxu0 %v6365
        %8895 = vmatprep.subr.bf16.mxu0 %v6368
        %8896 = vmatpush1.bf16.msra.mxu0 %v6367
        %8897 = vmatprep.subr.bf16.mxu0 %v6370
        %8898 = vmatpush1.bf16.msra.mxu0 %v6369
        %8899 = vmatprep.subr.bf16.mxu0 %v6372
        %8900 = vmatpush1.bf16.msra.mxu0 %v6371
        %8901 = vmatprep.subr.bf16.mxu0 %v6374
        %8902 = vmatpush1.bf16.msra.mxu0 %v6373
        %8903 = vmatprep.subr.bf16.mxu0 %v6376
        %8904 = vmatpush1.bf16.msra.mxu0 %v6375
        %8905 = vmatprep.subr.bf16.mxu0 %v6378
        %8906 = vmatpush1.bf16.msra.mxu0 %v6377
        %8907 = vmatprep.subr.bf16.mxu0 %v6380
        %8908 = vmatpush1.bf16.msra.mxu0 %v6379
        %8909 = vmatprep.subr.bf16.mxu0 %v6382
        %8910 = vmatpush1.bf16.msra.mxu0 %v6381
        %8911 = vmatprep.subr.bf16.mxu0 %v6384
        %8912 = vmatpush1.bf16.msra.mxu0 %v6383
        %8913 = vmatprep.subr.bf16.mxu0 %v6386
        %8914 = vmatpush1.bf16.msra.mxu0 %v6385
        %8915 = vmatprep.subr.bf16.mxu0 %v6388
        %8916 = vmatpush1.bf16.msra.mxu0 %v6387
        %8917 = vmatprep.subr.bf16.mxu0 %v6390
        %8918 = vmatpush1.bf16.msra.mxu0 %v6389
        %8919 = vmatprep.mubr.bf16.mxu0 %v1895
        %8920 = vmatmul.mubr.bf16.gmra.mrb[0].mxu0 %v1881
        %v8921 = vpop.f32.mrb[0].mxu0
        %v8922 = vadd.f32 %v8881, %v8921
        %v8923 = vpop.f32.mrb[0].mxu0
        %v8924 = vadd.f32 %v8883, %v8923
        %v8925 = vpop.f32.mrb[0].mxu0
        %v8926 = vpop.f32.mrb[0].mxu0
        %8927 = vdwg.mxu0
        %8928 = vmatprep.subr.bf16.mxu0 %v6392
        %8929 = vmatpush1.bf16.msra.mxu0 %v6391
        %8930 = vmatprep.subr.bf16.mxu0 %v6394
        %8931 = vmatpush1.bf16.msra.mxu0 %v6393
        %8932 = vmatprep.subr.bf16.mxu0 %v6396
        %8933 = vmatpush1.bf16.msra.mxu0 %v6395
        %8934 = vmatprep.subr.bf16.mxu0 %v6398
        %8935 = vmatpush1.bf16.msra.mxu0 %v6397
        %8936 = vmatprep.subr.bf16.mxu0 %v6400
        %8937 = vmatpush1.bf16.msra.mxu0 %v6399
        %8938 = vmatprep.subr.bf16.mxu0 %v6402
        %8939 = vmatpush1.bf16.msra.mxu0 %v6401
        %8940 = vmatprep.subr.bf16.mxu0 %v6404
        %8941 = vmatpush1.bf16.msra.mxu0 %v6403
        %8942 = vmatprep.subr.bf16.mxu0 %v6406
        %8943 = vmatpush1.bf16.msra.mxu0 %v6405
        %8944 = vmatprep.subr.bf16.mxu0 %v6408
        %8945 = vmatpush1.bf16.msra.mxu0 %v6407
        %8946 = vmatprep.subr.bf16.mxu0 %v6410
        %8947 = vmatpush1.bf16.msra.mxu0 %v6409
        %8948 = vmatprep.subr.bf16.mxu0 %v6412
        %8949 = vmatpush1.bf16.msra.mxu0 %v6411
        %8950 = vmatprep.subr.bf16.mxu0 %v6414
        %8951 = vmatpush1.bf16.msra.mxu0 %v6413
        %8952 = vmatprep.subr.bf16.mxu0 %v6416
        %8953 = vmatpush1.bf16.msra.mxu0 %v6415
        %8954 = vmatprep.subr.bf16.mxu0 %v6418
        %8955 = vmatpush1.bf16.msra.mxu0 %v6417
        %8956 = vmatprep.subr.bf16.mxu0 %v6420
        %8957 = vmatpush1.bf16.msra.mxu0 %v6419
        %8958 = vmatprep.subr.bf16.mxu0 %v6422
        %8959 = vmatpush1.bf16.msra.mxu0 %v6421
        %8960 = vmatprep.mubr.bf16.mxu0 %v1904
        %8961 = vmatmul.mubr.bf16.gmra.mrb[0].mxu0 %v1903
        %v8962 = vpop.f32.mrb[0].mxu0
        %v8963 = vadd.f32 %v8922, %v8962
        %v8964 = vpop.f32.mrb[0].mxu0
        %v8965 = vadd.f32 %v8924, %v8964
        %v8966 = vpop.f32.mrb[0].mxu0
        %v8967 = vpop.f32.mrb[0].mxu0
        %8968 = vdwg.mxu0
        %8969 = vmatprep.subr.bf16.mxu0 %v6424
        %8970 = vmatpush1.bf16.msra.mxu0 %v6423
        %8971 = vmatprep.subr.bf16.mxu0 %v6426
        %8972 = vmatpush1.bf16.msra.mxu0 %v6425
        %8973 = vmatprep.subr.bf16.mxu0 %v6428
        %8974 = vmatpush1.bf16.msra.mxu0 %v6427
        %8975 = vmatprep.subr.bf16.mxu0 %v6430
        %8976 = vmatpush1.bf16.msra.mxu0 %v6429
        %8977 = vmatprep.subr.bf16.mxu0 %v6432
        %8978 = vmatpush1.bf16.msra.mxu0 %v6431
        %8979 = vmatprep.subr.bf16.mxu0 %v6434
        %8980 = vmatpush1.bf16.msra.mxu0 %v6433
        %8981 = vmatprep.subr.bf16.mxu0 %v6436
        %8982 = vmatpush1.bf16.msra.mxu0 %v6435
        %8983 = vmatprep.subr.bf16.mxu0 %v6438
        %8984 = vmatpush1.bf16.msra.mxu0 %v6437
        %8985 = vmatprep.subr.bf16.mxu0 %v6440
        %8986 = vmatpush1.bf16.msra.mxu0 %v6439
        %8987 = vmatprep.subr.bf16.mxu0 %v6442
        %8988 = vmatpush1.bf16.msra.mxu0 %v6441
        %8989 = vmatprep.subr.bf16.mxu0 %v6444
        %8990 = vmatpush1.bf16.msra.mxu0 %v6443
        %8991 = vmatprep.subr.bf16.mxu0 %v6446
        %8992 = vmatpush1.bf16.msra.mxu0 %v6445
        %8993 = vmatprep.subr.bf16.mxu0 %v6448
        %8994 = vmatpush1.bf16.msra.mxu0 %v6447
        %8995 = vmatprep.subr.bf16.mxu0 %v6450
        %8996 = vmatpush1.bf16.msra.mxu0 %v6449
        %8997 = vmatprep.subr.bf16.mxu0 %v6452
        %8998 = vmatpush1.bf16.msra.mxu0 %v6451
        %8999 = vmatprep.subr.bf16.mxu0 %v6454
        %9000 = vmatpush1.bf16.msra.mxu0 %v6453
        %9001 = vmatprep.mubr.bf16.mxu0 %v1902
        %9002 = vmatmul.mubr.bf16.gmra.mrb[0].mxu0 %v1888
        %v9003 = vpop.f32.mrb[0].mxu0
        %v9004 = vadd.f32 %v8963, %v9003
        %v9005 = vpop.f32.mrb[0].mxu0
        %v9006 = vadd.f32 %v8965, %v9005
        %v9007 = vpop.f32.mrb[0].mxu0
        %v9008 = vpop.f32.mrb[0].mxu0
        %9009 = vdwg.mxu0
        %v9012 = vcombine.low %v9004, %v9006
        %v9014 = vunpack.c.l.s4 1983009808
        %v9015 = vunpack.c.0.s8 %v9014
        %v9016 = vlaneseq
        %v9017 = vshrl.u32 %v9016, 7
        %v9018 = vsub.s32 %v9015, %v9017
        %v9019 = vrot.slane %v9012, %v9018
        %v9021 = vadd.f32 %v327, %v9019
        %9022 = vst [vmem:[#allocation2] sm:$0xf] %v9021
        %p9023 = scmp.eq.s32.totalorder %s24, 2
        // Predicated region
        $region49: #{dqn_forward.5} parent=39 // pred_check
          %p9024 = pneg %p9023
        $region50: #{dqn_forward.5} parent=39 // pred_check_branch
          %9026 = sbr.rel (%p9024) target = $region52
        $region51: #{dqn_forward.5} parent=39 // pred_region
          %v9027 = vld [vmem:[#allocation2] sm:$0xf]
          %v9028 = vld [vmem:[%s310] sm:$0x3]
          %v9030 = vlaneseq
          %v9031 = vshrl.u32 %v9030, 7
          %v9032 = vsub.s32 0, %v9031
          %v9033 = vrot.slane %v9028, %v9032
          %v9034 = vlaneseq
          %v9035 = vshrl.u32 %v9034, 7
          %v9036 = vsub.s32 1, %v9035
          %v9037 = vrot.slane %v9028, %v9036
          %v9038 = vcombine.low %v9033, %v9037
          %v9040 = vunpack.c.l.s4 1983009808
          %v9041 = vunpack.c.0.s8 %v9040
          %v9042 = vlaneseq
          %v9043 = vshrl.u32 %v9042, 7
          %v9044 = vsub.s32 %v9041, %v9043
          %v9045 = vrot.slane %v9038, %v9044
          %v9047 = vadd.f32 %v9027, %v9045
          %v9048 = vmax.f32 %v9047, 0.0
          %v9049 = vld [vmem:[%s316] sm:$0xff]
          %v9050 = vld [vmem:[%s316 + $0x8] sm:$0xff]
          %v9051 = vld [vmem:[%s316 + $0x10] sm:$0xff]
          %v9052 = vld [vmem:[%s316 + $0x18] sm:$0xff]
          %v9053 = vld [vmem:[%s316 + $0x20] sm:$0xff]
          %v9054 = vld [vmem:[%s316 + $0x28] sm:$0xff]
          %v9055 = vld [vmem:[%s316 + $0x30] sm:$0xff]
          %v9056 = vld [vmem:[%s316 + $0x38] sm:$0xff]
          %v9057 = vld [vmem:[%s316 + $0x40] sm:$0xff]
          %v9058 = vld [vmem:[%s316 + $0x48] sm:$0xff]
          %v9059 = vld [vmem:[%s316 + $0x50] sm:$0xff]
          %v9060 = vld [vmem:[%s316 + $0x58] sm:$0xff]
          %v9061 = vld [vmem:[%s316 + $0x60] sm:$0xff]
          %v9062 = vld [vmem:[%s316 + $0x68] sm:$0xff]
          %v9063 = vld [vmem:[%s316 + $0x70] sm:$0xff]
          %v9064 = vld [vmem:[%s316 + $0x78] sm:$0xff]
          %v9065 = vld [vmem:[%s316 + $0x80] sm:$0xff]
          %v9066 = vld [vmem:[%s316 + $0x88] sm:$0xff]
          %v9067 = vld [vmem:[%s316 + $0x90] sm:$0xff]
          %v9068 = vld [vmem:[%s316 + $0x98] sm:$0xff]
          %v9069 = vld [vmem:[%s316 + $0xa0] sm:$0xff]
          %v9070 = vld [vmem:[%s316 + $0xa8] sm:$0xff]
          %v9071 = vld [vmem:[%s316 + $0xb0] sm:$0xff]
          %v9072 = vld [vmem:[%s316 + $0xb8] sm:$0xff]
          %v9073 = vld [vmem:[%s316 + $0xc0] sm:$0xff]
          %v9074 = vld [vmem:[%s316 + $0xc8] sm:$0xff]
          %v9075 = vld [vmem:[%s316 + $0xd0] sm:$0xff]
          %v9076 = vld [vmem:[%s316 + $0xd8] sm:$0xff]
          %v9077 = vld [vmem:[%s316 + $0xe0] sm:$0xff]
          %v9078 = vld [vmem:[%s316 + $0xe8] sm:$0xff]
          %v9079 = vld [vmem:[%s316 + $0xf0] sm:$0xff]
          %v9080 = vld [vmem:[%s316 + $0xf8] sm:$0xff]
          %v9081 = vld [vmem:[%s4] sm:$0x1]
          %v9083 = vlaneseq
          %v9084 = vshrl.u32 %v9083, 7
          %v9085 = vsub.s32 0, %v9084
          %v9086 = vrot.slane %v9081, %v9085
          %v9090 = vunpack.c.l.s4 1983009808
          %v9091 = vunpack.c.0.s8 %v9090
          %v9092 = vlaneseq
          %v9093 = vshrl.u32 %v9092, 7
          %v9094 = vsub.s32 %v9091, %v9093
          %v9095 = vrot.slane %v9048, %v9094
          %v9096 = vcombine.high %v9095, %v9095
          %9099 = vmatprep.subr.mxu0 0.0
          %9100 = vmatpush1.msra.mxu0 %v9049
          %9101 = vmatprep.subr.mxu0 0.0
          %9102 = vmatpush1.msra.mxu0 %v9050
          %9103 = vmatprep.subr.mxu0 0.0
          %9104 = vmatpush1.msra.mxu0 %v9051
          %9105 = vmatprep.subr.mxu0 0.0
          %9106 = vmatpush1.msra.mxu0 %v9052
          %9107 = vmatprep.subr.mxu0 0.0
          %9108 = vmatpush1.msra.mxu0 %v9053
          %9109 = vmatprep.subr.mxu0 0.0
          %9110 = vmatpush1.msra.mxu0 %v9054
          %9111 = vmatprep.subr.mxu0 0.0
          %9112 = vmatpush1.msra.mxu0 %v9055
          %9113 = vmatprep.subr.mxu0 0.0
          %9114 = vmatpush1.msra.mxu0 %v9056
          %9115 = vmatprep.subr.mxu0 0.0
          %9116 = vmatpush1.msra.mxu0 %v9057
          %9117 = vmatprep.subr.mxu0 0.0
          %9118 = vmatpush1.msra.mxu0 %v9058
          %9119 = vmatprep.subr.mxu0 0.0
          %9120 = vmatpush1.msra.mxu0 %v9059
          %9121 = vmatprep.subr.mxu0 0.0
          %9122 = vmatpush1.msra.mxu0 %v9060
          %9123 = vmatprep.subr.mxu0 0.0
          %9124 = vmatpush1.msra.mxu0 %v9061
          %9125 = vmatprep.subr.mxu0 0.0
          %9126 = vmatpush1.msra.mxu0 %v9062
          %9127 = vmatprep.subr.mxu0 0.0
          %9128 = vmatpush1.msra.mxu0 %v9063
          %9129 = vmatprep.subr.mxu0 0.0
          %9130 = vmatpush1.msra.mxu0 %v9064
          %9131 = vmatprep.subr.mxu0 0.0
          %9132 = vmatpush1.msra.mxu0 %v9065
          %9133 = vmatprep.subr.mxu0 0.0
          %9134 = vmatpush1.msra.mxu0 %v9066
          %9135 = vmatprep.subr.mxu0 0.0
          %9136 = vmatpush1.msra.mxu0 %v9067
          %9137 = vmatprep.subr.mxu0 0.0
          %9138 = vmatpush1.msra.mxu0 %v9068
          %9139 = vmatprep.subr.mxu0 0.0
          %9140 = vmatpush1.msra.mxu0 %v9069
          %9141 = vmatprep.subr.mxu0 0.0
          %9142 = vmatpush1.msra.mxu0 %v9070
          %9143 = vmatprep.subr.mxu0 0.0
          %9144 = vmatpush1.msra.mxu0 %v9071
          %9145 = vmatprep.subr.mxu0 0.0
          %9146 = vmatpush1.msra.mxu0 %v9072
          %9147 = vmatprep.subr.mxu0 0.0
          %9148 = vmatpush1.msra.mxu0 %v9073
          %9149 = vmatprep.subr.mxu0 0.0
          %9150 = vmatpush1.msra.mxu0 %v9074
          %9151 = vmatprep.subr.mxu0 0.0
          %9152 = vmatpush1.msra.mxu0 %v9075
          %9153 = vmatprep.subr.mxu0 0.0
          %9154 = vmatpush1.msra.mxu0 %v9076
          %9155 = vmatprep.subr.mxu0 0.0
          %9156 = vmatpush1.msra.mxu0 %v9077
          %9157 = vmatprep.subr.mxu0 0.0
          %9158 = vmatpush1.msra.mxu0 %v9078
          %9159 = vmatprep.subr.mxu0 0.0
          %9160 = vmatpush1.msra.mxu0 %v9079
          %9161 = vmatprep.subr.mxu0 0.0
          %9162 = vmatpush1.msra.mxu0 %v9080
          %9163 = vmatprep.mubr.f32.mxu0 %v9096
          %9164 = vmatmul.mubr.f32.gmra.mrb[0].mxu0 %v9095
          %v9165 = vpop.f32.mrb[0].mxu0
          %v9166 = vadd.f32 %v9086, %v9165
          %v9167 = vpop.f32.mrb[0].mxu0
          %9168 = vdwg.mxu0
          %vm9169 = vcmask 33792
          %9170 = vst.msk [vmem:[%s321] sm:$0x3] %vm9169, %v9166
        $region52: #{dqn_forward.5} parent=39 // pred_fallthru
          _
        %p9171 = scmp.lt.s32.totalorder %s23, 1
        %s9172 = scalar_select %p9171, %s23, 1
        %s9173 = smul.addr %s9172, 2
        %s9174 = scalar_lea.vmem %s5, %s9173
        // Predicated region
        $region53: #{dqn_forward.5} parent=39 // pred_check
          %p9175 = pneg %p176
        $region54: #{dqn_forward.5} parent=39 // pred_check_branch
          %9177 = sbr.rel (%p9175) target = $region56
        $region55: #{dqn_forward.5} parent=39 // pred_region
          _
        $region56: #{dqn_forward.5} parent=39 // pred_fallthru
          _
      $region40: #{dqn_forward.5} parent=5 // pred_fallthru
        _
      %p9178 = scmp.le.s32.totalorder 2, %s14
      // Predicated region
      $region57: #{dqn_forward.5} parent=5 // pred_check
        %p9179 = pneg %p9178
      $region58: #{dqn_forward.5} parent=5 // pred_check_branch
        %9181 = sbr.rel (%p9179) target = $region60
      $region59: #{dqn_forward.5} parent=5 // pred_region
        %s9182 = ssub.s32 %s14, 2
        // Predicated region
        $region61: #{dqn_forward.5} parent=59 // pred_check
          %p9183 = pneg %p182
        $region62: #{dqn_forward.5} parent=59 // pred_check_branch
          %9185 = sbr.rel (%p9183) target = $region64
        $region63: #{dqn_forward.5} parent=59 // pred_region
          %p9186 = scmp.lt.s32.totalorder %s25, 1
          %s9187 = scalar_select %p9186, %s25, 1
          %s9188 = smul.addr %s9187, 2
          %s9189 = scalar_lea.vmem %s5, %s9188
        $region64: #{dqn_forward.5} parent=59 // pred_fallthru
          _
      $region60: #{dqn_forward.5} parent=5 // pred_fallthru
        _
    $region6: #{dqn_forward.5} parent=1 // loop_footer
      %s18 = sadd.s32 1, %s14
    $region7: #{dqn_forward.5} parent=1 // loop_footer_branch
      %13 = sbr.rel target = $region3
    $region8: #{dqn_forward.5} parent=1 // loop_exit
      _
    %9190 = vsyncpa [#allocation4], 1
    %s9191 = scalar_lea.sflag [#allocation4], 1
    %9192 = vsyncpa %s9191, 1

</llo_original>
